<compile_context>
chip_gen: v5e
topology: v5e:2x2
jax: 0.10.0
libtpu: 0.0.40
codegen_flags: <defaults>
</compile_context>

<pallas_src>
import jax
import jax.numpy as jnp
from jax import lax
from jax.experimental import pallas as pl
from jax.experimental.pallas import tpu as pltpu

LANE = 128


# ----------------------------------------------------------------------------
# Pallas kernel: one grid step processes a lane-dense tile of n_tile sequences.
#
#   x_ref     : (T, D, n)   time-major inputs, bf16, batch on lanes
#   tmask_ref : (T, 1, n)   1.0 where t < seq_len else 0.0 (f32)
#   wihf/wihb : (4H, D)     input weights per direction, gate order [i;f;g;o], bf16
#   bf/bb     : (4H, 1)     biases (b_ih + b_hh folded), f32
#   whhf/whhb : (4H, H)     recurrent weights per direction, f32
#   w1        : (A, 2H)     attention W1, f32
#   w2        : (K, A)      attention W2 (K hops), f32
#   out_ref   : (2H, n)     attention-pooled sequence vectors [fwd ; bwd]
#   gin_ref   : (T, 8H, n)  hoisted input-gate projections (bf16), [fwd 4H ; bwd 4H]
#   hseq_ref  : (T, 2H, n)  per-timestep hidden states [h_f ; h_b] (f32)
#   sc_ref    : (T, K, n)   attention scores (f32)
# ----------------------------------------------------------------------------
def _bilstm_multi_att_kernel(x_ref, tmask_ref,
                             wihf_ref, wihb_ref, bf_ref, bb_ref,
                             whhf_ref, whhb_ref, w1_ref, w2_ref,
                             out_ref,
                             gin_ref, hseq_ref, sc_ref):
    T = x_ref.shape[0]
    n = x_ref.shape[2]
    H4, H = whhf_ref.shape                     # (4H, H)
    H2 = 2 * H
    K = w2_ref.shape[0]
    f32 = jnp.float32
    unroll = T <= 64                           # fully unroll short time loops

    # Hoist small weights and loop-invariant broadcasts (JAX does not CSE them).
    wihf = wihf_ref[...]                       # (4H, D) bf16
    wihb = wihb_ref[...]
    bias_f = jnp.broadcast_to(bf_ref[...], (H4, n))   # (4H, n) f32
    bias_b = jnp.broadcast_to(bb_ref[...], (H4, n))
    whhf = whhf_ref[...]                       # (4H, H) f32
    whhb = whhb_ref[...]
    w1 = w1_ref[...]                           # (A, 2H) f32
    w2 = w2_ref[...]                           # (K, A) f32

    # ---- Phase 1 (off the serial path): input gate projections, both dirs ----
    # gin[t, 0:4H] = W_ih_f @ x[t]       + b_f   (fwd time t)
    # gin[t, 4H:8H] = W_ih_b @ x[T-1-t]  + b_b   (bwd time T-1-t)
    def pre_body(t, carry):
        xf = x_ref[t]                          # (D, n) bf16
        xb = x_ref[T - 1 - t]
        gf = jnp.dot(wihf, xf, preferred_element_type=f32) + bias_f
        gb = jnp.dot(wihb, xb, preferred_element_type=f32) + bias_b
        gin_ref[t, 0:H4] = gf.astype(gin_ref.dtype)
        gin_ref[t, H4:2 * H4] = gb.astype(gin_ref.dtype)
        return carry

    lax.fori_loop(0, T, pre_body, 0, unroll=unroll)

    # ---- Phase 2: fused bidirectional recurrence (serial critical path) ------
    def rec_body(s, carry):
        h_f, h_b, c_f, c_b = carry             # (H, n) f32 each, carried in vregs
        t_b = T - 1 - s

        rec_f = jnp.dot(whhf, h_f, preferred_element_type=f32)   # (4H, n)
        rec_b = jnp.dot(whhb, h_b, preferred_element_type=f32)
        g_f = gin_ref[s, 0:H4].astype(f32) + rec_f
        g_b = gin_ref[s, H4:2 * H4].astype(f32) + rec_b

        # sublane-aligned gate slabs (offsets 0, H, 2H, 3H are multiples of 8)
        i_f = jax.nn.sigmoid(g_f[0:H]);        i_b = jax.nn.sigmoid(g_b[0:H])
        f_f = jax.nn.sigmoid(g_f[H:2 * H]);    f_b = jax.nn.sigmoid(g_b[H:2 * H])
        gg_f = jnp.tanh(g_f[2 * H:3 * H]);     gg_b = jnp.tanh(g_b[2 * H:3 * H])
        o_f = jax.nn.sigmoid(g_f[3 * H:4 * H]); o_b = jax.nn.sigmoid(g_b[3 * H:4 * H])

        c_f_new = f_f * c_f + i_f * gg_f
        c_b_new = f_b * c_b + i_b * gg_b
        h_f_new = o_f * jnp.tanh(c_f_new)
        h_b_new = o_b * jnp.tanh(c_b_new)

        # pack_padded semantics: freeze state on padded steps
        m_f = tmask_ref[s]                     # (1, n)
        m_b = tmask_ref[t_b]
        h_f_u = h_f + m_f * (h_f_new - h_f)
        c_f_u = c_f + m_f * (c_f_new - c_f)
        h_b_u = h_b + m_b * (h_b_new - h_b)
        c_b_u = c_b + m_b * (c_b_new - c_b)

        # whole-slab, lane-dense stores of the per-timestep hidden states
        # (no extra masking: padded timesteps are killed by the softmax mask)
        hseq_ref[s, 0:H] = h_f_u
        hseq_ref[t_b, H:H2] = h_b_u
        return (h_f_u, h_b_u, c_f_u, c_b_u)

    z = jnp.zeros((H, n), f32)
    lax.fori_loop(0, T, rec_body, (z, z, z, z), unroll=unroll)

    # ---- Phase 3: multi-hop self-attention (batched over the lane axis) ------
    def att_body(t, carry):
        u = jnp.tanh(jnp.dot(w1, hseq_ref[t], preferred_element_type=f32))   # (A, n)
        sc_ref[t] = jnp.dot(w2, u, preferred_element_type=f32)               # (K, n)
        return carry

    lax.fori_loop(0, T, att_body, 0, unroll=unroll)

    tm = tmask_ref[...]                                   # (T, 1, n)
    sc = sc_ref[...] * tm - 1e30 * (1.0 - tm)             # mask padded timesteps
    sc = sc - jnp.max(sc, axis=0, keepdims=True)
    e = jnp.exp(sc)
    denom = jnp.sum(e, axis=0, keepdims=True)             # (1, K, n)
    att = e * pl.reciprocal(denom, approx=True)           # softmax over time, per hop
    wmean = jnp.sum(att, axis=1, keepdims=True) * (1.0 / K)   # (T, 1, n) mean over hops
    out = jnp.sum(wmean * hseq_ref[...], axis=0)          # (2H, n)
    out_ref[...] = out * tmask_ref[0]                     # zero rows with len == 0


def _round_up(x, m):
    return ((x + m - 1) // m) * m


def lstm_multi_att(x, lens, p, *, seq_tile=256):
    """x: [N, T, D] float, lens: [N] int -> [N, 2H] float32.

    seq_tile: sequences per grid step (lane tile); 256 suits v6e/v7x, 128 v5e.
    The batch is padded up to a multiple of 128 so the kernel is lane-dense.
    """
    N, T, D = x.shape
    H = p["whh_f"].shape[1]
    K = p["w2"].shape[0]
    G = 8 * H

    seq_tile = _round_up(max(seq_tile, LANE), LANE)
    n_pad_lane = _round_up(max(N, 1), LANE)
    n_tile = min(seq_tile, n_pad_lane)
    n_pad = _round_up(n_pad_lane, n_tile)

    # Layout plumbing (plain JAX): time-major, feature-on-sublanes,
    # batch-on-lanes, bf16 matmul inputs, f32 validity mask.
    xt = jnp.transpose(x, (1, 2, 0)).astype(jnp.bfloat16)         # [T, D, N]
    xt = jnp.pad(xt, ((0, 0), (0, 0), (0, n_pad - N)))
    lens_p = jnp.pad(lens.astype(jnp.int32), (0, n_pad - N))
    tmask = (jnp.arange(T, dtype=jnp.int32)[:, None] < lens_p[None, :])
    tmask = tmask.astype(jnp.float32)[:, None, :]                 # [T, 1, N_pad]

    # Rough VMEM budget (scratch + double-buffered tiles), clamped so it stays
    # safe on v7x's 64 MiB VMEM while still lifting v5e's 16 MiB default.
    vmem = (T * G * n_tile * 2                 # gin (bf16)
            + T * 2 * H * n_tile * 4           # hseq (f32)
            + T * 8 * n_tile * 4               # sc (K padded to 8 sublanes)
            + 2 * T * max(D, 8) * n_tile * 2   # x, double-buffered bf16
            + 2 * T * 8 * n_tile * 4           # tmask, double-buffered
            + 2 * 2 * H * n_tile * 4           # out, double-buffered
            + (1 << 20))                       # weights + headroom
    vmem_limit = int(min(max(2 * vmem, 32 * 2**20), 48 * 2**20))

    out = pl.pallas_call(
        _bilstm_multi_att_kernel,
        out_shape=jax.ShapeDtypeStruct((2 * H, n_pad), jnp.float32),
        grid_spec=pltpu.PrefetchScalarGridSpec(
            num_scalar_prefetch=0,
            grid=(n_pad // n_tile,),
            in_specs=[
                pl.BlockSpec((T, D, n_tile), lambda n: (0, 0, n)),   # x (time-major)
                pl.BlockSpec((T, 1, n_tile), lambda n: (0, 0, n)),   # validity mask
                pl.BlockSpec((4 * H, D), lambda n: (0, 0)),          # W_ih fwd
                pl.BlockSpec((4 * H, D), lambda n: (0, 0)),          # W_ih bwd
                pl.BlockSpec((4 * H, 1), lambda n: (0, 0)),          # bias fwd
                pl.BlockSpec((4 * H, 1), lambda n: (0, 0)),          # bias bwd
                pl.BlockSpec((4 * H, H), lambda n: (0, 0)),          # W_hh fwd
                pl.BlockSpec((4 * H, H), lambda n: (0, 0)),          # W_hh bwd
                pl.BlockSpec(p["w1"].shape, lambda n: (0, 0)),       # attention W1
                pl.BlockSpec(p["w2"].shape, lambda n: (0, 0)),       # attention W2
            ],
            out_specs=pl.BlockSpec((2 * H, n_tile), lambda n: (0, n)),
            scratch_shapes=[
                pltpu.VMEM((T, G, n_tile), jnp.bfloat16),   # gin (input projections)
                pltpu.VMEM((T, 2 * H, n_tile), jnp.float32),  # hidden sequence
                pltpu.VMEM((T, K, n_tile), jnp.float32),      # attention scores
            ],
        ),
        compiler_params=pltpu.CompilerParams(
            dimension_semantics=("parallel",),
            vmem_limit_bytes=vmem_limit,
        ),
    )(xt, tmask, p["wih_f"], p["wih_b"], p["b_f"], p["b_b"],
      p["whh_f"], p["whh_b"], p["w1"], p["w2"])
    return jnp.transpose(out)[:N]


# ----------------------------------------------------------------------------
# Weight packing: per-direction unpadded weights in "output-major" orientation
# so the kernel computes W @ x with batch on lanes.  Gate order is [i; f; g; o].
# ----------------------------------------------------------------------------
def pack_lstm_multi_att_params(raw):
    return dict(
        wih_f=raw["wih_f"].astype(jnp.bfloat16),           # (4H, D)
        wih_b=raw["wih_b"].astype(jnp.bfloat16),            # (4H, D)
        b_f=raw["b_f"].reshape(-1, 1).astype(jnp.float32),  # (4H, 1)
        b_b=raw["b_b"].reshape(-1, 1).astype(jnp.float32),
        whh_f=raw["whh_f"].astype(jnp.float32),              # (4H, H)
        whh_b=raw["whh_b"].astype(jnp.float32),
        w1=raw["w1"].astype(jnp.float32),                    # (A, 2H)
        w2=raw["w2"].astype(jnp.float32),                    # (K, A)
    )


def init_lstm_multi_att_params(key, input_size, hidden, att_size, hops):
    ks = jax.random.split(key, 8)
    r = lambda k, s: jax.random.normal(k, s, jnp.float32) * 0.1
    raw = dict(
        wih_f=r(ks[0], (4 * hidden, input_size)),
        whh_f=r(ks[1], (4 * hidden, hidden)),
        b_f=r(ks[2], (4 * hidden,)),            # b_ih + b_hh folded
        wih_b=r(ks[3], (4 * hidden, input_size)),
        whh_b=r(ks[4], (4 * hidden, hidden)),
        b_b=r(ks[5], (4 * hidden,)),
        w1=r(ks[6], (att_size, 2 * hidden)),
        w2=r(ks[7], (hops, att_size)),
    )
    return pack_lstm_multi_att_params(raw)


# ----------------------------------------------------------------------------
# Full BaseModel forward (eval mode).  Returns sentence vectors [B, 2H].
# ----------------------------------------------------------------------------
def base_model_forward(params, products, sen_lens, word_lens):
    B, W, C = products.shape

    # char embedding lookup (plain JAX glue)
    emb = params["char_emb"][products]                              # [B, W, C, E]
    flat_emb = emb.reshape(B * W, C, -1)
    flat_word_lens = word_lens.reshape(B * W)

    # word level: BiLSTM over chars + multi-hop attention (Pallas)
    word_vecs = lstm_multi_att(flat_emb, flat_word_lens, params["word"])   # [B*W, 2H]
    word_vecs = word_vecs.reshape(B, W, -1)

    # filter_sents / make_tokens_att_full: keep first sen_lens[i] words, zero rest
    mask = (jnp.arange(W)[None, :] < sen_lens[:, None])[..., None]
    word_vecs = jnp.where(mask, word_vecs, 0.0)

    # sentence level: BiLSTM over words + multi-hop attention (Pallas)
    sen_vecs = lstm_multi_att(word_vecs, sen_lens, params["sen"])          # [B, 2H]
    return sen_vecs


if __name__ == "__main__":
    key = jax.random.PRNGKey(0)
    opt = dict(char_embedding_dim=16, lstm_hidden_size=16, lstm_num_layers=1,
               attention_size=16, attention_hops=3, drop_out=0.0)
    num_embedding_chars = 32
    B, W, C = 2, 4, 8  # batch, max words, max chars

    k_emb, k_word, k_sen, k_prod = jax.random.split(key, 4)
    params = dict(
        char_emb=jax.random.normal(
            k_emb, (num_embedding_chars, opt["char_embedding_dim"]), jnp.float32) * 0.1,
        word=init_lstm_multi_att_params(
            k_word, opt["char_embedding_dim"], opt["lstm_hidden_size"],
            opt["attention_size"], opt["attention_hops"]),
        sen=init_lstm_multi_att_params(
            k_sen, 2 * opt["lstm_hidden_size"], opt["lstm_hidden_size"],
            opt["attention_size"], opt["attention_hops"]),
    )

    products = jax.random.randint(k_prod, (B, W, C), 1, num_embedding_chars,
                                  dtype=jnp.int32)
    sen_lens = jnp.array([3, 4], dtype=jnp.int32)
    word_lens = jnp.array([[5, 3, 8, 0],
                           [2, 8, 4, 6]], dtype=jnp.int32)

    sen_vecs = base_model_forward(params, products, sen_lens, word_lens)
    sen_vecs = jax.block_until_ready(sen_vecs)
    assert sen_vecs.shape == (B, 2 * opt["lstm_hidden_size"])
    assert bool(jnp.all(jnp.isfinite(sen_vecs)))
    print("KERNEL_OK")
</pallas_src>

<mosaic_0001>
module attributes {stable_mosaic.version = 11 : i64} {
  func.func @_bilstm_multi_att_kernel(%arg0: i32, %arg1: memref<8x16x128xbf16, #tpu.memory_space<vmem>>, %arg2: memref<8x1x128xf32, #tpu.memory_space<vmem>>, %arg3: memref<64x16xbf16, #tpu.memory_space<vmem>>, %arg4: memref<64x16xbf16, #tpu.memory_space<vmem>>, %arg5: memref<64x1xf32, #tpu.memory_space<vmem>>, %arg6: memref<64x1xf32, #tpu.memory_space<vmem>>, %arg7: memref<64x16xf32, #tpu.memory_space<vmem>>, %arg8: memref<64x16xf32, #tpu.memory_space<vmem>>, %arg9: memref<16x32xf32, #tpu.memory_space<vmem>>, %arg10: memref<3x16xf32, #tpu.memory_space<vmem>>, %arg11: memref<32x128xf32, #tpu.memory_space<vmem>>, %arg12: memref<8x128x128xbf16, #tpu.memory_space<vmem>>, %arg13: memref<8x32x128xf32, #tpu.memory_space<vmem>>, %arg14: memref<8x3x128xf32, #tpu.memory_space<vmem>>) attributes {dimension_semantics = [#tpu.dimension_semantics<parallel>], iteration_bounds = array<i64: 1>, scalar_prefetch = 0 : i64, scratch_operands = 3 : i64, tpu.core_type = #tpu.core_type<tc>, window_params = [{transform_indices = @transform_0, window_bounds = array<i64: 8, 16, 128>}, {transform_indices = @transform_1, window_bounds = array<i64: 8, 1, 128>}, {pipeline_mode = #tpu.pipeline_mode<synchronous>, transform_indices = @transform_2, window_bounds = array<i64: 64, 16>}, {pipeline_mode = #tpu.pipeline_mode<synchronous>, transform_indices = @transform_3, window_bounds = array<i64: 64, 16>}, {pipeline_mode = #tpu.pipeline_mode<synchronous>, transform_indices = @transform_4, window_bounds = array<i64: 64, 1>}, {pipeline_mode = #tpu.pipeline_mode<synchronous>, transform_indices = @transform_5, window_bounds = array<i64: 64, 1>}, {pipeline_mode = #tpu.pipeline_mode<synchronous>, transform_indices = @transform_6, window_bounds = array<i64: 64, 16>}, {pipeline_mode = #tpu.pipeline_mode<synchronous>, transform_indices = @transform_7, window_bounds = array<i64: 64, 16>}, {pipeline_mode = #tpu.pipeline_mode<synchronous>, transform_indices = @transform_8, window_bounds = array<i64: 16, 32>}, {pipeline_mode = #tpu.pipeline_mode<synchronous>, transform_indices = @transform_9, window_bounds = array<i64: 3, 16>}, {transform_indices = @transform_10, window_bounds = array<i64: 32, 128>}]} {
    %c0 = arith.constant 0 : index
    %c0_0 = arith.constant 0 : index
    %0 = vector.load %arg3[%c0, %c0_0] : memref<64x16xbf16, #tpu.memory_space<vmem>>, vector<64x16xbf16>
    %c0_1 = arith.constant 0 : index
    %c0_2 = arith.constant 0 : index
    %1 = vector.load %arg4[%c0_1, %c0_2] : memref<64x16xbf16, #tpu.memory_space<vmem>>, vector<64x16xbf16>
    %c0_3 = arith.constant 0 : index
    %c0_4 = arith.constant 0 : index
    %2 = vector.load %arg5[%c0_3, %c0_4] : memref<64x1xf32, #tpu.memory_space<vmem>>, vector<64x1xf32>
    %3 = vector.shape_cast %2 : vector<64x1xf32> to vector<64x1xf32>
    %4 = vector.broadcast %3 : vector<64x1xf32> to vector<64x128xf32>
    %c0_5 = arith.constant 0 : index
    %c0_6 = arith.constant 0 : index
    %5 = vector.load %arg6[%c0_5, %c0_6] : memref<64x1xf32, #tpu.memory_space<vmem>>, vector<64x1xf32>
    %6 = vector.shape_cast %5 : vector<64x1xf32> to vector<64x1xf32>
    %7 = vector.broadcast %6 : vector<64x1xf32> to vector<64x128xf32>
    %c0_7 = arith.constant 0 : index
    %c0_8 = arith.constant 0 : index
    %8 = vector.load %arg7[%c0_7, %c0_8] : memref<64x16xf32, #tpu.memory_space<vmem>>, vector<64x16xf32>
    %c0_9 = arith.constant 0 : index
    %c0_10 = arith.constant 0 : index
    %9 = vector.load %arg8[%c0_9, %c0_10] : memref<64x16xf32, #tpu.memory_space<vmem>>, vector<64x16xf32>
    %c0_11 = arith.constant 0 : index
    %c0_12 = arith.constant 0 : index
    %10 = vector.load %arg9[%c0_11, %c0_12] : memref<16x32xf32, #tpu.memory_space<vmem>>, vector<16x32xf32>
    %c0_13 = arith.constant 0 : index
    %c0_14 = arith.constant 0 : index
    %11 = vector.load %arg10[%c0_13, %c0_14] : memref<3x16xf32, #tpu.memory_space<vmem>>, vector<3x16xf32>
    %c0_i32 = arith.constant 0 : i32
    %12 = arith.index_cast %c0_i32 : i32 to index
    %c0_15 = arith.constant 0 : index
    %c0_16 = arith.constant 0 : index
    %13 = vector.load %arg1[%12, %c0_15, %c0_16] : memref<8x16x128xbf16, #tpu.memory_space<vmem>>, vector<1x16x128xbf16>
    %14 = vector.shape_cast %13 : vector<1x16x128xbf16> to vector<16x128xbf16>
    %c7_i32 = arith.constant 7 : i32
    %15 = arith.subi %c7_i32, %c0_i32 : i32
    %16 = arith.index_cast %15 : i32 to index
    %c0_17 = arith.constant 0 : index
    %c0_18 = arith.constant 0 : index
    %17 = vector.load %arg1[%16, %c0_17, %c0_18] : memref<8x16x128xbf16, #tpu.memory_space<vmem>>, vector<1x16x128xbf16>
    %18 = vector.shape_cast %17 : vector<1x16x128xbf16> to vector<16x128xbf16>
    %cst = arith.constant dense<0.000000e+00> : vector<64x128xf32>
    %19 = tpu.matmul %0, %14, %cst {dimension_numbers = #tpu.dot_dimension_numbers<[1], [0], [0], [1], [0, 0, 1, 1], [], []>} : vector<64x16xbf16>, vector<16x128xbf16>, vector<64x128xf32> -> vector<64x128xf32>
    %20 = arith.addf %19, %4 : vector<64x128xf32>
    %cst_19 = arith.constant dense<0.000000e+00> : vector<64x128xf32>
    %21 = tpu.matmul %1, %18, %cst_19 {dimension_numbers = #tpu.dot_dimension_numbers<[1], [0], [0], [1], [0, 0, 1, 1], [], []>} : vector<64x16xbf16>, vector<16x128xbf16>, vector<64x128xf32> -> vector<64x128xf32>
    %22 = arith.addf %21, %7 : vector<64x128xf32>
    %23 = arith.truncf %20 : vector<64x128xf32> to vector<64x128xbf16>
    %24 = arith.index_cast %c0_i32 : i32 to index
    %c0_20 = arith.constant 0 : index
    %c0_21 = arith.constant 0 : index
    %25 = vector.load %arg12[%24, %c0_20, %c0_21] : memref<8x128x128xbf16, #tpu.memory_space<vmem>>, vector<1x64x128xbf16>
    %26 = vector.shape_cast %25 : vector<1x64x128xbf16> to vector<64x128xbf16>
    %27 = vector.shape_cast %23 : vector<64x128xbf16> to vector<1x64x128xbf16>
    tpu.vector_store %arg12[%24, %c0_20, %c0_21], %27 {strides = array<i32>} : memref<8x128x128xbf16, #tpu.memory_space<vmem>>, vector<1x64x128xbf16>,
    %28 = arith.truncf %22 : vector<64x128xf32> to vector<64x128xbf16>
    %29 = arith.index_cast %c0_i32 : i32 to index
    %c64 = arith.constant 64 : index
    %c0_22 = arith.constant 0 : index
    %30 = vector.load %arg12[%29, %c64, %c0_22] : memref<8x128x128xbf16, #tpu.memory_space<vmem>>, vector<1x64x128xbf16>
    %31 = vector.shape_cast %30 : vector<1x64x128xbf16> to vector<64x128xbf16>
    %32 = vector.shape_cast %28 : vector<64x128xbf16> to vector<1x64x128xbf16>
    tpu.vector_store %arg12[%29, %c64, %c0_22], %32 {strides = array<i32>} : memref<8x128x128xbf16, #tpu.memory_space<vmem>>, vector<1x64x128xbf16>,
    %c1_i32 = arith.constant 1 : i32
    %33 = arith.index_cast %c1_i32 : i32 to index
    %c0_23 = arith.constant 0 : index
    %c0_24 = arith.constant 0 : index
    %34 = vector.load %arg1[%33, %c0_23, %c0_24] : memref<8x16x128xbf16, #tpu.memory_space<vmem>>, vector<1x16x128xbf16>
    %35 = vector.shape_cast %34 : vector<1x16x128xbf16> to vector<16x128xbf16>
    %c7_i32_25 = arith.constant 7 : i32
    %36 = arith.subi %c7_i32_25, %c1_i32 : i32
    %37 = arith.index_cast %36 : i32 to index
    %c0_26 = arith.constant 0 : index
    %c0_27 = arith.constant 0 : index
    %38 = vector.load %arg1[%37, %c0_26, %c0_27] : memref<8x16x128xbf16, #tpu.memory_space<vmem>>, vector<1x16x128xbf16>
    %39 = vector.shape_cast %38 : vector<1x16x128xbf16> to vector<16x128xbf16>
    %cst_28 = arith.constant dense<0.000000e+00> : vector<64x128xf32>
    %40 = tpu.matmul %0, %35, %cst_28 {dimension_numbers = #tpu.dot_dimension_numbers<[1], [0], [0], [1], [0, 0, 1, 1], [], []>} : vector<64x16xbf16>, vector<16x128xbf16>, vector<64x128xf32> -> vector<64x128xf32>
    %41 = arith.addf %40, %4 : vector<64x128xf32>
    %cst_29 = arith.constant dense<0.000000e+00> : vector<64x128xf32>
    %42 = tpu.matmul %1, %39, %cst_29 {dimension_numbers = #tpu.dot_dimension_numbers<[1], [0], [0], [1], [0, 0, 1, 1], [], []>} : vector<64x16xbf16>, vector<16x128xbf16>, vector<64x128xf32> -> vector<64x128xf32>
    %43 = arith.addf %42, %7 : vector<64x128xf32>
    %44 = arith.truncf %41 : vector<64x128xf32> to vector<64x128xbf16>
    %45 = arith.index_cast %c1_i32 : i32 to index
    %c0_30 = arith.constant 0 : index
    %c0_31 = arith.constant 0 : index
    %46 = vector.load %arg12[%45, %c0_30, %c0_31] : memref<8x128x128xbf16, #tpu.memory_space<vmem>>, vector<1x64x128xbf16>
    %47 = vector.shape_cast %46 : vector<1x64x128xbf16> to vector<64x128xbf16>
    %48 = vector.shape_cast %44 : vector<64x128xbf16> to vector<1x64x128xbf16>
    tpu.vector_store %arg12[%45, %c0_30, %c0_31], %48 {strides = array<i32>} : memref<8x128x128xbf16, #tpu.memory_space<vmem>>, vector<1x64x128xbf16>,
    %49 = arith.truncf %43 : vector<64x128xf32> to vector<64x128xbf16>
    %50 = arith.index_cast %c1_i32 : i32 to index
    %c64_32 = arith.constant 64 : index
    %c0_33 = arith.constant 0 : index
    %51 = vector.load %arg12[%50, %c64_32, %c0_33] : memref<8x128x128xbf16, #tpu.memory_space<vmem>>, vector<1x64x128xbf16>
    %52 = vector.shape_cast %51 : vector<1x64x128xbf16> to vector<64x128xbf16>
    %53 = vector.shape_cast %49 : vector<64x128xbf16> to vector<1x64x128xbf16>
    tpu.vector_store %arg12[%50, %c64_32, %c0_33], %53 {strides = array<i32>} : memref<8x128x128xbf16, #tpu.memory_space<vmem>>, vector<1x64x128xbf16>,
    %c2_i32 = arith.constant 2 : i32
    %54 = arith.index_cast %c2_i32 : i32 to index
    %c0_34 = arith.constant 0 : index
    %c0_35 = arith.constant 0 : index
    %55 = vector.load %arg1[%54, %c0_34, %c0_35] : memref<8x16x128xbf16, #tpu.memory_space<vmem>>, vector<1x16x128xbf16>
    %56 = vector.shape_cast %55 : vector<1x16x128xbf16> to vector<16x128xbf16>
    %c7_i32_36 = arith.constant 7 : i32
    %57 = arith.subi %c7_i32_36, %c2_i32 : i32
    %58 = arith.index_cast %57 : i32 to index
    %c0_37 = arith.constant 0 : index
    %c0_38 = arith.constant 0 : index
    %59 = vector.load %arg1[%58, %c0_37, %c0_38] : memref<8x16x128xbf16, #tpu.memory_space<vmem>>, vector<1x16x128xbf16>
    %60 = vector.shape_cast %59 : vector<1x16x128xbf16> to vector<16x128xbf16>
    %cst_39 = arith.constant dense<0.000000e+00> : vector<64x128xf32>
    %61 = tpu.matmul %0, %56, %cst_39 {dimension_numbers = #tpu.dot_dimension_numbers<[1], [0], [0], [1], [0, 0, 1, 1], [], []>} : vector<64x16xbf16>, vector<16x128xbf16>, vector<64x128xf32> -> vector<64x128xf32>
    %62 = arith.addf %61, %4 : vector<64x128xf32>
    %cst_40 = arith.constant dense<0.000000e+00> : vector<64x128xf32>
    %63 = tpu.matmul %1, %60, %cst_40 {dimension_numbers = #tpu.dot_dimension_numbers<[1], [0], [0], [1], [0, 0, 1, 1], [], []>} : vector<64x16xbf16>, vector<16x128xbf16>, vector<64x128xf32> -> vector<64x128xf32>
    %64 = arith.addf %63, %7 : vector<64x128xf32>
    %65 = arith.truncf %62 : vector<64x128xf32> to vector<64x128xbf16>
    %66 = arith.index_cast %c2_i32 : i32 to index
    %c0_41 = arith.constant 0 : index
    %c0_42 = arith.constant 0 : index
    %67 = vector.load %arg12[%66, %c0_41, %c0_42] : memref<8x128x128xbf16, #tpu.memory_space<vmem>>, vector<1x64x128xbf16>
    %68 = vector.shape_cast %67 : vector<1x64x128xbf16> to vector<64x128xbf16>
    %69 = vector.shape_cast %65 : vector<64x128xbf16> to vector<1x64x128xbf16>
    tpu.vector_store %arg12[%66, %c0_41, %c0_42], %69 {strides = array<i32>} : memref<8x128x128xbf16, #tpu.memory_space<vmem>>, vector<1x64x128xbf16>,
    %70 = arith.truncf %64 : vector<64x128xf32> to vector<64x128xbf16>
    %71 = arith.index_cast %c2_i32 : i32 to index
    %c64_43 = arith.constant 64 : index
    %c0_44 = arith.constant 0 : index
    %72 = vector.load %arg12[%71, %c64_43, %c0_44] : memref<8x128x128xbf16, #tpu.memory_space<vmem>>, vector<1x64x128xbf16>
    %73 = vector.shape_cast %72 : vector<1x64x128xbf16> to vector<64x128xbf16>
    %74 = vector.shape_cast %70 : vector<64x128xbf16> to vector<1x64x128xbf16>
    tpu.vector_store %arg12[%71, %c64_43, %c0_44], %74 {strides = array<i32>} : memref<8x128x128xbf16, #tpu.memory_space<vmem>>, vector<1x64x128xbf16>,
    %c3_i32 = arith.constant 3 : i32
    %75 = arith.index_cast %c3_i32 : i32 to index
    %c0_45 = arith.constant 0 : index
    %c0_46 = arith.constant 0 : index
    %76 = vector.load %arg1[%75, %c0_45, %c0_46] : memref<8x16x128xbf16, #tpu.memory_space<vmem>>, vector<1x16x128xbf16>
    %77 = vector.shape_cast %76 : vector<1x16x128xbf16> to vector<16x128xbf16>
    %c7_i32_47 = arith.constant 7 : i32
    %78 = arith.subi %c7_i32_47, %c3_i32 : i32
    %79 = arith.index_cast %78 : i32 to index
    %c0_48 = arith.constant 0 : index
    %c0_49 = arith.constant 0 : index
    %80 = vector.load %arg1[%79, %c0_48, %c0_49] : memref<8x16x128xbf16, #tpu.memory_space<vmem>>, vector<1x16x128xbf16>
    %81 = vector.shape_cast %80 : vector<1x16x128xbf16> to vector<16x128xbf16>
    %cst_50 = arith.constant dense<0.000000e+00> : vector<64x128xf32>
    %82 = tpu.matmul %0, %77, %cst_50 {dimension_numbers = #tpu.dot_dimension_numbers<[1], [0], [0], [1], [0, 0, 1, 1], [], []>} : vector<64x16xbf16>, vector<16x128xbf16>, vector<64x128xf32> -> vector<64x128xf32>
    %83 = arith.addf %82, %4 : vector<64x128xf32>
    %cst_51 = arith.constant dense<0.000000e+00> : vector<64x128xf32>
    %84 = tpu.matmul %1, %81, %cst_51 {dimension_numbers = #tpu.dot_dimension_numbers<[1], [0], [0], [1], [0, 0, 1, 1], [], []>} : vector<64x16xbf16>, vector<16x128xbf16>, vector<64x128xf32> -> vector<64x128xf32>
    %85 = arith.addf %84, %7 : vector<64x128xf32>
    %86 = arith.truncf %83 : vector<64x128xf32> to vector<64x128xbf16>
    %87 = arith.index_cast %c3_i32 : i32 to index
    %c0_52 = arith.constant 0 : index
    %c0_53 = arith.constant 0 : index
    %88 = vector.load %arg12[%87, %c0_52, %c0_53] : memref<8x128x128xbf16, #tpu.memory_space<vmem>>, vector<1x64x128xbf16>
    %89 = vector.shape_cast %88 : vector<1x64x128xbf16> to vector<64x128xbf16>
    %90 = vector.shape_cast %86 : vector<64x128xbf16> to vector<1x64x128xbf16>
    tpu.vector_store %arg12[%87, %c0_52, %c0_53], %90 {strides = array<i32>} : memref<8x128x128xbf16, #tpu.memory_space<vmem>>, vector<1x64x128xbf16>,
    %91 = arith.truncf %85 : vector<64x128xf32> to vector<64x128xbf16>
    %92 = arith.index_cast %c3_i32 : i32 to index
    %c64_54 = arith.constant 64 : index
    %c0_55 = arith.constant 0 : index
    %93 = vector.load %arg12[%92, %c64_54, %c0_55] : memref<8x128x128xbf16, #tpu.memory_space<vmem>>, vector<1x64x128xbf16>
    %94 = vector.shape_cast %93 : vector<1x64x128xbf16> to vector<64x128xbf16>
    %95 = vector.shape_cast %91 : vector<64x128xbf16> to vector<1x64x128xbf16>
    tpu.vector_store %arg12[%92, %c64_54, %c0_55], %95 {strides = array<i32>} : memref<8x128x128xbf16, #tpu.memory_space<vmem>>, vector<1x64x128xbf16>,
    %c4_i32 = arith.constant 4 : i32
    %96 = arith.index_cast %c4_i32 : i32 to index
    %c0_56 = arith.constant 0 : index
    %c0_57 = arith.constant 0 : index
    %97 = vector.load %arg1[%96, %c0_56, %c0_57] : memref<8x16x128xbf16, #tpu.memory_space<vmem>>, vector<1x16x128xbf16>
    %98 = vector.shape_cast %97 : vector<1x16x128xbf16> to vector<16x128xbf16>
    %c7_i32_58 = arith.constant 7 : i32
    %99 = arith.subi %c7_i32_58, %c4_i32 : i32
    %100 = arith.index_cast %99 : i32 to index
    %c0_59 = arith.constant 0 : index
    %c0_60 = arith.constant 0 : index
    %101 = vector.load %arg1[%100, %c0_59, %c0_60] : memref<8x16x128xbf16, #tpu.memory_space<vmem>>, vector<1x16x128xbf16>
    %102 = vector.shape_cast %101 : vector<1x16x128xbf16> to vector<16x128xbf16>
    %cst_61 = arith.constant dense<0.000000e+00> : vector<64x128xf32>
    %103 = tpu.matmul %0, %98, %cst_61 {dimension_numbers = #tpu.dot_dimension_numbers<[1], [0], [0], [1], [0, 0, 1, 1], [], []>} : vector<64x16xbf16>, vector<16x128xbf16>, vector<64x128xf32> -> vector<64x128xf32>
    %104 = arith.addf %103, %4 : vector<64x128xf32>
    %cst_62 = arith.constant dense<0.000000e+00> : vector<64x128xf32>
    %105 = tpu.matmul %1, %102, %cst_62 {dimension_numbers = #tpu.dot_dimension_numbers<[1], [0], [0], [1], [0, 0, 1, 1], [], []>} : vector<64x16xbf16>, vector<16x128xbf16>, vector<64x128xf32> -> vector<64x128xf32>
    %106 = arith.addf %105, %7 : vector<64x128xf32>
    %107 = arith.truncf %104 : vector<64x128xf32> to vector<64x128xbf16>
    %108 = arith.index_cast %c4_i32 : i32 to index
    %c0_63 = arith.constant 0 : index
    %c0_64 = arith.constant 0 : index
    %109 = vector.load %arg12[%108, %c0_63, %c0_64] : memref<8x128x128xbf16, #tpu.memory_space<vmem>>, vector<1x64x128xbf16>
    %110 = vector.shape_cast %109 : vector<1x64x128xbf16> to vector<64x128xbf16>
    %111 = vector.shape_cast %107 : vector<64x128xbf16> to vector<1x64x128xbf16>
    tpu.vector_store %arg12[%108, %c0_63, %c0_64], %111 {strides = array<i32>} : memref<8x128x128xbf16, #tpu.memory_space<vmem>>, vector<1x64x128xbf16>,
    %112 = arith.truncf %106 : vector<64x128xf32> to vector<64x128xbf16>
    %113 = arith.index_cast %c4_i32 : i32 to index
    %c64_65 = arith.constant 64 : index
    %c0_66 = arith.constant 0 : index
    %114 = vector.load %arg12[%113, %c64_65, %c0_66] : memref<8x128x128xbf16, #tpu.memory_space<vmem>>, vector<1x64x128xbf16>
    %115 = vector.shape_cast %114 : vector<1x64x128xbf16> to vector<64x128xbf16>
    %116 = vector.shape_cast %112 : vector<64x128xbf16> to vector<1x64x128xbf16>
    tpu.vector_store %arg12[%113, %c64_65, %c0_66], %116 {strides = array<i32>} : memref<8x128x128xbf16, #tpu.memory_space<vmem>>, vector<1x64x128xbf16>,
    %c5_i32 = arith.constant 5 : i32
    %117 = arith.index_cast %c5_i32 : i32 to index
    %c0_67 = arith.constant 0 : index
    %c0_68 = arith.constant 0 : index
    %118 = vector.load %arg1[%117, %c0_67, %c0_68] : memref<8x16x128xbf16, #tpu.memory_space<vmem>>, vector<1x16x128xbf16>
    %119 = vector.shape_cast %118 : vector<1x16x128xbf16> to vector<16x128xbf16>
    %c7_i32_69 = arith.constant 7 : i32
    %120 = arith.subi %c7_i32_69, %c5_i32 : i32
    %121 = arith.index_cast %120 : i32 to index
    %c0_70 = arith.constant 0 : index
    %c0_71 = arith.constant 0 : index
    %122 = vector.load %arg1[%121, %c0_70, %c0_71] : memref<8x16x128xbf16, #tpu.memory_space<vmem>>, vector<1x16x128xbf16>
    %123 = vector.shape_cast %122 : vector<1x16x128xbf16> to vector<16x128xbf16>
    %cst_72 = arith.constant dense<0.000000e+00> : vector<64x128xf32>
    %124 = tpu.matmul %0, %119, %cst_72 {dimension_numbers = #tpu.dot_dimension_numbers<[1], [0], [0], [1], [0, 0, 1, 1], [], []>} : vector<64x16xbf16>, vector<16x128xbf16>, vector<64x128xf32> -> vector<64x128xf32>
    %125 = arith.addf %124, %4 : vector<64x128xf32>
    %cst_73 = arith.constant dense<0.000000e+00> : vector<64x128xf32>
    %126 = tpu.matmul %1, %123, %cst_73 {dimension_numbers = #tpu.dot_dimension_numbers<[1], [0], [0], [1], [0, 0, 1, 1], [], []>} : vector<64x16xbf16>, vector<16x128xbf16>, vector<64x128xf32> -> vector<64x128xf32>
    %127 = arith.addf %126, %7 : vector<64x128xf32>
    %128 = arith.truncf %125 : vector<64x128xf32> to vector<64x128xbf16>
    %129 = arith.index_cast %c5_i32 : i32 to index
    %c0_74 = arith.constant 0 : index
    %c0_75 = arith.constant 0 : index
    %130 = vector.load %arg12[%129, %c0_74, %c0_75] : memref<8x128x128xbf16, #tpu.memory_space<vmem>>, vector<1x64x128xbf16>
    %131 = vector.shape_cast %130 : vector<1x64x128xbf16> to vector<64x128xbf16>
    %132 = vector.shape_cast %128 : vector<64x128xbf16> to vector<1x64x128xbf16>
    tpu.vector_store %arg12[%129, %c0_74, %c0_75], %132 {strides = array<i32>} : memref<8x128x128xbf16, #tpu.memory_space<vmem>>, vector<1x64x128xbf16>,
    %133 = arith.truncf %127 : vector<64x128xf32> to vector<64x128xbf16>
    %134 = arith.index_cast %c5_i32 : i32 to index
    %c64_76 = arith.constant 64 : index
    %c0_77 = arith.constant 0 : index
    %135 = vector.load %arg12[%134, %c64_76, %c0_77] : memref<8x128x128xbf16, #tpu.memory_space<vmem>>, vector<1x64x128xbf16>
    %136 = vector.shape_cast %135 : vector<1x64x128xbf16> to vector<64x128xbf16>
    %137 = vector.shape_cast %133 : vector<64x128xbf16> to vector<1x64x128xbf16>
    tpu.vector_store %arg12[%134, %c64_76, %c0_77], %137 {strides = array<i32>} : memref<8x128x128xbf16, #tpu.memory_space<vmem>>, vector<1x64x128xbf16>,
    %c6_i32 = arith.constant 6 : i32
    %138 = arith.index_cast %c6_i32 : i32 to index
    %c0_78 = arith.constant 0 : index
    %c0_79 = arith.constant 0 : index
    %139 = vector.load %arg1[%138, %c0_78, %c0_79] : memref<8x16x128xbf16, #tpu.memory_space<vmem>>, vector<1x16x128xbf16>
    %140 = vector.shape_cast %139 : vector<1x16x128xbf16> to vector<16x128xbf16>
    %c7_i32_80 = arith.constant 7 : i32
    %141 = arith.subi %c7_i32_80, %c6_i32 : i32
    %142 = arith.index_cast %141 : i32 to index
    %c0_81 = arith.constant 0 : index
    %c0_82 = arith.constant 0 : index
    %143 = vector.load %arg1[%142, %c0_81, %c0_82] : memref<8x16x128xbf16, #tpu.memory_space<vmem>>, vector<1x16x128xbf16>
    %144 = vector.shape_cast %143 : vector<1x16x128xbf16> to vector<16x128xbf16>
    %cst_83 = arith.constant dense<0.000000e+00> : vector<64x128xf32>
    %145 = tpu.matmul %0, %140, %cst_83 {dimension_numbers = #tpu.dot_dimension_numbers<[1], [0], [0], [1], [0, 0, 1, 1], [], []>} : vector<64x16xbf16>, vector<16x128xbf16>, vector<64x128xf32> -> vector<64x128xf32>
    %146 = arith.addf %145, %4 : vector<64x128xf32>
    %cst_84 = arith.constant dense<0.000000e+00> : vector<64x128xf32>
    %147 = tpu.matmul %1, %144, %cst_84 {dimension_numbers = #tpu.dot_dimension_numbers<[1], [0], [0], [1], [0, 0, 1, 1], [], []>} : vector<64x16xbf16>, vector<16x128xbf16>, vector<64x128xf32> -> vector<64x128xf32>
    %148 = arith.addf %147, %7 : vector<64x128xf32>
    %149 = arith.truncf %146 : vector<64x128xf32> to vector<64x128xbf16>
    %150 = arith.index_cast %c6_i32 : i32 to index
    %c0_85 = arith.constant 0 : index
    %c0_86 = arith.constant 0 : index
    %151 = vector.load %arg12[%150, %c0_85, %c0_86] : memref<8x128x128xbf16, #tpu.memory_space<vmem>>, vector<1x64x128xbf16>
    %152 = vector.shape_cast %151 : vector<1x64x128xbf16> to vector<64x128xbf16>
    %153 = vector.shape_cast %149 : vector<64x128xbf16> to vector<1x64x128xbf16>
    tpu.vector_store %arg12[%150, %c0_85, %c0_86], %153 {strides = array<i32>} : memref<8x128x128xbf16, #tpu.memory_space<vmem>>, vector<1x64x128xbf16>,
    %154 = arith.truncf %148 : vector<64x128xf32> to vector<64x128xbf16>
    %155 = arith.index_cast %c6_i32 : i32 to index
    %c64_87 = arith.constant 64 : index
    %c0_88 = arith.constant 0 : index
    %156 = vector.load %arg12[%155, %c64_87, %c0_88] : memref<8x128x128xbf16, #tpu.memory_space<vmem>>, vector<1x64x128xbf16>
    %157 = vector.shape_cast %156 : vector<1x64x128xbf16> to vector<64x128xbf16>
    %158 = vector.shape_cast %154 : vector<64x128xbf16> to vector<1x64x128xbf16>
    tpu.vector_store %arg12[%155, %c64_87, %c0_88], %158 {strides = array<i32>} : memref<8x128x128xbf16, #tpu.memory_space<vmem>>, vector<1x64x128xbf16>,
    %c7_i32_89 = arith.constant 7 : i32
    %159 = arith.index_cast %c7_i32_89 : i32 to index
    %c0_90 = arith.constant 0 : index
    %c0_91 = arith.constant 0 : index
    %160 = vector.load %arg1[%159, %c0_90, %c0_91] : memref<8x16x128xbf16, #tpu.memory_space<vmem>>, vector<1x16x128xbf16>
    %161 = vector.shape_cast %160 : vector<1x16x128xbf16> to vector<16x128xbf16>
    %c7_i32_92 = arith.constant 7 : i32
    %162 = arith.subi %c7_i32_92, %c7_i32_89 : i32
    %163 = arith.index_cast %162 : i32 to index
    %c0_93 = arith.constant 0 : index
    %c0_94 = arith.constant 0 : index
    %164 = vector.load %arg1[%163, %c0_93, %c0_94] : memref<8x16x128xbf16, #tpu.memory_space<vmem>>, vector<1x16x128xbf16>
    %165 = vector.shape_cast %164 : vector<1x16x128xbf16> to vector<16x128xbf16>
    %cst_95 = arith.constant dense<0.000000e+00> : vector<64x128xf32>
    %166 = tpu.matmul %0, %161, %cst_95 {dimension_numbers = #tpu.dot_dimension_numbers<[1], [0], [0], [1], [0, 0, 1, 1], [], []>} : vector<64x16xbf16>, vector<16x128xbf16>, vector<64x128xf32> -> vector<64x128xf32>
    %167 = arith.addf %166, %4 : vector<64x128xf32>
    %cst_96 = arith.constant dense<0.000000e+00> : vector<64x128xf32>
    %168 = tpu.matmul %1, %165, %cst_96 {dimension_numbers = #tpu.dot_dimension_numbers<[1], [0], [0], [1], [0, 0, 1, 1], [], []>} : vector<64x16xbf16>, vector<16x128xbf16>, vector<64x128xf32> -> vector<64x128xf32>
    %169 = arith.addf %168, %7 : vector<64x128xf32>
    %170 = arith.truncf %167 : vector<64x128xf32> to vector<64x128xbf16>
    %171 = arith.index_cast %c7_i32_89 : i32 to index
    %c0_97 = arith.constant 0 : index
    %c0_98 = arith.constant 0 : index
    %172 = vector.load %arg12[%171, %c0_97, %c0_98] : memref<8x128x128xbf16, #tpu.memory_space<vmem>>, vector<1x64x128xbf16>
    %173 = vector.shape_cast %172 : vector<1x64x128xbf16> to vector<64x128xbf16>
    %174 = vector.shape_cast %170 : vector<64x128xbf16> to vector<1x64x128xbf16>
    tpu.vector_store %arg12[%171, %c0_97, %c0_98], %174 {strides = array<i32>} : memref<8x128x128xbf16, #tpu.memory_space<vmem>>, vector<1x64x128xbf16>,
    %175 = arith.truncf %169 : vector<64x128xf32> to vector<64x128xbf16>
    %176 = arith.index_cast %c7_i32_89 : i32 to index
    %c64_99 = arith.constant 64 : index
    %c0_100 = arith.constant 0 : index
    %177 = vector.load %arg12[%176, %c64_99, %c0_100] : memref<8x128x128xbf16, #tpu.memory_space<vmem>>, vector<1x64x128xbf16>
    %178 = vector.shape_cast %177 : vector<1x64x128xbf16> to vector<64x128xbf16>
    %179 = vector.shape_cast %175 : vector<64x128xbf16> to vector<1x64x128xbf16>
    tpu.vector_store %arg12[%176, %c64_99, %c0_100], %179 {strides = array<i32>} : memref<8x128x128xbf16, #tpu.memory_space<vmem>>, vector<1x64x128xbf16>,
    %c8_i32 = arith.constant 8 : i32
    %cst_101 = arith.constant 0.000000e+00 : f32
    %180 = vector.broadcast %cst_101 : f32 to vector<16x128xf32>
    %c0_i32_102 = arith.constant 0 : i32
    %c7_i32_103 = arith.constant 7 : i32
    %181 = arith.subi %c7_i32_103, %c0_i32_102 : i32
    %cst_104 = arith.constant dense<0.000000e+00> : vector<64x128xf32>
    %182 = tpu.matmul %8, %180, %cst_104 {dimension_numbers = #tpu.dot_dimension_numbers<[1], [0], [0], [1], [0, 0, 1, 1], [], []>} : vector<64x16xf32>, vector<16x128xf32>, vector<64x128xf32> -> vector<64x128xf32>
    %cst_105 = arith.constant dense<0.000000e+00> : vector<64x128xf32>
    %183 = tpu.matmul %9, %180, %cst_105 {dimension_numbers = #tpu.dot_dimension_numbers<[1], [0], [0], [1], [0, 0, 1, 1], [], []>} : vector<64x16xf32>, vector<16x128xf32>, vector<64x128xf32> -> vector<64x128xf32>
    %184 = arith.index_cast %c0_i32_102 : i32 to index
    %c0_106 = arith.constant 0 : index
    %c0_107 = arith.constant 0 : index
    %185 = vector.load %arg12[%184, %c0_106, %c0_107] : memref<8x128x128xbf16, #tpu.memory_space<vmem>>, vector<1x64x128xbf16>
    %186 = vector.shape_cast %185 : vector<1x64x128xbf16> to vector<64x128xbf16>
    %187 = arith.extf %186 : vector<64x128xbf16> to vector<64x128xf32>
    %188 = arith.addf %187, %182 : vector<64x128xf32>
    %189 = arith.index_cast %c0_i32_102 : i32 to index
    %c64_108 = arith.constant 64 : index
    %c0_109 = arith.constant 0 : index
    %190 = vector.load %arg12[%189, %c64_108, %c0_109] : memref<8x128x128xbf16, #tpu.memory_space<vmem>>, vector<1x64x128xbf16>
    %191 = vector.shape_cast %190 : vector<1x64x128xbf16> to vector<64x128xbf16>
    %192 = arith.extf %191 : vector<64x128xbf16> to vector<64x128xf32>
    %193 = arith.addf %192, %183 : vector<64x128xf32>
    %194 = vector.extract_strided_slice %188 {offsets = [0, 0], sizes = [16, 128], strides = [1, 1]} : vector<64x128xf32> to vector<16x128xf32>
    %195 = arith.negf %194 : vector<16x128xf32>
    %196 = math.exp %195 : vector<16x128xf32>
    %cst_110 = arith.constant 1.000000e+00 : f32
    %197 = vector.broadcast %cst_110 : f32 to vector<16x128xf32>
    %198 = arith.addf %197, %196 : vector<16x128xf32>
    %199 = arith.divf %197, %198 : vector<16x128xf32>
    %200 = vector.extract_strided_slice %193 {offsets = [0, 0], sizes = [16, 128], strides = [1, 1]} : vector<64x128xf32> to vector<16x128xf32>
    %201 = arith.negf %200 : vector<16x128xf32>
    %202 = math.exp %201 : vector<16x128xf32>
    %cst_111 = arith.constant 1.000000e+00 : f32
    %203 = vector.broadcast %cst_111 : f32 to vector<16x128xf32>
    %204 = arith.addf %203, %202 : vector<16x128xf32>
    %205 = arith.divf %203, %204 : vector<16x128xf32>
    %206 = vector.extract_strided_slice %188 {offsets = [16, 0], sizes = [16, 128], strides = [1, 1]} : vector<64x128xf32> to vector<16x128xf32>
    %207 = arith.negf %206 : vector<16x128xf32>
    %208 = math.exp %207 : vector<16x128xf32>
    %cst_112 = arith.constant 1.000000e+00 : f32
    %209 = vector.broadcast %cst_112 : f32 to vector<16x128xf32>
    %210 = arith.addf %209, %208 : vector<16x128xf32>
    %211 = arith.divf %209, %210 : vector<16x128xf32>
    %212 = vector.extract_strided_slice %193 {offsets = [16, 0], sizes = [16, 128], strides = [1, 1]} : vector<64x128xf32> to vector<16x128xf32>
    %213 = arith.negf %212 : vector<16x128xf32>
    %214 = math.exp %213 : vector<16x128xf32>
    %cst_113 = arith.constant 1.000000e+00 : f32
    %215 = vector.broadcast %cst_113 : f32 to vector<16x128xf32>
    %216 = arith.addf %215, %214 : vector<16x128xf32>
    %217 = arith.divf %215, %216 : vector<16x128xf32>
    %218 = vector.extract_strided_slice %188 {offsets = [32, 0], sizes = [16, 128], strides = [1, 1]} : vector<64x128xf32> to vector<16x128xf32>
    %219 = math.tanh %218 : vector<16x128xf32>
    %220 = vector.extract_strided_slice %193 {offsets = [32, 0], sizes = [16, 128], strides = [1, 1]} : vector<64x128xf32> to vector<16x128xf32>
    %221 = math.tanh %220 : vector<16x128xf32>
    %222 = vector.extract_strided_slice %188 {offsets = [48, 0], sizes = [16, 128], strides = [1, 1]} : vector<64x128xf32> to vector<16x128xf32>
    %223 = arith.negf %222 : vector<16x128xf32>
    %224 = math.exp %223 : vector<16x128xf32>
    %cst_114 = arith.constant 1.000000e+00 : f32
    %225 = vector.broadcast %cst_114 : f32 to vector<16x128xf32>
    %226 = arith.addf %225, %224 : vector<16x128xf32>
    %227 = arith.divf %225, %226 : vector<16x128xf32>
    %228 = vector.extract_strided_slice %193 {offsets = [48, 0], sizes = [16, 128], strides = [1, 1]} : vector<64x128xf32> to vector<16x128xf32>
    %229 = arith.negf %228 : vector<16x128xf32>
    %230 = math.exp %229 : vector<16x128xf32>
    %cst_115 = arith.constant 1.000000e+00 : f32
    %231 = vector.broadcast %cst_115 : f32 to vector<16x128xf32>
    %232 = arith.addf %231, %230 : vector<16x128xf32>
    %233 = arith.divf %231, %232 : vector<16x128xf32>
    %234 = arith.mulf %211, %180 : vector<16x128xf32>
    %235 = arith.mulf %199, %219 : vector<16x128xf32>
    %236 = arith.addf %234, %235 : vector<16x128xf32>
    %237 = arith.mulf %217, %180 : vector<16x128xf32>
    %238 = arith.mulf %205, %221 : vector<16x128xf32>
    %239 = arith.addf %237, %238 : vector<16x128xf32>
    %240 = math.tanh %236 : vector<16x128xf32>
    %241 = arith.mulf %227, %240 : vector<16x128xf32>
    %242 = math.tanh %239 : vector<16x128xf32>
    %243 = arith.mulf %233, %242 : vector<16x128xf32>
    %244 = arith.index_cast %c0_i32_102 : i32 to index
    %c0_116 = arith.constant 0 : index
    %c0_117 = arith.constant 0 : index
    %245 = vector.load %arg2[%244, %c0_116, %c0_117] : memref<8x1x128xf32, #tpu.memory_space<vmem>>, vector<1x1x128xf32>
    %246 = vector.shape_cast %245 : vector<1x1x128xf32> to vector<1x128xf32>
    %247 = arith.index_cast %181 : i32 to index
    %c0_118 = arith.constant 0 : index
    %c0_119 = arith.constant 0 : index
    %248 = vector.load %arg2[%247, %c0_118, %c0_119] : memref<8x1x128xf32, #tpu.memory_space<vmem>>, vector<1x1x128xf32>
    %249 = vector.shape_cast %248 : vector<1x1x128xf32> to vector<1x128xf32>
    %250 = arith.subf %241, %180 : vector<16x128xf32>
    %251 = vector.broadcast %246 : vector<1x128xf32> to vector<16x128xf32>
    %252 = arith.mulf %251, %250 : vector<16x128xf32>
    %253 = arith.addf %180, %252 : vector<16x128xf32>
    %254 = arith.subf %236, %180 : vector<16x128xf32>
    %255 = vector.broadcast %246 : vector<1x128xf32> to vector<16x128xf32>
    %256 = arith.mulf %255, %254 : vector<16x128xf32>
    %257 = arith.addf %180, %256 : vector<16x128xf32>
    %258 = arith.subf %243, %180 : vector<16x128xf32>
    %259 = vector.broadcast %249 : vector<1x128xf32> to vector<16x128xf32>
    %260 = arith.mulf %259, %258 : vector<16x128xf32>
    %261 = arith.addf %180, %260 : vector<16x128xf32>
    %262 = arith.subf %239, %180 : vector<16x128xf32>
    %263 = vector.broadcast %249 : vector<1x128xf32> to vector<16x128xf32>
    %264 = arith.mulf %263, %262 : vector<16x128xf32>
    %265 = arith.addf %180, %264 : vector<16x128xf32>
    %266 = arith.index_cast %c0_i32_102 : i32 to index
    %c0_120 = arith.constant 0 : index
    %c0_121 = arith.constant 0 : index
    %267 = vector.load %arg13[%266, %c0_120, %c0_121] : memref<8x32x128xf32, #tpu.memory_space<vmem>>, vector<1x16x128xf32>
    %268 = vector.shape_cast %267 : vector<1x16x128xf32> to vector<16x128xf32>
    %269 = vector.shape_cast %253 : vector<16x128xf32> to vector<1x16x128xf32>
    tpu.vector_store %arg13[%266, %c0_120, %c0_121], %269 {strides = array<i32>} : memref<8x32x128xf32, #tpu.memory_space<vmem>>, vector<1x16x128xf32>,
    %270 = arith.index_cast %181 : i32 to index
    %c16 = arith.constant 16 : index
    %c0_122 = arith.constant 0 : index
    %271 = vector.load %arg13[%270, %c16, %c0_122] : memref<8x32x128xf32, #tpu.memory_space<vmem>>, vector<1x16x128xf32>
    %272 = vector.shape_cast %271 : vector<1x16x128xf32> to vector<16x128xf32>
    %273 = vector.shape_cast %261 : vector<16x128xf32> to vector<1x16x128xf32>
    tpu.vector_store %arg13[%270, %c16, %c0_122], %273 {strides = array<i32>} : memref<8x32x128xf32, #tpu.memory_space<vmem>>, vector<1x16x128xf32>,
    %c1_i32_123 = arith.constant 1 : i32
    %c7_i32_124 = arith.constant 7 : i32
    %274 = arith.subi %c7_i32_124, %c1_i32_123 : i32
    %cst_125 = arith.constant dense<0.000000e+00> : vector<64x128xf32>
    %275 = tpu.matmul %8, %253, %cst_125 {dimension_numbers = #tpu.dot_dimension_numbers<[1], [0], [0], [1], [0, 0, 1, 1], [], []>} : vector<64x16xf32>, vector<16x128xf32>, vector<64x128xf32> -> vector<64x128xf32>
    %cst_126 = arith.constant dense<0.000000e+00> : vector<64x128xf32>
    %276 = tpu.matmul %9, %261, %cst_126 {dimension_numbers = #tpu.dot_dimension_numbers<[1], [0], [0], [1], [0, 0, 1, 1], [], []>} : vector<64x16xf32>, vector<16x128xf32>, vector<64x128xf32> -> vector<64x128xf32>
    %277 = arith.index_cast %c1_i32_123 : i32 to index
    %c0_127 = arith.constant 0 : index
    %c0_128 = arith.constant 0 : index
    %278 = vector.load %arg12[%277, %c0_127, %c0_128] : memref<8x128x128xbf16, #tpu.memory_space<vmem>>, vector<1x64x128xbf16>
    %279 = vector.shape_cast %278 : vector<1x64x128xbf16> to vector<64x128xbf16>
    %280 = arith.extf %279 : vector<64x128xbf16> to vector<64x128xf32>
    %281 = arith.addf %280, %275 : vector<64x128xf32>
    %282 = arith.index_cast %c1_i32_123 : i32 to index
    %c64_129 = arith.constant 64 : index
    %c0_130 = arith.constant 0 : index
    %283 = vector.load %arg12[%282, %c64_129, %c0_130] : memref<8x128x128xbf16, #tpu.memory_space<vmem>>, vector<1x64x128xbf16>
    %284 = vector.shape_cast %283 : vector<1x64x128xbf16> to vector<64x128xbf16>
    %285 = arith.extf %284 : vector<64x128xbf16> to vector<64x128xf32>
    %286 = arith.addf %285, %276 : vector<64x128xf32>
    %287 = vector.extract_strided_slice %281 {offsets = [0, 0], sizes = [16, 128], strides = [1, 1]} : vector<64x128xf32> to vector<16x128xf32>
    %288 = arith.negf %287 : vector<16x128xf32>
    %289 = math.exp %288 : vector<16x128xf32>
    %cst_131 = arith.constant 1.000000e+00 : f32
    %290 = vector.broadcast %cst_131 : f32 to vector<16x128xf32>
    %291 = arith.addf %290, %289 : vector<16x128xf32>
    %292 = arith.divf %290, %291 : vector<16x128xf32>
    %293 = vector.extract_strided_slice %286 {offsets = [0, 0], sizes = [16, 128], strides = [1, 1]} : vector<64x128xf32> to vector<16x128xf32>
    %294 = arith.negf %293 : vector<16x128xf32>
    %295 = math.exp %294 : vector<16x128xf32>
    %cst_132 = arith.constant 1.000000e+00 : f32
    %296 = vector.broadcast %cst_132 : f32 to vector<16x128xf32>
    %297 = arith.addf %296, %295 : vector<16x128xf32>
    %298 = arith.divf %296, %297 : vector<16x128xf32>
    %299 = vector.extract_strided_slice %281 {offsets = [16, 0], sizes = [16, 128], strides = [1, 1]} : vector<64x128xf32> to vector<16x128xf32>
    %300 = arith.negf %299 : vector<16x128xf32>
    %301 = math.exp %300 : vector<16x128xf32>
    %cst_133 = arith.constant 1.000000e+00 : f32
    %302 = vector.broadcast %cst_133 : f32 to vector<16x128xf32>
    %303 = arith.addf %302, %301 : vector<16x128xf32>
    %304 = arith.divf %302, %303 : vector<16x128xf32>
    %305 = vector.extract_strided_slice %286 {offsets = [16, 0], sizes = [16, 128], strides = [1, 1]} : vector<64x128xf32> to vector<16x128xf32>
    %306 = arith.negf %305 : vector<16x128xf32>
    %307 = math.exp %306 : vector<16x128xf32>
    %cst_134 = arith.constant 1.000000e+00 : f32
    %308 = vector.broadcast %cst_134 : f32 to vector<16x128xf32>
    %309 = arith.addf %308, %307 : vector<16x128xf32>
    %310 = arith.divf %308, %309 : vector<16x128xf32>
    %311 = vector.extract_strided_slice %281 {offsets = [32, 0], sizes = [16, 128], strides = [1, 1]} : vector<64x128xf32> to vector<16x128xf32>
    %312 = math.tanh %311 : vector<16x128xf32>
    %313 = vector.extract_strided_slice %286 {offsets = [32, 0], sizes = [16, 128], strides = [1, 1]} : vector<64x128xf32> to vector<16x128xf32>
    %314 = math.tanh %313 : vector<16x128xf32>
    %315 = vector.extract_strided_slice %281 {offsets = [48, 0], sizes = [16, 128], strides = [1, 1]} : vector<64x128xf32> to vector<16x128xf32>
    %316 = arith.negf %315 : vector<16x128xf32>
    %317 = math.exp %316 : vector<16x128xf32>
    %cst_135 = arith.constant 1.000000e+00 : f32
    %318 = vector.broadcast %cst_135 : f32 to vector<16x128xf32>
    %319 = arith.addf %318, %317 : vector<16x128xf32>
    %320 = arith.divf %318, %319 : vector<16x128xf32>
    %321 = vector.extract_strided_slice %286 {offsets = [48, 0], sizes = [16, 128], strides = [1, 1]} : vector<64x128xf32> to vector<16x128xf32>
    %322 = arith.negf %321 : vector<16x128xf32>
    %323 = math.exp %322 : vector<16x128xf32>
    %cst_136 = arith.constant 1.000000e+00 : f32
    %324 = vector.broadcast %cst_136 : f32 to vector<16x128xf32>
    %325 = arith.addf %324, %323 : vector<16x128xf32>
    %326 = arith.divf %324, %325 : vector<16x128xf32>
    %327 = arith.mulf %304, %257 : vector<16x128xf32>
    %328 = arith.mulf %292, %312 : vector<16x128xf32>
    %329 = arith.addf %327, %328 : vector<16x128xf32>
    %330 = arith.mulf %310, %265 : vector<16x128xf32>
    %331 = arith.mulf %298, %314 : vector<16x128xf32>
    %332 = arith.addf %330, %331 : vector<16x128xf32>
    %333 = math.tanh %329 : vector<16x128xf32>
    %334 = arith.mulf %320, %333 : vector<16x128xf32>
    %335 = math.tanh %332 : vector<16x128xf32>
    %336 = arith.mulf %326, %335 : vector<16x128xf32>
    %337 = arith.index_cast %c1_i32_123 : i32 to index
    %c0_137 = arith.constant 0 : index
    %c0_138 = arith.constant 0 : index
    %338 = vector.load %arg2[%337, %c0_137, %c0_138] : memref<8x1x128xf32, #tpu.memory_space<vmem>>, vector<1x1x128xf32>
    %339 = vector.shape_cast %338 : vector<1x1x128xf32> to vector<1x128xf32>
    %340 = arith.index_cast %274 : i32 to index
    %c0_139 = arith.constant 0 : index
    %c0_140 = arith.constant 0 : index
    %341 = vector.load %arg2[%340, %c0_139, %c0_140] : memref<8x1x128xf32, #tpu.memory_space<vmem>>, vector<1x1x128xf32>
    %342 = vector.shape_cast %341 : vector<1x1x128xf32> to vector<1x128xf32>
    %343 = arith.subf %334, %253 : vector<16x128xf32>
    %344 = vector.broadcast %339 : vector<1x128xf32> to vector<16x128xf32>
    %345 = arith.mulf %344, %343 : vector<16x128xf32>
    %346 = arith.addf %253, %345 : vector<16x128xf32>
    %347 = arith.subf %329, %257 : vector<16x128xf32>
    %348 = vector.broadcast %339 : vector<1x128xf32> to vector<16x128xf32>
    %349 = arith.mulf %348, %347 : vector<16x128xf32>
    %350 = arith.addf %257, %349 : vector<16x128xf32>
    %351 = arith.subf %336, %261 : vector<16x128xf32>
    %352 = vector.broadcast %342 : vector<1x128xf32> to vector<16x128xf32>
    %353 = arith.mulf %352, %351 : vector<16x128xf32>
    %354 = arith.addf %261, %353 : vector<16x128xf32>
    %355 = arith.subf %332, %265 : vector<16x128xf32>
    %356 = vector.broadcast %342 : vector<1x128xf32> to vector<16x128xf32>
    %357 = arith.mulf %356, %355 : vector<16x128xf32>
    %358 = arith.addf %265, %357 : vector<16x128xf32>
    %359 = arith.index_cast %c1_i32_123 : i32 to index
    %c0_141 = arith.constant 0 : index
    %c0_142 = arith.constant 0 : index
    %360 = vector.load %arg13[%359, %c0_141, %c0_142] : memref<8x32x128xf32, #tpu.memory_space<vmem>>, vector<1x16x128xf32>
    %361 = vector.shape_cast %360 : vector<1x16x128xf32> to vector<16x128xf32>
    %362 = vector.shape_cast %346 : vector<16x128xf32> to vector<1x16x128xf32>
    tpu.vector_store %arg13[%359, %c0_141, %c0_142], %362 {strides = array<i32>} : memref<8x32x128xf32, #tpu.memory_space<vmem>>, vector<1x16x128xf32>,
    %363 = arith.index_cast %274 : i32 to index
    %c16_143 = arith.constant 16 : index
    %c0_144 = arith.constant 0 : index
    %364 = vector.load %arg13[%363, %c16_143, %c0_144] : memref<8x32x128xf32, #tpu.memory_space<vmem>>, vector<1x16x128xf32>
    %365 = vector.shape_cast %364 : vector<1x16x128xf32> to vector<16x128xf32>
    %366 = vector.shape_cast %354 : vector<16x128xf32> to vector<1x16x128xf32>
    tpu.vector_store %arg13[%363, %c16_143, %c0_144], %366 {strides = array<i32>} : memref<8x32x128xf32, #tpu.memory_space<vmem>>, vector<1x16x128xf32>,
    %c2_i32_145 = arith.constant 2 : i32
    %c7_i32_146 = arith.constant 7 : i32
    %367 = arith.subi %c7_i32_146, %c2_i32_145 : i32
    %cst_147 = arith.constant dense<0.000000e+00> : vector<64x128xf32>
    %368 = tpu.matmul %8, %346, %cst_147 {dimension_numbers = #tpu.dot_dimension_numbers<[1], [0], [0], [1], [0, 0, 1, 1], [], []>} : vector<64x16xf32>, vector<16x128xf32>, vector<64x128xf32> -> vector<64x128xf32>
    %cst_148 = arith.constant dense<0.000000e+00> : vector<64x128xf32>
    %369 = tpu.matmul %9, %354, %cst_148 {dimension_numbers = #tpu.dot_dimension_numbers<[1], [0], [0], [1], [0, 0, 1, 1], [], []>} : vector<64x16xf32>, vector<16x128xf32>, vector<64x128xf32> -> vector<64x128xf32>
    %370 = arith.index_cast %c2_i32_145 : i32 to index
    %c0_149 = arith.constant 0 : index
    %c0_150 = arith.constant 0 : index
    %371 = vector.load %arg12[%370, %c0_149, %c0_150] : memref<8x128x128xbf16, #tpu.memory_space<vmem>>, vector<1x64x128xbf16>
    %372 = vector.shape_cast %371 : vector<1x64x128xbf16> to vector<64x128xbf16>
    %373 = arith.extf %372 : vector<64x128xbf16> to vector<64x128xf32>
    %374 = arith.addf %373, %368 : vector<64x128xf32>
    %375 = arith.index_cast %c2_i32_145 : i32 to index
    %c64_151 = arith.constant 64 : index
    %c0_152 = arith.constant 0 : index
    %376 = vector.load %arg12[%375, %c64_151, %c0_152] : memref<8x128x128xbf16, #tpu.memory_space<vmem>>, vector<1x64x128xbf16>
    %377 = vector.shape_cast %376 : vector<1x64x128xbf16> to vector<64x128xbf16>
    %378 = arith.extf %377 : vector<64x128xbf16> to vector<64x128xf32>
    %379 = arith.addf %378, %369 : vector<64x128xf32>
    %380 = vector.extract_strided_slice %374 {offsets = [0, 0], sizes = [16, 128], strides = [1, 1]} : vector<64x128xf32> to vector<16x128xf32>
    %381 = arith.negf %380 : vector<16x128xf32>
    %382 = math.exp %381 : vector<16x128xf32>
    %cst_153 = arith.constant 1.000000e+00 : f32
    %383 = vector.broadcast %cst_153 : f32 to vector<16x128xf32>
    %384 = arith.addf %383, %382 : vector<16x128xf32>
    %385 = arith.divf %383, %384 : vector<16x128xf32>
    %386 = vector.extract_strided_slice %379 {offsets = [0, 0], sizes = [16, 128], strides = [1, 1]} : vector<64x128xf32> to vector<16x128xf32>
    %387 = arith.negf %386 : vector<16x128xf32>
    %388 = math.exp %387 : vector<16x128xf32>
    %cst_154 = arith.constant 1.000000e+00 : f32
    %389 = vector.broadcast %cst_154 : f32 to vector<16x128xf32>
    %390 = arith.addf %389, %388 : vector<16x128xf32>
    %391 = arith.divf %389, %390 : vector<16x128xf32>
    %392 = vector.extract_strided_slice %374 {offsets = [16, 0], sizes = [16, 128], strides = [1, 1]} : vector<64x128xf32> to vector<16x128xf32>
    %393 = arith.negf %392 : vector<16x128xf32>
    %394 = math.exp %393 : vector<16x128xf32>
    %cst_155 = arith.constant 1.000000e+00 : f32
    %395 = vector.broadcast %cst_155 : f32 to vector<16x128xf32>
    %396 = arith.addf %395, %394 : vector<16x128xf32>
    %397 = arith.divf %395, %396 : vector<16x128xf32>
    %398 = vector.extract_strided_slice %379 {offsets = [16, 0], sizes = [16, 128], strides = [1, 1]} : vector<64x128xf32> to vector<16x128xf32>
    %399 = arith.negf %398 : vector<16x128xf32>
    %400 = math.exp %399 : vector<16x128xf32>
    %cst_156 = arith.constant 1.000000e+00 : f32
    %401 = vector.broadcast %cst_156 : f32 to vector<16x128xf32>
    %402 = arith.addf %401, %400 : vector<16x128xf32>
    %403 = arith.divf %401, %402 : vector<16x128xf32>
    %404 = vector.extract_strided_slice %374 {offsets = [32, 0], sizes = [16, 128], strides = [1, 1]} : vector<64x128xf32> to vector<16x128xf32>
    %405 = math.tanh %404 : vector<16x128xf32>
    %406 = vector.extract_strided_slice %379 {offsets = [32, 0], sizes = [16, 128], strides = [1, 1]} : vector<64x128xf32> to vector<16x128xf32>
    %407 = math.tanh %406 : vector<16x128xf32>
    %408 = vector.extract_strided_slice %374 {offsets = [48, 0], sizes = [16, 128], strides = [1, 1]} : vector<64x128xf32> to vector<16x128xf32>
    %409 = arith.negf %408 : vector<16x128xf32>
    %410 = math.exp %409 : vector<16x128xf32>
    %cst_157 = arith.constant 1.000000e+00 : f32
    %411 = vector.broadcast %cst_157 : f32 to vector<16x128xf32>
    %412 = arith.addf %411, %410 : vector<16x128xf32>
    %413 = arith.divf %411, %412 : vector<16x128xf32>
    %414 = vector.extract_strided_slice %379 {offsets = [48, 0], sizes = [16, 128], strides = [1, 1]} : vector<64x128xf32> to vector<16x128xf32>
    %415 = arith.negf %414 : vector<16x128xf32>
    %416 = math.exp %415 : vector<16x128xf32>
    %cst_158 = arith.constant 1.000000e+00 : f32
    %417 = vector.broadcast %cst_158 : f32 to vector<16x128xf32>
    %418 = arith.addf %417, %416 : vector<16x128xf32>
    %419 = arith.divf %417, %418 : vector<16x128xf32>
    %420 = arith.mulf %397, %350 : vector<16x128xf32>
    %421 = arith.mulf %385, %405 : vector<16x128xf32>
    %422 = arith.addf %420, %421 : vector<16x128xf32>
    %423 = arith.mulf %403, %358 : vector<16x128xf32>
    %424 = arith.mulf %391, %407 : vector<16x128xf32>
    %425 = arith.addf %423, %424 : vector<16x128xf32>
    %426 = math.tanh %422 : vector<16x128xf32>
    %427 = arith.mulf %413, %426 : vector<16x128xf32>
    %428 = math.tanh %425 : vector<16x128xf32>
    %429 = arith.mulf %419, %428 : vector<16x128xf32>
    %430 = arith.index_cast %c2_i32_145 : i32 to index
    %c0_159 = arith.constant 0 : index
    %c0_160 = arith.constant 0 : index
    %431 = vector.load %arg2[%430, %c0_159, %c0_160] : memref<8x1x128xf32, #tpu.memory_space<vmem>>, vector<1x1x128xf32>
    %432 = vector.shape_cast %431 : vector<1x1x128xf32> to vector<1x128xf32>
    %433 = arith.index_cast %367 : i32 to index
    %c0_161 = arith.constant 0 : index
    %c0_162 = arith.constant 0 : index
    %434 = vector.load %arg2[%433, %c0_161, %c0_162] : memref<8x1x128xf32, #tpu.memory_space<vmem>>, vector<1x1x128xf32>
    %435 = vector.shape_cast %434 : vector<1x1x128xf32> to vector<1x128xf32>
    %436 = arith.subf %427, %346 : vector<16x128xf32>
    %437 = vector.broadcast %432 : vector<1x128xf32> to vector<16x128xf32>
    %438 = arith.mulf %437, %436 : vector<16x128xf32>
    %439 = arith.addf %346, %438 : vector<16x128xf32>
    %440 = arith.subf %422, %350 : vector<16x128xf32>
    %441 = vector.broadcast %432 : vector<1x128xf32> to vector<16x128xf32>
    %442 = arith.mulf %441, %440 : vector<16x128xf32>
    %443 = arith.addf %350, %442 : vector<16x128xf32>
    %444 = arith.subf %429, %354 : vector<16x128xf32>
    %445 = vector.broadcast %435 : vector<1x128xf32> to vector<16x128xf32>
    %446 = arith.mulf %445, %444 : vector<16x128xf32>
    %447 = arith.addf %354, %446 : vector<16x128xf32>
    %448 = arith.subf %425, %358 : vector<16x128xf32>
    %449 = vector.broadcast %435 : vector<1x128xf32> to vector<16x128xf32>
    %450 = arith.mulf %449, %448 : vector<16x128xf32>
    %451 = arith.addf %358, %450 : vector<16x128xf32>
    %452 = arith.index_cast %c2_i32_145 : i32 to index
    %c0_163 = arith.constant 0 : index
    %c0_164 = arith.constant 0 : index
    %453 = vector.load %arg13[%452, %c0_163, %c0_164] : memref<8x32x128xf32, #tpu.memory_space<vmem>>, vector<1x16x128xf32>
    %454 = vector.shape_cast %453 : vector<1x16x128xf32> to vector<16x128xf32>
    %455 = vector.shape_cast %439 : vector<16x128xf32> to vector<1x16x128xf32>
    tpu.vector_store %arg13[%452, %c0_163, %c0_164], %455 {strides = array<i32>} : memref<8x32x128xf32, #tpu.memory_space<vmem>>, vector<1x16x128xf32>,
    %456 = arith.index_cast %367 : i32 to index
    %c16_165 = arith.constant 16 : index
    %c0_166 = arith.constant 0 : index
    %457 = vector.load %arg13[%456, %c16_165, %c0_166] : memref<8x32x128xf32, #tpu.memory_space<vmem>>, vector<1x16x128xf32>
    %458 = vector.shape_cast %457 : vector<1x16x128xf32> to vector<16x128xf32>
    %459 = vector.shape_cast %447 : vector<16x128xf32> to vector<1x16x128xf32>
    tpu.vector_store %arg13[%456, %c16_165, %c0_166], %459 {strides = array<i32>} : memref<8x32x128xf32, #tpu.memory_space<vmem>>, vector<1x16x128xf32>,
    %c3_i32_167 = arith.constant 3 : i32
    %c7_i32_168 = arith.constant 7 : i32
    %460 = arith.subi %c7_i32_168, %c3_i32_167 : i32
    %cst_169 = arith.constant dense<0.000000e+00> : vector<64x128xf32>
    %461 = tpu.matmul %8, %439, %cst_169 {dimension_numbers = #tpu.dot_dimension_numbers<[1], [0], [0], [1], [0, 0, 1, 1], [], []>} : vector<64x16xf32>, vector<16x128xf32>, vector<64x128xf32> -> vector<64x128xf32>
    %cst_170 = arith.constant dense<0.000000e+00> : vector<64x128xf32>
    %462 = tpu.matmul %9, %447, %cst_170 {dimension_numbers = #tpu.dot_dimension_numbers<[1], [0], [0], [1], [0, 0, 1, 1], [], []>} : vector<64x16xf32>, vector<16x128xf32>, vector<64x128xf32> -> vector<64x128xf32>
    %463 = arith.index_cast %c3_i32_167 : i32 to index
    %c0_171 = arith.constant 0 : index
    %c0_172 = arith.constant 0 : index
    %464 = vector.load %arg12[%463, %c0_171, %c0_172] : memref<8x128x128xbf16, #tpu.memory_space<vmem>>, vector<1x64x128xbf16>
    %465 = vector.shape_cast %464 : vector<1x64x128xbf16> to vector<64x128xbf16>
    %466 = arith.extf %465 : vector<64x128xbf16> to vector<64x128xf32>
    %467 = arith.addf %466, %461 : vector<64x128xf32>
    %468 = arith.index_cast %c3_i32_167 : i32 to index
    %c64_173 = arith.constant 64 : index
    %c0_174 = arith.constant 0 : index
    %469 = vector.load %arg12[%468, %c64_173, %c0_174] : memref<8x128x128xbf16, #tpu.memory_space<vmem>>, vector<1x64x128xbf16>
    %470 = vector.shape_cast %469 : vector<1x64x128xbf16> to vector<64x128xbf16>
    %471 = arith.extf %470 : vector<64x128xbf16> to vector<64x128xf32>
    %472 = arith.addf %471, %462 : vector<64x128xf32>
    %473 = vector.extract_strided_slice %467 {offsets = [0, 0], sizes = [16, 128], strides = [1, 1]} : vector<64x128xf32> to vector<16x128xf32>
    %474 = arith.negf %473 : vector<16x128xf32>
    %475 = math.exp %474 : vector<16x128xf32>
    %cst_175 = arith.constant 1.000000e+00 : f32
    %476 = vector.broadcast %cst_175 : f32 to vector<16x128xf32>
    %477 = arith.addf %476, %475 : vector<16x128xf32>
    %478 = arith.divf %476, %477 : vector<16x128xf32>
    %479 = vector.extract_strided_slice %472 {offsets = [0, 0], sizes = [16, 128], strides = [1, 1]} : vector<64x128xf32> to vector<16x128xf32>
    %480 = arith.negf %479 : vector<16x128xf32>
    %481 = math.exp %480 : vector<16x128xf32>
    %cst_176 = arith.constant 1.000000e+00 : f32
    %482 = vector.broadcast %cst_176 : f32 to vector<16x128xf32>
    %483 = arith.addf %482, %481 : vector<16x128xf32>
    %484 = arith.divf %482, %483 : vector<16x128xf32>
    %485 = vector.extract_strided_slice %467 {offsets = [16, 0], sizes = [16, 128], strides = [1, 1]} : vector<64x128xf32> to vector<16x128xf32>
    %486 = arith.negf %485 : vector<16x128xf32>
    %487 = math.exp %486 : vector<16x128xf32>
    %cst_177 = arith.constant 1.000000e+00 : f32
    %488 = vector.broadcast %cst_177 : f32 to vector<16x128xf32>
    %489 = arith.addf %488, %487 : vector<16x128xf32>
    %490 = arith.divf %488, %489 : vector<16x128xf32>
    %491 = vector.extract_strided_slice %472 {offsets = [16, 0], sizes = [16, 128], strides = [1, 1]} : vector<64x128xf32> to vector<16x128xf32>
    %492 = arith.negf %491 : vector<16x128xf32>
    %493 = math.exp %492 : vector<16x128xf32>
    %cst_178 = arith.constant 1.000000e+00 : f32
    %494 = vector.broadcast %cst_178 : f32 to vector<16x128xf32>
    %495 = arith.addf %494, %493 : vector<16x128xf32>
    %496 = arith.divf %494, %495 : vector<16x128xf32>
    %497 = vector.extract_strided_slice %467 {offsets = [32, 0], sizes = [16, 128], strides = [1, 1]} : vector<64x128xf32> to vector<16x128xf32>
    %498 = math.tanh %497 : vector<16x128xf32>
    %499 = vector.extract_strided_slice %472 {offsets = [32, 0], sizes = [16, 128], strides = [1, 1]} : vector<64x128xf32> to vector<16x128xf32>
    %500 = math.tanh %499 : vector<16x128xf32>
    %501 = vector.extract_strided_slice %467 {offsets = [48, 0], sizes = [16, 128], strides = [1, 1]} : vector<64x128xf32> to vector<16x128xf32>
    %502 = arith.negf %501 : vector<16x128xf32>
    %503 = math.exp %502 : vector<16x128xf32>
    %cst_179 = arith.constant 1.000000e+00 : f32
    %504 = vector.broadcast %cst_179 : f32 to vector<16x128xf32>
    %505 = arith.addf %504, %503 : vector<16x128xf32>
    %506 = arith.divf %504, %505 : vector<16x128xf32>
    %507 = vector.extract_strided_slice %472 {offsets = [48, 0], sizes = [16, 128], strides = [1, 1]} : vector<64x128xf32> to vector<16x128xf32>
    %508 = arith.negf %507 : vector<16x128xf32>
    %509 = math.exp %508 : vector<16x128xf32>
    %cst_180 = arith.constant 1.000000e+00 : f32
    %510 = vector.broadcast %cst_180 : f32 to vector<16x128xf32>
    %511 = arith.addf %510, %509 : vector<16x128xf32>
    %512 = arith.divf %510, %511 : vector<16x128xf32>
    %513 = arith.mulf %490, %443 : vector<16x128xf32>
    %514 = arith.mulf %478, %498 : vector<16x128xf32>
    %515 = arith.addf %513, %514 : vector<16x128xf32>
    %516 = arith.mulf %496, %451 : vector<16x128xf32>
    %517 = arith.mulf %484, %500 : vector<16x128xf32>
    %518 = arith.addf %516, %517 : vector<16x128xf32>
    %519 = math.tanh %515 : vector<16x128xf32>
    %520 = arith.mulf %506, %519 : vector<16x128xf32>
    %521 = math.tanh %518 : vector<16x128xf32>
    %522 = arith.mulf %512, %521 : vector<16x128xf32>
    %523 = arith.index_cast %c3_i32_167 : i32 to index
    %c0_181 = arith.constant 0 : index
    %c0_182 = arith.constant 0 : index
    %524 = vector.load %arg2[%523, %c0_181, %c0_182] : memref<8x1x128xf32, #tpu.memory_space<vmem>>, vector<1x1x128xf32>
    %525 = vector.shape_cast %524 : vector<1x1x128xf32> to vector<1x128xf32>
    %526 = arith.index_cast %460 : i32 to index
    %c0_183 = arith.constant 0 : index
    %c0_184 = arith.constant 0 : index
    %527 = vector.load %arg2[%526, %c0_183, %c0_184] : memref<8x1x128xf32, #tpu.memory_space<vmem>>, vector<1x1x128xf32>
    %528 = vector.shape_cast %527 : vector<1x1x128xf32> to vector<1x128xf32>
    %529 = arith.subf %520, %439 : vector<16x128xf32>
    %530 = vector.broadcast %525 : vector<1x128xf32> to vector<16x128xf32>
    %531 = arith.mulf %530, %529 : vector<16x128xf32>
    %532 = arith.addf %439, %531 : vector<16x128xf32>
    %533 = arith.subf %515, %443 : vector<16x128xf32>
    %534 = vector.broadcast %525 : vector<1x128xf32> to vector<16x128xf32>
    %535 = arith.mulf %534, %533 : vector<16x128xf32>
    %536 = arith.addf %443, %535 : vector<16x128xf32>
    %537 = arith.subf %522, %447 : vector<16x128xf32>
    %538 = vector.broadcast %528 : vector<1x128xf32> to vector<16x128xf32>
    %539 = arith.mulf %538, %537 : vector<16x128xf32>
    %540 = arith.addf %447, %539 : vector<16x128xf32>
    %541 = arith.subf %518, %451 : vector<16x128xf32>
    %542 = vector.broadcast %528 : vector<1x128xf32> to vector<16x128xf32>
    %543 = arith.mulf %542, %541 : vector<16x128xf32>
    %544 = arith.addf %451, %543 : vector<16x128xf32>
    %545 = arith.index_cast %c3_i32_167 : i32 to index
    %c0_185 = arith.constant 0 : index
    %c0_186 = arith.constant 0 : index
    %546 = vector.load %arg13[%545, %c0_185, %c0_186] : memref<8x32x128xf32, #tpu.memory_space<vmem>>, vector<1x16x128xf32>
    %547 = vector.shape_cast %546 : vector<1x16x128xf32> to vector<16x128xf32>
    %548 = vector.shape_cast %532 : vector<16x128xf32> to vector<1x16x128xf32>
    tpu.vector_store %arg13[%545, %c0_185, %c0_186], %548 {strides = array<i32>} : memref<8x32x128xf32, #tpu.memory_space<vmem>>, vector<1x16x128xf32>,
    %549 = arith.index_cast %460 : i32 to index
    %c16_187 = arith.constant 16 : index
    %c0_188 = arith.constant 0 : index
    %550 = vector.load %arg13[%549, %c16_187, %c0_188] : memref<8x32x128xf32, #tpu.memory_space<vmem>>, vector<1x16x128xf32>
    %551 = vector.shape_cast %550 : vector<1x16x128xf32> to vector<16x128xf32>
    %552 = vector.shape_cast %540 : vector<16x128xf32> to vector<1x16x128xf32>
    tpu.vector_store %arg13[%549, %c16_187, %c0_188], %552 {strides = array<i32>} : memref<8x32x128xf32, #tpu.memory_space<vmem>>, vector<1x16x128xf32>,
    %c4_i32_189 = arith.constant 4 : i32
    %c7_i32_190 = arith.constant 7 : i32
    %553 = arith.subi %c7_i32_190, %c4_i32_189 : i32
    %cst_191 = arith.constant dense<0.000000e+00> : vector<64x128xf32>
    %554 = tpu.matmul %8, %532, %cst_191 {dimension_numbers = #tpu.dot_dimension_numbers<[1], [0], [0], [1], [0, 0, 1, 1], [], []>} : vector<64x16xf32>, vector<16x128xf32>, vector<64x128xf32> -> vector<64x128xf32>
    %cst_192 = arith.constant dense<0.000000e+00> : vector<64x128xf32>
    %555 = tpu.matmul %9, %540, %cst_192 {dimension_numbers = #tpu.dot_dimension_numbers<[1], [0], [0], [1], [0, 0, 1, 1], [], []>} : vector<64x16xf32>, vector<16x128xf32>, vector<64x128xf32> -> vector<64x128xf32>
    %556 = arith.index_cast %c4_i32_189 : i32 to index
    %c0_193 = arith.constant 0 : index
    %c0_194 = arith.constant 0 : index
    %557 = vector.load %arg12[%556, %c0_193, %c0_194] : memref<8x128x128xbf16, #tpu.memory_space<vmem>>, vector<1x64x128xbf16>
    %558 = vector.shape_cast %557 : vector<1x64x128xbf16> to vector<64x128xbf16>
    %559 = arith.extf %558 : vector<64x128xbf16> to vector<64x128xf32>
    %560 = arith.addf %559, %554 : vector<64x128xf32>
    %561 = arith.index_cast %c4_i32_189 : i32 to index
    %c64_195 = arith.constant 64 : index
    %c0_196 = arith.constant 0 : index
    %562 = vector.load %arg12[%561, %c64_195, %c0_196] : memref<8x128x128xbf16, #tpu.memory_space<vmem>>, vector<1x64x128xbf16>
    %563 = vector.shape_cast %562 : vector<1x64x128xbf16> to vector<64x128xbf16>
    %564 = arith.extf %563 : vector<64x128xbf16> to vector<64x128xf32>
    %565 = arith.addf %564, %555 : vector<64x128xf32>
    %566 = vector.extract_strided_slice %560 {offsets = [0, 0], sizes = [16, 128], strides = [1, 1]} : vector<64x128xf32> to vector<16x128xf32>
    %567 = arith.negf %566 : vector<16x128xf32>
    %568 = math.exp %567 : vector<16x128xf32>
    %cst_197 = arith.constant 1.000000e+00 : f32
    %569 = vector.broadcast %cst_197 : f32 to vector<16x128xf32>
    %570 = arith.addf %569, %568 : vector<16x128xf32>
    %571 = arith.divf %569, %570 : vector<16x128xf32>
    %572 = vector.extract_strided_slice %565 {offsets = [0, 0], sizes = [16, 128], strides = [1, 1]} : vector<64x128xf32> to vector<16x128xf32>
    %573 = arith.negf %572 : vector<16x128xf32>
    %574 = math.exp %573 : vector<16x128xf32>
    %cst_198 = arith.constant 1.000000e+00 : f32
    %575 = vector.broadcast %cst_198 : f32 to vector<16x128xf32>
    %576 = arith.addf %575, %574 : vector<16x128xf32>
    %577 = arith.divf %575, %576 : vector<16x128xf32>
    %578 = vector.extract_strided_slice %560 {offsets = [16, 0], sizes = [16, 128], strides = [1, 1]} : vector<64x128xf32> to vector<16x128xf32>
    %579 = arith.negf %578 : vector<16x128xf32>
    %580 = math.exp %579 : vector<16x128xf32>
    %cst_199 = arith.constant 1.000000e+00 : f32
    %581 = vector.broadcast %cst_199 : f32 to vector<16x128xf32>
    %582 = arith.addf %581, %580 : vector<16x128xf32>
    %583 = arith.divf %581, %582 : vector<16x128xf32>
    %584 = vector.extract_strided_slice %565 {offsets = [16, 0], sizes = [16, 128], strides = [1, 1]} : vector<64x128xf32> to vector<16x128xf32>
    %585 = arith.negf %584 : vector<16x128xf32>
    %586 = math.exp %585 : vector<16x128xf32>
    %cst_200 = arith.constant 1.000000e+00 : f32
    %587 = vector.broadcast %cst_200 : f32 to vector<16x128xf32>
    %588 = arith.addf %587, %586 : vector<16x128xf32>
    %589 = arith.divf %587, %588 : vector<16x128xf32>
    %590 = vector.extract_strided_slice %560 {offsets = [32, 0], sizes = [16, 128], strides = [1, 1]} : vector<64x128xf32> to vector<16x128xf32>
    %591 = math.tanh %590 : vector<16x128xf32>
    %592 = vector.extract_strided_slice %565 {offsets = [32, 0], sizes = [16, 128], strides = [1, 1]} : vector<64x128xf32> to vector<16x128xf32>
    %593 = math.tanh %592 : vector<16x128xf32>
    %594 = vector.extract_strided_slice %560 {offsets = [48, 0], sizes = [16, 128], strides = [1, 1]} : vector<64x128xf32> to vector<16x128xf32>
    %595 = arith.negf %594 : vector<16x128xf32>
    %596 = math.exp %595 : vector<16x128xf32>
    %cst_201 = arith.constant 1.000000e+00 : f32
    %597 = vector.broadcast %cst_201 : f32 to vector<16x128xf32>
    %598 = arith.addf %597, %596 : vector<16x128xf32>
    %599 = arith.divf %597, %598 : vector<16x128xf32>
    %600 = vector.extract_strided_slice %565 {offsets = [48, 0], sizes = [16, 128], strides = [1, 1]} : vector<64x128xf32> to vector<16x128xf32>
    %601 = arith.negf %600 : vector<16x128xf32>
    %602 = math.exp %601 : vector<16x128xf32>
    %cst_202 = arith.constant 1.000000e+00 : f32
    %603 = vector.broadcast %cst_202 : f32 to vector<16x128xf32>
    %604 = arith.addf %603, %602 : vector<16x128xf32>
    %605 = arith.divf %603, %604 : vector<16x128xf32>
    %606 = arith.mulf %583, %536 : vector<16x128xf32>
    %607 = arith.mulf %571, %591 : vector<16x128xf32>
    %608 = arith.addf %606, %607 : vector<16x128xf32>
    %609 = arith.mulf %589, %544 : vector<16x128xf32>
    %610 = arith.mulf %577, %593 : vector<16x128xf32>
    %611 = arith.addf %609, %610 : vector<16x128xf32>
    %612 = math.tanh %608 : vector<16x128xf32>
    %613 = arith.mulf %599, %612 : vector<16x128xf32>
    %614 = math.tanh %611 : vector<16x128xf32>
    %615 = arith.mulf %605, %614 : vector<16x128xf32>
    %616 = arith.index_cast %c4_i32_189 : i32 to index
    %c0_203 = arith.constant 0 : index
    %c0_204 = arith.constant 0 : index
    %617 = vector.load %arg2[%616, %c0_203, %c0_204] : memref<8x1x128xf32, #tpu.memory_space<vmem>>, vector<1x1x128xf32>
    %618 = vector.shape_cast %617 : vector<1x1x128xf32> to vector<1x128xf32>
    %619 = arith.index_cast %553 : i32 to index
    %c0_205 = arith.constant 0 : index
    %c0_206 = arith.constant 0 : index
    %620 = vector.load %arg2[%619, %c0_205, %c0_206] : memref<8x1x128xf32, #tpu.memory_space<vmem>>, vector<1x1x128xf32>
    %621 = vector.shape_cast %620 : vector<1x1x128xf32> to vector<1x128xf32>
    %622 = arith.subf %613, %532 : vector<16x128xf32>
    %623 = vector.broadcast %618 : vector<1x128xf32> to vector<16x128xf32>
    %624 = arith.mulf %623, %622 : vector<16x128xf32>
    %625 = arith.addf %532, %624 : vector<16x128xf32>
    %626 = arith.subf %608, %536 : vector<16x128xf32>
    %627 = vector.broadcast %618 : vector<1x128xf32> to vector<16x128xf32>
    %628 = arith.mulf %627, %626 : vector<16x128xf32>
    %629 = arith.addf %536, %628 : vector<16x128xf32>
    %630 = arith.subf %615, %540 : vector<16x128xf32>
    %631 = vector.broadcast %621 : vector<1x128xf32> to vector<16x128xf32>
    %632 = arith.mulf %631, %630 : vector<16x128xf32>
    %633 = arith.addf %540, %632 : vector<16x128xf32>
    %634 = arith.subf %611, %544 : vector<16x128xf32>
    %635 = vector.broadcast %621 : vector<1x128xf32> to vector<16x128xf32>
    %636 = arith.mulf %635, %634 : vector<16x128xf32>
    %637 = arith.addf %544, %636 : vector<16x128xf32>
    %638 = arith.index_cast %c4_i32_189 : i32 to index
    %c0_207 = arith.constant 0 : index
    %c0_208 = arith.constant 0 : index
    %639 = vector.load %arg13[%638, %c0_207, %c0_208] : memref<8x32x128xf32, #tpu.memory_space<vmem>>, vector<1x16x128xf32>
    %640 = vector.shape_cast %639 : vector<1x16x128xf32> to vector<16x128xf32>
    %641 = vector.shape_cast %625 : vector<16x128xf32> to vector<1x16x128xf32>
    tpu.vector_store %arg13[%638, %c0_207, %c0_208], %641 {strides = array<i32>} : memref<8x32x128xf32, #tpu.memory_space<vmem>>, vector<1x16x128xf32>,
    %642 = arith.index_cast %553 : i32 to index
    %c16_209 = arith.constant 16 : index
    %c0_210 = arith.constant 0 : index
    %643 = vector.load %arg13[%642, %c16_209, %c0_210] : memref<8x32x128xf32, #tpu.memory_space<vmem>>, vector<1x16x128xf32>
    %644 = vector.shape_cast %643 : vector<1x16x128xf32> to vector<16x128xf32>
    %645 = vector.shape_cast %633 : vector<16x128xf32> to vector<1x16x128xf32>
    tpu.vector_store %arg13[%642, %c16_209, %c0_210], %645 {strides = array<i32>} : memref<8x32x128xf32, #tpu.memory_space<vmem>>, vector<1x16x128xf32>,
    %c5_i32_211 = arith.constant 5 : i32
    %c7_i32_212 = arith.constant 7 : i32
    %646 = arith.subi %c7_i32_212, %c5_i32_211 : i32
    %cst_213 = arith.constant dense<0.000000e+00> : vector<64x128xf32>
    %647 = tpu.matmul %8, %625, %cst_213 {dimension_numbers = #tpu.dot_dimension_numbers<[1], [0], [0], [1], [0, 0, 1, 1], [], []>} : vector<64x16xf32>, vector<16x128xf32>, vector<64x128xf32> -> vector<64x128xf32>
    %cst_214 = arith.constant dense<0.000000e+00> : vector<64x128xf32>
    %648 = tpu.matmul %9, %633, %cst_214 {dimension_numbers = #tpu.dot_dimension_numbers<[1], [0], [0], [1], [0, 0, 1, 1], [], []>} : vector<64x16xf32>, vector<16x128xf32>, vector<64x128xf32> -> vector<64x128xf32>
    %649 = arith.index_cast %c5_i32_211 : i32 to index
    %c0_215 = arith.constant 0 : index
    %c0_216 = arith.constant 0 : index
    %650 = vector.load %arg12[%649, %c0_215, %c0_216] : memref<8x128x128xbf16, #tpu.memory_space<vmem>>, vector<1x64x128xbf16>
    %651 = vector.shape_cast %650 : vector<1x64x128xbf16> to vector<64x128xbf16>
    %652 = arith.extf %651 : vector<64x128xbf16> to vector<64x128xf32>
    %653 = arith.addf %652, %647 : vector<64x128xf32>
    %654 = arith.index_cast %c5_i32_211 : i32 to index
    %c64_217 = arith.constant 64 : index
    %c0_218 = arith.constant 0 : index
    %655 = vector.load %arg12[%654, %c64_217, %c0_218] : memref<8x128x128xbf16, #tpu.memory_space<vmem>>, vector<1x64x128xbf16>
    %656 = vector.shape_cast %655 : vector<1x64x128xbf16> to vector<64x128xbf16>
    %657 = arith.extf %656 : vector<64x128xbf16> to vector<64x128xf32>
    %658 = arith.addf %657, %648 : vector<64x128xf32>
    %659 = vector.extract_strided_slice %653 {offsets = [0, 0], sizes = [16, 128], strides = [1, 1]} : vector<64x128xf32> to vector<16x128xf32>
    %660 = arith.negf %659 : vector<16x128xf32>
    %661 = math.exp %660 : vector<16x128xf32>
    %cst_219 = arith.constant 1.000000e+00 : f32
    %662 = vector.broadcast %cst_219 : f32 to vector<16x128xf32>
    %663 = arith.addf %662, %661 : vector<16x128xf32>
    %664 = arith.divf %662, %663 : vector<16x128xf32>
    %665 = vector.extract_strided_slice %658 {offsets = [0, 0], sizes = [16, 128], strides = [1, 1]} : vector<64x128xf32> to vector<16x128xf32>
    %666 = arith.negf %665 : vector<16x128xf32>
    %667 = math.exp %666 : vector<16x128xf32>
    %cst_220 = arith.constant 1.000000e+00 : f32
    %668 = vector.broadcast %cst_220 : f32 to vector<16x128xf32>
    %669 = arith.addf %668, %667 : vector<16x128xf32>
    %670 = arith.divf %668, %669 : vector<16x128xf32>
    %671 = vector.extract_strided_slice %653 {offsets = [16, 0], sizes = [16, 128], strides = [1, 1]} : vector<64x128xf32> to vector<16x128xf32>
    %672 = arith.negf %671 : vector<16x128xf32>
    %673 = math.exp %672 : vector<16x128xf32>
    %cst_221 = arith.constant 1.000000e+00 : f32
    %674 = vector.broadcast %cst_221 : f32 to vector<16x128xf32>
    %675 = arith.addf %674, %673 : vector<16x128xf32>
    %676 = arith.divf %674, %675 : vector<16x128xf32>
    %677 = vector.extract_strided_slice %658 {offsets = [16, 0], sizes = [16, 128], strides = [1, 1]} : vector<64x128xf32> to vector<16x128xf32>
    %678 = arith.negf %677 : vector<16x128xf32>
    %679 = math.exp %678 : vector<16x128xf32>
    %cst_222 = arith.constant 1.000000e+00 : f32
    %680 = vector.broadcast %cst_222 : f32 to vector<16x128xf32>
    %681 = arith.addf %680, %679 : vector<16x128xf32>
    %682 = arith.divf %680, %681 : vector<16x128xf32>
    %683 = vector.extract_strided_slice %653 {offsets = [32, 0], sizes = [16, 128], strides = [1, 1]} : vector<64x128xf32> to vector<16x128xf32>
    %684 = math.tanh %683 : vector<16x128xf32>
    %685 = vector.extract_strided_slice %658 {offsets = [32, 0], sizes = [16, 128], strides = [1, 1]} : vector<64x128xf32> to vector<16x128xf32>
    %686 = math.tanh %685 : vector<16x128xf32>
    %687 = vector.extract_strided_slice %653 {offsets = [48, 0], sizes = [16, 128], strides = [1, 1]} : vector<64x128xf32> to vector<16x128xf32>
    %688 = arith.negf %687 : vector<16x128xf32>
    %689 = math.exp %688 : vector<16x128xf32>
    %cst_223 = arith.constant 1.000000e+00 : f32
    %690 = vector.broadcast %cst_223 : f32 to vector<16x128xf32>
    %691 = arith.addf %690, %689 : vector<16x128xf32>
    %692 = arith.divf %690, %691 : vector<16x128xf32>
    %693 = vector.extract_strided_slice %658 {offsets = [48, 0], sizes = [16, 128], strides = [1, 1]} : vector<64x128xf32> to vector<16x128xf32>
    %694 = arith.negf %693 : vector<16x128xf32>
    %695 = math.exp %694 : vector<16x128xf32>
    %cst_224 = arith.constant 1.000000e+00 : f32
    %696 = vector.broadcast %cst_224 : f32 to vector<16x128xf32>
    %697 = arith.addf %696, %695 : vector<16x128xf32>
    %698 = arith.divf %696, %697 : vector<16x128xf32>
    %699 = arith.mulf %676, %629 : vector<16x128xf32>
    %700 = arith.mulf %664, %684 : vector<16x128xf32>
    %701 = arith.addf %699, %700 : vector<16x128xf32>
    %702 = arith.mulf %682, %637 : vector<16x128xf32>
    %703 = arith.mulf %670, %686 : vector<16x128xf32>
    %704 = arith.addf %702, %703 : vector<16x128xf32>
    %705 = math.tanh %701 : vector<16x128xf32>
    %706 = arith.mulf %692, %705 : vector<16x128xf32>
    %707 = math.tanh %704 : vector<16x128xf32>
    %708 = arith.mulf %698, %707 : vector<16x128xf32>
    %709 = arith.index_cast %c5_i32_211 : i32 to index
    %c0_225 = arith.constant 0 : index
    %c0_226 = arith.constant 0 : index
    %710 = vector.load %arg2[%709, %c0_225, %c0_226] : memref<8x1x128xf32, #tpu.memory_space<vmem>>, vector<1x1x128xf32>
    %711 = vector.shape_cast %710 : vector<1x1x128xf32> to vector<1x128xf32>
    %712 = arith.index_cast %646 : i32 to index
    %c0_227 = arith.constant 0 : index
    %c0_228 = arith.constant 0 : index
    %713 = vector.load %arg2[%712, %c0_227, %c0_228] : memref<8x1x128xf32, #tpu.memory_space<vmem>>, vector<1x1x128xf32>
    %714 = vector.shape_cast %713 : vector<1x1x128xf32> to vector<1x128xf32>
    %715 = arith.subf %706, %625 : vector<16x128xf32>
    %716 = vector.broadcast %711 : vector<1x128xf32> to vector<16x128xf32>
    %717 = arith.mulf %716, %715 : vector<16x128xf32>
    %718 = arith.addf %625, %717 : vector<16x128xf32>
    %719 = arith.subf %701, %629 : vector<16x128xf32>
    %720 = vector.broadcast %711 : vector<1x128xf32> to vector<16x128xf32>
    %721 = arith.mulf %720, %719 : vector<16x128xf32>
    %722 = arith.addf %629, %721 : vector<16x128xf32>
    %723 = arith.subf %708, %633 : vector<16x128xf32>
    %724 = vector.broadcast %714 : vector<1x128xf32> to vector<16x128xf32>
    %725 = arith.mulf %724, %723 : vector<16x128xf32>
    %726 = arith.addf %633, %725 : vector<16x128xf32>
    %727 = arith.subf %704, %637 : vector<16x128xf32>
    %728 = vector.broadcast %714 : vector<1x128xf32> to vector<16x128xf32>
    %729 = arith.mulf %728, %727 : vector<16x128xf32>
    %730 = arith.addf %637, %729 : vector<16x128xf32>
    %731 = arith.index_cast %c5_i32_211 : i32 to index
    %c0_229 = arith.constant 0 : index
    %c0_230 = arith.constant 0 : index
    %732 = vector.load %arg13[%731, %c0_229, %c0_230] : memref<8x32x128xf32, #tpu.memory_space<vmem>>, vector<1x16x128xf32>
    %733 = vector.shape_cast %732 : vector<1x16x128xf32> to vector<16x128xf32>
    %734 = vector.shape_cast %718 : vector<16x128xf32> to vector<1x16x128xf32>
    tpu.vector_store %arg13[%731, %c0_229, %c0_230], %734 {strides = array<i32>} : memref<8x32x128xf32, #tpu.memory_space<vmem>>, vector<1x16x128xf32>,
    %735 = arith.index_cast %646 : i32 to index
    %c16_231 = arith.constant 16 : index
    %c0_232 = arith.constant 0 : index
    %736 = vector.load %arg13[%735, %c16_231, %c0_232] : memref<8x32x128xf32, #tpu.memory_space<vmem>>, vector<1x16x128xf32>
    %737 = vector.shape_cast %736 : vector<1x16x128xf32> to vector<16x128xf32>
    %738 = vector.shape_cast %726 : vector<16x128xf32> to vector<1x16x128xf32>
    tpu.vector_store %arg13[%735, %c16_231, %c0_232], %738 {strides = array<i32>} : memref<8x32x128xf32, #tpu.memory_space<vmem>>, vector<1x16x128xf32>,
    %c6_i32_233 = arith.constant 6 : i32
    %c7_i32_234 = arith.constant 7 : i32
    %739 = arith.subi %c7_i32_234, %c6_i32_233 : i32
    %cst_235 = arith.constant dense<0.000000e+00> : vector<64x128xf32>
    %740 = tpu.matmul %8, %718, %cst_235 {dimension_numbers = #tpu.dot_dimension_numbers<[1], [0], [0], [1], [0, 0, 1, 1], [], []>} : vector<64x16xf32>, vector<16x128xf32>, vector<64x128xf32> -> vector<64x128xf32>
    %cst_236 = arith.constant dense<0.000000e+00> : vector<64x128xf32>
    %741 = tpu.matmul %9, %726, %cst_236 {dimension_numbers = #tpu.dot_dimension_numbers<[1], [0], [0], [1], [0, 0, 1, 1], [], []>} : vector<64x16xf32>, vector<16x128xf32>, vector<64x128xf32> -> vector<64x128xf32>
    %742 = arith.index_cast %c6_i32_233 : i32 to index
    %c0_237 = arith.constant 0 : index
    %c0_238 = arith.constant 0 : index
    %743 = vector.load %arg12[%742, %c0_237, %c0_238] : memref<8x128x128xbf16, #tpu.memory_space<vmem>>, vector<1x64x128xbf16>
    %744 = vector.shape_cast %743 : vector<1x64x128xbf16> to vector<64x128xbf16>
    %745 = arith.extf %744 : vector<64x128xbf16> to vector<64x128xf32>
    %746 = arith.addf %745, %740 : vector<64x128xf32>
    %747 = arith.index_cast %c6_i32_233 : i32 to index
    %c64_239 = arith.constant 64 : index
    %c0_240 = arith.constant 0 : index
    %748 = vector.load %arg12[%747, %c64_239, %c0_240] : memref<8x128x128xbf16, #tpu.memory_space<vmem>>, vector<1x64x128xbf16>
    %749 = vector.shape_cast %748 : vector<1x64x128xbf16> to vector<64x128xbf16>
    %750 = arith.extf %749 : vector<64x128xbf16> to vector<64x128xf32>
    %751 = arith.addf %750, %741 : vector<64x128xf32>
    %752 = vector.extract_strided_slice %746 {offsets = [0, 0], sizes = [16, 128], strides = [1, 1]} : vector<64x128xf32> to vector<16x128xf32>
    %753 = arith.negf %752 : vector<16x128xf32>
    %754 = math.exp %753 : vector<16x128xf32>
    %cst_241 = arith.constant 1.000000e+00 : f32
    %755 = vector.broadcast %cst_241 : f32 to vector<16x128xf32>
    %756 = arith.addf %755, %754 : vector<16x128xf32>
    %757 = arith.divf %755, %756 : vector<16x128xf32>
    %758 = vector.extract_strided_slice %751 {offsets = [0, 0], sizes = [16, 128], strides = [1, 1]} : vector<64x128xf32> to vector<16x128xf32>
    %759 = arith.negf %758 : vector<16x128xf32>
    %760 = math.exp %759 : vector<16x128xf32>
    %cst_242 = arith.constant 1.000000e+00 : f32
    %761 = vector.broadcast %cst_242 : f32 to vector<16x128xf32>
    %762 = arith.addf %761, %760 : vector<16x128xf32>
    %763 = arith.divf %761, %762 : vector<16x128xf32>
    %764 = vector.extract_strided_slice %746 {offsets = [16, 0], sizes = [16, 128], strides = [1, 1]} : vector<64x128xf32> to vector<16x128xf32>
    %765 = arith.negf %764 : vector<16x128xf32>
    %766 = math.exp %765 : vector<16x128xf32>
    %cst_243 = arith.constant 1.000000e+00 : f32
    %767 = vector.broadcast %cst_243 : f32 to vector<16x128xf32>
    %768 = arith.addf %767, %766 : vector<16x128xf32>
    %769 = arith.divf %767, %768 : vector<16x128xf32>
    %770 = vector.extract_strided_slice %751 {offsets = [16, 0], sizes = [16, 128], strides = [1, 1]} : vector<64x128xf32> to vector<16x128xf32>
    %771 = arith.negf %770 : vector<16x128xf32>
    %772 = math.exp %771 : vector<16x128xf32>
    %cst_244 = arith.constant 1.000000e+00 : f32
    %773 = vector.broadcast %cst_244 : f32 to vector<16x128xf32>
    %774 = arith.addf %773, %772 : vector<16x128xf32>
    %775 = arith.divf %773, %774 : vector<16x128xf32>
    %776 = vector.extract_strided_slice %746 {offsets = [32, 0], sizes = [16, 128], strides = [1, 1]} : vector<64x128xf32> to vector<16x128xf32>
    %777 = math.tanh %776 : vector<16x128xf32>
    %778 = vector.extract_strided_slice %751 {offsets = [32, 0], sizes = [16, 128], strides = [1, 1]} : vector<64x128xf32> to vector<16x128xf32>
    %779 = math.tanh %778 : vector<16x128xf32>
    %780 = vector.extract_strided_slice %746 {offsets = [48, 0], sizes = [16, 128], strides = [1, 1]} : vector<64x128xf32> to vector<16x128xf32>
    %781 = arith.negf %780 : vector<16x128xf32>
    %782 = math.exp %781 : vector<16x128xf32>
    %cst_245 = arith.constant 1.000000e+00 : f32
    %783 = vector.broadcast %cst_245 : f32 to vector<16x128xf32>
    %784 = arith.addf %783, %782 : vector<16x128xf32>
    %785 = arith.divf %783, %784 : vector<16x128xf32>
    %786 = vector.extract_strided_slice %751 {offsets = [48, 0], sizes = [16, 128], strides = [1, 1]} : vector<64x128xf32> to vector<16x128xf32>
    %787 = arith.negf %786 : vector<16x128xf32>
    %788 = math.exp %787 : vector<16x128xf32>
    %cst_246 = arith.constant 1.000000e+00 : f32
    %789 = vector.broadcast %cst_246 : f32 to vector<16x128xf32>
    %790 = arith.addf %789, %788 : vector<16x128xf32>
    %791 = arith.divf %789, %790 : vector<16x128xf32>
    %792 = arith.mulf %769, %722 : vector<16x128xf32>
    %793 = arith.mulf %757, %777 : vector<16x128xf32>
    %794 = arith.addf %792, %793 : vector<16x128xf32>
    %795 = arith.mulf %775, %730 : vector<16x128xf32>
    %796 = arith.mulf %763, %779 : vector<16x128xf32>
    %797 = arith.addf %795, %796 : vector<16x128xf32>
    %798 = math.tanh %794 : vector<16x128xf32>
    %799 = arith.mulf %785, %798 : vector<16x128xf32>
    %800 = math.tanh %797 : vector<16x128xf32>
    %801 = arith.mulf %791, %800 : vector<16x128xf32>
    %802 = arith.index_cast %c6_i32_233 : i32 to index
    %c0_247 = arith.constant 0 : index
    %c0_248 = arith.constant 0 : index
    %803 = vector.load %arg2[%802, %c0_247, %c0_248] : memref<8x1x128xf32, #tpu.memory_space<vmem>>, vector<1x1x128xf32>
    %804 = vector.shape_cast %803 : vector<1x1x128xf32> to vector<1x128xf32>
    %805 = arith.index_cast %739 : i32 to index
    %c0_249 = arith.constant 0 : index
    %c0_250 = arith.constant 0 : index
    %806 = vector.load %arg2[%805, %c0_249, %c0_250] : memref<8x1x128xf32, #tpu.memory_space<vmem>>, vector<1x1x128xf32>
    %807 = vector.shape_cast %806 : vector<1x1x128xf32> to vector<1x128xf32>
    %808 = arith.subf %799, %718 : vector<16x128xf32>
    %809 = vector.broadcast %804 : vector<1x128xf32> to vector<16x128xf32>
    %810 = arith.mulf %809, %808 : vector<16x128xf32>
    %811 = arith.addf %718, %810 : vector<16x128xf32>
    %812 = arith.subf %794, %722 : vector<16x128xf32>
    %813 = vector.broadcast %804 : vector<1x128xf32> to vector<16x128xf32>
    %814 = arith.mulf %813, %812 : vector<16x128xf32>
    %815 = arith.addf %722, %814 : vector<16x128xf32>
    %816 = arith.subf %801, %726 : vector<16x128xf32>
    %817 = vector.broadcast %807 : vector<1x128xf32> to vector<16x128xf32>
    %818 = arith.mulf %817, %816 : vector<16x128xf32>
    %819 = arith.addf %726, %818 : vector<16x128xf32>
    %820 = arith.subf %797, %730 : vector<16x128xf32>
    %821 = vector.broadcast %807 : vector<1x128xf32> to vector<16x128xf32>
    %822 = arith.mulf %821, %820 : vector<16x128xf32>
    %823 = arith.addf %730, %822 : vector<16x128xf32>
    %824 = arith.index_cast %c6_i32_233 : i32 to index
    %c0_251 = arith.constant 0 : index
    %c0_252 = arith.constant 0 : index
    %825 = vector.load %arg13[%824, %c0_251, %c0_252] : memref<8x32x128xf32, #tpu.memory_space<vmem>>, vector<1x16x128xf32>
    %826 = vector.shape_cast %825 : vector<1x16x128xf32> to vector<16x128xf32>
    %827 = vector.shape_cast %811 : vector<16x128xf32> to vector<1x16x128xf32>
    tpu.vector_store %arg13[%824, %c0_251, %c0_252], %827 {strides = array<i32>} : memref<8x32x128xf32, #tpu.memory_space<vmem>>, vector<1x16x128xf32>,
    %828 = arith.index_cast %739 : i32 to index
    %c16_253 = arith.constant 16 : index
    %c0_254 = arith.constant 0 : index
    %829 = vector.load %arg13[%828, %c16_253, %c0_254] : memref<8x32x128xf32, #tpu.memory_space<vmem>>, vector<1x16x128xf32>
    %830 = vector.shape_cast %829 : vector<1x16x128xf32> to vector<16x128xf32>
    %831 = vector.shape_cast %819 : vector<16x128xf32> to vector<1x16x128xf32>
    tpu.vector_store %arg13[%828, %c16_253, %c0_254], %831 {strides = array<i32>} : memref<8x32x128xf32, #tpu.memory_space<vmem>>, vector<1x16x128xf32>,
    %c7_i32_255 = arith.constant 7 : i32
    %c7_i32_256 = arith.constant 7 : i32
    %832 = arith.subi %c7_i32_256, %c7_i32_255 : i32
    %cst_257 = arith.constant dense<0.000000e+00> : vector<64x128xf32>
    %833 = tpu.matmul %8, %811, %cst_257 {dimension_numbers = #tpu.dot_dimension_numbers<[1], [0], [0], [1], [0, 0, 1, 1], [], []>} : vector<64x16xf32>, vector<16x128xf32>, vector<64x128xf32> -> vector<64x128xf32>
    %cst_258 = arith.constant dense<0.000000e+00> : vector<64x128xf32>
    %834 = tpu.matmul %9, %819, %cst_258 {dimension_numbers = #tpu.dot_dimension_numbers<[1], [0], [0], [1], [0, 0, 1, 1], [], []>} : vector<64x16xf32>, vector<16x128xf32>, vector<64x128xf32> -> vector<64x128xf32>
    %835 = arith.index_cast %c7_i32_255 : i32 to index
    %c0_259 = arith.constant 0 : index
    %c0_260 = arith.constant 0 : index
    %836 = vector.load %arg12[%835, %c0_259, %c0_260] : memref<8x128x128xbf16, #tpu.memory_space<vmem>>, vector<1x64x128xbf16>
    %837 = vector.shape_cast %836 : vector<1x64x128xbf16> to vector<64x128xbf16>
    %838 = arith.extf %837 : vector<64x128xbf16> to vector<64x128xf32>
    %839 = arith.addf %838, %833 : vector<64x128xf32>
    %840 = arith.index_cast %c7_i32_255 : i32 to index
    %c64_261 = arith.constant 64 : index
    %c0_262 = arith.constant 0 : index
    %841 = vector.load %arg12[%840, %c64_261, %c0_262] : memref<8x128x128xbf16, #tpu.memory_space<vmem>>, vector<1x64x128xbf16>
    %842 = vector.shape_cast %841 : vector<1x64x128xbf16> to vector<64x128xbf16>
    %843 = arith.extf %842 : vector<64x128xbf16> to vector<64x128xf32>
    %844 = arith.addf %843, %834 : vector<64x128xf32>
    %845 = vector.extract_strided_slice %839 {offsets = [0, 0], sizes = [16, 128], strides = [1, 1]} : vector<64x128xf32> to vector<16x128xf32>
    %846 = arith.negf %845 : vector<16x128xf32>
    %847 = math.exp %846 : vector<16x128xf32>
    %cst_263 = arith.constant 1.000000e+00 : f32
    %848 = vector.broadcast %cst_263 : f32 to vector<16x128xf32>
    %849 = arith.addf %848, %847 : vector<16x128xf32>
    %850 = arith.divf %848, %849 : vector<16x128xf32>
    %851 = vector.extract_strided_slice %844 {offsets = [0, 0], sizes = [16, 128], strides = [1, 1]} : vector<64x128xf32> to vector<16x128xf32>
    %852 = arith.negf %851 : vector<16x128xf32>
    %853 = math.exp %852 : vector<16x128xf32>
    %cst_264 = arith.constant 1.000000e+00 : f32
    %854 = vector.broadcast %cst_264 : f32 to vector<16x128xf32>
    %855 = arith.addf %854, %853 : vector<16x128xf32>
    %856 = arith.divf %854, %855 : vector<16x128xf32>
    %857 = vector.extract_strided_slice %839 {offsets = [16, 0], sizes = [16, 128], strides = [1, 1]} : vector<64x128xf32> to vector<16x128xf32>
    %858 = arith.negf %857 : vector<16x128xf32>
    %859 = math.exp %858 : vector<16x128xf32>
    %cst_265 = arith.constant 1.000000e+00 : f32
    %860 = vector.broadcast %cst_265 : f32 to vector<16x128xf32>
    %861 = arith.addf %860, %859 : vector<16x128xf32>
    %862 = arith.divf %860, %861 : vector<16x128xf32>
    %863 = vector.extract_strided_slice %844 {offsets = [16, 0], sizes = [16, 128], strides = [1, 1]} : vector<64x128xf32> to vector<16x128xf32>
    %864 = arith.negf %863 : vector<16x128xf32>
    %865 = math.exp %864 : vector<16x128xf32>
    %cst_266 = arith.constant 1.000000e+00 : f32
    %866 = vector.broadcast %cst_266 : f32 to vector<16x128xf32>
    %867 = arith.addf %866, %865 : vector<16x128xf32>
    %868 = arith.divf %866, %867 : vector<16x128xf32>
    %869 = vector.extract_strided_slice %839 {offsets = [32, 0], sizes = [16, 128], strides = [1, 1]} : vector<64x128xf32> to vector<16x128xf32>
    %870 = math.tanh %869 : vector<16x128xf32>
    %871 = vector.extract_strided_slice %844 {offsets = [32, 0], sizes = [16, 128], strides = [1, 1]} : vector<64x128xf32> to vector<16x128xf32>
    %872 = math.tanh %871 : vector<16x128xf32>
    %873 = vector.extract_strided_slice %839 {offsets = [48, 0], sizes = [16, 128], strides = [1, 1]} : vector<64x128xf32> to vector<16x128xf32>
    %874 = arith.negf %873 : vector<16x128xf32>
    %875 = math.exp %874 : vector<16x128xf32>
    %cst_267 = arith.constant 1.000000e+00 : f32
    %876 = vector.broadcast %cst_267 : f32 to vector<16x128xf32>
    %877 = arith.addf %876, %875 : vector<16x128xf32>
    %878 = arith.divf %876, %877 : vector<16x128xf32>
    %879 = vector.extract_strided_slice %844 {offsets = [48, 0], sizes = [16, 128], strides = [1, 1]} : vector<64x128xf32> to vector<16x128xf32>
    %880 = arith.negf %879 : vector<16x128xf32>
    %881 = math.exp %880 : vector<16x128xf32>
    %cst_268 = arith.constant 1.000000e+00 : f32
    %882 = vector.broadcast %cst_268 : f32 to vector<16x128xf32>
    %883 = arith.addf %882, %881 : vector<16x128xf32>
    %884 = arith.divf %882, %883 : vector<16x128xf32>
    %885 = arith.mulf %862, %815 : vector<16x128xf32>
    %886 = arith.mulf %850, %870 : vector<16x128xf32>
    %887 = arith.addf %885, %886 : vector<16x128xf32>
    %888 = arith.mulf %868, %823 : vector<16x128xf32>
    %889 = arith.mulf %856, %872 : vector<16x128xf32>
    %890 = arith.addf %888, %889 : vector<16x128xf32>
    %891 = math.tanh %887 : vector<16x128xf32>
    %892 = arith.mulf %878, %891 : vector<16x128xf32>
    %893 = math.tanh %890 : vector<16x128xf32>
    %894 = arith.mulf %884, %893 : vector<16x128xf32>
    %895 = arith.index_cast %c7_i32_255 : i32 to index
    %c0_269 = arith.constant 0 : index
    %c0_270 = arith.constant 0 : index
    %896 = vector.load %arg2[%895, %c0_269, %c0_270] : memref<8x1x128xf32, #tpu.memory_space<vmem>>, vector<1x1x128xf32>
    %897 = vector.shape_cast %896 : vector<1x1x128xf32> to vector<1x128xf32>
    %898 = arith.index_cast %832 : i32 to index
    %c0_271 = arith.constant 0 : index
    %c0_272 = arith.constant 0 : index
    %899 = vector.load %arg2[%898, %c0_271, %c0_272] : memref<8x1x128xf32, #tpu.memory_space<vmem>>, vector<1x1x128xf32>
    %900 = vector.shape_cast %899 : vector<1x1x128xf32> to vector<1x128xf32>
    %901 = arith.subf %892, %811 : vector<16x128xf32>
    %902 = vector.broadcast %897 : vector<1x128xf32> to vector<16x128xf32>
    %903 = arith.mulf %902, %901 : vector<16x128xf32>
    %904 = arith.addf %811, %903 : vector<16x128xf32>
    %905 = arith.subf %887, %815 : vector<16x128xf32>
    %906 = vector.broadcast %897 : vector<1x128xf32> to vector<16x128xf32>
    %907 = arith.mulf %906, %905 : vector<16x128xf32>
    %908 = arith.addf %815, %907 : vector<16x128xf32>
    %909 = arith.subf %894, %819 : vector<16x128xf32>
    %910 = vector.broadcast %900 : vector<1x128xf32> to vector<16x128xf32>
    %911 = arith.mulf %910, %909 : vector<16x128xf32>
    %912 = arith.addf %819, %911 : vector<16x128xf32>
    %913 = arith.subf %890, %823 : vector<16x128xf32>
    %914 = vector.broadcast %900 : vector<1x128xf32> to vector<16x128xf32>
    %915 = arith.mulf %914, %913 : vector<16x128xf32>
    %916 = arith.addf %823, %915 : vector<16x128xf32>
    %917 = arith.index_cast %c7_i32_255 : i32 to index
    %c0_273 = arith.constant 0 : index
    %c0_274 = arith.constant 0 : index
    %918 = vector.load %arg13[%917, %c0_273, %c0_274] : memref<8x32x128xf32, #tpu.memory_space<vmem>>, vector<1x16x128xf32>
    %919 = vector.shape_cast %918 : vector<1x16x128xf32> to vector<16x128xf32>
    %920 = vector.shape_cast %904 : vector<16x128xf32> to vector<1x16x128xf32>
    tpu.vector_store %arg13[%917, %c0_273, %c0_274], %920 {strides = array<i32>} : memref<8x32x128xf32, #tpu.memory_space<vmem>>, vector<1x16x128xf32>,
    %921 = arith.index_cast %832 : i32 to index
    %c16_275 = arith.constant 16 : index
    %c0_276 = arith.constant 0 : index
    %922 = vector.load %arg13[%921, %c16_275, %c0_276] : memref<8x32x128xf32, #tpu.memory_space<vmem>>, vector<1x16x128xf32>
    %923 = vector.shape_cast %922 : vector<1x16x128xf32> to vector<16x128xf32>
    %924 = vector.shape_cast %912 : vector<16x128xf32> to vector<1x16x128xf32>
    tpu.vector_store %arg13[%921, %c16_275, %c0_276], %924 {strides = array<i32>} : memref<8x32x128xf32, #tpu.memory_space<vmem>>, vector<1x16x128xf32>,
    %c8_i32_277 = arith.constant 8 : i32
    %c0_i32_278 = arith.constant 0 : i32
    %925 = arith.index_cast %c0_i32_278 : i32 to index
    %c0_279 = arith.constant 0 : index
    %c0_280 = arith.constant 0 : index
    %926 = vector.load %arg13[%925, %c0_279, %c0_280] : memref<8x32x128xf32, #tpu.memory_space<vmem>>, vector<1x32x128xf32>
    %927 = vector.shape_cast %926 : vector<1x32x128xf32> to vector<32x128xf32>
    %cst_281 = arith.constant dense<0.000000e+00> : vector<16x128xf32>
    %928 = tpu.matmul %10, %927, %cst_281 {dimension_numbers = #tpu.dot_dimension_numbers<[1], [0], [0], [1], [0, 0, 1, 1], [], []>} : vector<16x32xf32>, vector<32x128xf32>, vector<16x128xf32> -> vector<16x128xf32>
    %929 = math.tanh %928 : vector<16x128xf32>
    %cst_282 = arith.constant dense<0.000000e+00> : vector<3x128xf32>
    %930 = tpu.matmul %11, %929, %cst_282 {dimension_numbers = #tpu.dot_dimension_numbers<[1], [0], [0], [1], [0, 0, 1, 1], [], []>} : vector<3x16xf32>, vector<16x128xf32>, vector<3x128xf32> -> vector<3x128xf32>
    %931 = arith.index_cast %c0_i32_278 : i32 to index
    %c0_283 = arith.constant 0 : index
    %c0_284 = arith.constant 0 : index
    %932 = vector.load %arg14[%931, %c0_283, %c0_284] : memref<8x3x128xf32, #tpu.memory_space<vmem>>, vector<1x3x128xf32>
    %933 = vector.shape_cast %932 : vector<1x3x128xf32> to vector<3x128xf32>
    %934 = vector.shape_cast %930 : vector<3x128xf32> to vector<1x3x128xf32>
    tpu.vector_store %arg14[%931, %c0_283, %c0_284], %934 {strides = array<i32>} : memref<8x3x128xf32, #tpu.memory_space<vmem>>, vector<1x3x128xf32>,
    %c1_i32_285 = arith.constant 1 : i32
    %935 = arith.index_cast %c1_i32_285 : i32 to index
    %c0_286 = arith.constant 0 : index
    %c0_287 = arith.constant 0 : index
    %936 = vector.load %arg13[%935, %c0_286, %c0_287] : memref<8x32x128xf32, #tpu.memory_space<vmem>>, vector<1x32x128xf32>
    %937 = vector.shape_cast %936 : vector<1x32x128xf32> to vector<32x128xf32>
    %cst_288 = arith.constant dense<0.000000e+00> : vector<16x128xf32>
    %938 = tpu.matmul %10, %937, %cst_288 {dimension_numbers = #tpu.dot_dimension_numbers<[1], [0], [0], [1], [0, 0, 1, 1], [], []>} : vector<16x32xf32>, vector<32x128xf32>, vector<16x128xf32> -> vector<16x128xf32>
    %939 = math.tanh %938 : vector<16x128xf32>
    %cst_289 = arith.constant dense<0.000000e+00> : vector<3x128xf32>
    %940 = tpu.matmul %11, %939, %cst_289 {dimension_numbers = #tpu.dot_dimension_numbers<[1], [0], [0], [1], [0, 0, 1, 1], [], []>} : vector<3x16xf32>, vector<16x128xf32>, vector<3x128xf32> -> vector<3x128xf32>
    %941 = arith.index_cast %c1_i32_285 : i32 to index
    %c0_290 = arith.constant 0 : index
    %c0_291 = arith.constant 0 : index
    %942 = vector.load %arg14[%941, %c0_290, %c0_291] : memref<8x3x128xf32, #tpu.memory_space<vmem>>, vector<1x3x128xf32>
    %943 = vector.shape_cast %942 : vector<1x3x128xf32> to vector<3x128xf32>
    %944 = vector.shape_cast %940 : vector<3x128xf32> to vector<1x3x128xf32>
    tpu.vector_store %arg14[%941, %c0_290, %c0_291], %944 {strides = array<i32>} : memref<8x3x128xf32, #tpu.memory_space<vmem>>, vector<1x3x128xf32>,
    %c2_i32_292 = arith.constant 2 : i32
    %945 = arith.index_cast %c2_i32_292 : i32 to index
    %c0_293 = arith.constant 0 : index
    %c0_294 = arith.constant 0 : index
    %946 = vector.load %arg13[%945, %c0_293, %c0_294] : memref<8x32x128xf32, #tpu.memory_space<vmem>>, vector<1x32x128xf32>
    %947 = vector.shape_cast %946 : vector<1x32x128xf32> to vector<32x128xf32>
    %cst_295 = arith.constant dense<0.000000e+00> : vector<16x128xf32>
    %948 = tpu.matmul %10, %947, %cst_295 {dimension_numbers = #tpu.dot_dimension_numbers<[1], [0], [0], [1], [0, 0, 1, 1], [], []>} : vector<16x32xf32>, vector<32x128xf32>, vector<16x128xf32> -> vector<16x128xf32>
    %949 = math.tanh %948 : vector<16x128xf32>
    %cst_296 = arith.constant dense<0.000000e+00> : vector<3x128xf32>
    %950 = tpu.matmul %11, %949, %cst_296 {dimension_numbers = #tpu.dot_dimension_numbers<[1], [0], [0], [1], [0, 0, 1, 1], [], []>} : vector<3x16xf32>, vector<16x128xf32>, vector<3x128xf32> -> vector<3x128xf32>
    %951 = arith.index_cast %c2_i32_292 : i32 to index
    %c0_297 = arith.constant 0 : index
    %c0_298 = arith.constant 0 : index
    %952 = vector.load %arg14[%951, %c0_297, %c0_298] : memref<8x3x128xf32, #tpu.memory_space<vmem>>, vector<1x3x128xf32>
    %953 = vector.shape_cast %952 : vector<1x3x128xf32> to vector<3x128xf32>
    %954 = vector.shape_cast %950 : vector<3x128xf32> to vector<1x3x128xf32>
    tpu.vector_store %arg14[%951, %c0_297, %c0_298], %954 {strides = array<i32>} : memref<8x3x128xf32, #tpu.memory_space<vmem>>, vector<1x3x128xf32>,
    %c3_i32_299 = arith.constant 3 : i32
    %955 = arith.index_cast %c3_i32_299 : i32 to index
    %c0_300 = arith.constant 0 : index
    %c0_301 = arith.constant 0 : index
    %956 = vector.load %arg13[%955, %c0_300, %c0_301] : memref<8x32x128xf32, #tpu.memory_space<vmem>>, vector<1x32x128xf32>
    %957 = vector.shape_cast %956 : vector<1x32x128xf32> to vector<32x128xf32>
    %cst_302 = arith.constant dense<0.000000e+00> : vector<16x128xf32>
    %958 = tpu.matmul %10, %957, %cst_302 {dimension_numbers = #tpu.dot_dimension_numbers<[1], [0], [0], [1], [0, 0, 1, 1], [], []>} : vector<16x32xf32>, vector<32x128xf32>, vector<16x128xf32> -> vector<16x128xf32>
    %959 = math.tanh %958 : vector<16x128xf32>
    %cst_303 = arith.constant dense<0.000000e+00> : vector<3x128xf32>
    %960 = tpu.matmul %11, %959, %cst_303 {dimension_numbers = #tpu.dot_dimension_numbers<[1], [0], [0], [1], [0, 0, 1, 1], [], []>} : vector<3x16xf32>, vector<16x128xf32>, vector<3x128xf32> -> vector<3x128xf32>
    %961 = arith.index_cast %c3_i32_299 : i32 to index
    %c0_304 = arith.constant 0 : index
    %c0_305 = arith.constant 0 : index
    %962 = vector.load %arg14[%961, %c0_304, %c0_305] : memref<8x3x128xf32, #tpu.memory_space<vmem>>, vector<1x3x128xf32>
    %963 = vector.shape_cast %962 : vector<1x3x128xf32> to vector<3x128xf32>
    %964 = vector.shape_cast %960 : vector<3x128xf32> to vector<1x3x128xf32>
    tpu.vector_store %arg14[%961, %c0_304, %c0_305], %964 {strides = array<i32>} : memref<8x3x128xf32, #tpu.memory_space<vmem>>, vector<1x3x128xf32>,
    %c4_i32_306 = arith.constant 4 : i32
    %965 = arith.index_cast %c4_i32_306 : i32 to index
    %c0_307 = arith.constant 0 : index
    %c0_308 = arith.constant 0 : index
    %966 = vector.load %arg13[%965, %c0_307, %c0_308] : memref<8x32x128xf32, #tpu.memory_space<vmem>>, vector<1x32x128xf32>
    %967 = vector.shape_cast %966 : vector<1x32x128xf32> to vector<32x128xf32>
    %cst_309 = arith.constant dense<0.000000e+00> : vector<16x128xf32>
    %968 = tpu.matmul %10, %967, %cst_309 {dimension_numbers = #tpu.dot_dimension_numbers<[1], [0], [0], [1], [0, 0, 1, 1], [], []>} : vector<16x32xf32>, vector<32x128xf32>, vector<16x128xf32> -> vector<16x128xf32>
    %969 = math.tanh %968 : vector<16x128xf32>
    %cst_310 = arith.constant dense<0.000000e+00> : vector<3x128xf32>
    %970 = tpu.matmul %11, %969, %cst_310 {dimension_numbers = #tpu.dot_dimension_numbers<[1], [0], [0], [1], [0, 0, 1, 1], [], []>} : vector<3x16xf32>, vector<16x128xf32>, vector<3x128xf32> -> vector<3x128xf32>
    %971 = arith.index_cast %c4_i32_306 : i32 to index
    %c0_311 = arith.constant 0 : index
    %c0_312 = arith.constant 0 : index
    %972 = vector.load %arg14[%971, %c0_311, %c0_312] : memref<8x3x128xf32, #tpu.memory_space<vmem>>, vector<1x3x128xf32>
    %973 = vector.shape_cast %972 : vector<1x3x128xf32> to vector<3x128xf32>
    %974 = vector.shape_cast %970 : vector<3x128xf32> to vector<1x3x128xf32>
    tpu.vector_store %arg14[%971, %c0_311, %c0_312], %974 {strides = array<i32>} : memref<8x3x128xf32, #tpu.memory_space<vmem>>, vector<1x3x128xf32>,
    %c5_i32_313 = arith.constant 5 : i32
    %975 = arith.index_cast %c5_i32_313 : i32 to index
    %c0_314 = arith.constant 0 : index
    %c0_315 = arith.constant 0 : index
    %976 = vector.load %arg13[%975, %c0_314, %c0_315] : memref<8x32x128xf32, #tpu.memory_space<vmem>>, vector<1x32x128xf32>
    %977 = vector.shape_cast %976 : vector<1x32x128xf32> to vector<32x128xf32>
    %cst_316 = arith.constant dense<0.000000e+00> : vector<16x128xf32>
    %978 = tpu.matmul %10, %977, %cst_316 {dimension_numbers = #tpu.dot_dimension_numbers<[1], [0], [0], [1], [0, 0, 1, 1], [], []>} : vector<16x32xf32>, vector<32x128xf32>, vector<16x128xf32> -> vector<16x128xf32>
    %979 = math.tanh %978 : vector<16x128xf32>
    %cst_317 = arith.constant dense<0.000000e+00> : vector<3x128xf32>
    %980 = tpu.matmul %11, %979, %cst_317 {dimension_numbers = #tpu.dot_dimension_numbers<[1], [0], [0], [1], [0, 0, 1, 1], [], []>} : vector<3x16xf32>, vector<16x128xf32>, vector<3x128xf32> -> vector<3x128xf32>
    %981 = arith.index_cast %c5_i32_313 : i32 to index
    %c0_318 = arith.constant 0 : index
    %c0_319 = arith.constant 0 : index
    %982 = vector.load %arg14[%981, %c0_318, %c0_319] : memref<8x3x128xf32, #tpu.memory_space<vmem>>, vector<1x3x128xf32>
    %983 = vector.shape_cast %982 : vector<1x3x128xf32> to vector<3x128xf32>
    %984 = vector.shape_cast %980 : vector<3x128xf32> to vector<1x3x128xf32>
    tpu.vector_store %arg14[%981, %c0_318, %c0_319], %984 {strides = array<i32>} : memref<8x3x128xf32, #tpu.memory_space<vmem>>, vector<1x3x128xf32>,
    %c6_i32_320 = arith.constant 6 : i32
    %985 = arith.index_cast %c6_i32_320 : i32 to index
    %c0_321 = arith.constant 0 : index
    %c0_322 = arith.constant 0 : index
    %986 = vector.load %arg13[%985, %c0_321, %c0_322] : memref<8x32x128xf32, #tpu.memory_space<vmem>>, vector<1x32x128xf32>
    %987 = vector.shape_cast %986 : vector<1x32x128xf32> to vector<32x128xf32>
    %cst_323 = arith.constant dense<0.000000e+00> : vector<16x128xf32>
    %988 = tpu.matmul %10, %987, %cst_323 {dimension_numbers = #tpu.dot_dimension_numbers<[1], [0], [0], [1], [0, 0, 1, 1], [], []>} : vector<16x32xf32>, vector<32x128xf32>, vector<16x128xf32> -> vector<16x128xf32>
    %989 = math.tanh %988 : vector<16x128xf32>
    %cst_324 = arith.constant dense<0.000000e+00> : vector<3x128xf32>
    %990 = tpu.matmul %11, %989, %cst_324 {dimension_numbers = #tpu.dot_dimension_numbers<[1], [0], [0], [1], [0, 0, 1, 1], [], []>} : vector<3x16xf32>, vector<16x128xf32>, vector<3x128xf32> -> vector<3x128xf32>
    %991 = arith.index_cast %c6_i32_320 : i32 to index
    %c0_325 = arith.constant 0 : index
    %c0_326 = arith.constant 0 : index
    %992 = vector.load %arg14[%991, %c0_325, %c0_326] : memref<8x3x128xf32, #tpu.memory_space<vmem>>, vector<1x3x128xf32>
    %993 = vector.shape_cast %992 : vector<1x3x128xf32> to vector<3x128xf32>
    %994 = vector.shape_cast %990 : vector<3x128xf32> to vector<1x3x128xf32>
    tpu.vector_store %arg14[%991, %c0_325, %c0_326], %994 {strides = array<i32>} : memref<8x3x128xf32, #tpu.memory_space<vmem>>, vector<1x3x128xf32>,
    %c7_i32_327 = arith.constant 7 : i32
    %995 = arith.index_cast %c7_i32_327 : i32 to index
    %c0_328 = arith.constant 0 : index
    %c0_329 = arith.constant 0 : index
    %996 = vector.load %arg13[%995, %c0_328, %c0_329] : memref<8x32x128xf32, #tpu.memory_space<vmem>>, vector<1x32x128xf32>
    %997 = vector.shape_cast %996 : vector<1x32x128xf32> to vector<32x128xf32>
    %cst_330 = arith.constant dense<0.000000e+00> : vector<16x128xf32>
    %998 = tpu.matmul %10, %997, %cst_330 {dimension_numbers = #tpu.dot_dimension_numbers<[1], [0], [0], [1], [0, 0, 1, 1], [], []>} : vector<16x32xf32>, vector<32x128xf32>, vector<16x128xf32> -> vector<16x128xf32>
    %999 = math.tanh %998 : vector<16x128xf32>
    %cst_331 = arith.constant dense<0.000000e+00> : vector<3x128xf32>
    %1000 = tpu.matmul %11, %999, %cst_331 {dimension_numbers = #tpu.dot_dimension_numbers<[1], [0], [0], [1], [0, 0, 1, 1], [], []>} : vector<3x16xf32>, vector<16x128xf32>, vector<3x128xf32> -> vector<3x128xf32>
    %1001 = arith.index_cast %c7_i32_327 : i32 to index
    %c0_332 = arith.constant 0 : index
    %c0_333 = arith.constant 0 : index
    %1002 = vector.load %arg14[%1001, %c0_332, %c0_333] : memref<8x3x128xf32, #tpu.memory_space<vmem>>, vector<1x3x128xf32>
    %1003 = vector.shape_cast %1002 : vector<1x3x128xf32> to vector<3x128xf32>
    %1004 = vector.shape_cast %1000 : vector<3x128xf32> to vector<1x3x128xf32>
    tpu.vector_store %arg14[%1001, %c0_332, %c0_333], %1004 {strides = array<i32>} : memref<8x3x128xf32, #tpu.memory_space<vmem>>, vector<1x3x128xf32>,
    %c8_i32_334 = arith.constant 8 : i32
    %c0_335 = arith.constant 0 : index
    %c0_336 = arith.constant 0 : index
    %c0_337 = arith.constant 0 : index
    %1005 = vector.load %arg2[%c0_335, %c0_336, %c0_337] : memref<8x1x128xf32, #tpu.memory_space<vmem>>, vector<8x1x128xf32>
    %c0_338 = arith.constant 0 : index
    %c0_339 = arith.constant 0 : index
    %c0_340 = arith.constant 0 : index
    %1006 = vector.load %arg14[%c0_338, %c0_339, %c0_340] : memref<8x3x128xf32, #tpu.memory_space<vmem>>, vector<8x3x128xf32>
    %1007 = vector.broadcast %1005 : vector<8x1x128xf32> to vector<8x3x128xf32>
    %1008 = arith.mulf %1006, %1007 : vector<8x3x128xf32>
    %cst_341 = arith.constant 1.000000e+00 : f32
    %1009 = vector.broadcast %cst_341 : f32 to vector<8x1x128xf32>
    %1010 = arith.subf %1009, %1005 : vector<8x1x128xf32>
    %cst_342 = arith.constant 1.000000e+30 : f32
    %1011 = vector.broadcast %cst_342 : f32 to vector<8x1x128xf32>
    %1012 = arith.mulf %1011, %1010 : vector<8x1x128xf32>
    %1013 = vector.broadcast %1012 : vector<8x1x128xf32> to vector<8x3x128xf32>
    %1014 = arith.subf %1008, %1013 : vector<8x3x128xf32>
    %cst_343 = arith.constant dense<0xFF800000> : vector<3x128xf32>
    %1015 = vector.multi_reduction <maximumf>, %1014, %cst_343 [0] : vector<8x3x128xf32> to vector<3x128xf32>
    %1016 = vector.shape_cast %1015 : vector<3x128xf32> to vector<1x3x128xf32>
    %1017 = vector.broadcast %1016 : vector<1x3x128xf32> to vector<8x3x128xf32>
    %1018 = arith.subf %1014, %1017 : vector<8x3x128xf32>
    %1019 = math.exp %1018 : vector<8x3x128xf32>
    %cst_344 = arith.constant dense<0.000000e+00> : vector<3x128xf32>
    %1020 = vector.multi_reduction <add>, %1019, %cst_344 [0] : vector<8x3x128xf32> to vector<3x128xf32>
    %1021 = vector.shape_cast %1020 : vector<3x128xf32> to vector<1x3x128xf32>
    %1022 = tpu.reciprocal %1021 {approx = true} : vector<1x3x128xf32> -> vector<1x3x128xf32>
    %1023 = vector.broadcast %1022 : vector<1x3x128xf32> to vector<8x3x128xf32>
    %1024 = arith.mulf %1019, %1023 : vector<8x3x128xf32>
    %cst_345 = arith.constant dense<0.000000e+00> : vector<8x128xf32>
    %1025 = vector.multi_reduction <add>, %1024, %cst_345 [1] : vector<8x3x128xf32> to vector<8x128xf32>
    %1026 = vector.shape_cast %1025 : vector<8x128xf32> to vector<8x1x128xf32>
    %cst_346 = arith.constant 0.333333343 : f32
    %1027 = vector.broadcast %cst_346 : f32 to vector<8x1x128xf32>
    %1028 = arith.mulf %1026, %1027 : vector<8x1x128xf32>
    %c0_347 = arith.constant 0 : index
    %c0_348 = arith.constant 0 : index
    %c0_349 = arith.constant 0 : index
    %1029 = vector.load %arg13[%c0_347, %c0_348, %c0_349] : memref<8x32x128xf32, #tpu.memory_space<vmem>>, vector<8x32x128xf32>
    %1030 = vector.broadcast %1028 : vector<8x1x128xf32> to vector<8x32x128xf32>
    %1031 = arith.mulf %1030, %1029 : vector<8x32x128xf32>
    %cst_350 = arith.constant dense<0.000000e+00> : vector<32x128xf32>
    %1032 = vector.multi_reduction <add>, %1031, %cst_350 [0] : vector<8x32x128xf32> to vector<32x128xf32>
    %c0_351 = arith.constant 0 : index
    %c0_352 = arith.constant 0 : index
    %c0_353 = arith.constant 0 : index
    %1033 = vector.load %arg2[%c0_351, %c0_352, %c0_353] : memref<8x1x128xf32, #tpu.memory_space<vmem>>, vector<1x1x128xf32>
    %1034 = vector.shape_cast %1033 : vector<1x1x128xf32> to vector<1x128xf32>
    %1035 = vector.broadcast %1034 : vector<1x128xf32> to vector<32x128xf32>
    %1036 = arith.mulf %1032, %1035 : vector<32x128xf32>
    %c0_354 = arith.constant 0 : index
    %c0_355 = arith.constant 0 : index
    %1037 = vector.load %arg11[%c0_354, %c0_355] : memref<32x128xf32, #tpu.memory_space<vmem>>, vector<32x128xf32>
    tpu.vector_store %arg11[%c0_354, %c0_355], %1036 {strides = array<i32>} : memref<32x128xf32, #tpu.memory_space<vmem>>, vector<32x128xf32>,
    return
  }
  func.func @transform_0(%arg0: i32) -> (i32, i32, i32) {
    %c0_i32 = arith.constant 0 : i32
    %c0_i32_0 = arith.constant 0 : i32
    %c0_i32_1 = arith.constant 0 : i32
    return %c0_i32, %c0_i32_0, %arg0 : i32, i32, i32
  }
  func.func @transform_1(%arg0: i32) -> (i32, i32, i32) {
    %c0_i32 = arith.constant 0 : i32
    %c0_i32_0 = arith.constant 0 : i32
    %c0_i32_1 = arith.constant 0 : i32
    return %c0_i32, %c0_i32_0, %arg0 : i32, i32, i32
  }
  func.func @transform_2(%arg0: i32) -> (i32, i32) {
    %c0_i32 = arith.constant 0 : i32
    %c0_i32_0 = arith.constant 0 : i32
    %c0_i32_1 = arith.constant 0 : i32
    return %c0_i32, %c0_i32_0 : i32, i32
  }
  func.func @transform_3(%arg0: i32) -> (i32, i32) {
    %c0_i32 = arith.constant 0 : i32
    %c0_i32_0 = arith.constant 0 : i32
    %c0_i32_1 = arith.constant 0 : i32
    return %c0_i32, %c0_i32_0 : i32, i32
  }
  func.func @transform_4(%arg0: i32) -> (i32, i32) {
    %c0_i32 = arith.constant 0 : i32
    %c0_i32_0 = arith.constant 0 : i32
    %c0_i32_1 = arith.constant 0 : i32
    return %c0_i32, %c0_i32_0 : i32, i32
  }
  func.func @transform_5(%arg0: i32) -> (i32, i32) {
    %c0_i32 = arith.constant 0 : i32
    %c0_i32_0 = arith.constant 0 : i32
    %c0_i32_1 = arith.constant 0 : i32
    return %c0_i32, %c0_i32_0 : i32, i32
  }
  func.func @transform_6(%arg0: i32) -> (i32, i32) {
    %c0_i32 = arith.constant 0 : i32
    %c0_i32_0 = arith.constant 0 : i32
    %c0_i32_1 = arith.constant 0 : i32
    return %c0_i32, %c0_i32_0 : i32, i32
  }
  func.func @transform_7(%arg0: i32) -> (i32, i32) {
    %c0_i32 = arith.constant 0 : i32
    %c0_i32_0 = arith.constant 0 : i32
    %c0_i32_1 = arith.constant 0 : i32
    return %c0_i32, %c0_i32_0 : i32, i32
  }
  func.func @transform_8(%arg0: i32) -> (i32, i32) {
    %c0_i32 = arith.constant 0 : i32
    %c0_i32_0 = arith.constant 0 : i32
    %c0_i32_1 = arith.constant 0 : i32
    return %c0_i32, %c0_i32_0 : i32, i32
  }
  func.func @transform_9(%arg0: i32) -> (i32, i32) {
    %c0_i32 = arith.constant 0 : i32
    %c0_i32_0 = arith.constant 0 : i32
    %c0_i32_1 = arith.constant 0 : i32
    return %c0_i32, %c0_i32_0 : i32, i32
  }
  func.func @transform_10(%arg0: i32) -> (i32, i32) {
    %c0_i32 = arith.constant 0 : i32
    %c0_i32_0 = arith.constant 0 : i32
    return %c0_i32, %arg0 : i32, i32
  }
}

</mosaic_0001>

<llo_original>
// kernel: tpu_custom_call.1
$region0: #{tpu_custom_call.1}
  #allocation0 [shape = 'u32[]', space=smem, size = 0x4, offset = 0x4, fixed_abs, tag = 'smem constant byte address 0x4 - core index']
  #allocation1 [shape = 'u32[72,128]{1,0:T(1,128)}', space=vmem, size = 0x9000, scoped, tag = 'internal scratch']
  #allocation2 [shape = 'bf16[8,128,128]{2,1,0:T(8,128)(2,1)}', space=vmem, size = 0x40000, scoped, tag = 'scratch operand']
  #allocation3 [shape = 'f32[8,32,128]{2,1,0:T(8,128)}', space=vmem, size = 0x20000, scoped, tag = 'scratch operand']
  #allocation4 [shape = 'f32[8,3,128]{2,1,0:T(4,128)}', space=vmem, size = 0x4000, scoped, tag = 'scratch operand']
  %s0 = inlined_call_operand.vmem [shape: bf16[8,16,128], index: 0, kind: input, shape index: {}]
  %s1 = inlined_call_operand.vmem [shape: f32[8,1,128], index: 1, kind: input, shape index: {}]
  %s2 = inlined_call_operand.vmem [shape: bf16[64,16], index: 2, kind: input, shape index: {}]
  %s3 = inlined_call_operand.vmem [shape: bf16[64,16], index: 3, kind: input, shape index: {}]
  %s4 = inlined_call_operand.vmem [shape: f32[64,1], index: 4, kind: input, shape index: {}]
  %s5 = inlined_call_operand.vmem [shape: f32[64,1], index: 5, kind: input, shape index: {}]
  %s6 = inlined_call_operand.vmem [shape: f32[64,16], index: 6, kind: input, shape index: {}]
  %s7 = inlined_call_operand.vmem [shape: f32[64,16], index: 7, kind: input, shape index: {}]
  %s8 = inlined_call_operand.vmem [shape: f32[16,32], index: 8, kind: input, shape index: {}]
  %s9 = inlined_call_operand.vmem [shape: f32[3,16], index: 9, kind: input, shape index: {}]
  %s10 = inlined_call_operand.hbm [shape: f32[32,128], index: 10, kind: output, shape index: {}]
  %s11 = sld [smem:[#allocation0]]
  $region50: #{tpu_custom_call.1} parent=0
    _
  %s13 = ssub.s32 1, %s11
  %s14 = scalar_select 0, %s13, %s11
  $region1: #{tpu_custom_call.1} parent=0
    #allocation5 [shape = 'u8[16384]{0}', space=vmem, size = 0x4000, scoped, tag = 'output window, operand 0, single buffered']
    #allocation6 [shape = 's32[1]{0}', space=sflag, size = 0x4, scoped, tag = 'scoped memory for tpu_custom_call.1']
    %15 = vsyncpa [#allocation6], 0
    // Predicated region
    $region2: #{tpu_custom_call.1} parent=1 // pred_check
      _
    $region3: #{tpu_custom_call.1} parent=1 // pred_check_branch
      %17 = sbr.rel (0) target = $region5
    $region4: #{tpu_custom_call.1} parent=1 // pred_region
      _
    $region5: #{tpu_custom_call.1} parent=1 // pred_fallthru
      _
    // Predicated region
    $region6: #{tpu_custom_call.1} parent=1 // pred_check
      _
    $region7: #{tpu_custom_call.1} parent=1 // pred_check_branch
      %19 = sbr.rel (0) target = $region9
    $region8: #{tpu_custom_call.1} parent=1 // pred_region
      _
    $region9: #{tpu_custom_call.1} parent=1 // pred_fallthru
      _
    // Predicated region
    $region10: #{tpu_custom_call.1} parent=1 // pred_check
      _
    $region11: #{tpu_custom_call.1} parent=1 // pred_check_branch
      %21 = sbr.rel (0) target = $region13
    $region12: #{tpu_custom_call.1} parent=1 // pred_region
      _
    $region13: #{tpu_custom_call.1} parent=1 // pred_fallthru
      _
    // Predicated region
    $region14: #{tpu_custom_call.1} parent=1 // pred_check
      _
    $region15: #{tpu_custom_call.1} parent=1 // pred_check_branch
      %23 = sbr.rel (0) target = $region17
    $region16: #{tpu_custom_call.1} parent=1 // pred_region
      _
    $region17: #{tpu_custom_call.1} parent=1 // pred_fallthru
      _
    // Predicated region
    $region18: #{tpu_custom_call.1} parent=1 // pred_check
      _
    $region19: #{tpu_custom_call.1} parent=1 // pred_check_branch
      %25 = sbr.rel (0) target = $region21
    $region20: #{tpu_custom_call.1} parent=1 // pred_region
      _
    $region21: #{tpu_custom_call.1} parent=1 // pred_fallthru
      _
    // Predicated region
    $region22: #{tpu_custom_call.1} parent=1 // pred_check
      _
    $region23: #{tpu_custom_call.1} parent=1 // pred_check_branch
      %27 = sbr.rel (0) target = $region25
    $region24: #{tpu_custom_call.1} parent=1 // pred_region
      _
    $region25: #{tpu_custom_call.1} parent=1 // pred_fallthru
      _
    // Predicated region
    $region26: #{tpu_custom_call.1} parent=1 // pred_check
      _
    $region27: #{tpu_custom_call.1} parent=1 // pred_check_branch
      %29 = sbr.rel (0) target = $region29
    $region28: #{tpu_custom_call.1} parent=1 // pred_region
      _
    $region29: #{tpu_custom_call.1} parent=1 // pred_fallthru
      _
    // Predicated region
    $region30: #{tpu_custom_call.1} parent=1 // pred_check
      _
    $region31: #{tpu_custom_call.1} parent=1 // pred_check_branch
      %31 = sbr.rel (0) target = $region33
    $region32: #{tpu_custom_call.1} parent=1 // pred_region
      _
    $region33: #{tpu_custom_call.1} parent=1 // pred_fallthru
      _
    // Predicated region
    $region34: #{tpu_custom_call.1} parent=1 // pred_check
      _
    $region35: #{tpu_custom_call.1} parent=1 // pred_check_branch
      %33 = sbr.rel (0) target = $region37
    $region36: #{tpu_custom_call.1} parent=1 // pred_region
      _
    $region37: #{tpu_custom_call.1} parent=1 // pred_fallthru
      _
    // Predicated region
    $region38: #{tpu_custom_call.1} parent=1 // pred_check
      _
    $region39: #{tpu_custom_call.1} parent=1 // pred_check_branch
      %35 = sbr.rel (0) target = $region41
    $region40: #{tpu_custom_call.1} parent=1 // pred_region
      _
    $region41: #{tpu_custom_call.1} parent=1 // pred_fallthru
      _
    %v37 = vld [vmem:[%s2] sm:$0xf]
    %v38 = vld [vmem:[%s2 + $0x4] sm:$0xf]
    %v39 = vld [vmem:[%s2 + $0x8] sm:$0xf]
    %v40 = vld [vmem:[%s2 + $0xc] sm:$0xf]
    %v41 = vld [vmem:[%s2 + $0x10] sm:$0xf]
    %v42 = vld [vmem:[%s2 + $0x14] sm:$0xf]
    %v43 = vld [vmem:[%s2 + $0x18] sm:$0xf]
    %v44 = vld [vmem:[%s2 + $0x1c] sm:$0xf]
    %v45 = vld [vmem:[%s3] sm:$0xf]
    %v46 = vld [vmem:[%s3 + $0x4] sm:$0xf]
    %v47 = vld [vmem:[%s3 + $0x8] sm:$0xf]
    %v48 = vld [vmem:[%s3 + $0xc] sm:$0xf]
    %v49 = vld [vmem:[%s3 + $0x10] sm:$0xf]
    %v50 = vld [vmem:[%s3 + $0x14] sm:$0xf]
    %v51 = vld [vmem:[%s3 + $0x18] sm:$0xf]
    %v52 = vld [vmem:[%s3 + $0x1c] sm:$0xf]
    %v53 = vld [vmem:[%s4] sm:$0xff]
    %v54 = vld [vmem:[%s4 + $0x8] sm:$0xff]
    %v55 = vld [vmem:[%s4 + $0x10] sm:$0xff]
    %v56 = vld [vmem:[%s4 + $0x18] sm:$0xff]
    %v57 = vld [vmem:[%s4 + $0x20] sm:$0xff]
    %v58 = vld [vmem:[%s4 + $0x28] sm:$0xff]
    %v59 = vld [vmem:[%s4 + $0x30] sm:$0xff]
    %v60 = vld [vmem:[%s4 + $0x38] sm:$0xff]
    %62 = vset.pattern.permute.xlu0 0
    %63 = vperm.xlu0 %62, %v53
    %v64 = vpop.permute.xlu0 %63
    %67 = vset.pattern.permute.xlu0 0
    %68 = vperm.xlu0 %67, %v54
    %v69 = vpop.permute.xlu0 %68
    %72 = vset.pattern.permute.xlu0 0
    %73 = vperm.xlu0 %72, %v55
    %v74 = vpop.permute.xlu0 %73
    %77 = vset.pattern.permute.xlu0 0
    %78 = vperm.xlu0 %77, %v56
    %v79 = vpop.permute.xlu0 %78
    %82 = vset.pattern.permute.xlu0 0
    %83 = vperm.xlu0 %82, %v57
    %v84 = vpop.permute.xlu0 %83
    %87 = vset.pattern.permute.xlu0 0
    %88 = vperm.xlu0 %87, %v58
    %v89 = vpop.permute.xlu0 %88
    %92 = vset.pattern.permute.xlu0 0
    %93 = vperm.xlu0 %92, %v59
    %v94 = vpop.permute.xlu0 %93
    %97 = vset.pattern.permute.xlu0 0
    %98 = vperm.xlu0 %97, %v60
    %v99 = vpop.permute.xlu0 %98
    %v101 = vld [vmem:[%s5] sm:$0xff]
    %v102 = vld [vmem:[%s5 + $0x8] sm:$0xff]
    %v103 = vld [vmem:[%s5 + $0x10] sm:$0xff]
    %v104 = vld [vmem:[%s5 + $0x18] sm:$0xff]
    %v105 = vld [vmem:[%s5 + $0x20] sm:$0xff]
    %v106 = vld [vmem:[%s5 + $0x28] sm:$0xff]
    %v107 = vld [vmem:[%s5 + $0x30] sm:$0xff]
    %v108 = vld [vmem:[%s5 + $0x38] sm:$0xff]
    %110 = vset.pattern.permute.xlu0 0
    %111 = vperm.xlu0 %110, %v101
    %v112 = vpop.permute.xlu0 %111
    %115 = vset.pattern.permute.xlu0 0
    %116 = vperm.xlu0 %115, %v102
    %v117 = vpop.permute.xlu0 %116
    %120 = vset.pattern.permute.xlu0 0
    %121 = vperm.xlu0 %120, %v103
    %v122 = vpop.permute.xlu0 %121
    %125 = vset.pattern.permute.xlu0 0
    %126 = vperm.xlu0 %125, %v104
    %v127 = vpop.permute.xlu0 %126
    %130 = vset.pattern.permute.xlu0 0
    %131 = vperm.xlu0 %130, %v105
    %v132 = vpop.permute.xlu0 %131
    %135 = vset.pattern.permute.xlu0 0
    %136 = vperm.xlu0 %135, %v106
    %v137 = vpop.permute.xlu0 %136
    %140 = vset.pattern.permute.xlu0 0
    %141 = vperm.xlu0 %140, %v107
    %v142 = vpop.permute.xlu0 %141
    %145 = vset.pattern.permute.xlu0 0
    %146 = vperm.xlu0 %145, %v108
    %v147 = vpop.permute.xlu0 %146
    %v149 = vld [vmem:[%s6] sm:$0xff]
    %v150 = vld [vmem:[%s6 + $0x8] sm:$0xff]
    %v151 = vld [vmem:[%s6 + $0x10] sm:$0xff]
    %v152 = vld [vmem:[%s6 + $0x18] sm:$0xff]
    %v153 = vld [vmem:[%s6 + $0x20] sm:$0xff]
    %v154 = vld [vmem:[%s6 + $0x28] sm:$0xff]
    %v155 = vld [vmem:[%s6 + $0x30] sm:$0xff]
    %v156 = vld [vmem:[%s6 + $0x38] sm:$0xff]
    %v157 = vld [vmem:[%s7] sm:$0xff]
    %v158 = vld [vmem:[%s7 + $0x8] sm:$0xff]
    %v159 = vld [vmem:[%s7 + $0x10] sm:$0xff]
    %v160 = vld [vmem:[%s7 + $0x18] sm:$0xff]
    %v161 = vld [vmem:[%s7 + $0x20] sm:$0xff]
    %v162 = vld [vmem:[%s7 + $0x28] sm:$0xff]
    %v163 = vld [vmem:[%s7 + $0x30] sm:$0xff]
    %v164 = vld [vmem:[%s7 + $0x38] sm:$0xff]
    %v165 = vld [vmem:[%s8] sm:$0xff]
    %v166 = vld [vmem:[%s8 + $0x8] sm:$0xff]
    %v167 = vld [vmem:[%s9] sm:$0x7]
    %v168 = vld [vmem:[%s0] sm:$0xf]
    %v169 = vld [vmem:[%s0 + $0x4] sm:$0xf]
    %s170 = scalar_lea.vmem %s0, 56
    %v171 = vld [vmem:[%s170] sm:$0xf]
    %v172 = vld [vmem:[%s170 + $0x4] sm:$0xf]
    %v181 = vunpack.c.l.b16 %v37
    %v182 = vunpack.c.l.b16 %v38
    %v183 = vunpack.c.l.b16 %v39
    %v184 = vunpack.c.l.b16 %v40
    %v185 = vunpack.c.l.b16 %v41
    %v186 = vunpack.c.l.b16 %v42
    %v187 = vunpack.c.l.b16 %v43
    %v188 = vunpack.c.l.b16 %v44
    %v189 = vpack.c.b16 %v182, %v181
    %v190 = vpack.c.b16 %v184, %v183
    %v191 = vpack.c.b16 %v186, %v185
    %v192 = vpack.c.b16 %v188, %v187
    %v195 = vunpack.c.l.b16 %v168
    %v196 = vunpack.c.l.b16 %v169
    %v197 = vpack.c.b16 %v196, %v195
    %vm199 = vcmask 130048
    %v201 = vsel %vm199, %v189, 0
    %v204 = vsel %vm199, %v190, 0
    %v207 = vsel %vm199, %v191, 0
    %v210 = vsel %vm199, %v192, 0
    %212 = vmatpush.bf16.msra.mxu0 0
    %213 = vmatpush.bf16.msra.mxu0 0
    %214 = vmatpush.bf16.msra.mxu0 0
    %215 = vmatpush.bf16.msra.mxu0 0
    %216 = vmatpush.bf16.msra.mxu0 0
    %217 = vmatpush.bf16.msra.mxu0 0
    %218 = vmatpush.bf16.msra.mxu0 0
    %219 = vmatpush.bf16.msra.mxu0 %v197
    %220 = vmatmul.bf16.gmra.mxu0 %v201
    %v221 = vpop.f32.mrf.mxu0
    %v222 = vadd.f32 %v64, %v221
    %v223 = vpop.f32.mrf.mxu0
    %v224 = vadd.f32 %v69, %v223
    %225 = vmatmul.bf16.gmra.mxu0 %v204
    %v226 = vpop.f32.mrf.mxu0
    %v227 = vadd.f32 %v74, %v226
    %v228 = vpop.f32.mrf.mxu0
    %v229 = vadd.f32 %v79, %v228
    %230 = vmatmul.bf16.gmra.mxu0 %v207
    %v231 = vpop.f32.mrf.mxu0
    %v232 = vadd.f32 %v84, %v231
    %v233 = vpop.f32.mrf.mxu0
    %v234 = vadd.f32 %v89, %v233
    %235 = vmatmul.bf16.gmra.mxu0 %v210
    %v236 = vpop.f32.mrf.mxu0
    %v237 = vadd.f32 %v94, %v236
    %v238 = vpop.f32.mrf.mxu0
    %v239 = vadd.f32 %v99, %v238
    %240 = vdwg.mxu0
    %v249 = vunpack.c.l.b16 %v45
    %v250 = vunpack.c.l.b16 %v46
    %v251 = vunpack.c.l.b16 %v47
    %v252 = vunpack.c.l.b16 %v48
    %v253 = vunpack.c.l.b16 %v49
    %v254 = vunpack.c.l.b16 %v50
    %v255 = vunpack.c.l.b16 %v51
    %v256 = vunpack.c.l.b16 %v52
    %v257 = vpack.c.b16 %v250, %v249
    %v258 = vpack.c.b16 %v252, %v251
    %v259 = vpack.c.b16 %v254, %v253
    %v260 = vpack.c.b16 %v256, %v255
    %v263 = vunpack.c.l.b16 %v171
    %v264 = vunpack.c.l.b16 %v172
    %v265 = vpack.c.b16 %v264, %v263
    %v268 = vsel %vm199, %v257, 0
    %v271 = vsel %vm199, %v258, 0
    %v274 = vsel %vm199, %v259, 0
    %v277 = vsel %vm199, %v260, 0
    %279 = vmatpush.bf16.msra.mxu0 0
    %280 = vmatpush.bf16.msra.mxu0 0
    %281 = vmatpush.bf16.msra.mxu0 0
    %282 = vmatpush.bf16.msra.mxu0 0
    %283 = vmatpush.bf16.msra.mxu0 0
    %284 = vmatpush.bf16.msra.mxu0 0
    %285 = vmatpush.bf16.msra.mxu0 0
    %286 = vmatpush.bf16.msra.mxu0 %v265
    %287 = vmatmul.bf16.gmra.mxu0 %v268
    %v288 = vpop.f32.mrf.mxu0
    %v289 = vadd.f32 %v112, %v288
    %v290 = vpop.f32.mrf.mxu0
    %v291 = vadd.f32 %v117, %v290
    %292 = vmatmul.bf16.gmra.mxu0 %v271
    %v293 = vpop.f32.mrf.mxu0
    %v294 = vadd.f32 %v122, %v293
    %v295 = vpop.f32.mrf.mxu0
    %v296 = vadd.f32 %v127, %v295
    %297 = vmatmul.bf16.gmra.mxu0 %v274
    %v298 = vpop.f32.mrf.mxu0
    %v299 = vadd.f32 %v132, %v298
    %v300 = vpop.f32.mrf.mxu0
    %v301 = vadd.f32 %v137, %v300
    %302 = vmatmul.bf16.gmra.mxu0 %v277
    %v303 = vpop.f32.mrf.mxu0
    %v304 = vadd.f32 %v142, %v303
    %v305 = vpop.f32.mrf.mxu0
    %v306 = vadd.f32 %v147, %v305
    %307 = vdwg.mxu0
    %v308 = vpack.c.bf16 %v222, %v222
    %v309 = vpack.c.bf16 %v224, %v224
    %v310 = vpack.c.bf16 %v227, %v227
    %v311 = vpack.c.bf16 %v229, %v229
    %v312 = vpack.c.bf16 %v232, %v232
    %v313 = vpack.c.bf16 %v234, %v234
    %v314 = vpack.c.bf16 %v237, %v237
    %v315 = vpack.c.bf16 %v239, %v239
    %316 = vst [vmem:[#allocation2] sm:$0xf] %v308
    %317 = vst [vmem:[#allocation2 + $0x4] sm:$0xf] %v309
    %318 = vst [vmem:[#allocation2 + $0x8] sm:$0xf] %v310
    %319 = vst [vmem:[#allocation2 + $0xc] sm:$0xf] %v311
    %320 = vst [vmem:[#allocation2 + $0x10] sm:$0xf] %v312
    %321 = vst [vmem:[#allocation2 + $0x14] sm:$0xf] %v313
    %322 = vst [vmem:[#allocation2 + $0x18] sm:$0xf] %v314
    %323 = vst [vmem:[#allocation2 + $0x1c] sm:$0xf] %v315
    %v324 = vpack.c.bf16 %v289, %v289
    %v325 = vpack.c.bf16 %v291, %v291
    %v326 = vpack.c.bf16 %v294, %v294
    %v327 = vpack.c.bf16 %v296, %v296
    %v328 = vpack.c.bf16 %v299, %v299
    %v329 = vpack.c.bf16 %v301, %v301
    %v330 = vpack.c.bf16 %v304, %v304
    %v331 = vpack.c.bf16 %v306, %v306
    %332 = vst [vmem:[#allocation2 + $0x20] sm:$0xf] %v324
    %333 = vst [vmem:[#allocation2 + $0x24] sm:$0xf] %v325
    %334 = vst [vmem:[#allocation2 + $0x28] sm:$0xf] %v326
    %335 = vst [vmem:[#allocation2 + $0x2c] sm:$0xf] %v327
    %336 = vst [vmem:[#allocation2 + $0x30] sm:$0xf] %v328
    %337 = vst [vmem:[#allocation2 + $0x34] sm:$0xf] %v329
    %338 = vst [vmem:[#allocation2 + $0x38] sm:$0xf] %v330
    %339 = vst [vmem:[#allocation2 + $0x3c] sm:$0xf] %v331
    %s340 = scalar_lea.vmem %s0, 8
    %v341 = vld [vmem:[%s340] sm:$0xf]
    %v342 = vld [vmem:[%s340 + $0x4] sm:$0xf]
    %s343 = scalar_lea.vmem %s0, 48
    %v344 = vld [vmem:[%s343] sm:$0xf]
    %v345 = vld [vmem:[%s343 + $0x4] sm:$0xf]
    %v348 = vunpack.c.l.b16 %v341
    %v349 = vunpack.c.l.b16 %v342
    %v350 = vpack.c.b16 %v349, %v348
    %352 = vmatpush.bf16.msra.mxu0 0
    %353 = vmatpush.bf16.msra.mxu0 0
    %354 = vmatpush.bf16.msra.mxu0 0
    %355 = vmatpush.bf16.msra.mxu0 0
    %356 = vmatpush.bf16.msra.mxu0 0
    %357 = vmatpush.bf16.msra.mxu0 0
    %358 = vmatpush.bf16.msra.mxu0 0
    %359 = vmatpush.bf16.msra.mxu0 %v350
    %360 = vmatmul.bf16.gmra.mxu0 %v201
    %v361 = vpop.f32.mrf.mxu0
    %v362 = vadd.f32 %v64, %v361
    %v363 = vpop.f32.mrf.mxu0
    %v364 = vadd.f32 %v69, %v363
    %365 = vmatmul.bf16.gmra.mxu0 %v204
    %v366 = vpop.f32.mrf.mxu0
    %v367 = vadd.f32 %v74, %v366
    %v368 = vpop.f32.mrf.mxu0
    %v369 = vadd.f32 %v79, %v368
    %370 = vmatmul.bf16.gmra.mxu0 %v207
    %v371 = vpop.f32.mrf.mxu0
    %v372 = vadd.f32 %v84, %v371
    %v373 = vpop.f32.mrf.mxu0
    %v374 = vadd.f32 %v89, %v373
    %375 = vmatmul.bf16.gmra.mxu0 %v210
    %v376 = vpop.f32.mrf.mxu0
    %v377 = vadd.f32 %v94, %v376
    %v378 = vpop.f32.mrf.mxu0
    %v379 = vadd.f32 %v99, %v378
    %380 = vdwg.mxu0
    %v383 = vunpack.c.l.b16 %v344
    %v384 = vunpack.c.l.b16 %v345
    %v385 = vpack.c.b16 %v384, %v383
    %387 = vmatpush.bf16.msra.mxu0 0
    %388 = vmatpush.bf16.msra.mxu0 0
    %389 = vmatpush.bf16.msra.mxu0 0
    %390 = vmatpush.bf16.msra.mxu0 0
    %391 = vmatpush.bf16.msra.mxu0 0
    %392 = vmatpush.bf16.msra.mxu0 0
    %393 = vmatpush.bf16.msra.mxu0 0
    %394 = vmatpush.bf16.msra.mxu0 %v385
    %395 = vmatmul.bf16.gmra.mxu0 %v268
    %v396 = vpop.f32.mrf.mxu0
    %v397 = vadd.f32 %v112, %v396
    %v398 = vpop.f32.mrf.mxu0
    %v399 = vadd.f32 %v117, %v398
    %400 = vmatmul.bf16.gmra.mxu0 %v271
    %v401 = vpop.f32.mrf.mxu0
    %v402 = vadd.f32 %v122, %v401
    %v403 = vpop.f32.mrf.mxu0
    %v404 = vadd.f32 %v127, %v403
    %405 = vmatmul.bf16.gmra.mxu0 %v274
    %v406 = vpop.f32.mrf.mxu0
    %v407 = vadd.f32 %v132, %v406
    %v408 = vpop.f32.mrf.mxu0
    %v409 = vadd.f32 %v137, %v408
    %410 = vmatmul.bf16.gmra.mxu0 %v277
    %v411 = vpop.f32.mrf.mxu0
    %v412 = vadd.f32 %v142, %v411
    %v413 = vpop.f32.mrf.mxu0
    %v414 = vadd.f32 %v147, %v413
    %415 = vdwg.mxu0
    %v416 = vpack.c.bf16 %v362, %v362
    %v417 = vpack.c.bf16 %v364, %v364
    %v418 = vpack.c.bf16 %v367, %v367
    %v419 = vpack.c.bf16 %v369, %v369
    %v420 = vpack.c.bf16 %v372, %v372
    %v421 = vpack.c.bf16 %v374, %v374
    %v422 = vpack.c.bf16 %v377, %v377
    %v423 = vpack.c.bf16 %v379, %v379
    %s424 = scalar_lea.vmem [#allocation2], 64
    %425 = vst [vmem:[%s424] sm:$0xf] %v416
    %426 = vst [vmem:[%s424 + $0x4] sm:$0xf] %v417
    %427 = vst [vmem:[%s424 + $0x8] sm:$0xf] %v418
    %428 = vst [vmem:[%s424 + $0xc] sm:$0xf] %v419
    %429 = vst [vmem:[%s424 + $0x10] sm:$0xf] %v420
    %430 = vst [vmem:[%s424 + $0x14] sm:$0xf] %v421
    %431 = vst [vmem:[%s424 + $0x18] sm:$0xf] %v422
    %432 = vst [vmem:[%s424 + $0x1c] sm:$0xf] %v423
    %v433 = vpack.c.bf16 %v397, %v397
    %v434 = vpack.c.bf16 %v399, %v399
    %v435 = vpack.c.bf16 %v402, %v402
    %v436 = vpack.c.bf16 %v404, %v404
    %v437 = vpack.c.bf16 %v407, %v407
    %v438 = vpack.c.bf16 %v409, %v409
    %v439 = vpack.c.bf16 %v412, %v412
    %v440 = vpack.c.bf16 %v414, %v414
    %441 = vst [vmem:[%s424 + $0x20] sm:$0xf] %v433
    %442 = vst [vmem:[%s424 + $0x24] sm:$0xf] %v434
    %443 = vst [vmem:[%s424 + $0x28] sm:$0xf] %v435
    %444 = vst [vmem:[%s424 + $0x2c] sm:$0xf] %v436
    %445 = vst [vmem:[%s424 + $0x30] sm:$0xf] %v437
    %446 = vst [vmem:[%s424 + $0x34] sm:$0xf] %v438
    %447 = vst [vmem:[%s424 + $0x38] sm:$0xf] %v439
    %448 = vst [vmem:[%s424 + $0x3c] sm:$0xf] %v440
    %s449 = scalar_lea.vmem %s0, 16
    %v450 = vld [vmem:[%s449] sm:$0xf]
    %v451 = vld [vmem:[%s449 + $0x4] sm:$0xf]
    %s452 = scalar_lea.vmem %s0, 40
    %v453 = vld [vmem:[%s452] sm:$0xf]
    %v454 = vld [vmem:[%s452 + $0x4] sm:$0xf]
    %v457 = vunpack.c.l.b16 %v450
    %v458 = vunpack.c.l.b16 %v451
    %v459 = vpack.c.b16 %v458, %v457
    %461 = vmatpush.bf16.msra.mxu0 0
    %462 = vmatpush.bf16.msra.mxu0 0
    %463 = vmatpush.bf16.msra.mxu0 0
    %464 = vmatpush.bf16.msra.mxu0 0
    %465 = vmatpush.bf16.msra.mxu0 0
    %466 = vmatpush.bf16.msra.mxu0 0
    %467 = vmatpush.bf16.msra.mxu0 0
    %468 = vmatpush.bf16.msra.mxu0 %v459
    %469 = vmatmul.bf16.gmra.mxu0 %v201
    %v470 = vpop.f32.mrf.mxu0
    %v471 = vadd.f32 %v64, %v470
    %v472 = vpop.f32.mrf.mxu0
    %v473 = vadd.f32 %v69, %v472
    %474 = vmatmul.bf16.gmra.mxu0 %v204
    %v475 = vpop.f32.mrf.mxu0
    %v476 = vadd.f32 %v74, %v475
    %v477 = vpop.f32.mrf.mxu0
    %v478 = vadd.f32 %v79, %v477
    %479 = vmatmul.bf16.gmra.mxu0 %v207
    %v480 = vpop.f32.mrf.mxu0
    %v481 = vadd.f32 %v84, %v480
    %v482 = vpop.f32.mrf.mxu0
    %v483 = vadd.f32 %v89, %v482
    %484 = vmatmul.bf16.gmra.mxu0 %v210
    %v485 = vpop.f32.mrf.mxu0
    %v486 = vadd.f32 %v94, %v485
    %v487 = vpop.f32.mrf.mxu0
    %v488 = vadd.f32 %v99, %v487
    %489 = vdwg.mxu0
    %v492 = vunpack.c.l.b16 %v453
    %v493 = vunpack.c.l.b16 %v454
    %v494 = vpack.c.b16 %v493, %v492
    %496 = vmatpush.bf16.msra.mxu0 0
    %497 = vmatpush.bf16.msra.mxu0 0
    %498 = vmatpush.bf16.msra.mxu0 0
    %499 = vmatpush.bf16.msra.mxu0 0
    %500 = vmatpush.bf16.msra.mxu0 0
    %501 = vmatpush.bf16.msra.mxu0 0
    %502 = vmatpush.bf16.msra.mxu0 0
    %503 = vmatpush.bf16.msra.mxu0 %v494
    %504 = vmatmul.bf16.gmra.mxu0 %v268
    %v505 = vpop.f32.mrf.mxu0
    %v506 = vadd.f32 %v112, %v505
    %v507 = vpop.f32.mrf.mxu0
    %v508 = vadd.f32 %v117, %v507
    %509 = vmatmul.bf16.gmra.mxu0 %v271
    %v510 = vpop.f32.mrf.mxu0
    %v511 = vadd.f32 %v122, %v510
    %v512 = vpop.f32.mrf.mxu0
    %v513 = vadd.f32 %v127, %v512
    %514 = vmatmul.bf16.gmra.mxu0 %v274
    %v515 = vpop.f32.mrf.mxu0
    %v516 = vadd.f32 %v132, %v515
    %v517 = vpop.f32.mrf.mxu0
    %v518 = vadd.f32 %v137, %v517
    %519 = vmatmul.bf16.gmra.mxu0 %v277
    %v520 = vpop.f32.mrf.mxu0
    %v521 = vadd.f32 %v142, %v520
    %v522 = vpop.f32.mrf.mxu0
    %v523 = vadd.f32 %v147, %v522
    %524 = vdwg.mxu0
    %v525 = vpack.c.bf16 %v471, %v471
    %v526 = vpack.c.bf16 %v473, %v473
    %v527 = vpack.c.bf16 %v476, %v476
    %v528 = vpack.c.bf16 %v478, %v478
    %v529 = vpack.c.bf16 %v481, %v481
    %v530 = vpack.c.bf16 %v483, %v483
    %v531 = vpack.c.bf16 %v486, %v486
    %v532 = vpack.c.bf16 %v488, %v488
    %s533 = scalar_lea.vmem [#allocation2], 128
    %534 = vst [vmem:[%s533] sm:$0xf] %v525
    %535 = vst [vmem:[%s533 + $0x4] sm:$0xf] %v526
    %536 = vst [vmem:[%s533 + $0x8] sm:$0xf] %v527
    %537 = vst [vmem:[%s533 + $0xc] sm:$0xf] %v528
    %538 = vst [vmem:[%s533 + $0x10] sm:$0xf] %v529
    %539 = vst [vmem:[%s533 + $0x14] sm:$0xf] %v530
    %540 = vst [vmem:[%s533 + $0x18] sm:$0xf] %v531
    %541 = vst [vmem:[%s533 + $0x1c] sm:$0xf] %v532
    %v542 = vpack.c.bf16 %v506, %v506
    %v543 = vpack.c.bf16 %v508, %v508
    %v544 = vpack.c.bf16 %v511, %v511
    %v545 = vpack.c.bf16 %v513, %v513
    %v546 = vpack.c.bf16 %v516, %v516
    %v547 = vpack.c.bf16 %v518, %v518
    %v548 = vpack.c.bf16 %v521, %v521
    %v549 = vpack.c.bf16 %v523, %v523
    %550 = vst [vmem:[%s533 + $0x20] sm:$0xf] %v542
    %551 = vst [vmem:[%s533 + $0x24] sm:$0xf] %v543
    %552 = vst [vmem:[%s533 + $0x28] sm:$0xf] %v544
    %553 = vst [vmem:[%s533 + $0x2c] sm:$0xf] %v545
    %554 = vst [vmem:[%s533 + $0x30] sm:$0xf] %v546
    %555 = vst [vmem:[%s533 + $0x34] sm:$0xf] %v547
    %556 = vst [vmem:[%s533 + $0x38] sm:$0xf] %v548
    %557 = vst [vmem:[%s533 + $0x3c] sm:$0xf] %v549
    %s558 = scalar_lea.vmem %s0, 24
    %v559 = vld [vmem:[%s558] sm:$0xf]
    %v560 = vld [vmem:[%s558 + $0x4] sm:$0xf]
    %s561 = scalar_lea.vmem %s0, 32
    %v562 = vld [vmem:[%s561] sm:$0xf]
    %v563 = vld [vmem:[%s561 + $0x4] sm:$0xf]
    %v566 = vunpack.c.l.b16 %v559
    %v567 = vunpack.c.l.b16 %v560
    %v568 = vpack.c.b16 %v567, %v566
    %570 = vmatpush.bf16.msra.mxu0 0
    %571 = vmatpush.bf16.msra.mxu0 0
    %572 = vmatpush.bf16.msra.mxu0 0
    %573 = vmatpush.bf16.msra.mxu0 0
    %574 = vmatpush.bf16.msra.mxu0 0
    %575 = vmatpush.bf16.msra.mxu0 0
    %576 = vmatpush.bf16.msra.mxu0 0
    %577 = vmatpush.bf16.msra.mxu0 %v568
    %578 = vmatmul.bf16.gmra.mxu0 %v201
    %v579 = vpop.f32.mrf.mxu0
    %v580 = vadd.f32 %v64, %v579
    %v581 = vpop.f32.mrf.mxu0
    %v582 = vadd.f32 %v69, %v581
    %583 = vmatmul.bf16.gmra.mxu0 %v204
    %v584 = vpop.f32.mrf.mxu0
    %v585 = vadd.f32 %v74, %v584
    %v586 = vpop.f32.mrf.mxu0
    %v587 = vadd.f32 %v79, %v586
    %588 = vmatmul.bf16.gmra.mxu0 %v207
    %v589 = vpop.f32.mrf.mxu0
    %v590 = vadd.f32 %v84, %v589
    %v591 = vpop.f32.mrf.mxu0
    %v592 = vadd.f32 %v89, %v591
    %593 = vmatmul.bf16.gmra.mxu0 %v210
    %v594 = vpop.f32.mrf.mxu0
    %v595 = vadd.f32 %v94, %v594
    %v596 = vpop.f32.mrf.mxu0
    %v597 = vadd.f32 %v99, %v596
    %598 = vdwg.mxu0
    %v601 = vunpack.c.l.b16 %v562
    %v602 = vunpack.c.l.b16 %v563
    %v603 = vpack.c.b16 %v602, %v601
    %605 = vmatpush.bf16.msra.mxu0 0
    %606 = vmatpush.bf16.msra.mxu0 0
    %607 = vmatpush.bf16.msra.mxu0 0
    %608 = vmatpush.bf16.msra.mxu0 0
    %609 = vmatpush.bf16.msra.mxu0 0
    %610 = vmatpush.bf16.msra.mxu0 0
    %611 = vmatpush.bf16.msra.mxu0 0
    %612 = vmatpush.bf16.msra.mxu0 %v603
    %613 = vmatmul.bf16.gmra.mxu0 %v268
    %v614 = vpop.f32.mrf.mxu0
    %v615 = vadd.f32 %v112, %v614
    %v616 = vpop.f32.mrf.mxu0
    %v617 = vadd.f32 %v117, %v616
    %618 = vmatmul.bf16.gmra.mxu0 %v271
    %v619 = vpop.f32.mrf.mxu0
    %v620 = vadd.f32 %v122, %v619
    %v621 = vpop.f32.mrf.mxu0
    %v622 = vadd.f32 %v127, %v621
    %623 = vmatmul.bf16.gmra.mxu0 %v274
    %v624 = vpop.f32.mrf.mxu0
    %v625 = vadd.f32 %v132, %v624
    %v626 = vpop.f32.mrf.mxu0
    %v627 = vadd.f32 %v137, %v626
    %628 = vmatmul.bf16.gmra.mxu0 %v277
    %v629 = vpop.f32.mrf.mxu0
    %v630 = vadd.f32 %v142, %v629
    %v631 = vpop.f32.mrf.mxu0
    %v632 = vadd.f32 %v147, %v631
    %633 = vdwg.mxu0
    %v634 = vpack.c.bf16 %v580, %v580
    %v635 = vpack.c.bf16 %v582, %v582
    %v636 = vpack.c.bf16 %v585, %v585
    %v637 = vpack.c.bf16 %v587, %v587
    %v638 = vpack.c.bf16 %v590, %v590
    %v639 = vpack.c.bf16 %v592, %v592
    %v640 = vpack.c.bf16 %v595, %v595
    %v641 = vpack.c.bf16 %v597, %v597
    %s642 = scalar_lea.vmem [#allocation2], 192
    %643 = vst [vmem:[%s642] sm:$0xf] %v634
    %644 = vst [vmem:[%s642 + $0x4] sm:$0xf] %v635
    %645 = vst [vmem:[%s642 + $0x8] sm:$0xf] %v636
    %646 = vst [vmem:[%s642 + $0xc] sm:$0xf] %v637
    %647 = vst [vmem:[%s642 + $0x10] sm:$0xf] %v638
    %648 = vst [vmem:[%s642 + $0x14] sm:$0xf] %v639
    %649 = vst [vmem:[%s642 + $0x18] sm:$0xf] %v640
    %650 = vst [vmem:[%s642 + $0x1c] sm:$0xf] %v641
    %v651 = vpack.c.bf16 %v615, %v615
    %v652 = vpack.c.bf16 %v617, %v617
    %v653 = vpack.c.bf16 %v620, %v620
    %v654 = vpack.c.bf16 %v622, %v622
    %v655 = vpack.c.bf16 %v625, %v625
    %v656 = vpack.c.bf16 %v627, %v627
    %v657 = vpack.c.bf16 %v630, %v630
    %v658 = vpack.c.bf16 %v632, %v632
    %659 = vst [vmem:[%s642 + $0x20] sm:$0xf] %v651
    %660 = vst [vmem:[%s642 + $0x24] sm:$0xf] %v652
    %661 = vst [vmem:[%s642 + $0x28] sm:$0xf] %v653
    %662 = vst [vmem:[%s642 + $0x2c] sm:$0xf] %v654
    %663 = vst [vmem:[%s642 + $0x30] sm:$0xf] %v655
    %664 = vst [vmem:[%s642 + $0x34] sm:$0xf] %v656
    %665 = vst [vmem:[%s642 + $0x38] sm:$0xf] %v657
    %666 = vst [vmem:[%s642 + $0x3c] sm:$0xf] %v658
    %v667 = vld [vmem:[%s561] sm:$0xf]
    %v668 = vld [vmem:[%s561 + $0x4] sm:$0xf]
    %v669 = vld [vmem:[%s558] sm:$0xf]
    %v670 = vld [vmem:[%s558 + $0x4] sm:$0xf]
    %v673 = vunpack.c.l.b16 %v667
    %v674 = vunpack.c.l.b16 %v668
    %v675 = vpack.c.b16 %v674, %v673
    %677 = vmatpush.bf16.msra.mxu0 0
    %678 = vmatpush.bf16.msra.mxu0 0
    %679 = vmatpush.bf16.msra.mxu0 0
    %680 = vmatpush.bf16.msra.mxu0 0
    %681 = vmatpush.bf16.msra.mxu0 0
    %682 = vmatpush.bf16.msra.mxu0 0
    %683 = vmatpush.bf16.msra.mxu0 0
    %684 = vmatpush.bf16.msra.mxu0 %v675
    %685 = vmatmul.bf16.gmra.mxu0 %v201
    %v686 = vpop.f32.mrf.mxu0
    %v687 = vadd.f32 %v64, %v686
    %v688 = vpop.f32.mrf.mxu0
    %v689 = vadd.f32 %v69, %v688
    %690 = vmatmul.bf16.gmra.mxu0 %v204
    %v691 = vpop.f32.mrf.mxu0
    %v692 = vadd.f32 %v74, %v691
    %v693 = vpop.f32.mrf.mxu0
    %v694 = vadd.f32 %v79, %v693
    %695 = vmatmul.bf16.gmra.mxu0 %v207
    %v696 = vpop.f32.mrf.mxu0
    %v697 = vadd.f32 %v84, %v696
    %v698 = vpop.f32.mrf.mxu0
    %v699 = vadd.f32 %v89, %v698
    %700 = vmatmul.bf16.gmra.mxu0 %v210
    %v701 = vpop.f32.mrf.mxu0
    %v702 = vadd.f32 %v94, %v701
    %v703 = vpop.f32.mrf.mxu0
    %v704 = vadd.f32 %v99, %v703
    %705 = vdwg.mxu0
    %v708 = vunpack.c.l.b16 %v669
    %v709 = vunpack.c.l.b16 %v670
    %v710 = vpack.c.b16 %v709, %v708
    %712 = vmatpush.bf16.msra.mxu0 0
    %713 = vmatpush.bf16.msra.mxu0 0
    %714 = vmatpush.bf16.msra.mxu0 0
    %715 = vmatpush.bf16.msra.mxu0 0
    %716 = vmatpush.bf16.msra.mxu0 0
    %717 = vmatpush.bf16.msra.mxu0 0
    %718 = vmatpush.bf16.msra.mxu0 0
    %719 = vmatpush.bf16.msra.mxu0 %v710
    %720 = vmatmul.bf16.gmra.mxu0 %v268
    %v721 = vpop.f32.mrf.mxu0
    %v722 = vadd.f32 %v112, %v721
    %v723 = vpop.f32.mrf.mxu0
    %v724 = vadd.f32 %v117, %v723
    %725 = vmatmul.bf16.gmra.mxu0 %v271
    %v726 = vpop.f32.mrf.mxu0
    %v727 = vadd.f32 %v122, %v726
    %v728 = vpop.f32.mrf.mxu0
    %v729 = vadd.f32 %v127, %v728
    %730 = vmatmul.bf16.gmra.mxu0 %v274
    %v731 = vpop.f32.mrf.mxu0
    %v732 = vadd.f32 %v132, %v731
    %v733 = vpop.f32.mrf.mxu0
    %v734 = vadd.f32 %v137, %v733
    %735 = vmatmul.bf16.gmra.mxu0 %v277
    %v736 = vpop.f32.mrf.mxu0
    %v737 = vadd.f32 %v142, %v736
    %v738 = vpop.f32.mrf.mxu0
    %v739 = vadd.f32 %v147, %v738
    %740 = vdwg.mxu0
    %v741 = vpack.c.bf16 %v687, %v687
    %v742 = vpack.c.bf16 %v689, %v689
    %v743 = vpack.c.bf16 %v692, %v692
    %v744 = vpack.c.bf16 %v694, %v694
    %v745 = vpack.c.bf16 %v697, %v697
    %v746 = vpack.c.bf16 %v699, %v699
    %v747 = vpack.c.bf16 %v702, %v702
    %v748 = vpack.c.bf16 %v704, %v704
    %s749 = scalar_lea.vmem [#allocation2], 256
    %750 = vst [vmem:[%s749] sm:$0xf] %v741
    %751 = vst [vmem:[%s749 + $0x4] sm:$0xf] %v742
    %752 = vst [vmem:[%s749 + $0x8] sm:$0xf] %v743
    %753 = vst [vmem:[%s749 + $0xc] sm:$0xf] %v744
    %754 = vst [vmem:[%s749 + $0x10] sm:$0xf] %v745
    %755 = vst [vmem:[%s749 + $0x14] sm:$0xf] %v746
    %756 = vst [vmem:[%s749 + $0x18] sm:$0xf] %v747
    %757 = vst [vmem:[%s749 + $0x1c] sm:$0xf] %v748
    %v758 = vpack.c.bf16 %v722, %v722
    %v759 = vpack.c.bf16 %v724, %v724
    %v760 = vpack.c.bf16 %v727, %v727
    %v761 = vpack.c.bf16 %v729, %v729
    %v762 = vpack.c.bf16 %v732, %v732
    %v763 = vpack.c.bf16 %v734, %v734
    %v764 = vpack.c.bf16 %v737, %v737
    %v765 = vpack.c.bf16 %v739, %v739
    %766 = vst [vmem:[%s749 + $0x20] sm:$0xf] %v758
    %767 = vst [vmem:[%s749 + $0x24] sm:$0xf] %v759
    %768 = vst [vmem:[%s749 + $0x28] sm:$0xf] %v760
    %769 = vst [vmem:[%s749 + $0x2c] sm:$0xf] %v761
    %770 = vst [vmem:[%s749 + $0x30] sm:$0xf] %v762
    %771 = vst [vmem:[%s749 + $0x34] sm:$0xf] %v763
    %772 = vst [vmem:[%s749 + $0x38] sm:$0xf] %v764
    %773 = vst [vmem:[%s749 + $0x3c] sm:$0xf] %v765
    %v774 = vld [vmem:[%s452] sm:$0xf]
    %v775 = vld [vmem:[%s452 + $0x4] sm:$0xf]
    %v776 = vld [vmem:[%s449] sm:$0xf]
    %v777 = vld [vmem:[%s449 + $0x4] sm:$0xf]
    %v780 = vunpack.c.l.b16 %v774
    %v781 = vunpack.c.l.b16 %v775
    %v782 = vpack.c.b16 %v781, %v780
    %784 = vmatpush.bf16.msra.mxu0 0
    %785 = vmatpush.bf16.msra.mxu0 0
    %786 = vmatpush.bf16.msra.mxu0 0
    %787 = vmatpush.bf16.msra.mxu0 0
    %788 = vmatpush.bf16.msra.mxu0 0
    %789 = vmatpush.bf16.msra.mxu0 0
    %790 = vmatpush.bf16.msra.mxu0 0
    %791 = vmatpush.bf16.msra.mxu0 %v782
    %792 = vmatmul.bf16.gmra.mxu0 %v201
    %v793 = vpop.f32.mrf.mxu0
    %v794 = vadd.f32 %v64, %v793
    %v795 = vpop.f32.mrf.mxu0
    %v796 = vadd.f32 %v69, %v795
    %797 = vmatmul.bf16.gmra.mxu0 %v204
    %v798 = vpop.f32.mrf.mxu0
    %v799 = vadd.f32 %v74, %v798
    %v800 = vpop.f32.mrf.mxu0
    %v801 = vadd.f32 %v79, %v800
    %802 = vmatmul.bf16.gmra.mxu0 %v207
    %v803 = vpop.f32.mrf.mxu0
    %v804 = vadd.f32 %v84, %v803
    %v805 = vpop.f32.mrf.mxu0
    %v806 = vadd.f32 %v89, %v805
    %807 = vmatmul.bf16.gmra.mxu0 %v210
    %v808 = vpop.f32.mrf.mxu0
    %v809 = vadd.f32 %v94, %v808
    %v810 = vpop.f32.mrf.mxu0
    %v811 = vadd.f32 %v99, %v810
    %812 = vdwg.mxu0
    %v815 = vunpack.c.l.b16 %v776
    %v816 = vunpack.c.l.b16 %v777
    %v817 = vpack.c.b16 %v816, %v815
    %819 = vmatpush.bf16.msra.mxu0 0
    %820 = vmatpush.bf16.msra.mxu0 0
    %821 = vmatpush.bf16.msra.mxu0 0
    %822 = vmatpush.bf16.msra.mxu0 0
    %823 = vmatpush.bf16.msra.mxu0 0
    %824 = vmatpush.bf16.msra.mxu0 0
    %825 = vmatpush.bf16.msra.mxu0 0
    %826 = vmatpush.bf16.msra.mxu0 %v817
    %827 = vmatmul.bf16.gmra.mxu0 %v268
    %v828 = vpop.f32.mrf.mxu0
    %v829 = vadd.f32 %v112, %v828
    %v830 = vpop.f32.mrf.mxu0
    %v831 = vadd.f32 %v117, %v830
    %832 = vmatmul.bf16.gmra.mxu0 %v271
    %v833 = vpop.f32.mrf.mxu0
    %v834 = vadd.f32 %v122, %v833
    %v835 = vpop.f32.mrf.mxu0
    %v836 = vadd.f32 %v127, %v835
    %837 = vmatmul.bf16.gmra.mxu0 %v274
    %v838 = vpop.f32.mrf.mxu0
    %v839 = vadd.f32 %v132, %v838
    %v840 = vpop.f32.mrf.mxu0
    %v841 = vadd.f32 %v137, %v840
    %842 = vmatmul.bf16.gmra.mxu0 %v277
    %v843 = vpop.f32.mrf.mxu0
    %v844 = vadd.f32 %v142, %v843
    %v845 = vpop.f32.mrf.mxu0
    %v846 = vadd.f32 %v147, %v845
    %847 = vdwg.mxu0
    %v848 = vpack.c.bf16 %v794, %v794
    %v849 = vpack.c.bf16 %v796, %v796
    %v850 = vpack.c.bf16 %v799, %v799
    %v851 = vpack.c.bf16 %v801, %v801
    %v852 = vpack.c.bf16 %v804, %v804
    %v853 = vpack.c.bf16 %v806, %v806
    %v854 = vpack.c.bf16 %v809, %v809
    %v855 = vpack.c.bf16 %v811, %v811
    %s856 = scalar_lea.vmem [#allocation2], 320
    %857 = vst [vmem:[%s856] sm:$0xf] %v848
    %858 = vst [vmem:[%s856 + $0x4] sm:$0xf] %v849
    %859 = vst [vmem:[%s856 + $0x8] sm:$0xf] %v850
    %860 = vst [vmem:[%s856 + $0xc] sm:$0xf] %v851
    %861 = vst [vmem:[%s856 + $0x10] sm:$0xf] %v852
    %862 = vst [vmem:[%s856 + $0x14] sm:$0xf] %v853
    %863 = vst [vmem:[%s856 + $0x18] sm:$0xf] %v854
    %864 = vst [vmem:[%s856 + $0x1c] sm:$0xf] %v855
    %v865 = vpack.c.bf16 %v829, %v829
    %v866 = vpack.c.bf16 %v831, %v831
    %v867 = vpack.c.bf16 %v834, %v834
    %v868 = vpack.c.bf16 %v836, %v836
    %v869 = vpack.c.bf16 %v839, %v839
    %v870 = vpack.c.bf16 %v841, %v841
    %v871 = vpack.c.bf16 %v844, %v844
    %v872 = vpack.c.bf16 %v846, %v846
    %873 = vst [vmem:[%s856 + $0x20] sm:$0xf] %v865
    %874 = vst [vmem:[%s856 + $0x24] sm:$0xf] %v866
    %875 = vst [vmem:[%s856 + $0x28] sm:$0xf] %v867
    %876 = vst [vmem:[%s856 + $0x2c] sm:$0xf] %v868
    %877 = vst [vmem:[%s856 + $0x30] sm:$0xf] %v869
    %878 = vst [vmem:[%s856 + $0x34] sm:$0xf] %v870
    %879 = vst [vmem:[%s856 + $0x38] sm:$0xf] %v871
    %880 = vst [vmem:[%s856 + $0x3c] sm:$0xf] %v872
    %v881 = vld [vmem:[%s343] sm:$0xf]
    %v882 = vld [vmem:[%s343 + $0x4] sm:$0xf]
    %v883 = vld [vmem:[%s340] sm:$0xf]
    %v884 = vld [vmem:[%s340 + $0x4] sm:$0xf]
    %v887 = vunpack.c.l.b16 %v881
    %v888 = vunpack.c.l.b16 %v882
    %v889 = vpack.c.b16 %v888, %v887
    %891 = vmatpush.bf16.msra.mxu0 0
    %892 = vmatpush.bf16.msra.mxu0 0
    %893 = vmatpush.bf16.msra.mxu0 0
    %894 = vmatpush.bf16.msra.mxu0 0
    %895 = vmatpush.bf16.msra.mxu0 0
    %896 = vmatpush.bf16.msra.mxu0 0
    %897 = vmatpush.bf16.msra.mxu0 0
    %898 = vmatpush.bf16.msra.mxu0 %v889
    %899 = vmatmul.bf16.gmra.mxu0 %v201
    %v900 = vpop.f32.mrf.mxu0
    %v901 = vadd.f32 %v64, %v900
    %v902 = vpop.f32.mrf.mxu0
    %v903 = vadd.f32 %v69, %v902
    %904 = vmatmul.bf16.gmra.mxu0 %v204
    %v905 = vpop.f32.mrf.mxu0
    %v906 = vadd.f32 %v74, %v905
    %v907 = vpop.f32.mrf.mxu0
    %v908 = vadd.f32 %v79, %v907
    %909 = vmatmul.bf16.gmra.mxu0 %v207
    %v910 = vpop.f32.mrf.mxu0
    %v911 = vadd.f32 %v84, %v910
    %v912 = vpop.f32.mrf.mxu0
    %v913 = vadd.f32 %v89, %v912
    %914 = vmatmul.bf16.gmra.mxu0 %v210
    %v915 = vpop.f32.mrf.mxu0
    %v916 = vadd.f32 %v94, %v915
    %v917 = vpop.f32.mrf.mxu0
    %v918 = vadd.f32 %v99, %v917
    %919 = vdwg.mxu0
    %v922 = vunpack.c.l.b16 %v883
    %v923 = vunpack.c.l.b16 %v884
    %v924 = vpack.c.b16 %v923, %v922
    %926 = vmatpush.bf16.msra.mxu0 0
    %927 = vmatpush.bf16.msra.mxu0 0
    %928 = vmatpush.bf16.msra.mxu0 0
    %929 = vmatpush.bf16.msra.mxu0 0
    %930 = vmatpush.bf16.msra.mxu0 0
    %931 = vmatpush.bf16.msra.mxu0 0
    %932 = vmatpush.bf16.msra.mxu0 0
    %933 = vmatpush.bf16.msra.mxu0 %v924
    %934 = vmatmul.bf16.gmra.mxu0 %v268
    %v935 = vpop.f32.mrf.mxu0
    %v936 = vadd.f32 %v112, %v935
    %v937 = vpop.f32.mrf.mxu0
    %v938 = vadd.f32 %v117, %v937
    %939 = vmatmul.bf16.gmra.mxu0 %v271
    %v940 = vpop.f32.mrf.mxu0
    %v941 = vadd.f32 %v122, %v940
    %v942 = vpop.f32.mrf.mxu0
    %v943 = vadd.f32 %v127, %v942
    %944 = vmatmul.bf16.gmra.mxu0 %v274
    %v945 = vpop.f32.mrf.mxu0
    %v946 = vadd.f32 %v132, %v945
    %v947 = vpop.f32.mrf.mxu0
    %v948 = vadd.f32 %v137, %v947
    %949 = vmatmul.bf16.gmra.mxu0 %v277
    %v950 = vpop.f32.mrf.mxu0
    %v951 = vadd.f32 %v142, %v950
    %v952 = vpop.f32.mrf.mxu0
    %v953 = vadd.f32 %v147, %v952
    %954 = vdwg.mxu0
    %v955 = vpack.c.bf16 %v901, %v901
    %v956 = vpack.c.bf16 %v903, %v903
    %v957 = vpack.c.bf16 %v906, %v906
    %v958 = vpack.c.bf16 %v908, %v908
    %v959 = vpack.c.bf16 %v911, %v911
    %v960 = vpack.c.bf16 %v913, %v913
    %v961 = vpack.c.bf16 %v916, %v916
    %v962 = vpack.c.bf16 %v918, %v918
    %s963 = scalar_lea.vmem [#allocation2], 384
    %964 = vst [vmem:[%s963] sm:$0xf] %v955
    %965 = vst [vmem:[%s963 + $0x4] sm:$0xf] %v956
    %966 = vst [vmem:[%s963 + $0x8] sm:$0xf] %v957
    %967 = vst [vmem:[%s963 + $0xc] sm:$0xf] %v958
    %968 = vst [vmem:[%s963 + $0x10] sm:$0xf] %v959
    %969 = vst [vmem:[%s963 + $0x14] sm:$0xf] %v960
    %970 = vst [vmem:[%s963 + $0x18] sm:$0xf] %v961
    %971 = vst [vmem:[%s963 + $0x1c] sm:$0xf] %v962
    %v972 = vpack.c.bf16 %v936, %v936
    %v973 = vpack.c.bf16 %v938, %v938
    %v974 = vpack.c.bf16 %v941, %v941
    %v975 = vpack.c.bf16 %v943, %v943
    %v976 = vpack.c.bf16 %v946, %v946
    %v977 = vpack.c.bf16 %v948, %v948
    %v978 = vpack.c.bf16 %v951, %v951
    %v979 = vpack.c.bf16 %v953, %v953
    %980 = vst [vmem:[%s963 + $0x20] sm:$0xf] %v972
    %981 = vst [vmem:[%s963 + $0x24] sm:$0xf] %v973
    %982 = vst [vmem:[%s963 + $0x28] sm:$0xf] %v974
    %983 = vst [vmem:[%s963 + $0x2c] sm:$0xf] %v975
    %984 = vst [vmem:[%s963 + $0x30] sm:$0xf] %v976
    %985 = vst [vmem:[%s963 + $0x34] sm:$0xf] %v977
    %986 = vst [vmem:[%s963 + $0x38] sm:$0xf] %v978
    %987 = vst [vmem:[%s963 + $0x3c] sm:$0xf] %v979
    %v988 = vld [vmem:[%s170] sm:$0xf]
    %v989 = vld [vmem:[%s170 + $0x4] sm:$0xf]
    %v990 = vld [vmem:[%s0] sm:$0xf]
    %v991 = vld [vmem:[%s0 + $0x4] sm:$0xf]
    %v994 = vunpack.c.l.b16 %v988
    %v995 = vunpack.c.l.b16 %v989
    %v996 = vpack.c.b16 %v995, %v994
    %998 = vmatpush.bf16.msra.mxu0 0
    %999 = vmatpush.bf16.msra.mxu0 0
    %1000 = vmatpush.bf16.msra.mxu0 0
    %1001 = vmatpush.bf16.msra.mxu0 0
    %1002 = vmatpush.bf16.msra.mxu0 0
    %1003 = vmatpush.bf16.msra.mxu0 0
    %1004 = vmatpush.bf16.msra.mxu0 0
    %1005 = vmatpush.bf16.msra.mxu0 %v996
    %1006 = vmatmul.bf16.gmra.mxu0 %v201
    %v1007 = vpop.f32.mrf.mxu0
    %v1008 = vadd.f32 %v64, %v1007
    %v1009 = vpop.f32.mrf.mxu0
    %v1010 = vadd.f32 %v69, %v1009
    %1011 = vmatmul.bf16.gmra.mxu0 %v204
    %v1012 = vpop.f32.mrf.mxu0
    %v1013 = vadd.f32 %v74, %v1012
    %v1014 = vpop.f32.mrf.mxu0
    %v1015 = vadd.f32 %v79, %v1014
    %1016 = vmatmul.bf16.gmra.mxu0 %v207
    %v1017 = vpop.f32.mrf.mxu0
    %v1018 = vadd.f32 %v84, %v1017
    %v1019 = vpop.f32.mrf.mxu0
    %v1020 = vadd.f32 %v89, %v1019
    %1021 = vmatmul.bf16.gmra.mxu0 %v210
    %v1022 = vpop.f32.mrf.mxu0
    %v1023 = vadd.f32 %v94, %v1022
    %v1024 = vpop.f32.mrf.mxu0
    %v1025 = vadd.f32 %v99, %v1024
    %1026 = vdwg.mxu0
    %v1029 = vunpack.c.l.b16 %v990
    %v1030 = vunpack.c.l.b16 %v991
    %v1031 = vpack.c.b16 %v1030, %v1029
    %1033 = vmatpush.bf16.msra.mxu0 0
    %1034 = vmatpush.bf16.msra.mxu0 0
    %1035 = vmatpush.bf16.msra.mxu0 0
    %1036 = vmatpush.bf16.msra.mxu0 0
    %1037 = vmatpush.bf16.msra.mxu0 0
    %1038 = vmatpush.bf16.msra.mxu0 0
    %1039 = vmatpush.bf16.msra.mxu0 0
    %1040 = vmatpush.bf16.msra.mxu0 %v1031
    %1041 = vmatmul.bf16.gmra.mxu0 %v268
    %v1042 = vpop.f32.mrf.mxu0
    %v1043 = vadd.f32 %v112, %v1042
    %v1044 = vpop.f32.mrf.mxu0
    %v1045 = vadd.f32 %v117, %v1044
    %1046 = vmatmul.bf16.gmra.mxu0 %v271
    %v1047 = vpop.f32.mrf.mxu0
    %v1048 = vadd.f32 %v122, %v1047
    %v1049 = vpop.f32.mrf.mxu0
    %v1050 = vadd.f32 %v127, %v1049
    %1051 = vmatmul.bf16.gmra.mxu0 %v274
    %v1052 = vpop.f32.mrf.mxu0
    %v1053 = vadd.f32 %v132, %v1052
    %v1054 = vpop.f32.mrf.mxu0
    %v1055 = vadd.f32 %v137, %v1054
    %1056 = vmatmul.bf16.gmra.mxu0 %v277
    %v1057 = vpop.f32.mrf.mxu0
    %v1058 = vadd.f32 %v142, %v1057
    %v1059 = vpop.f32.mrf.mxu0
    %v1060 = vadd.f32 %v147, %v1059
    %1061 = vdwg.mxu0
    %v1062 = vpack.c.bf16 %v1008, %v1008
    %v1063 = vpack.c.bf16 %v1010, %v1010
    %v1064 = vpack.c.bf16 %v1013, %v1013
    %v1065 = vpack.c.bf16 %v1015, %v1015
    %v1066 = vpack.c.bf16 %v1018, %v1018
    %v1067 = vpack.c.bf16 %v1020, %v1020
    %v1068 = vpack.c.bf16 %v1023, %v1023
    %v1069 = vpack.c.bf16 %v1025, %v1025
    %s1070 = scalar_lea.vmem [#allocation2], 448
    %1071 = vst [vmem:[%s1070] sm:$0xf] %v1062
    %1072 = vst [vmem:[%s1070 + $0x4] sm:$0xf] %v1063
    %1073 = vst [vmem:[%s1070 + $0x8] sm:$0xf] %v1064
    %1074 = vst [vmem:[%s1070 + $0xc] sm:$0xf] %v1065
    %1075 = vst [vmem:[%s1070 + $0x10] sm:$0xf] %v1066
    %1076 = vst [vmem:[%s1070 + $0x14] sm:$0xf] %v1067
    %1077 = vst [vmem:[%s1070 + $0x18] sm:$0xf] %v1068
    %1078 = vst [vmem:[%s1070 + $0x1c] sm:$0xf] %v1069
    %v1079 = vpack.c.bf16 %v1043, %v1043
    %v1080 = vpack.c.bf16 %v1045, %v1045
    %v1081 = vpack.c.bf16 %v1048, %v1048
    %v1082 = vpack.c.bf16 %v1050, %v1050
    %v1083 = vpack.c.bf16 %v1053, %v1053
    %v1084 = vpack.c.bf16 %v1055, %v1055
    %v1085 = vpack.c.bf16 %v1058, %v1058
    %v1086 = vpack.c.bf16 %v1060, %v1060
    %1087 = vst [vmem:[%s1070 + $0x20] sm:$0xf] %v1079
    %1088 = vst [vmem:[%s1070 + $0x24] sm:$0xf] %v1080
    %1089 = vst [vmem:[%s1070 + $0x28] sm:$0xf] %v1081
    %1090 = vst [vmem:[%s1070 + $0x2c] sm:$0xf] %v1082
    %1091 = vst [vmem:[%s1070 + $0x30] sm:$0xf] %v1083
    %1092 = vst [vmem:[%s1070 + $0x34] sm:$0xf] %v1084
    %1093 = vst [vmem:[%s1070 + $0x38] sm:$0xf] %v1085
    %1094 = vst [vmem:[%s1070 + $0x3c] sm:$0xf] %v1086
    %v1096 = vsel %vm199, %v149, 0
    %v1099 = vsel %vm199, %v150, 0
    %v1102 = vsel %vm199, %v151, 0
    %v1105 = vsel %vm199, %v152, 0
    %v1108 = vsel %vm199, %v153, 0
    %v1111 = vsel %vm199, %v154, 0
    %v1114 = vsel %vm199, %v155, 0
    %v1117 = vsel %vm199, %v156, 0
    %1119 = vmatpush.msra.mxu0 0.0
    %1120 = vmatpush.msra.mxu0 0.0
    %1121 = vmatpush.msra.mxu0 0.0
    %1122 = vmatpush.msra.mxu0 0.0
    %1123 = vmatpush.msra.mxu0 0.0
    %1124 = vmatpush.msra.mxu0 0.0
    %1125 = vmatpush.msra.mxu0 0.0
    %1126 = vmatpush.msra.mxu0 0.0
    %1127 = vmatpush.msra.mxu0 0.0
    %1128 = vmatpush.msra.mxu0 0.0
    %1129 = vmatpush.msra.mxu0 0.0
    %1130 = vmatpush.msra.mxu0 0.0
    %1131 = vmatpush.msra.mxu0 0.0
    %1132 = vmatpush.msra.mxu0 0.0
    %1133 = vmatpush.msra.mxu0 0.0
    %1134 = vmatpush.msra.mxu0 0.0
    %1135 = vmatmul.f32.gmra.mxu0 %v1096
    %v1136 = vpop.f32.mrf.mxu0
    %v1137 = vadd.f32 0.0, %v1136
    %1138 = vmatmul.f32.gmra.mxu0 %v1099
    %v1139 = vpop.f32.mrf.mxu0
    %v1140 = vadd.f32 0.0, %v1139
    %1141 = vmatmul.f32.gmra.mxu0 %v1102
    %v1142 = vpop.f32.mrf.mxu0
    %v1143 = vadd.f32 0.0, %v1142
    %1144 = vmatmul.f32.gmra.mxu0 %v1105
    %v1145 = vpop.f32.mrf.mxu0
    %v1146 = vadd.f32 0.0, %v1145
    %1147 = vmatmul.f32.gmra.mxu0 %v1108
    %v1148 = vpop.f32.mrf.mxu0
    %v1149 = vadd.f32 0.0, %v1148
    %1150 = vmatmul.f32.gmra.mxu0 %v1111
    %v1151 = vpop.f32.mrf.mxu0
    %v1152 = vadd.f32 0.0, %v1151
    %1153 = vmatmul.f32.gmra.mxu0 %v1114
    %v1154 = vpop.f32.mrf.mxu0
    %v1155 = vadd.f32 0.0, %v1154
    %1156 = vmatmul.f32.gmra.mxu0 %v1117
    %v1157 = vpop.f32.mrf.mxu0
    %v1158 = vadd.f32 0.0, %v1157
    %1159 = vdwg.mxu0
    %v1161 = vsel %vm199, %v157, 0
    %v1164 = vsel %vm199, %v158, 0
    %v1167 = vsel %vm199, %v159, 0
    %v1170 = vsel %vm199, %v160, 0
    %v1173 = vsel %vm199, %v161, 0
    %v1176 = vsel %vm199, %v162, 0
    %v1179 = vsel %vm199, %v163, 0
    %v1182 = vsel %vm199, %v164, 0
    %1184 = vmatpush.msra.mxu0 0.0
    %1185 = vmatpush.msra.mxu0 0.0
    %1186 = vmatpush.msra.mxu0 0.0
    %1187 = vmatpush.msra.mxu0 0.0
    %1188 = vmatpush.msra.mxu0 0.0
    %1189 = vmatpush.msra.mxu0 0.0
    %1190 = vmatpush.msra.mxu0 0.0
    %1191 = vmatpush.msra.mxu0 0.0
    %1192 = vmatpush.msra.mxu0 0.0
    %1193 = vmatpush.msra.mxu0 0.0
    %1194 = vmatpush.msra.mxu0 0.0
    %1195 = vmatpush.msra.mxu0 0.0
    %1196 = vmatpush.msra.mxu0 0.0
    %1197 = vmatpush.msra.mxu0 0.0
    %1198 = vmatpush.msra.mxu0 0.0
    %1199 = vmatpush.msra.mxu0 0.0
    %1200 = vmatmul.f32.gmra.mxu0 %v1161
    %v1201 = vpop.f32.mrf.mxu0
    %v1202 = vadd.f32 0.0, %v1201
    %1203 = vmatmul.f32.gmra.mxu0 %v1164
    %v1204 = vpop.f32.mrf.mxu0
    %v1205 = vadd.f32 0.0, %v1204
    %1206 = vmatmul.f32.gmra.mxu0 %v1167
    %v1207 = vpop.f32.mrf.mxu0
    %v1208 = vadd.f32 0.0, %v1207
    %1209 = vmatmul.f32.gmra.mxu0 %v1170
    %v1210 = vpop.f32.mrf.mxu0
    %v1211 = vadd.f32 0.0, %v1210
    %1212 = vmatmul.f32.gmra.mxu0 %v1173
    %v1213 = vpop.f32.mrf.mxu0
    %v1214 = vadd.f32 0.0, %v1213
    %1215 = vmatmul.f32.gmra.mxu0 %v1176
    %v1216 = vpop.f32.mrf.mxu0
    %v1217 = vadd.f32 0.0, %v1216
    %1218 = vmatmul.f32.gmra.mxu0 %v1179
    %v1219 = vpop.f32.mrf.mxu0
    %v1220 = vadd.f32 0.0, %v1219
    %1221 = vmatmul.f32.gmra.mxu0 %v1182
    %v1222 = vpop.f32.mrf.mxu0
    %v1223 = vadd.f32 0.0, %v1222
    %1224 = vdwg.mxu0
    %v1225 = vld [vmem:[#allocation2] sm:$0xf]
    %v1226 = vld [vmem:[#allocation2 + $0x4] sm:$0xf]
    %v1227 = vld [vmem:[#allocation2 + $0x8] sm:$0xf]
    %v1228 = vld [vmem:[#allocation2 + $0xc] sm:$0xf]
    %v1229 = vld [vmem:[#allocation2 + $0x10] sm:$0xf]
    %v1230 = vld [vmem:[#allocation2 + $0x14] sm:$0xf]
    %v1231 = vld [vmem:[#allocation2 + $0x18] sm:$0xf]
    %v1232 = vld [vmem:[#allocation2 + $0x1c] sm:$0xf]
    %v1233 = vunpack.c.l.bf16 %v1225
    %v1234 = vunpack.c.l.bf16 %v1226
    %v1235 = vunpack.c.l.bf16 %v1227
    %v1236 = vunpack.c.l.bf16 %v1228
    %v1237 = vunpack.c.l.bf16 %v1229
    %v1238 = vunpack.c.l.bf16 %v1230
    %v1239 = vunpack.c.l.bf16 %v1231
    %v1240 = vunpack.c.l.bf16 %v1232
    %v1241 = vadd.f32 %v1233, %v1137
    %v1242 = vadd.f32 %v1234, %v1140
    %v1243 = vadd.f32 %v1235, %v1143
    %v1244 = vadd.f32 %v1236, %v1146
    %v1245 = vadd.f32 %v1237, %v1149
    %v1246 = vadd.f32 %v1238, %v1152
    %v1247 = vadd.f32 %v1239, %v1155
    %v1248 = vadd.f32 %v1240, %v1158
    %v1249 = vld [vmem:[#allocation2 + $0x20] sm:$0xf]
    %v1250 = vld [vmem:[#allocation2 + $0x24] sm:$0xf]
    %v1251 = vld [vmem:[#allocation2 + $0x28] sm:$0xf]
    %v1252 = vld [vmem:[#allocation2 + $0x2c] sm:$0xf]
    %v1253 = vld [vmem:[#allocation2 + $0x30] sm:$0xf]
    %v1254 = vld [vmem:[#allocation2 + $0x34] sm:$0xf]
    %v1255 = vld [vmem:[#allocation2 + $0x38] sm:$0xf]
    %v1256 = vld [vmem:[#allocation2 + $0x3c] sm:$0xf]
    %v1257 = vunpack.c.l.bf16 %v1249
    %v1258 = vunpack.c.l.bf16 %v1250
    %v1259 = vunpack.c.l.bf16 %v1251
    %v1260 = vunpack.c.l.bf16 %v1252
    %v1261 = vunpack.c.l.bf16 %v1253
    %v1262 = vunpack.c.l.bf16 %v1254
    %v1263 = vunpack.c.l.bf16 %v1255
    %v1264 = vunpack.c.l.bf16 %v1256
    %v1265 = vadd.f32 %v1257, %v1202
    %v1266 = vadd.f32 %v1258, %v1205
    %v1267 = vadd.f32 %v1259, %v1208
    %v1268 = vadd.f32 %v1260, %v1211
    %v1269 = vadd.f32 %v1261, %v1214
    %v1270 = vadd.f32 %v1262, %v1217
    %v1271 = vadd.f32 %v1263, %v1220
    %v1272 = vadd.f32 %v1264, %v1223
    %v1273 = vxor.u32 %v1241, 2147483648
    %v1274 = vxor.u32 %v1242, 2147483648
    %v1275 = vmul.f32 %v1273, 1.442695
    %v1276 = vpow.pop %v1275
    %v1277 = vmul.f32 %v1274, 1.442695
    %v1278 = vpow.pop %v1277
    %v1279 = vadd.f32 %v1276, 1.0
    %v1280 = vadd.f32 %v1278, 1.0
    %v1281 = vrcp.pop %v1279
    %v1282 = vmul.f32 %v1279, %v1281
    %v1283 = vsub.f32 1.0, %v1282
    %v1284 = vmul.f32 %v1281, %v1283
    %v1285 = vadd.f32 %v1281, %v1284
    %vm1286 = vweird.f32 %v1279
    %vm1287 = vweird.f32 %v1281
    %vm1288 = vmor %vm1286, %vm1287
    %v1289 = vsel %vm1288, %v1281, %v1285
    %v1290 = vand.u32 2147483647, %v1279
    %vm1291 = vcmp.eq.f32.partialorder %v1290, 8.507059e+37
    %v1292 = vand.u32 %v1279, 2147483648
    %v1293 = vor.u32 1.1754944e-38, %v1292
    %v1294 = vsel %vm1291, %v1293, %v1289
    %v1295 = vmul.f32 1.0, %v1294
    %v1296 = vrcp.pop %v1280
    %v1297 = vmul.f32 %v1280, %v1296
    %v1298 = vsub.f32 1.0, %v1297
    %v1299 = vmul.f32 %v1296, %v1298
    %v1300 = vadd.f32 %v1296, %v1299
    %vm1301 = vweird.f32 %v1280
    %vm1302 = vweird.f32 %v1296
    %vm1303 = vmor %vm1301, %vm1302
    %v1304 = vsel %vm1303, %v1296, %v1300
    %v1305 = vand.u32 2147483647, %v1280
    %vm1306 = vcmp.eq.f32.partialorder %v1305, 8.507059e+37
    %v1307 = vand.u32 %v1280, 2147483648
    %v1308 = vor.u32 1.1754944e-38, %v1307
    %v1309 = vsel %vm1306, %v1308, %v1304
    %v1310 = vmul.f32 1.0, %v1309
    %v1311 = vxor.u32 %v1265, 2147483648
    %v1312 = vxor.u32 %v1266, 2147483648
    %v1313 = vmul.f32 %v1311, 1.442695
    %v1314 = vpow.pop %v1313
    %v1315 = vmul.f32 %v1312, 1.442695
    %v1316 = vpow.pop %v1315
    %v1317 = vadd.f32 %v1314, 1.0
    %v1318 = vadd.f32 %v1316, 1.0
    %v1319 = vrcp.pop %v1317
    %v1320 = vmul.f32 %v1317, %v1319
    %v1321 = vsub.f32 1.0, %v1320
    %v1322 = vmul.f32 %v1319, %v1321
    %v1323 = vadd.f32 %v1319, %v1322
    %vm1324 = vweird.f32 %v1317
    %vm1325 = vweird.f32 %v1319
    %vm1326 = vmor %vm1324, %vm1325
    %v1327 = vsel %vm1326, %v1319, %v1323
    %v1328 = vand.u32 2147483647, %v1317
    %vm1329 = vcmp.eq.f32.partialorder %v1328, 8.507059e+37
    %v1330 = vand.u32 %v1317, 2147483648
    %v1331 = vor.u32 1.1754944e-38, %v1330
    %v1332 = vsel %vm1329, %v1331, %v1327
    %v1333 = vmul.f32 1.0, %v1332
    %v1334 = vrcp.pop %v1318
    %v1335 = vmul.f32 %v1318, %v1334
    %v1336 = vsub.f32 1.0, %v1335
    %v1337 = vmul.f32 %v1334, %v1336
    %v1338 = vadd.f32 %v1334, %v1337
    %vm1339 = vweird.f32 %v1318
    %vm1340 = vweird.f32 %v1334
    %vm1341 = vmor %vm1339, %vm1340
    %v1342 = vsel %vm1341, %v1334, %v1338
    %v1343 = vand.u32 2147483647, %v1318
    %vm1344 = vcmp.eq.f32.partialorder %v1343, 8.507059e+37
    %v1345 = vand.u32 %v1318, 2147483648
    %v1346 = vor.u32 1.1754944e-38, %v1345
    %v1347 = vsel %vm1344, %v1346, %v1342
    %v1348 = vmul.f32 1.0, %v1347
    %v1349 = vxor.u32 %v1243, 2147483648
    %v1350 = vxor.u32 %v1244, 2147483648
    %v1351 = vmul.f32 %v1349, 1.442695
    %v1352 = vpow.pop %v1351
    %v1353 = vmul.f32 %v1350, 1.442695
    %v1354 = vpow.pop %v1353
    %v1355 = vadd.f32 %v1352, 1.0
    %v1356 = vadd.f32 %v1354, 1.0
    %v1357 = vrcp.pop %v1355
    %v1358 = vmul.f32 %v1355, %v1357
    %v1359 = vsub.f32 1.0, %v1358
    %v1360 = vmul.f32 %v1357, %v1359
    %v1361 = vadd.f32 %v1357, %v1360
    %vm1362 = vweird.f32 %v1355
    %vm1363 = vweird.f32 %v1357
    %vm1364 = vmor %vm1362, %vm1363
    %v1365 = vsel %vm1364, %v1357, %v1361
    %v1366 = vand.u32 2147483647, %v1355
    %vm1367 = vcmp.eq.f32.partialorder %v1366, 8.507059e+37
    %v1368 = vand.u32 %v1355, 2147483648
    %v1369 = vor.u32 1.1754944e-38, %v1368
    %v1370 = vsel %vm1367, %v1369, %v1365
    %v1371 = vmul.f32 1.0, %v1370
    %v1372 = vrcp.pop %v1356
    %v1373 = vmul.f32 %v1356, %v1372
    %v1374 = vsub.f32 1.0, %v1373
    %v1375 = vmul.f32 %v1372, %v1374
    %v1376 = vadd.f32 %v1372, %v1375
    %vm1377 = vweird.f32 %v1356
    %vm1378 = vweird.f32 %v1372
    %vm1379 = vmor %vm1377, %vm1378
    %v1380 = vsel %vm1379, %v1372, %v1376
    %v1381 = vand.u32 2147483647, %v1356
    %vm1382 = vcmp.eq.f32.partialorder %v1381, 8.507059e+37
    %v1383 = vand.u32 %v1356, 2147483648
    %v1384 = vor.u32 1.1754944e-38, %v1383
    %v1385 = vsel %vm1382, %v1384, %v1380
    %v1386 = vmul.f32 1.0, %v1385
    %v1387 = vxor.u32 %v1267, 2147483648
    %v1388 = vxor.u32 %v1268, 2147483648
    %v1389 = vmul.f32 %v1387, 1.442695
    %v1390 = vpow.pop %v1389
    %v1391 = vmul.f32 %v1388, 1.442695
    %v1392 = vpow.pop %v1391
    %v1393 = vadd.f32 %v1390, 1.0
    %v1394 = vadd.f32 %v1392, 1.0
    %v1395 = vrcp.pop %v1393
    %v1396 = vmul.f32 %v1393, %v1395
    %v1397 = vsub.f32 1.0, %v1396
    %v1398 = vmul.f32 %v1395, %v1397
    %v1399 = vadd.f32 %v1395, %v1398
    %vm1400 = vweird.f32 %v1393
    %vm1401 = vweird.f32 %v1395
    %vm1402 = vmor %vm1400, %vm1401
    %v1403 = vsel %vm1402, %v1395, %v1399
    %v1404 = vand.u32 2147483647, %v1393
    %vm1405 = vcmp.eq.f32.partialorder %v1404, 8.507059e+37
    %v1406 = vand.u32 %v1393, 2147483648
    %v1407 = vor.u32 1.1754944e-38, %v1406
    %v1408 = vsel %vm1405, %v1407, %v1403
    %v1409 = vmul.f32 1.0, %v1408
    %v1410 = vrcp.pop %v1394
    %v1411 = vmul.f32 %v1394, %v1410
    %v1412 = vsub.f32 1.0, %v1411
    %v1413 = vmul.f32 %v1410, %v1412
    %v1414 = vadd.f32 %v1410, %v1413
    %vm1415 = vweird.f32 %v1394
    %vm1416 = vweird.f32 %v1410
    %vm1417 = vmor %vm1415, %vm1416
    %v1418 = vsel %vm1417, %v1410, %v1414
    %v1419 = vand.u32 2147483647, %v1394
    %vm1420 = vcmp.eq.f32.partialorder %v1419, 8.507059e+37
    %v1421 = vand.u32 %v1394, 2147483648
    %v1422 = vor.u32 1.1754944e-38, %v1421
    %v1423 = vsel %vm1420, %v1422, %v1418
    %v1424 = vmul.f32 1.0, %v1423
    %v1425 = vtanh.pop %v1245
    %v1426 = vtanh.pop %v1246
    %v1427 = vtanh.pop %v1269
    %v1428 = vtanh.pop %v1270
    %v1429 = vxor.u32 %v1247, 2147483648
    %v1430 = vxor.u32 %v1248, 2147483648
    %v1431 = vmul.f32 %v1429, 1.442695
    %v1432 = vpow.pop %v1431
    %v1433 = vmul.f32 %v1430, 1.442695
    %v1434 = vpow.pop %v1433
    %v1435 = vadd.f32 %v1432, 1.0
    %v1436 = vadd.f32 %v1434, 1.0
    %v1437 = vrcp.pop %v1435
    %v1438 = vmul.f32 %v1435, %v1437
    %v1439 = vsub.f32 1.0, %v1438
    %v1440 = vmul.f32 %v1437, %v1439
    %v1441 = vadd.f32 %v1437, %v1440
    %vm1442 = vweird.f32 %v1435
    %vm1443 = vweird.f32 %v1437
    %vm1444 = vmor %vm1442, %vm1443
    %v1445 = vsel %vm1444, %v1437, %v1441
    %v1446 = vand.u32 2147483647, %v1435
    %vm1447 = vcmp.eq.f32.partialorder %v1446, 8.507059e+37
    %v1448 = vand.u32 %v1435, 2147483648
    %v1449 = vor.u32 1.1754944e-38, %v1448
    %v1450 = vsel %vm1447, %v1449, %v1445
    %v1451 = vmul.f32 1.0, %v1450
    %v1452 = vrcp.pop %v1436
    %v1453 = vmul.f32 %v1436, %v1452
    %v1454 = vsub.f32 1.0, %v1453
    %v1455 = vmul.f32 %v1452, %v1454
    %v1456 = vadd.f32 %v1452, %v1455
    %vm1457 = vweird.f32 %v1436
    %vm1458 = vweird.f32 %v1452
    %vm1459 = vmor %vm1457, %vm1458
    %v1460 = vsel %vm1459, %v1452, %v1456
    %v1461 = vand.u32 2147483647, %v1436
    %vm1462 = vcmp.eq.f32.partialorder %v1461, 8.507059e+37
    %v1463 = vand.u32 %v1436, 2147483648
    %v1464 = vor.u32 1.1754944e-38, %v1463
    %v1465 = vsel %vm1462, %v1464, %v1460
    %v1466 = vmul.f32 1.0, %v1465
    %v1467 = vxor.u32 %v1271, 2147483648
    %v1468 = vxor.u32 %v1272, 2147483648
    %v1469 = vmul.f32 %v1467, 1.442695
    %v1470 = vpow.pop %v1469
    %v1471 = vmul.f32 %v1468, 1.442695
    %v1472 = vpow.pop %v1471
    %v1473 = vadd.f32 %v1470, 1.0
    %v1474 = vadd.f32 %v1472, 1.0
    %v1475 = vrcp.pop %v1473
    %v1476 = vmul.f32 %v1473, %v1475
    %v1477 = vsub.f32 1.0, %v1476
    %v1478 = vmul.f32 %v1475, %v1477
    %v1479 = vadd.f32 %v1475, %v1478
    %vm1480 = vweird.f32 %v1473
    %vm1481 = vweird.f32 %v1475
    %vm1482 = vmor %vm1480, %vm1481
    %v1483 = vsel %vm1482, %v1475, %v1479
    %v1484 = vand.u32 2147483647, %v1473
    %vm1485 = vcmp.eq.f32.partialorder %v1484, 8.507059e+37
    %v1486 = vand.u32 %v1473, 2147483648
    %v1487 = vor.u32 1.1754944e-38, %v1486
    %v1488 = vsel %vm1485, %v1487, %v1483
    %v1489 = vmul.f32 1.0, %v1488
    %v1490 = vrcp.pop %v1474
    %v1491 = vmul.f32 %v1474, %v1490
    %v1492 = vsub.f32 1.0, %v1491
    %v1493 = vmul.f32 %v1490, %v1492
    %v1494 = vadd.f32 %v1490, %v1493
    %vm1495 = vweird.f32 %v1474
    %vm1496 = vweird.f32 %v1490
    %vm1497 = vmor %vm1495, %vm1496
    %v1498 = vsel %vm1497, %v1490, %v1494
    %v1499 = vand.u32 2147483647, %v1474
    %vm1500 = vcmp.eq.f32.partialorder %v1499, 8.507059e+37
    %v1501 = vand.u32 %v1474, 2147483648
    %v1502 = vor.u32 1.1754944e-38, %v1501
    %v1503 = vsel %vm1500, %v1502, %v1498
    %v1504 = vmul.f32 1.0, %v1503
    %v1505 = vmul.f32 %v1371, 0.0
    %v1506 = vmul.f32 %v1386, 0.0
    %v1507 = vmul.f32 %v1295, %v1425
    %v1508 = vmul.f32 %v1310, %v1426
    %v1509 = vadd.f32 %v1505, %v1507
    %v1510 = vadd.f32 %v1506, %v1508
    %v1511 = vmul.f32 %v1409, 0.0
    %v1512 = vmul.f32 %v1424, 0.0
    %v1513 = vmul.f32 %v1333, %v1427
    %v1514 = vmul.f32 %v1348, %v1428
    %v1515 = vadd.f32 %v1511, %v1513
    %v1516 = vadd.f32 %v1512, %v1514
    %v1517 = vtanh.pop %v1509
    %v1518 = vtanh.pop %v1510
    %v1519 = vmul.f32 %v1451, %v1517
    %v1520 = vmul.f32 %v1466, %v1518
    %v1521 = vtanh.pop %v1515
    %v1522 = vtanh.pop %v1516
    %v1523 = vmul.f32 %v1489, %v1521
    %v1524 = vmul.f32 %v1504, %v1522
    %v1525 = vld [vmem:[%s1] sm:$0x1]
    %s1526 = scalar_lea.vmem %s1, 7
    %v1527 = vld [vmem:[%s1526] sm:$0x1]
    %v1529 = vperm.slane %v1525, 0
    %v1531 = vmul.f32 %v1529, %v1519
    %v1532 = vmul.f32 %v1529, %v1520
    %v1533 = vadd.f32 %v1531, 0.0
    %v1534 = vadd.f32 %v1532, 0.0
    %v1535 = vmul.f32 %v1529, %v1509
    %v1536 = vmul.f32 %v1529, %v1510
    %v1537 = vadd.f32 %v1535, 0.0
    %v1538 = vadd.f32 %v1536, 0.0
    %v1540 = vperm.slane %v1527, 0
    %v1542 = vmul.f32 %v1540, %v1523
    %v1543 = vmul.f32 %v1540, %v1524
    %v1544 = vadd.f32 %v1542, 0.0
    %v1545 = vadd.f32 %v1543, 0.0
    %v1546 = vmul.f32 %v1540, %v1515
    %v1547 = vmul.f32 %v1540, %v1516
    %v1548 = vadd.f32 %v1546, 0.0
    %v1549 = vadd.f32 %v1547, 0.0
    %1550 = vst [vmem:[#allocation3] sm:$0xff] %v1533
    %1551 = vst [vmem:[#allocation3 + $0x8] sm:$0xff] %v1534
    %s1552 = scalar_lea.vmem [#allocation3], 224
    %1553 = vst [vmem:[%s1552 + $0x10] sm:$0xff] %v1544
    %1554 = vst [vmem:[%s1552 + $0x18] sm:$0xff] %v1545
    %1555 = vmatpush.msra.mxu0 0.0
    %1556 = vmatpush.msra.mxu0 0.0
    %1557 = vmatpush.msra.mxu0 0.0
    %1558 = vmatpush.msra.mxu0 0.0
    %1559 = vmatpush.msra.mxu0 0.0
    %1560 = vmatpush.msra.mxu0 0.0
    %1561 = vmatpush.msra.mxu0 0.0
    %1562 = vmatpush.msra.mxu0 0.0
    %1563 = vmatpush.msra.mxu0 0.0
    %1564 = vmatpush.msra.mxu0 0.0
    %1565 = vmatpush.msra.mxu0 0.0
    %1566 = vmatpush.msra.mxu0 0.0
    %1567 = vmatpush.msra.mxu0 0.0
    %1568 = vmatpush.msra.mxu0 0.0
    %1569 = vmatpush.msra.mxu0 %v1534
    %1570 = vmatpush.msra.mxu0 %v1533
    %1571 = vmatmul.f32.gmra.mxu0 %v1096
    %v1572 = vpop.f32.mrf.mxu0
    %v1573 = vadd.f32 0.0, %v1572
    %1574 = vmatmul.f32.gmra.mxu0 %v1099
    %v1575 = vpop.f32.mrf.mxu0
    %v1576 = vadd.f32 0.0, %v1575
    %1577 = vmatmul.f32.gmra.mxu0 %v1102
    %v1578 = vpop.f32.mrf.mxu0
    %v1579 = vadd.f32 0.0, %v1578
    %1580 = vmatmul.f32.gmra.mxu0 %v1105
    %v1581 = vpop.f32.mrf.mxu0
    %v1582 = vadd.f32 0.0, %v1581
    %1583 = vmatmul.f32.gmra.mxu0 %v1108
    %v1584 = vpop.f32.mrf.mxu0
    %v1585 = vadd.f32 0.0, %v1584
    %1586 = vmatmul.f32.gmra.mxu0 %v1111
    %v1587 = vpop.f32.mrf.mxu0
    %v1588 = vadd.f32 0.0, %v1587
    %1589 = vmatmul.f32.gmra.mxu0 %v1114
    %v1590 = vpop.f32.mrf.mxu0
    %v1591 = vadd.f32 0.0, %v1590
    %1592 = vmatmul.f32.gmra.mxu0 %v1117
    %v1593 = vpop.f32.mrf.mxu0
    %v1594 = vadd.f32 0.0, %v1593
    %1595 = vdwg.mxu0
    %1596 = vmatpush.msra.mxu0 0.0
    %1597 = vmatpush.msra.mxu0 0.0
    %1598 = vmatpush.msra.mxu0 0.0
    %1599 = vmatpush.msra.mxu0 0.0
    %1600 = vmatpush.msra.mxu0 0.0
    %1601 = vmatpush.msra.mxu0 0.0
    %1602 = vmatpush.msra.mxu0 0.0
    %1603 = vmatpush.msra.mxu0 0.0
    %1604 = vmatpush.msra.mxu0 0.0
    %1605 = vmatpush.msra.mxu0 0.0
    %1606 = vmatpush.msra.mxu0 0.0
    %1607 = vmatpush.msra.mxu0 0.0
    %1608 = vmatpush.msra.mxu0 0.0
    %1609 = vmatpush.msra.mxu0 0.0
    %1610 = vmatpush.msra.mxu0 %v1545
    %1611 = vmatpush.msra.mxu0 %v1544
    %1612 = vmatmul.f32.gmra.mxu0 %v1161
    %v1613 = vpop.f32.mrf.mxu0
    %v1614 = vadd.f32 0.0, %v1613
    %1615 = vmatmul.f32.gmra.mxu0 %v1164
    %v1616 = vpop.f32.mrf.mxu0
    %v1617 = vadd.f32 0.0, %v1616
    %1618 = vmatmul.f32.gmra.mxu0 %v1167
    %v1619 = vpop.f32.mrf.mxu0
    %v1620 = vadd.f32 0.0, %v1619
    %1621 = vmatmul.f32.gmra.mxu0 %v1170
    %v1622 = vpop.f32.mrf.mxu0
    %v1623 = vadd.f32 0.0, %v1622
    %1624 = vmatmul.f32.gmra.mxu0 %v1173
    %v1625 = vpop.f32.mrf.mxu0
    %v1626 = vadd.f32 0.0, %v1625
    %1627 = vmatmul.f32.gmra.mxu0 %v1176
    %v1628 = vpop.f32.mrf.mxu0
    %v1629 = vadd.f32 0.0, %v1628
    %1630 = vmatmul.f32.gmra.mxu0 %v1179
    %v1631 = vpop.f32.mrf.mxu0
    %v1632 = vadd.f32 0.0, %v1631
    %1633 = vmatmul.f32.gmra.mxu0 %v1182
    %v1634 = vpop.f32.mrf.mxu0
    %v1635 = vadd.f32 0.0, %v1634
    %1636 = vdwg.mxu0
    %v1637 = vld [vmem:[%s424] sm:$0xf]
    %v1638 = vld [vmem:[%s424 + $0x4] sm:$0xf]
    %v1639 = vld [vmem:[%s424 + $0x8] sm:$0xf]
    %v1640 = vld [vmem:[%s424 + $0xc] sm:$0xf]
    %v1641 = vld [vmem:[%s424 + $0x10] sm:$0xf]
    %v1642 = vld [vmem:[%s424 + $0x14] sm:$0xf]
    %v1643 = vld [vmem:[%s424 + $0x18] sm:$0xf]
    %v1644 = vld [vmem:[%s424 + $0x1c] sm:$0xf]
    %v1645 = vunpack.c.l.bf16 %v1637
    %v1646 = vunpack.c.l.bf16 %v1638
    %v1647 = vunpack.c.l.bf16 %v1639
    %v1648 = vunpack.c.l.bf16 %v1640
    %v1649 = vunpack.c.l.bf16 %v1641
    %v1650 = vunpack.c.l.bf16 %v1642
    %v1651 = vunpack.c.l.bf16 %v1643
    %v1652 = vunpack.c.l.bf16 %v1644
    %v1653 = vadd.f32 %v1645, %v1573
    %v1654 = vadd.f32 %v1646, %v1576
    %v1655 = vadd.f32 %v1647, %v1579
    %v1656 = vadd.f32 %v1648, %v1582
    %v1657 = vadd.f32 %v1649, %v1585
    %v1658 = vadd.f32 %v1650, %v1588
    %v1659 = vadd.f32 %v1651, %v1591
    %v1660 = vadd.f32 %v1652, %v1594
    %v1661 = vld [vmem:[%s424 + $0x20] sm:$0xf]
    %v1662 = vld [vmem:[%s424 + $0x24] sm:$0xf]
    %v1663 = vld [vmem:[%s424 + $0x28] sm:$0xf]
    %v1664 = vld [vmem:[%s424 + $0x2c] sm:$0xf]
    %v1665 = vld [vmem:[%s424 + $0x30] sm:$0xf]
    %v1666 = vld [vmem:[%s424 + $0x34] sm:$0xf]
    %v1667 = vld [vmem:[%s424 + $0x38] sm:$0xf]
    %v1668 = vld [vmem:[%s424 + $0x3c] sm:$0xf]
    %v1669 = vunpack.c.l.bf16 %v1661
    %v1670 = vunpack.c.l.bf16 %v1662
    %v1671 = vunpack.c.l.bf16 %v1663
    %v1672 = vunpack.c.l.bf16 %v1664
    %v1673 = vunpack.c.l.bf16 %v1665
    %v1674 = vunpack.c.l.bf16 %v1666
    %v1675 = vunpack.c.l.bf16 %v1667
    %v1676 = vunpack.c.l.bf16 %v1668
    %v1677 = vadd.f32 %v1669, %v1614
    %v1678 = vadd.f32 %v1670, %v1617
    %v1679 = vadd.f32 %v1671, %v1620
    %v1680 = vadd.f32 %v1672, %v1623
    %v1681 = vadd.f32 %v1673, %v1626
    %v1682 = vadd.f32 %v1674, %v1629
    %v1683 = vadd.f32 %v1675, %v1632
    %v1684 = vadd.f32 %v1676, %v1635
    %v1685 = vxor.u32 %v1653, 2147483648
    %v1686 = vxor.u32 %v1654, 2147483648
    %v1687 = vmul.f32 %v1685, 1.442695
    %v1688 = vpow.pop %v1687
    %v1689 = vmul.f32 %v1686, 1.442695
    %v1690 = vpow.pop %v1689
    %v1691 = vadd.f32 %v1688, 1.0
    %v1692 = vadd.f32 %v1690, 1.0
    %v1693 = vrcp.pop %v1691
    %v1694 = vmul.f32 %v1691, %v1693
    %v1695 = vsub.f32 1.0, %v1694
    %v1696 = vmul.f32 %v1693, %v1695
    %v1697 = vadd.f32 %v1693, %v1696
    %vm1698 = vweird.f32 %v1691
    %vm1699 = vweird.f32 %v1693
    %vm1700 = vmor %vm1698, %vm1699
    %v1701 = vsel %vm1700, %v1693, %v1697
    %v1702 = vand.u32 2147483647, %v1691
    %vm1703 = vcmp.eq.f32.partialorder %v1702, 8.507059e+37
    %v1704 = vand.u32 %v1691, 2147483648
    %v1705 = vor.u32 1.1754944e-38, %v1704
    %v1706 = vsel %vm1703, %v1705, %v1701
    %v1707 = vmul.f32 1.0, %v1706
    %v1708 = vrcp.pop %v1692
    %v1709 = vmul.f32 %v1692, %v1708
    %v1710 = vsub.f32 1.0, %v1709
    %v1711 = vmul.f32 %v1708, %v1710
    %v1712 = vadd.f32 %v1708, %v1711
    %vm1713 = vweird.f32 %v1692
    %vm1714 = vweird.f32 %v1708
    %vm1715 = vmor %vm1713, %vm1714
    %v1716 = vsel %vm1715, %v1708, %v1712
    %v1717 = vand.u32 2147483647, %v1692
    %vm1718 = vcmp.eq.f32.partialorder %v1717, 8.507059e+37
    %v1719 = vand.u32 %v1692, 2147483648
    %v1720 = vor.u32 1.1754944e-38, %v1719
    %v1721 = vsel %vm1718, %v1720, %v1716
    %v1722 = vmul.f32 1.0, %v1721
    %v1723 = vxor.u32 %v1677, 2147483648
    %v1724 = vxor.u32 %v1678, 2147483648
    %v1725 = vmul.f32 %v1723, 1.442695
    %v1726 = vpow.pop %v1725
    %v1727 = vmul.f32 %v1724, 1.442695
    %v1728 = vpow.pop %v1727
    %v1729 = vadd.f32 %v1726, 1.0
    %v1730 = vadd.f32 %v1728, 1.0
    %v1731 = vrcp.pop %v1729
    %v1732 = vmul.f32 %v1729, %v1731
    %v1733 = vsub.f32 1.0, %v1732
    %v1734 = vmul.f32 %v1731, %v1733
    %v1735 = vadd.f32 %v1731, %v1734
    %vm1736 = vweird.f32 %v1729
    %vm1737 = vweird.f32 %v1731
    %vm1738 = vmor %vm1736, %vm1737
    %v1739 = vsel %vm1738, %v1731, %v1735
    %v1740 = vand.u32 2147483647, %v1729
    %vm1741 = vcmp.eq.f32.partialorder %v1740, 8.507059e+37
    %v1742 = vand.u32 %v1729, 2147483648
    %v1743 = vor.u32 1.1754944e-38, %v1742
    %v1744 = vsel %vm1741, %v1743, %v1739
    %v1745 = vmul.f32 1.0, %v1744
    %v1746 = vrcp.pop %v1730
    %v1747 = vmul.f32 %v1730, %v1746
    %v1748 = vsub.f32 1.0, %v1747
    %v1749 = vmul.f32 %v1746, %v1748
    %v1750 = vadd.f32 %v1746, %v1749
    %vm1751 = vweird.f32 %v1730
    %vm1752 = vweird.f32 %v1746
    %vm1753 = vmor %vm1751, %vm1752
    %v1754 = vsel %vm1753, %v1746, %v1750
    %v1755 = vand.u32 2147483647, %v1730
    %vm1756 = vcmp.eq.f32.partialorder %v1755, 8.507059e+37
    %v1757 = vand.u32 %v1730, 2147483648
    %v1758 = vor.u32 1.1754944e-38, %v1757
    %v1759 = vsel %vm1756, %v1758, %v1754
    %v1760 = vmul.f32 1.0, %v1759
    %v1761 = vxor.u32 %v1655, 2147483648
    %v1762 = vxor.u32 %v1656, 2147483648
    %v1763 = vmul.f32 %v1761, 1.442695
    %v1764 = vpow.pop %v1763
    %v1765 = vmul.f32 %v1762, 1.442695
    %v1766 = vpow.pop %v1765
    %v1767 = vadd.f32 %v1764, 1.0
    %v1768 = vadd.f32 %v1766, 1.0
    %v1769 = vrcp.pop %v1767
    %v1770 = vmul.f32 %v1767, %v1769
    %v1771 = vsub.f32 1.0, %v1770
    %v1772 = vmul.f32 %v1769, %v1771
    %v1773 = vadd.f32 %v1769, %v1772
    %vm1774 = vweird.f32 %v1767
    %vm1775 = vweird.f32 %v1769
    %vm1776 = vmor %vm1774, %vm1775
    %v1777 = vsel %vm1776, %v1769, %v1773
    %v1778 = vand.u32 2147483647, %v1767
    %vm1779 = vcmp.eq.f32.partialorder %v1778, 8.507059e+37
    %v1780 = vand.u32 %v1767, 2147483648
    %v1781 = vor.u32 1.1754944e-38, %v1780
    %v1782 = vsel %vm1779, %v1781, %v1777
    %v1783 = vmul.f32 1.0, %v1782
    %v1784 = vrcp.pop %v1768
    %v1785 = vmul.f32 %v1768, %v1784
    %v1786 = vsub.f32 1.0, %v1785
    %v1787 = vmul.f32 %v1784, %v1786
    %v1788 = vadd.f32 %v1784, %v1787
    %vm1789 = vweird.f32 %v1768
    %vm1790 = vweird.f32 %v1784
    %vm1791 = vmor %vm1789, %vm1790
    %v1792 = vsel %vm1791, %v1784, %v1788
    %v1793 = vand.u32 2147483647, %v1768
    %vm1794 = vcmp.eq.f32.partialorder %v1793, 8.507059e+37
    %v1795 = vand.u32 %v1768, 2147483648
    %v1796 = vor.u32 1.1754944e-38, %v1795
    %v1797 = vsel %vm1794, %v1796, %v1792
    %v1798 = vmul.f32 1.0, %v1797
    %v1799 = vxor.u32 %v1679, 2147483648
    %v1800 = vxor.u32 %v1680, 2147483648
    %v1801 = vmul.f32 %v1799, 1.442695
    %v1802 = vpow.pop %v1801
    %v1803 = vmul.f32 %v1800, 1.442695
    %v1804 = vpow.pop %v1803
    %v1805 = vadd.f32 %v1802, 1.0
    %v1806 = vadd.f32 %v1804, 1.0
    %v1807 = vrcp.pop %v1805
    %v1808 = vmul.f32 %v1805, %v1807
    %v1809 = vsub.f32 1.0, %v1808
    %v1810 = vmul.f32 %v1807, %v1809
    %v1811 = vadd.f32 %v1807, %v1810
    %vm1812 = vweird.f32 %v1805
    %vm1813 = vweird.f32 %v1807
    %vm1814 = vmor %vm1812, %vm1813
    %v1815 = vsel %vm1814, %v1807, %v1811
    %v1816 = vand.u32 2147483647, %v1805
    %vm1817 = vcmp.eq.f32.partialorder %v1816, 8.507059e+37
    %v1818 = vand.u32 %v1805, 2147483648
    %v1819 = vor.u32 1.1754944e-38, %v1818
    %v1820 = vsel %vm1817, %v1819, %v1815
    %v1821 = vmul.f32 1.0, %v1820
    %v1822 = vrcp.pop %v1806
    %v1823 = vmul.f32 %v1806, %v1822
    %v1824 = vsub.f32 1.0, %v1823
    %v1825 = vmul.f32 %v1822, %v1824
    %v1826 = vadd.f32 %v1822, %v1825
    %vm1827 = vweird.f32 %v1806
    %vm1828 = vweird.f32 %v1822
    %vm1829 = vmor %vm1827, %vm1828
    %v1830 = vsel %vm1829, %v1822, %v1826
    %v1831 = vand.u32 2147483647, %v1806
    %vm1832 = vcmp.eq.f32.partialorder %v1831, 8.507059e+37
    %v1833 = vand.u32 %v1806, 2147483648
    %v1834 = vor.u32 1.1754944e-38, %v1833
    %v1835 = vsel %vm1832, %v1834, %v1830
    %v1836 = vmul.f32 1.0, %v1835
    %v1837 = vtanh.pop %v1657
    %v1838 = vtanh.pop %v1658
    %v1839 = vtanh.pop %v1681
    %v1840 = vtanh.pop %v1682
    %v1841 = vxor.u32 %v1659, 2147483648
    %v1842 = vxor.u32 %v1660, 2147483648
    %v1843 = vmul.f32 %v1841, 1.442695
    %v1844 = vpow.pop %v1843
    %v1845 = vmul.f32 %v1842, 1.442695
    %v1846 = vpow.pop %v1845
    %v1847 = vadd.f32 %v1844, 1.0
    %v1848 = vadd.f32 %v1846, 1.0
    %v1849 = vrcp.pop %v1847
    %v1850 = vmul.f32 %v1847, %v1849
    %v1851 = vsub.f32 1.0, %v1850
    %v1852 = vmul.f32 %v1849, %v1851
    %v1853 = vadd.f32 %v1849, %v1852
    %vm1854 = vweird.f32 %v1847
    %vm1855 = vweird.f32 %v1849
    %vm1856 = vmor %vm1854, %vm1855
    %v1857 = vsel %vm1856, %v1849, %v1853
    %v1858 = vand.u32 2147483647, %v1847
    %vm1859 = vcmp.eq.f32.partialorder %v1858, 8.507059e+37
    %v1860 = vand.u32 %v1847, 2147483648
    %v1861 = vor.u32 1.1754944e-38, %v1860
    %v1862 = vsel %vm1859, %v1861, %v1857
    %v1863 = vmul.f32 1.0, %v1862
    %v1864 = vrcp.pop %v1848
    %v1865 = vmul.f32 %v1848, %v1864
    %v1866 = vsub.f32 1.0, %v1865
    %v1867 = vmul.f32 %v1864, %v1866
    %v1868 = vadd.f32 %v1864, %v1867
    %vm1869 = vweird.f32 %v1848
    %vm1870 = vweird.f32 %v1864
    %vm1871 = vmor %vm1869, %vm1870
    %v1872 = vsel %vm1871, %v1864, %v1868
    %v1873 = vand.u32 2147483647, %v1848
    %vm1874 = vcmp.eq.f32.partialorder %v1873, 8.507059e+37
    %v1875 = vand.u32 %v1848, 2147483648
    %v1876 = vor.u32 1.1754944e-38, %v1875
    %v1877 = vsel %vm1874, %v1876, %v1872
    %v1878 = vmul.f32 1.0, %v1877
    %v1879 = vxor.u32 %v1683, 2147483648
    %v1880 = vxor.u32 %v1684, 2147483648
    %v1881 = vmul.f32 %v1879, 1.442695
    %v1882 = vpow.pop %v1881
    %v1883 = vmul.f32 %v1880, 1.442695
    %v1884 = vpow.pop %v1883
    %v1885 = vadd.f32 %v1882, 1.0
    %v1886 = vadd.f32 %v1884, 1.0
    %v1887 = vrcp.pop %v1885
    %v1888 = vmul.f32 %v1885, %v1887
    %v1889 = vsub.f32 1.0, %v1888
    %v1890 = vmul.f32 %v1887, %v1889
    %v1891 = vadd.f32 %v1887, %v1890
    %vm1892 = vweird.f32 %v1885
    %vm1893 = vweird.f32 %v1887
    %vm1894 = vmor %vm1892, %vm1893
    %v1895 = vsel %vm1894, %v1887, %v1891
    %v1896 = vand.u32 2147483647, %v1885
    %vm1897 = vcmp.eq.f32.partialorder %v1896, 8.507059e+37
    %v1898 = vand.u32 %v1885, 2147483648
    %v1899 = vor.u32 1.1754944e-38, %v1898
    %v1900 = vsel %vm1897, %v1899, %v1895
    %v1901 = vmul.f32 1.0, %v1900
    %v1902 = vrcp.pop %v1886
    %v1903 = vmul.f32 %v1886, %v1902
    %v1904 = vsub.f32 1.0, %v1903
    %v1905 = vmul.f32 %v1902, %v1904
    %v1906 = vadd.f32 %v1902, %v1905
    %vm1907 = vweird.f32 %v1886
    %vm1908 = vweird.f32 %v1902
    %vm1909 = vmor %vm1907, %vm1908
    %v1910 = vsel %vm1909, %v1902, %v1906
    %v1911 = vand.u32 2147483647, %v1886
    %vm1912 = vcmp.eq.f32.partialorder %v1911, 8.507059e+37
    %v1913 = vand.u32 %v1886, 2147483648
    %v1914 = vor.u32 1.1754944e-38, %v1913
    %v1915 = vsel %vm1912, %v1914, %v1910
    %v1916 = vmul.f32 1.0, %v1915
    %v1917 = vmul.f32 %v1783, %v1537
    %v1918 = vmul.f32 %v1798, %v1538
    %v1919 = vmul.f32 %v1707, %v1837
    %v1920 = vmul.f32 %v1722, %v1838
    %v1921 = vadd.f32 %v1917, %v1919
    %v1922 = vadd.f32 %v1918, %v1920
    %v1923 = vmul.f32 %v1821, %v1548
    %v1924 = vmul.f32 %v1836, %v1549
    %v1925 = vmul.f32 %v1745, %v1839
    %v1926 = vmul.f32 %v1760, %v1840
    %v1927 = vadd.f32 %v1923, %v1925
    %v1928 = vadd.f32 %v1924, %v1926
    %v1929 = vtanh.pop %v1921
    %v1930 = vtanh.pop %v1922
    %v1931 = vmul.f32 %v1863, %v1929
    %v1932 = vmul.f32 %v1878, %v1930
    %v1933 = vtanh.pop %v1927
    %v1934 = vtanh.pop %v1928
    %v1935 = vmul.f32 %v1901, %v1933
    %v1936 = vmul.f32 %v1916, %v1934
    %s1937 = scalar_lea.vmem %s1, 1
    %v1938 = vld [vmem:[%s1937] sm:$0x1]
    %s1939 = scalar_lea.vmem %s1, 6
    %v1940 = vld [vmem:[%s1939] sm:$0x1]
    %v1941 = vsub.f32 %v1931, %v1533
    %v1942 = vsub.f32 %v1932, %v1534
    %v1944 = vperm.slane %v1938, 0
    %v1946 = vmul.f32 %v1944, %v1941
    %v1947 = vmul.f32 %v1944, %v1942
    %v1948 = vadd.f32 %v1533, %v1946
    %v1949 = vadd.f32 %v1534, %v1947
    %v1950 = vsub.f32 %v1921, %v1537
    %v1951 = vsub.f32 %v1922, %v1538
    %v1952 = vmul.f32 %v1944, %v1950
    %v1953 = vmul.f32 %v1944, %v1951
    %v1954 = vadd.f32 %v1537, %v1952
    %v1955 = vadd.f32 %v1538, %v1953
    %v1956 = vsub.f32 %v1935, %v1544
    %v1957 = vsub.f32 %v1936, %v1545
    %v1959 = vperm.slane %v1940, 0
    %v1961 = vmul.f32 %v1959, %v1956
    %v1962 = vmul.f32 %v1959, %v1957
    %v1963 = vadd.f32 %v1544, %v1961
    %v1964 = vadd.f32 %v1545, %v1962
    %v1965 = vsub.f32 %v1927, %v1548
    %v1966 = vsub.f32 %v1928, %v1549
    %v1967 = vmul.f32 %v1959, %v1965
    %v1968 = vmul.f32 %v1959, %v1966
    %v1969 = vadd.f32 %v1548, %v1967
    %v1970 = vadd.f32 %v1549, %v1968
    %s1971 = scalar_lea.vmem [#allocation3], 32
    %1972 = vst [vmem:[%s1971] sm:$0xff] %v1948
    %1973 = vst [vmem:[%s1971 + $0x8] sm:$0xff] %v1949
    %s1974 = scalar_lea.vmem [#allocation3], 192
    %1975 = vst [vmem:[%s1974 + $0x10] sm:$0xff] %v1963
    %1976 = vst [vmem:[%s1974 + $0x18] sm:$0xff] %v1964
    %1977 = vmatpush.msra.mxu0 0.0
    %1978 = vmatpush.msra.mxu0 0.0
    %1979 = vmatpush.msra.mxu0 0.0
    %1980 = vmatpush.msra.mxu0 0.0
    %1981 = vmatpush.msra.mxu0 0.0
    %1982 = vmatpush.msra.mxu0 0.0
    %1983 = vmatpush.msra.mxu0 0.0
    %1984 = vmatpush.msra.mxu0 0.0
    %1985 = vmatpush.msra.mxu0 0.0
    %1986 = vmatpush.msra.mxu0 0.0
    %1987 = vmatpush.msra.mxu0 0.0
    %1988 = vmatpush.msra.mxu0 0.0
    %1989 = vmatpush.msra.mxu0 0.0
    %1990 = vmatpush.msra.mxu0 0.0
    %1991 = vmatpush.msra.mxu0 %v1949
    %1992 = vmatpush.msra.mxu0 %v1948
    %1993 = vmatmul.f32.gmra.mxu0 %v1096
    %v1994 = vpop.f32.mrf.mxu0
    %v1995 = vadd.f32 0.0, %v1994
    %1996 = vmatmul.f32.gmra.mxu0 %v1099
    %v1997 = vpop.f32.mrf.mxu0
    %v1998 = vadd.f32 0.0, %v1997
    %1999 = vmatmul.f32.gmra.mxu0 %v1102
    %v2000 = vpop.f32.mrf.mxu0
    %v2001 = vadd.f32 0.0, %v2000
    %2002 = vmatmul.f32.gmra.mxu0 %v1105
    %v2003 = vpop.f32.mrf.mxu0
    %v2004 = vadd.f32 0.0, %v2003
    %2005 = vmatmul.f32.gmra.mxu0 %v1108
    %v2006 = vpop.f32.mrf.mxu0
    %v2007 = vadd.f32 0.0, %v2006
    %2008 = vmatmul.f32.gmra.mxu0 %v1111
    %v2009 = vpop.f32.mrf.mxu0
    %v2010 = vadd.f32 0.0, %v2009
    %2011 = vmatmul.f32.gmra.mxu0 %v1114
    %v2012 = vpop.f32.mrf.mxu0
    %v2013 = vadd.f32 0.0, %v2012
    %2014 = vmatmul.f32.gmra.mxu0 %v1117
    %v2015 = vpop.f32.mrf.mxu0
    %v2016 = vadd.f32 0.0, %v2015
    %2017 = vdwg.mxu0
    %2018 = vmatpush.msra.mxu0 0.0
    %2019 = vmatpush.msra.mxu0 0.0
    %2020 = vmatpush.msra.mxu0 0.0
    %2021 = vmatpush.msra.mxu0 0.0
    %2022 = vmatpush.msra.mxu0 0.0
    %2023 = vmatpush.msra.mxu0 0.0
    %2024 = vmatpush.msra.mxu0 0.0
    %2025 = vmatpush.msra.mxu0 0.0
    %2026 = vmatpush.msra.mxu0 0.0
    %2027 = vmatpush.msra.mxu0 0.0
    %2028 = vmatpush.msra.mxu0 0.0
    %2029 = vmatpush.msra.mxu0 0.0
    %2030 = vmatpush.msra.mxu0 0.0
    %2031 = vmatpush.msra.mxu0 0.0
    %2032 = vmatpush.msra.mxu0 %v1964
    %2033 = vmatpush.msra.mxu0 %v1963
    %2034 = vmatmul.f32.gmra.mxu0 %v1161
    %v2035 = vpop.f32.mrf.mxu0
    %v2036 = vadd.f32 0.0, %v2035
    %2037 = vmatmul.f32.gmra.mxu0 %v1164
    %v2038 = vpop.f32.mrf.mxu0
    %v2039 = vadd.f32 0.0, %v2038
    %2040 = vmatmul.f32.gmra.mxu0 %v1167
    %v2041 = vpop.f32.mrf.mxu0
    %v2042 = vadd.f32 0.0, %v2041
    %2043 = vmatmul.f32.gmra.mxu0 %v1170
    %v2044 = vpop.f32.mrf.mxu0
    %v2045 = vadd.f32 0.0, %v2044
    %2046 = vmatmul.f32.gmra.mxu0 %v1173
    %v2047 = vpop.f32.mrf.mxu0
    %v2048 = vadd.f32 0.0, %v2047
    %2049 = vmatmul.f32.gmra.mxu0 %v1176
    %v2050 = vpop.f32.mrf.mxu0
    %v2051 = vadd.f32 0.0, %v2050
    %2052 = vmatmul.f32.gmra.mxu0 %v1179
    %v2053 = vpop.f32.mrf.mxu0
    %v2054 = vadd.f32 0.0, %v2053
    %2055 = vmatmul.f32.gmra.mxu0 %v1182
    %v2056 = vpop.f32.mrf.mxu0
    %v2057 = vadd.f32 0.0, %v2056
    %2058 = vdwg.mxu0
    %v2059 = vld [vmem:[%s533] sm:$0xf]
    %v2060 = vld [vmem:[%s533 + $0x4] sm:$0xf]
    %v2061 = vld [vmem:[%s533 + $0x8] sm:$0xf]
    %v2062 = vld [vmem:[%s533 + $0xc] sm:$0xf]
    %v2063 = vld [vmem:[%s533 + $0x10] sm:$0xf]
    %v2064 = vld [vmem:[%s533 + $0x14] sm:$0xf]
    %v2065 = vld [vmem:[%s533 + $0x18] sm:$0xf]
    %v2066 = vld [vmem:[%s533 + $0x1c] sm:$0xf]
    %v2067 = vunpack.c.l.bf16 %v2059
    %v2068 = vunpack.c.l.bf16 %v2060
    %v2069 = vunpack.c.l.bf16 %v2061
    %v2070 = vunpack.c.l.bf16 %v2062
    %v2071 = vunpack.c.l.bf16 %v2063
    %v2072 = vunpack.c.l.bf16 %v2064
    %v2073 = vunpack.c.l.bf16 %v2065
    %v2074 = vunpack.c.l.bf16 %v2066
    %v2075 = vadd.f32 %v2067, %v1995
    %v2076 = vadd.f32 %v2068, %v1998
    %v2077 = vadd.f32 %v2069, %v2001
    %v2078 = vadd.f32 %v2070, %v2004
    %v2079 = vadd.f32 %v2071, %v2007
    %v2080 = vadd.f32 %v2072, %v2010
    %v2081 = vadd.f32 %v2073, %v2013
    %v2082 = vadd.f32 %v2074, %v2016
    %v2083 = vld [vmem:[%s533 + $0x20] sm:$0xf]
    %v2084 = vld [vmem:[%s533 + $0x24] sm:$0xf]
    %v2085 = vld [vmem:[%s533 + $0x28] sm:$0xf]
    %v2086 = vld [vmem:[%s533 + $0x2c] sm:$0xf]
    %v2087 = vld [vmem:[%s533 + $0x30] sm:$0xf]
    %v2088 = vld [vmem:[%s533 + $0x34] sm:$0xf]
    %v2089 = vld [vmem:[%s533 + $0x38] sm:$0xf]
    %v2090 = vld [vmem:[%s533 + $0x3c] sm:$0xf]
    %v2091 = vunpack.c.l.bf16 %v2083
    %v2092 = vunpack.c.l.bf16 %v2084
    %v2093 = vunpack.c.l.bf16 %v2085
    %v2094 = vunpack.c.l.bf16 %v2086
    %v2095 = vunpack.c.l.bf16 %v2087
    %v2096 = vunpack.c.l.bf16 %v2088
    %v2097 = vunpack.c.l.bf16 %v2089
    %v2098 = vunpack.c.l.bf16 %v2090
    %v2099 = vadd.f32 %v2091, %v2036
    %v2100 = vadd.f32 %v2092, %v2039
    %v2101 = vadd.f32 %v2093, %v2042
    %v2102 = vadd.f32 %v2094, %v2045
    %v2103 = vadd.f32 %v2095, %v2048
    %v2104 = vadd.f32 %v2096, %v2051
    %v2105 = vadd.f32 %v2097, %v2054
    %v2106 = vadd.f32 %v2098, %v2057
    %v2107 = vxor.u32 %v2075, 2147483648
    %v2108 = vxor.u32 %v2076, 2147483648
    %v2109 = vmul.f32 %v2107, 1.442695
    %v2110 = vpow.pop %v2109
    %v2111 = vmul.f32 %v2108, 1.442695
    %v2112 = vpow.pop %v2111
    %v2113 = vadd.f32 %v2110, 1.0
    %v2114 = vadd.f32 %v2112, 1.0
    %v2115 = vrcp.pop %v2113
    %v2116 = vmul.f32 %v2113, %v2115
    %v2117 = vsub.f32 1.0, %v2116
    %v2118 = vmul.f32 %v2115, %v2117
    %v2119 = vadd.f32 %v2115, %v2118
    %vm2120 = vweird.f32 %v2113
    %vm2121 = vweird.f32 %v2115
    %vm2122 = vmor %vm2120, %vm2121
    %v2123 = vsel %vm2122, %v2115, %v2119
    %v2124 = vand.u32 2147483647, %v2113
    %vm2125 = vcmp.eq.f32.partialorder %v2124, 8.507059e+37
    %v2126 = vand.u32 %v2113, 2147483648
    %v2127 = vor.u32 1.1754944e-38, %v2126
    %v2128 = vsel %vm2125, %v2127, %v2123
    %v2129 = vmul.f32 1.0, %v2128
    %v2130 = vrcp.pop %v2114
    %v2131 = vmul.f32 %v2114, %v2130
    %v2132 = vsub.f32 1.0, %v2131
    %v2133 = vmul.f32 %v2130, %v2132
    %v2134 = vadd.f32 %v2130, %v2133
    %vm2135 = vweird.f32 %v2114
    %vm2136 = vweird.f32 %v2130
    %vm2137 = vmor %vm2135, %vm2136
    %v2138 = vsel %vm2137, %v2130, %v2134
    %v2139 = vand.u32 2147483647, %v2114
    %vm2140 = vcmp.eq.f32.partialorder %v2139, 8.507059e+37
    %v2141 = vand.u32 %v2114, 2147483648
    %v2142 = vor.u32 1.1754944e-38, %v2141
    %v2143 = vsel %vm2140, %v2142, %v2138
    %v2144 = vmul.f32 1.0, %v2143
    %v2145 = vxor.u32 %v2099, 2147483648
    %v2146 = vxor.u32 %v2100, 2147483648
    %v2147 = vmul.f32 %v2145, 1.442695
    %v2148 = vpow.pop %v2147
    %v2149 = vmul.f32 %v2146, 1.442695
    %v2150 = vpow.pop %v2149
    %v2151 = vadd.f32 %v2148, 1.0
    %v2152 = vadd.f32 %v2150, 1.0
    %v2153 = vrcp.pop %v2151
    %v2154 = vmul.f32 %v2151, %v2153
    %v2155 = vsub.f32 1.0, %v2154
    %v2156 = vmul.f32 %v2153, %v2155
    %v2157 = vadd.f32 %v2153, %v2156
    %vm2158 = vweird.f32 %v2151
    %vm2159 = vweird.f32 %v2153
    %vm2160 = vmor %vm2158, %vm2159
    %v2161 = vsel %vm2160, %v2153, %v2157
    %v2162 = vand.u32 2147483647, %v2151
    %vm2163 = vcmp.eq.f32.partialorder %v2162, 8.507059e+37
    %v2164 = vand.u32 %v2151, 2147483648
    %v2165 = vor.u32 1.1754944e-38, %v2164
    %v2166 = vsel %vm2163, %v2165, %v2161
    %v2167 = vmul.f32 1.0, %v2166
    %v2168 = vrcp.pop %v2152
    %v2169 = vmul.f32 %v2152, %v2168
    %v2170 = vsub.f32 1.0, %v2169
    %v2171 = vmul.f32 %v2168, %v2170
    %v2172 = vadd.f32 %v2168, %v2171
    %vm2173 = vweird.f32 %v2152
    %vm2174 = vweird.f32 %v2168
    %vm2175 = vmor %vm2173, %vm2174
    %v2176 = vsel %vm2175, %v2168, %v2172
    %v2177 = vand.u32 2147483647, %v2152
    %vm2178 = vcmp.eq.f32.partialorder %v2177, 8.507059e+37
    %v2179 = vand.u32 %v2152, 2147483648
    %v2180 = vor.u32 1.1754944e-38, %v2179
    %v2181 = vsel %vm2178, %v2180, %v2176
    %v2182 = vmul.f32 1.0, %v2181
    %v2183 = vxor.u32 %v2077, 2147483648
    %v2184 = vxor.u32 %v2078, 2147483648
    %v2185 = vmul.f32 %v2183, 1.442695
    %v2186 = vpow.pop %v2185
    %v2187 = vmul.f32 %v2184, 1.442695
    %v2188 = vpow.pop %v2187
    %v2189 = vadd.f32 %v2186, 1.0
    %v2190 = vadd.f32 %v2188, 1.0
    %v2191 = vrcp.pop %v2189
    %v2192 = vmul.f32 %v2189, %v2191
    %v2193 = vsub.f32 1.0, %v2192
    %v2194 = vmul.f32 %v2191, %v2193
    %v2195 = vadd.f32 %v2191, %v2194
    %vm2196 = vweird.f32 %v2189
    %vm2197 = vweird.f32 %v2191
    %vm2198 = vmor %vm2196, %vm2197
    %v2199 = vsel %vm2198, %v2191, %v2195
    %v2200 = vand.u32 2147483647, %v2189
    %vm2201 = vcmp.eq.f32.partialorder %v2200, 8.507059e+37
    %v2202 = vand.u32 %v2189, 2147483648
    %v2203 = vor.u32 1.1754944e-38, %v2202
    %v2204 = vsel %vm2201, %v2203, %v2199
    %v2205 = vmul.f32 1.0, %v2204
    %v2206 = vrcp.pop %v2190
    %v2207 = vmul.f32 %v2190, %v2206
    %v2208 = vsub.f32 1.0, %v2207
    %v2209 = vmul.f32 %v2206, %v2208
    %v2210 = vadd.f32 %v2206, %v2209
    %vm2211 = vweird.f32 %v2190
    %vm2212 = vweird.f32 %v2206
    %vm2213 = vmor %vm2211, %vm2212
    %v2214 = vsel %vm2213, %v2206, %v2210
    %v2215 = vand.u32 2147483647, %v2190
    %vm2216 = vcmp.eq.f32.partialorder %v2215, 8.507059e+37
    %v2217 = vand.u32 %v2190, 2147483648
    %v2218 = vor.u32 1.1754944e-38, %v2217
    %v2219 = vsel %vm2216, %v2218, %v2214
    %v2220 = vmul.f32 1.0, %v2219
    %v2221 = vxor.u32 %v2101, 2147483648
    %v2222 = vxor.u32 %v2102, 2147483648
    %v2223 = vmul.f32 %v2221, 1.442695
    %v2224 = vpow.pop %v2223
    %v2225 = vmul.f32 %v2222, 1.442695
    %v2226 = vpow.pop %v2225
    %v2227 = vadd.f32 %v2224, 1.0
    %v2228 = vadd.f32 %v2226, 1.0
    %v2229 = vrcp.pop %v2227
    %v2230 = vmul.f32 %v2227, %v2229
    %v2231 = vsub.f32 1.0, %v2230
    %v2232 = vmul.f32 %v2229, %v2231
    %v2233 = vadd.f32 %v2229, %v2232
    %vm2234 = vweird.f32 %v2227
    %vm2235 = vweird.f32 %v2229
    %vm2236 = vmor %vm2234, %vm2235
    %v2237 = vsel %vm2236, %v2229, %v2233
    %v2238 = vand.u32 2147483647, %v2227
    %vm2239 = vcmp.eq.f32.partialorder %v2238, 8.507059e+37
    %v2240 = vand.u32 %v2227, 2147483648
    %v2241 = vor.u32 1.1754944e-38, %v2240
    %v2242 = vsel %vm2239, %v2241, %v2237
    %v2243 = vmul.f32 1.0, %v2242
    %v2244 = vrcp.pop %v2228
    %v2245 = vmul.f32 %v2228, %v2244
    %v2246 = vsub.f32 1.0, %v2245
    %v2247 = vmul.f32 %v2244, %v2246
    %v2248 = vadd.f32 %v2244, %v2247
    %vm2249 = vweird.f32 %v2228
    %vm2250 = vweird.f32 %v2244
    %vm2251 = vmor %vm2249, %vm2250
    %v2252 = vsel %vm2251, %v2244, %v2248
    %v2253 = vand.u32 2147483647, %v2228
    %vm2254 = vcmp.eq.f32.partialorder %v2253, 8.507059e+37
    %v2255 = vand.u32 %v2228, 2147483648
    %v2256 = vor.u32 1.1754944e-38, %v2255
    %v2257 = vsel %vm2254, %v2256, %v2252
    %v2258 = vmul.f32 1.0, %v2257
    %v2259 = vtanh.pop %v2079
    %v2260 = vtanh.pop %v2080
    %v2261 = vtanh.pop %v2103
    %v2262 = vtanh.pop %v2104
    %v2263 = vxor.u32 %v2081, 2147483648
    %v2264 = vxor.u32 %v2082, 2147483648
    %v2265 = vmul.f32 %v2263, 1.442695
    %v2266 = vpow.pop %v2265
    %v2267 = vmul.f32 %v2264, 1.442695
    %v2268 = vpow.pop %v2267
    %v2269 = vadd.f32 %v2266, 1.0
    %v2270 = vadd.f32 %v2268, 1.0
    %v2271 = vrcp.pop %v2269
    %v2272 = vmul.f32 %v2269, %v2271
    %v2273 = vsub.f32 1.0, %v2272
    %v2274 = vmul.f32 %v2271, %v2273
    %v2275 = vadd.f32 %v2271, %v2274
    %vm2276 = vweird.f32 %v2269
    %vm2277 = vweird.f32 %v2271
    %vm2278 = vmor %vm2276, %vm2277
    %v2279 = vsel %vm2278, %v2271, %v2275
    %v2280 = vand.u32 2147483647, %v2269
    %vm2281 = vcmp.eq.f32.partialorder %v2280, 8.507059e+37
    %v2282 = vand.u32 %v2269, 2147483648
    %v2283 = vor.u32 1.1754944e-38, %v2282
    %v2284 = vsel %vm2281, %v2283, %v2279
    %v2285 = vmul.f32 1.0, %v2284
    %v2286 = vrcp.pop %v2270
    %v2287 = vmul.f32 %v2270, %v2286
    %v2288 = vsub.f32 1.0, %v2287
    %v2289 = vmul.f32 %v2286, %v2288
    %v2290 = vadd.f32 %v2286, %v2289
    %vm2291 = vweird.f32 %v2270
    %vm2292 = vweird.f32 %v2286
    %vm2293 = vmor %vm2291, %vm2292
    %v2294 = vsel %vm2293, %v2286, %v2290
    %v2295 = vand.u32 2147483647, %v2270
    %vm2296 = vcmp.eq.f32.partialorder %v2295, 8.507059e+37
    %v2297 = vand.u32 %v2270, 2147483648
    %v2298 = vor.u32 1.1754944e-38, %v2297
    %v2299 = vsel %vm2296, %v2298, %v2294
    %v2300 = vmul.f32 1.0, %v2299
    %v2301 = vxor.u32 %v2105, 2147483648
    %v2302 = vxor.u32 %v2106, 2147483648
    %v2303 = vmul.f32 %v2301, 1.442695
    %v2304 = vpow.pop %v2303
    %v2305 = vmul.f32 %v2302, 1.442695
    %v2306 = vpow.pop %v2305
    %v2307 = vadd.f32 %v2304, 1.0
    %v2308 = vadd.f32 %v2306, 1.0
    %v2309 = vrcp.pop %v2307
    %v2310 = vmul.f32 %v2307, %v2309
    %v2311 = vsub.f32 1.0, %v2310
    %v2312 = vmul.f32 %v2309, %v2311
    %v2313 = vadd.f32 %v2309, %v2312
    %vm2314 = vweird.f32 %v2307
    %vm2315 = vweird.f32 %v2309
    %vm2316 = vmor %vm2314, %vm2315
    %v2317 = vsel %vm2316, %v2309, %v2313
    %v2318 = vand.u32 2147483647, %v2307
    %vm2319 = vcmp.eq.f32.partialorder %v2318, 8.507059e+37
    %v2320 = vand.u32 %v2307, 2147483648
    %v2321 = vor.u32 1.1754944e-38, %v2320
    %v2322 = vsel %vm2319, %v2321, %v2317
    %v2323 = vmul.f32 1.0, %v2322
    %v2324 = vrcp.pop %v2308
    %v2325 = vmul.f32 %v2308, %v2324
    %v2326 = vsub.f32 1.0, %v2325
    %v2327 = vmul.f32 %v2324, %v2326
    %v2328 = vadd.f32 %v2324, %v2327
    %vm2329 = vweird.f32 %v2308
    %vm2330 = vweird.f32 %v2324
    %vm2331 = vmor %vm2329, %vm2330
    %v2332 = vsel %vm2331, %v2324, %v2328
    %v2333 = vand.u32 2147483647, %v2308
    %vm2334 = vcmp.eq.f32.partialorder %v2333, 8.507059e+37
    %v2335 = vand.u32 %v2308, 2147483648
    %v2336 = vor.u32 1.1754944e-38, %v2335
    %v2337 = vsel %vm2334, %v2336, %v2332
    %v2338 = vmul.f32 1.0, %v2337
    %v2339 = vmul.f32 %v2205, %v1954
    %v2340 = vmul.f32 %v2220, %v1955
    %v2341 = vmul.f32 %v2129, %v2259
    %v2342 = vmul.f32 %v2144, %v2260
    %v2343 = vadd.f32 %v2339, %v2341
    %v2344 = vadd.f32 %v2340, %v2342
    %v2345 = vmul.f32 %v2243, %v1969
    %v2346 = vmul.f32 %v2258, %v1970
    %v2347 = vmul.f32 %v2167, %v2261
    %v2348 = vmul.f32 %v2182, %v2262
    %v2349 = vadd.f32 %v2345, %v2347
    %v2350 = vadd.f32 %v2346, %v2348
    %v2351 = vtanh.pop %v2343
    %v2352 = vtanh.pop %v2344
    %v2353 = vmul.f32 %v2285, %v2351
    %v2354 = vmul.f32 %v2300, %v2352
    %v2355 = vtanh.pop %v2349
    %v2356 = vtanh.pop %v2350
    %v2357 = vmul.f32 %v2323, %v2355
    %v2358 = vmul.f32 %v2338, %v2356
    %s2359 = scalar_lea.vmem %s1, 2
    %v2360 = vld [vmem:[%s2359] sm:$0x1]
    %s2361 = scalar_lea.vmem %s1, 5
    %v2362 = vld [vmem:[%s2361] sm:$0x1]
    %v2363 = vsub.f32 %v2353, %v1948
    %v2364 = vsub.f32 %v2354, %v1949
    %v2366 = vperm.slane %v2360, 0
    %v2368 = vmul.f32 %v2366, %v2363
    %v2369 = vmul.f32 %v2366, %v2364
    %v2370 = vadd.f32 %v1948, %v2368
    %v2371 = vadd.f32 %v1949, %v2369
    %v2372 = vsub.f32 %v2343, %v1954
    %v2373 = vsub.f32 %v2344, %v1955
    %v2374 = vmul.f32 %v2366, %v2372
    %v2375 = vmul.f32 %v2366, %v2373
    %v2376 = vadd.f32 %v1954, %v2374
    %v2377 = vadd.f32 %v1955, %v2375
    %v2378 = vsub.f32 %v2357, %v1963
    %v2379 = vsub.f32 %v2358, %v1964
    %v2381 = vperm.slane %v2362, 0
    %v2383 = vmul.f32 %v2381, %v2378
    %v2384 = vmul.f32 %v2381, %v2379
    %v2385 = vadd.f32 %v1963, %v2383
    %v2386 = vadd.f32 %v1964, %v2384
    %v2387 = vsub.f32 %v2349, %v1969
    %v2388 = vsub.f32 %v2350, %v1970
    %v2389 = vmul.f32 %v2381, %v2387
    %v2390 = vmul.f32 %v2381, %v2388
    %v2391 = vadd.f32 %v1969, %v2389
    %v2392 = vadd.f32 %v1970, %v2390
    %s2393 = scalar_lea.vmem [#allocation3], 64
    %2394 = vst [vmem:[%s2393] sm:$0xff] %v2370
    %2395 = vst [vmem:[%s2393 + $0x8] sm:$0xff] %v2371
    %s2396 = scalar_lea.vmem [#allocation3], 160
    %2397 = vst [vmem:[%s2396 + $0x10] sm:$0xff] %v2385
    %2398 = vst [vmem:[%s2396 + $0x18] sm:$0xff] %v2386
    %2399 = vmatpush.msra.mxu0 0.0
    %2400 = vmatpush.msra.mxu0 0.0
    %2401 = vmatpush.msra.mxu0 0.0
    %2402 = vmatpush.msra.mxu0 0.0
    %2403 = vmatpush.msra.mxu0 0.0
    %2404 = vmatpush.msra.mxu0 0.0
    %2405 = vmatpush.msra.mxu0 0.0
    %2406 = vmatpush.msra.mxu0 0.0
    %2407 = vmatpush.msra.mxu0 0.0
    %2408 = vmatpush.msra.mxu0 0.0
    %2409 = vmatpush.msra.mxu0 0.0
    %2410 = vmatpush.msra.mxu0 0.0
    %2411 = vmatpush.msra.mxu0 0.0
    %2412 = vmatpush.msra.mxu0 0.0
    %2413 = vmatpush.msra.mxu0 %v2371
    %2414 = vmatpush.msra.mxu0 %v2370
    %2415 = vmatmul.f32.gmra.mxu0 %v1096
    %v2416 = vpop.f32.mrf.mxu0
    %v2417 = vadd.f32 0.0, %v2416
    %2418 = vmatmul.f32.gmra.mxu0 %v1099
    %v2419 = vpop.f32.mrf.mxu0
    %v2420 = vadd.f32 0.0, %v2419
    %2421 = vmatmul.f32.gmra.mxu0 %v1102
    %v2422 = vpop.f32.mrf.mxu0
    %v2423 = vadd.f32 0.0, %v2422
    %2424 = vmatmul.f32.gmra.mxu0 %v1105
    %v2425 = vpop.f32.mrf.mxu0
    %v2426 = vadd.f32 0.0, %v2425
    %2427 = vmatmul.f32.gmra.mxu0 %v1108
    %v2428 = vpop.f32.mrf.mxu0
    %v2429 = vadd.f32 0.0, %v2428
    %2430 = vmatmul.f32.gmra.mxu0 %v1111
    %v2431 = vpop.f32.mrf.mxu0
    %v2432 = vadd.f32 0.0, %v2431
    %2433 = vmatmul.f32.gmra.mxu0 %v1114
    %v2434 = vpop.f32.mrf.mxu0
    %v2435 = vadd.f32 0.0, %v2434
    %2436 = vmatmul.f32.gmra.mxu0 %v1117
    %v2437 = vpop.f32.mrf.mxu0
    %v2438 = vadd.f32 0.0, %v2437
    %2439 = vdwg.mxu0
    %2440 = vmatpush.msra.mxu0 0.0
    %2441 = vmatpush.msra.mxu0 0.0
    %2442 = vmatpush.msra.mxu0 0.0
    %2443 = vmatpush.msra.mxu0 0.0
    %2444 = vmatpush.msra.mxu0 0.0
    %2445 = vmatpush.msra.mxu0 0.0
    %2446 = vmatpush.msra.mxu0 0.0
    %2447 = vmatpush.msra.mxu0 0.0
    %2448 = vmatpush.msra.mxu0 0.0
    %2449 = vmatpush.msra.mxu0 0.0
    %2450 = vmatpush.msra.mxu0 0.0
    %2451 = vmatpush.msra.mxu0 0.0
    %2452 = vmatpush.msra.mxu0 0.0
    %2453 = vmatpush.msra.mxu0 0.0
    %2454 = vmatpush.msra.mxu0 %v2386
    %2455 = vmatpush.msra.mxu0 %v2385
    %2456 = vmatmul.f32.gmra.mxu0 %v1161
    %v2457 = vpop.f32.mrf.mxu0
    %v2458 = vadd.f32 0.0, %v2457
    %2459 = vmatmul.f32.gmra.mxu0 %v1164
    %v2460 = vpop.f32.mrf.mxu0
    %v2461 = vadd.f32 0.0, %v2460
    %2462 = vmatmul.f32.gmra.mxu0 %v1167
    %v2463 = vpop.f32.mrf.mxu0
    %v2464 = vadd.f32 0.0, %v2463
    %2465 = vmatmul.f32.gmra.mxu0 %v1170
    %v2466 = vpop.f32.mrf.mxu0
    %v2467 = vadd.f32 0.0, %v2466
    %2468 = vmatmul.f32.gmra.mxu0 %v1173
    %v2469 = vpop.f32.mrf.mxu0
    %v2470 = vadd.f32 0.0, %v2469
    %2471 = vmatmul.f32.gmra.mxu0 %v1176
    %v2472 = vpop.f32.mrf.mxu0
    %v2473 = vadd.f32 0.0, %v2472
    %2474 = vmatmul.f32.gmra.mxu0 %v1179
    %v2475 = vpop.f32.mrf.mxu0
    %v2476 = vadd.f32 0.0, %v2475
    %2477 = vmatmul.f32.gmra.mxu0 %v1182
    %v2478 = vpop.f32.mrf.mxu0
    %v2479 = vadd.f32 0.0, %v2478
    %2480 = vdwg.mxu0
    %v2481 = vld [vmem:[%s642] sm:$0xf]
    %v2482 = vld [vmem:[%s642 + $0x4] sm:$0xf]
    %v2483 = vld [vmem:[%s642 + $0x8] sm:$0xf]
    %v2484 = vld [vmem:[%s642 + $0xc] sm:$0xf]
    %v2485 = vld [vmem:[%s642 + $0x10] sm:$0xf]
    %v2486 = vld [vmem:[%s642 + $0x14] sm:$0xf]
    %v2487 = vld [vmem:[%s642 + $0x18] sm:$0xf]
    %v2488 = vld [vmem:[%s642 + $0x1c] sm:$0xf]
    %v2489 = vunpack.c.l.bf16 %v2481
    %v2490 = vunpack.c.l.bf16 %v2482
    %v2491 = vunpack.c.l.bf16 %v2483
    %v2492 = vunpack.c.l.bf16 %v2484
    %v2493 = vunpack.c.l.bf16 %v2485
    %v2494 = vunpack.c.l.bf16 %v2486
    %v2495 = vunpack.c.l.bf16 %v2487
    %v2496 = vunpack.c.l.bf16 %v2488
    %v2497 = vadd.f32 %v2489, %v2417
    %v2498 = vadd.f32 %v2490, %v2420
    %v2499 = vadd.f32 %v2491, %v2423
    %v2500 = vadd.f32 %v2492, %v2426
    %v2501 = vadd.f32 %v2493, %v2429
    %v2502 = vadd.f32 %v2494, %v2432
    %v2503 = vadd.f32 %v2495, %v2435
    %v2504 = vadd.f32 %v2496, %v2438
    %v2505 = vld [vmem:[%s642 + $0x20] sm:$0xf]
    %v2506 = vld [vmem:[%s642 + $0x24] sm:$0xf]
    %v2507 = vld [vmem:[%s642 + $0x28] sm:$0xf]
    %v2508 = vld [vmem:[%s642 + $0x2c] sm:$0xf]
    %v2509 = vld [vmem:[%s642 + $0x30] sm:$0xf]
    %v2510 = vld [vmem:[%s642 + $0x34] sm:$0xf]
    %v2511 = vld [vmem:[%s642 + $0x38] sm:$0xf]
    %v2512 = vld [vmem:[%s642 + $0x3c] sm:$0xf]
    %v2513 = vunpack.c.l.bf16 %v2505
    %v2514 = vunpack.c.l.bf16 %v2506
    %v2515 = vunpack.c.l.bf16 %v2507
    %v2516 = vunpack.c.l.bf16 %v2508
    %v2517 = vunpack.c.l.bf16 %v2509
    %v2518 = vunpack.c.l.bf16 %v2510
    %v2519 = vunpack.c.l.bf16 %v2511
    %v2520 = vunpack.c.l.bf16 %v2512
    %v2521 = vadd.f32 %v2513, %v2458
    %v2522 = vadd.f32 %v2514, %v2461
    %v2523 = vadd.f32 %v2515, %v2464
    %v2524 = vadd.f32 %v2516, %v2467
    %v2525 = vadd.f32 %v2517, %v2470
    %v2526 = vadd.f32 %v2518, %v2473
    %v2527 = vadd.f32 %v2519, %v2476
    %v2528 = vadd.f32 %v2520, %v2479
    %v2529 = vxor.u32 %v2497, 2147483648
    %v2530 = vxor.u32 %v2498, 2147483648
    %v2531 = vmul.f32 %v2529, 1.442695
    %v2532 = vpow.pop %v2531
    %v2533 = vmul.f32 %v2530, 1.442695
    %v2534 = vpow.pop %v2533
    %v2535 = vadd.f32 %v2532, 1.0
    %v2536 = vadd.f32 %v2534, 1.0
    %v2537 = vrcp.pop %v2535
    %v2538 = vmul.f32 %v2535, %v2537
    %v2539 = vsub.f32 1.0, %v2538
    %v2540 = vmul.f32 %v2537, %v2539
    %v2541 = vadd.f32 %v2537, %v2540
    %vm2542 = vweird.f32 %v2535
    %vm2543 = vweird.f32 %v2537
    %vm2544 = vmor %vm2542, %vm2543
    %v2545 = vsel %vm2544, %v2537, %v2541
    %v2546 = vand.u32 2147483647, %v2535
    %vm2547 = vcmp.eq.f32.partialorder %v2546, 8.507059e+37
    %v2548 = vand.u32 %v2535, 2147483648
    %v2549 = vor.u32 1.1754944e-38, %v2548
    %v2550 = vsel %vm2547, %v2549, %v2545
    %v2551 = vmul.f32 1.0, %v2550
    %v2552 = vrcp.pop %v2536
    %v2553 = vmul.f32 %v2536, %v2552
    %v2554 = vsub.f32 1.0, %v2553
    %v2555 = vmul.f32 %v2552, %v2554
    %v2556 = vadd.f32 %v2552, %v2555
    %vm2557 = vweird.f32 %v2536
    %vm2558 = vweird.f32 %v2552
    %vm2559 = vmor %vm2557, %vm2558
    %v2560 = vsel %vm2559, %v2552, %v2556
    %v2561 = vand.u32 2147483647, %v2536
    %vm2562 = vcmp.eq.f32.partialorder %v2561, 8.507059e+37
    %v2563 = vand.u32 %v2536, 2147483648
    %v2564 = vor.u32 1.1754944e-38, %v2563
    %v2565 = vsel %vm2562, %v2564, %v2560
    %v2566 = vmul.f32 1.0, %v2565
    %v2567 = vxor.u32 %v2521, 2147483648
    %v2568 = vxor.u32 %v2522, 2147483648
    %v2569 = vmul.f32 %v2567, 1.442695
    %v2570 = vpow.pop %v2569
    %v2571 = vmul.f32 %v2568, 1.442695
    %v2572 = vpow.pop %v2571
    %v2573 = vadd.f32 %v2570, 1.0
    %v2574 = vadd.f32 %v2572, 1.0
    %v2575 = vrcp.pop %v2573
    %v2576 = vmul.f32 %v2573, %v2575
    %v2577 = vsub.f32 1.0, %v2576
    %v2578 = vmul.f32 %v2575, %v2577
    %v2579 = vadd.f32 %v2575, %v2578
    %vm2580 = vweird.f32 %v2573
    %vm2581 = vweird.f32 %v2575
    %vm2582 = vmor %vm2580, %vm2581
    %v2583 = vsel %vm2582, %v2575, %v2579
    %v2584 = vand.u32 2147483647, %v2573
    %vm2585 = vcmp.eq.f32.partialorder %v2584, 8.507059e+37
    %v2586 = vand.u32 %v2573, 2147483648
    %v2587 = vor.u32 1.1754944e-38, %v2586
    %v2588 = vsel %vm2585, %v2587, %v2583
    %v2589 = vmul.f32 1.0, %v2588
    %v2590 = vrcp.pop %v2574
    %v2591 = vmul.f32 %v2574, %v2590
    %v2592 = vsub.f32 1.0, %v2591
    %v2593 = vmul.f32 %v2590, %v2592
    %v2594 = vadd.f32 %v2590, %v2593
    %vm2595 = vweird.f32 %v2574
    %vm2596 = vweird.f32 %v2590
    %vm2597 = vmor %vm2595, %vm2596
    %v2598 = vsel %vm2597, %v2590, %v2594
    %v2599 = vand.u32 2147483647, %v2574
    %vm2600 = vcmp.eq.f32.partialorder %v2599, 8.507059e+37
    %v2601 = vand.u32 %v2574, 2147483648
    %v2602 = vor.u32 1.1754944e-38, %v2601
    %v2603 = vsel %vm2600, %v2602, %v2598
    %v2604 = vmul.f32 1.0, %v2603
    %v2605 = vxor.u32 %v2499, 2147483648
    %v2606 = vxor.u32 %v2500, 2147483648
    %v2607 = vmul.f32 %v2605, 1.442695
    %v2608 = vpow.pop %v2607
    %v2609 = vmul.f32 %v2606, 1.442695
    %v2610 = vpow.pop %v2609
    %v2611 = vadd.f32 %v2608, 1.0
    %v2612 = vadd.f32 %v2610, 1.0
    %v2613 = vrcp.pop %v2611
    %v2614 = vmul.f32 %v2611, %v2613
    %v2615 = vsub.f32 1.0, %v2614
    %v2616 = vmul.f32 %v2613, %v2615
    %v2617 = vadd.f32 %v2613, %v2616
    %vm2618 = vweird.f32 %v2611
    %vm2619 = vweird.f32 %v2613
    %vm2620 = vmor %vm2618, %vm2619
    %v2621 = vsel %vm2620, %v2613, %v2617
    %v2622 = vand.u32 2147483647, %v2611
    %vm2623 = vcmp.eq.f32.partialorder %v2622, 8.507059e+37
    %v2624 = vand.u32 %v2611, 2147483648
    %v2625 = vor.u32 1.1754944e-38, %v2624
    %v2626 = vsel %vm2623, %v2625, %v2621
    %v2627 = vmul.f32 1.0, %v2626
    %v2628 = vrcp.pop %v2612
    %v2629 = vmul.f32 %v2612, %v2628
    %v2630 = vsub.f32 1.0, %v2629
    %v2631 = vmul.f32 %v2628, %v2630
    %v2632 = vadd.f32 %v2628, %v2631
    %vm2633 = vweird.f32 %v2612
    %vm2634 = vweird.f32 %v2628
    %vm2635 = vmor %vm2633, %vm2634
    %v2636 = vsel %vm2635, %v2628, %v2632
    %v2637 = vand.u32 2147483647, %v2612
    %vm2638 = vcmp.eq.f32.partialorder %v2637, 8.507059e+37
    %v2639 = vand.u32 %v2612, 2147483648
    %v2640 = vor.u32 1.1754944e-38, %v2639
    %v2641 = vsel %vm2638, %v2640, %v2636
    %v2642 = vmul.f32 1.0, %v2641
    %v2643 = vxor.u32 %v2523, 2147483648
    %v2644 = vxor.u32 %v2524, 2147483648
    %v2645 = vmul.f32 %v2643, 1.442695
    %v2646 = vpow.pop %v2645
    %v2647 = vmul.f32 %v2644, 1.442695
    %v2648 = vpow.pop %v2647
    %v2649 = vadd.f32 %v2646, 1.0
    %v2650 = vadd.f32 %v2648, 1.0
    %v2651 = vrcp.pop %v2649
    %v2652 = vmul.f32 %v2649, %v2651
    %v2653 = vsub.f32 1.0, %v2652
    %v2654 = vmul.f32 %v2651, %v2653
    %v2655 = vadd.f32 %v2651, %v2654
    %vm2656 = vweird.f32 %v2649
    %vm2657 = vweird.f32 %v2651
    %vm2658 = vmor %vm2656, %vm2657
    %v2659 = vsel %vm2658, %v2651, %v2655
    %v2660 = vand.u32 2147483647, %v2649
    %vm2661 = vcmp.eq.f32.partialorder %v2660, 8.507059e+37
    %v2662 = vand.u32 %v2649, 2147483648
    %v2663 = vor.u32 1.1754944e-38, %v2662
    %v2664 = vsel %vm2661, %v2663, %v2659
    %v2665 = vmul.f32 1.0, %v2664
    %v2666 = vrcp.pop %v2650
    %v2667 = vmul.f32 %v2650, %v2666
    %v2668 = vsub.f32 1.0, %v2667
    %v2669 = vmul.f32 %v2666, %v2668
    %v2670 = vadd.f32 %v2666, %v2669
    %vm2671 = vweird.f32 %v2650
    %vm2672 = vweird.f32 %v2666
    %vm2673 = vmor %vm2671, %vm2672
    %v2674 = vsel %vm2673, %v2666, %v2670
    %v2675 = vand.u32 2147483647, %v2650
    %vm2676 = vcmp.eq.f32.partialorder %v2675, 8.507059e+37
    %v2677 = vand.u32 %v2650, 2147483648
    %v2678 = vor.u32 1.1754944e-38, %v2677
    %v2679 = vsel %vm2676, %v2678, %v2674
    %v2680 = vmul.f32 1.0, %v2679
    %v2681 = vtanh.pop %v2501
    %v2682 = vtanh.pop %v2502
    %v2683 = vtanh.pop %v2525
    %v2684 = vtanh.pop %v2526
    %v2685 = vxor.u32 %v2503, 2147483648
    %v2686 = vxor.u32 %v2504, 2147483648
    %v2687 = vmul.f32 %v2685, 1.442695
    %v2688 = vpow.pop %v2687
    %v2689 = vmul.f32 %v2686, 1.442695
    %v2690 = vpow.pop %v2689
    %v2691 = vadd.f32 %v2688, 1.0
    %v2692 = vadd.f32 %v2690, 1.0
    %v2693 = vrcp.pop %v2691
    %v2694 = vmul.f32 %v2691, %v2693
    %v2695 = vsub.f32 1.0, %v2694
    %v2696 = vmul.f32 %v2693, %v2695
    %v2697 = vadd.f32 %v2693, %v2696
    %vm2698 = vweird.f32 %v2691
    %vm2699 = vweird.f32 %v2693
    %vm2700 = vmor %vm2698, %vm2699
    %v2701 = vsel %vm2700, %v2693, %v2697
    %v2702 = vand.u32 2147483647, %v2691
    %vm2703 = vcmp.eq.f32.partialorder %v2702, 8.507059e+37
    %v2704 = vand.u32 %v2691, 2147483648
    %v2705 = vor.u32 1.1754944e-38, %v2704
    %v2706 = vsel %vm2703, %v2705, %v2701
    %v2707 = vmul.f32 1.0, %v2706
    %v2708 = vrcp.pop %v2692
    %v2709 = vmul.f32 %v2692, %v2708
    %v2710 = vsub.f32 1.0, %v2709
    %v2711 = vmul.f32 %v2708, %v2710
    %v2712 = vadd.f32 %v2708, %v2711
    %vm2713 = vweird.f32 %v2692
    %vm2714 = vweird.f32 %v2708
    %vm2715 = vmor %vm2713, %vm2714
    %v2716 = vsel %vm2715, %v2708, %v2712
    %v2717 = vand.u32 2147483647, %v2692
    %vm2718 = vcmp.eq.f32.partialorder %v2717, 8.507059e+37
    %v2719 = vand.u32 %v2692, 2147483648
    %v2720 = vor.u32 1.1754944e-38, %v2719
    %v2721 = vsel %vm2718, %v2720, %v2716
    %v2722 = vmul.f32 1.0, %v2721
    %v2723 = vxor.u32 %v2527, 2147483648
    %v2724 = vxor.u32 %v2528, 2147483648
    %v2725 = vmul.f32 %v2723, 1.442695
    %v2726 = vpow.pop %v2725
    %v2727 = vmul.f32 %v2724, 1.442695
    %v2728 = vpow.pop %v2727
    %v2729 = vadd.f32 %v2726, 1.0
    %v2730 = vadd.f32 %v2728, 1.0
    %v2731 = vrcp.pop %v2729
    %v2732 = vmul.f32 %v2729, %v2731
    %v2733 = vsub.f32 1.0, %v2732
    %v2734 = vmul.f32 %v2731, %v2733
    %v2735 = vadd.f32 %v2731, %v2734
    %vm2736 = vweird.f32 %v2729
    %vm2737 = vweird.f32 %v2731
    %vm2738 = vmor %vm2736, %vm2737
    %v2739 = vsel %vm2738, %v2731, %v2735
    %v2740 = vand.u32 2147483647, %v2729
    %vm2741 = vcmp.eq.f32.partialorder %v2740, 8.507059e+37
    %v2742 = vand.u32 %v2729, 2147483648
    %v2743 = vor.u32 1.1754944e-38, %v2742
    %v2744 = vsel %vm2741, %v2743, %v2739
    %v2745 = vmul.f32 1.0, %v2744
    %v2746 = vrcp.pop %v2730
    %v2747 = vmul.f32 %v2730, %v2746
    %v2748 = vsub.f32 1.0, %v2747
    %v2749 = vmul.f32 %v2746, %v2748
    %v2750 = vadd.f32 %v2746, %v2749
    %vm2751 = vweird.f32 %v2730
    %vm2752 = vweird.f32 %v2746
    %vm2753 = vmor %vm2751, %vm2752
    %v2754 = vsel %vm2753, %v2746, %v2750
    %v2755 = vand.u32 2147483647, %v2730
    %vm2756 = vcmp.eq.f32.partialorder %v2755, 8.507059e+37
    %v2757 = vand.u32 %v2730, 2147483648
    %v2758 = vor.u32 1.1754944e-38, %v2757
    %v2759 = vsel %vm2756, %v2758, %v2754
    %v2760 = vmul.f32 1.0, %v2759
    %v2761 = vmul.f32 %v2627, %v2376
    %v2762 = vmul.f32 %v2642, %v2377
    %v2763 = vmul.f32 %v2551, %v2681
    %v2764 = vmul.f32 %v2566, %v2682
    %v2765 = vadd.f32 %v2761, %v2763
    %v2766 = vadd.f32 %v2762, %v2764
    %v2767 = vmul.f32 %v2665, %v2391
    %v2768 = vmul.f32 %v2680, %v2392
    %v2769 = vmul.f32 %v2589, %v2683
    %v2770 = vmul.f32 %v2604, %v2684
    %v2771 = vadd.f32 %v2767, %v2769
    %v2772 = vadd.f32 %v2768, %v2770
    %v2773 = vtanh.pop %v2765
    %v2774 = vtanh.pop %v2766
    %v2775 = vmul.f32 %v2707, %v2773
    %v2776 = vmul.f32 %v2722, %v2774
    %v2777 = vtanh.pop %v2771
    %v2778 = vtanh.pop %v2772
    %v2779 = vmul.f32 %v2745, %v2777
    %v2780 = vmul.f32 %v2760, %v2778
    %s2781 = scalar_lea.vmem %s1, 3
    %v2782 = vld [vmem:[%s2781] sm:$0x1]
    %s2783 = scalar_lea.vmem %s1, 4
    %v2784 = vld [vmem:[%s2783] sm:$0x1]
    %v2785 = vsub.f32 %v2775, %v2370
    %v2786 = vsub.f32 %v2776, %v2371
    %v2788 = vperm.slane %v2782, 0
    %v2790 = vmul.f32 %v2788, %v2785
    %v2791 = vmul.f32 %v2788, %v2786
    %v2792 = vadd.f32 %v2370, %v2790
    %v2793 = vadd.f32 %v2371, %v2791
    %v2794 = vsub.f32 %v2765, %v2376
    %v2795 = vsub.f32 %v2766, %v2377
    %v2796 = vmul.f32 %v2788, %v2794
    %v2797 = vmul.f32 %v2788, %v2795
    %v2798 = vadd.f32 %v2376, %v2796
    %v2799 = vadd.f32 %v2377, %v2797
    %v2800 = vsub.f32 %v2779, %v2385
    %v2801 = vsub.f32 %v2780, %v2386
    %v2803 = vperm.slane %v2784, 0
    %v2805 = vmul.f32 %v2803, %v2800
    %v2806 = vmul.f32 %v2803, %v2801
    %v2807 = vadd.f32 %v2385, %v2805
    %v2808 = vadd.f32 %v2386, %v2806
    %v2809 = vsub.f32 %v2771, %v2391
    %v2810 = vsub.f32 %v2772, %v2392
    %v2811 = vmul.f32 %v2803, %v2809
    %v2812 = vmul.f32 %v2803, %v2810
    %v2813 = vadd.f32 %v2391, %v2811
    %v2814 = vadd.f32 %v2392, %v2812
    %s2815 = scalar_lea.vmem [#allocation3], 96
    %2816 = vst [vmem:[%s2815] sm:$0xff] %v2792
    %2817 = vst [vmem:[%s2815 + $0x8] sm:$0xff] %v2793
    %s2818 = scalar_lea.vmem [#allocation3], 128
    %2819 = vst [vmem:[%s2818 + $0x10] sm:$0xff] %v2807
    %2820 = vst [vmem:[%s2818 + $0x18] sm:$0xff] %v2808
    %2821 = vmatpush.msra.mxu0 0.0
    %2822 = vmatpush.msra.mxu0 0.0
    %2823 = vmatpush.msra.mxu0 0.0
    %2824 = vmatpush.msra.mxu0 0.0
    %2825 = vmatpush.msra.mxu0 0.0
    %2826 = vmatpush.msra.mxu0 0.0
    %2827 = vmatpush.msra.mxu0 0.0
    %2828 = vmatpush.msra.mxu0 0.0
    %2829 = vmatpush.msra.mxu0 0.0
    %2830 = vmatpush.msra.mxu0 0.0
    %2831 = vmatpush.msra.mxu0 0.0
    %2832 = vmatpush.msra.mxu0 0.0
    %2833 = vmatpush.msra.mxu0 0.0
    %2834 = vmatpush.msra.mxu0 0.0
    %2835 = vmatpush.msra.mxu0 %v2793
    %2836 = vmatpush.msra.mxu0 %v2792
    %2837 = vmatmul.f32.gmra.mxu0 %v1096
    %v2838 = vpop.f32.mrf.mxu0
    %v2839 = vadd.f32 0.0, %v2838
    %2840 = vmatmul.f32.gmra.mxu0 %v1099
    %v2841 = vpop.f32.mrf.mxu0
    %v2842 = vadd.f32 0.0, %v2841
    %2843 = vmatmul.f32.gmra.mxu0 %v1102
    %v2844 = vpop.f32.mrf.mxu0
    %v2845 = vadd.f32 0.0, %v2844
    %2846 = vmatmul.f32.gmra.mxu0 %v1105
    %v2847 = vpop.f32.mrf.mxu0
    %v2848 = vadd.f32 0.0, %v2847
    %2849 = vmatmul.f32.gmra.mxu0 %v1108
    %v2850 = vpop.f32.mrf.mxu0
    %v2851 = vadd.f32 0.0, %v2850
    %2852 = vmatmul.f32.gmra.mxu0 %v1111
    %v2853 = vpop.f32.mrf.mxu0
    %v2854 = vadd.f32 0.0, %v2853
    %2855 = vmatmul.f32.gmra.mxu0 %v1114
    %v2856 = vpop.f32.mrf.mxu0
    %v2857 = vadd.f32 0.0, %v2856
    %2858 = vmatmul.f32.gmra.mxu0 %v1117
    %v2859 = vpop.f32.mrf.mxu0
    %v2860 = vadd.f32 0.0, %v2859
    %2861 = vdwg.mxu0
    %2862 = vmatpush.msra.mxu0 0.0
    %2863 = vmatpush.msra.mxu0 0.0
    %2864 = vmatpush.msra.mxu0 0.0
    %2865 = vmatpush.msra.mxu0 0.0
    %2866 = vmatpush.msra.mxu0 0.0
    %2867 = vmatpush.msra.mxu0 0.0
    %2868 = vmatpush.msra.mxu0 0.0
    %2869 = vmatpush.msra.mxu0 0.0
    %2870 = vmatpush.msra.mxu0 0.0
    %2871 = vmatpush.msra.mxu0 0.0
    %2872 = vmatpush.msra.mxu0 0.0
    %2873 = vmatpush.msra.mxu0 0.0
    %2874 = vmatpush.msra.mxu0 0.0
    %2875 = vmatpush.msra.mxu0 0.0
    %2876 = vmatpush.msra.mxu0 %v2808
    %2877 = vmatpush.msra.mxu0 %v2807
    %2878 = vmatmul.f32.gmra.mxu0 %v1161
    %v2879 = vpop.f32.mrf.mxu0
    %v2880 = vadd.f32 0.0, %v2879
    %2881 = vmatmul.f32.gmra.mxu0 %v1164
    %v2882 = vpop.f32.mrf.mxu0
    %v2883 = vadd.f32 0.0, %v2882
    %2884 = vmatmul.f32.gmra.mxu0 %v1167
    %v2885 = vpop.f32.mrf.mxu0
    %v2886 = vadd.f32 0.0, %v2885
    %2887 = vmatmul.f32.gmra.mxu0 %v1170
    %v2888 = vpop.f32.mrf.mxu0
    %v2889 = vadd.f32 0.0, %v2888
    %2890 = vmatmul.f32.gmra.mxu0 %v1173
    %v2891 = vpop.f32.mrf.mxu0
    %v2892 = vadd.f32 0.0, %v2891
    %2893 = vmatmul.f32.gmra.mxu0 %v1176
    %v2894 = vpop.f32.mrf.mxu0
    %v2895 = vadd.f32 0.0, %v2894
    %2896 = vmatmul.f32.gmra.mxu0 %v1179
    %v2897 = vpop.f32.mrf.mxu0
    %v2898 = vadd.f32 0.0, %v2897
    %2899 = vmatmul.f32.gmra.mxu0 %v1182
    %v2900 = vpop.f32.mrf.mxu0
    %v2901 = vadd.f32 0.0, %v2900
    %2902 = vdwg.mxu0
    %v2903 = vld [vmem:[%s749] sm:$0xf]
    %v2904 = vld [vmem:[%s749 + $0x4] sm:$0xf]
    %v2905 = vld [vmem:[%s749 + $0x8] sm:$0xf]
    %v2906 = vld [vmem:[%s749 + $0xc] sm:$0xf]
    %v2907 = vld [vmem:[%s749 + $0x10] sm:$0xf]
    %v2908 = vld [vmem:[%s749 + $0x14] sm:$0xf]
    %v2909 = vld [vmem:[%s749 + $0x18] sm:$0xf]
    %v2910 = vld [vmem:[%s749 + $0x1c] sm:$0xf]
    %v2911 = vunpack.c.l.bf16 %v2903
    %v2912 = vunpack.c.l.bf16 %v2904
    %v2913 = vunpack.c.l.bf16 %v2905
    %v2914 = vunpack.c.l.bf16 %v2906
    %v2915 = vunpack.c.l.bf16 %v2907
    %v2916 = vunpack.c.l.bf16 %v2908
    %v2917 = vunpack.c.l.bf16 %v2909
    %v2918 = vunpack.c.l.bf16 %v2910
    %v2919 = vadd.f32 %v2911, %v2839
    %v2920 = vadd.f32 %v2912, %v2842
    %v2921 = vadd.f32 %v2913, %v2845
    %v2922 = vadd.f32 %v2914, %v2848
    %v2923 = vadd.f32 %v2915, %v2851
    %v2924 = vadd.f32 %v2916, %v2854
    %v2925 = vadd.f32 %v2917, %v2857
    %v2926 = vadd.f32 %v2918, %v2860
    %v2927 = vld [vmem:[%s749 + $0x20] sm:$0xf]
    %v2928 = vld [vmem:[%s749 + $0x24] sm:$0xf]
    %v2929 = vld [vmem:[%s749 + $0x28] sm:$0xf]
    %v2930 = vld [vmem:[%s749 + $0x2c] sm:$0xf]
    %v2931 = vld [vmem:[%s749 + $0x30] sm:$0xf]
    %v2932 = vld [vmem:[%s749 + $0x34] sm:$0xf]
    %v2933 = vld [vmem:[%s749 + $0x38] sm:$0xf]
    %v2934 = vld [vmem:[%s749 + $0x3c] sm:$0xf]
    %v2935 = vunpack.c.l.bf16 %v2927
    %v2936 = vunpack.c.l.bf16 %v2928
    %v2937 = vunpack.c.l.bf16 %v2929
    %v2938 = vunpack.c.l.bf16 %v2930
    %v2939 = vunpack.c.l.bf16 %v2931
    %v2940 = vunpack.c.l.bf16 %v2932
    %v2941 = vunpack.c.l.bf16 %v2933
    %v2942 = vunpack.c.l.bf16 %v2934
    %v2943 = vadd.f32 %v2935, %v2880
    %v2944 = vadd.f32 %v2936, %v2883
    %v2945 = vadd.f32 %v2937, %v2886
    %v2946 = vadd.f32 %v2938, %v2889
    %v2947 = vadd.f32 %v2939, %v2892
    %v2948 = vadd.f32 %v2940, %v2895
    %v2949 = vadd.f32 %v2941, %v2898
    %v2950 = vadd.f32 %v2942, %v2901
    %v2951 = vxor.u32 %v2919, 2147483648
    %v2952 = vxor.u32 %v2920, 2147483648
    %v2953 = vmul.f32 %v2951, 1.442695
    %v2954 = vpow.pop %v2953
    %v2955 = vmul.f32 %v2952, 1.442695
    %v2956 = vpow.pop %v2955
    %v2957 = vadd.f32 %v2954, 1.0
    %v2958 = vadd.f32 %v2956, 1.0
    %v2959 = vrcp.pop %v2957
    %v2960 = vmul.f32 %v2957, %v2959
    %v2961 = vsub.f32 1.0, %v2960
    %v2962 = vmul.f32 %v2959, %v2961
    %v2963 = vadd.f32 %v2959, %v2962
    %vm2964 = vweird.f32 %v2957
    %vm2965 = vweird.f32 %v2959
    %vm2966 = vmor %vm2964, %vm2965
    %v2967 = vsel %vm2966, %v2959, %v2963
    %v2968 = vand.u32 2147483647, %v2957
    %vm2969 = vcmp.eq.f32.partialorder %v2968, 8.507059e+37
    %v2970 = vand.u32 %v2957, 2147483648
    %v2971 = vor.u32 1.1754944e-38, %v2970
    %v2972 = vsel %vm2969, %v2971, %v2967
    %v2973 = vmul.f32 1.0, %v2972
    %v2974 = vrcp.pop %v2958
    %v2975 = vmul.f32 %v2958, %v2974
    %v2976 = vsub.f32 1.0, %v2975
    %v2977 = vmul.f32 %v2974, %v2976
    %v2978 = vadd.f32 %v2974, %v2977
    %vm2979 = vweird.f32 %v2958
    %vm2980 = vweird.f32 %v2974
    %vm2981 = vmor %vm2979, %vm2980
    %v2982 = vsel %vm2981, %v2974, %v2978
    %v2983 = vand.u32 2147483647, %v2958
    %vm2984 = vcmp.eq.f32.partialorder %v2983, 8.507059e+37
    %v2985 = vand.u32 %v2958, 2147483648
    %v2986 = vor.u32 1.1754944e-38, %v2985
    %v2987 = vsel %vm2984, %v2986, %v2982
    %v2988 = vmul.f32 1.0, %v2987
    %v2989 = vxor.u32 %v2943, 2147483648
    %v2990 = vxor.u32 %v2944, 2147483648
    %v2991 = vmul.f32 %v2989, 1.442695
    %v2992 = vpow.pop %v2991
    %v2993 = vmul.f32 %v2990, 1.442695
    %v2994 = vpow.pop %v2993
    %v2995 = vadd.f32 %v2992, 1.0
    %v2996 = vadd.f32 %v2994, 1.0
    %v2997 = vrcp.pop %v2995
    %v2998 = vmul.f32 %v2995, %v2997
    %v2999 = vsub.f32 1.0, %v2998
    %v3000 = vmul.f32 %v2997, %v2999
    %v3001 = vadd.f32 %v2997, %v3000
    %vm3002 = vweird.f32 %v2995
    %vm3003 = vweird.f32 %v2997
    %vm3004 = vmor %vm3002, %vm3003
    %v3005 = vsel %vm3004, %v2997, %v3001
    %v3006 = vand.u32 2147483647, %v2995
    %vm3007 = vcmp.eq.f32.partialorder %v3006, 8.507059e+37
    %v3008 = vand.u32 %v2995, 2147483648
    %v3009 = vor.u32 1.1754944e-38, %v3008
    %v3010 = vsel %vm3007, %v3009, %v3005
    %v3011 = vmul.f32 1.0, %v3010
    %v3012 = vrcp.pop %v2996
    %v3013 = vmul.f32 %v2996, %v3012
    %v3014 = vsub.f32 1.0, %v3013
    %v3015 = vmul.f32 %v3012, %v3014
    %v3016 = vadd.f32 %v3012, %v3015
    %vm3017 = vweird.f32 %v2996
    %vm3018 = vweird.f32 %v3012
    %vm3019 = vmor %vm3017, %vm3018
    %v3020 = vsel %vm3019, %v3012, %v3016
    %v3021 = vand.u32 2147483647, %v2996
    %vm3022 = vcmp.eq.f32.partialorder %v3021, 8.507059e+37
    %v3023 = vand.u32 %v2996, 2147483648
    %v3024 = vor.u32 1.1754944e-38, %v3023
    %v3025 = vsel %vm3022, %v3024, %v3020
    %v3026 = vmul.f32 1.0, %v3025
    %v3027 = vxor.u32 %v2921, 2147483648
    %v3028 = vxor.u32 %v2922, 2147483648
    %v3029 = vmul.f32 %v3027, 1.442695
    %v3030 = vpow.pop %v3029
    %v3031 = vmul.f32 %v3028, 1.442695
    %v3032 = vpow.pop %v3031
    %v3033 = vadd.f32 %v3030, 1.0
    %v3034 = vadd.f32 %v3032, 1.0
    %v3035 = vrcp.pop %v3033
    %v3036 = vmul.f32 %v3033, %v3035
    %v3037 = vsub.f32 1.0, %v3036
    %v3038 = vmul.f32 %v3035, %v3037
    %v3039 = vadd.f32 %v3035, %v3038
    %vm3040 = vweird.f32 %v3033
    %vm3041 = vweird.f32 %v3035
    %vm3042 = vmor %vm3040, %vm3041
    %v3043 = vsel %vm3042, %v3035, %v3039
    %v3044 = vand.u32 2147483647, %v3033
    %vm3045 = vcmp.eq.f32.partialorder %v3044, 8.507059e+37
    %v3046 = vand.u32 %v3033, 2147483648
    %v3047 = vor.u32 1.1754944e-38, %v3046
    %v3048 = vsel %vm3045, %v3047, %v3043
    %v3049 = vmul.f32 1.0, %v3048
    %v3050 = vrcp.pop %v3034
    %v3051 = vmul.f32 %v3034, %v3050
    %v3052 = vsub.f32 1.0, %v3051
    %v3053 = vmul.f32 %v3050, %v3052
    %v3054 = vadd.f32 %v3050, %v3053
    %vm3055 = vweird.f32 %v3034
    %vm3056 = vweird.f32 %v3050
    %vm3057 = vmor %vm3055, %vm3056
    %v3058 = vsel %vm3057, %v3050, %v3054
    %v3059 = vand.u32 2147483647, %v3034
    %vm3060 = vcmp.eq.f32.partialorder %v3059, 8.507059e+37
    %v3061 = vand.u32 %v3034, 2147483648
    %v3062 = vor.u32 1.1754944e-38, %v3061
    %v3063 = vsel %vm3060, %v3062, %v3058
    %v3064 = vmul.f32 1.0, %v3063
    %v3065 = vxor.u32 %v2945, 2147483648
    %v3066 = vxor.u32 %v2946, 2147483648
    %v3067 = vmul.f32 %v3065, 1.442695
    %v3068 = vpow.pop %v3067
    %v3069 = vmul.f32 %v3066, 1.442695
    %v3070 = vpow.pop %v3069
    %v3071 = vadd.f32 %v3068, 1.0
    %v3072 = vadd.f32 %v3070, 1.0
    %v3073 = vrcp.pop %v3071
    %v3074 = vmul.f32 %v3071, %v3073
    %v3075 = vsub.f32 1.0, %v3074
    %v3076 = vmul.f32 %v3073, %v3075
    %v3077 = vadd.f32 %v3073, %v3076
    %vm3078 = vweird.f32 %v3071
    %vm3079 = vweird.f32 %v3073
    %vm3080 = vmor %vm3078, %vm3079
    %v3081 = vsel %vm3080, %v3073, %v3077
    %v3082 = vand.u32 2147483647, %v3071
    %vm3083 = vcmp.eq.f32.partialorder %v3082, 8.507059e+37
    %v3084 = vand.u32 %v3071, 2147483648
    %v3085 = vor.u32 1.1754944e-38, %v3084
    %v3086 = vsel %vm3083, %v3085, %v3081
    %v3087 = vmul.f32 1.0, %v3086
    %v3088 = vrcp.pop %v3072
    %v3089 = vmul.f32 %v3072, %v3088
    %v3090 = vsub.f32 1.0, %v3089
    %v3091 = vmul.f32 %v3088, %v3090
    %v3092 = vadd.f32 %v3088, %v3091
    %vm3093 = vweird.f32 %v3072
    %vm3094 = vweird.f32 %v3088
    %vm3095 = vmor %vm3093, %vm3094
    %v3096 = vsel %vm3095, %v3088, %v3092
    %v3097 = vand.u32 2147483647, %v3072
    %vm3098 = vcmp.eq.f32.partialorder %v3097, 8.507059e+37
    %v3099 = vand.u32 %v3072, 2147483648
    %v3100 = vor.u32 1.1754944e-38, %v3099
    %v3101 = vsel %vm3098, %v3100, %v3096
    %v3102 = vmul.f32 1.0, %v3101
    %v3103 = vtanh.pop %v2923
    %v3104 = vtanh.pop %v2924
    %v3105 = vtanh.pop %v2947
    %v3106 = vtanh.pop %v2948
    %v3107 = vxor.u32 %v2925, 2147483648
    %v3108 = vxor.u32 %v2926, 2147483648
    %v3109 = vmul.f32 %v3107, 1.442695
    %v3110 = vpow.pop %v3109
    %v3111 = vmul.f32 %v3108, 1.442695
    %v3112 = vpow.pop %v3111
    %v3113 = vadd.f32 %v3110, 1.0
    %v3114 = vadd.f32 %v3112, 1.0
    %v3115 = vrcp.pop %v3113
    %v3116 = vmul.f32 %v3113, %v3115
    %v3117 = vsub.f32 1.0, %v3116
    %v3118 = vmul.f32 %v3115, %v3117
    %v3119 = vadd.f32 %v3115, %v3118
    %vm3120 = vweird.f32 %v3113
    %vm3121 = vweird.f32 %v3115
    %vm3122 = vmor %vm3120, %vm3121
    %v3123 = vsel %vm3122, %v3115, %v3119
    %v3124 = vand.u32 2147483647, %v3113
    %vm3125 = vcmp.eq.f32.partialorder %v3124, 8.507059e+37
    %v3126 = vand.u32 %v3113, 2147483648
    %v3127 = vor.u32 1.1754944e-38, %v3126
    %v3128 = vsel %vm3125, %v3127, %v3123
    %v3129 = vmul.f32 1.0, %v3128
    %v3130 = vrcp.pop %v3114
    %v3131 = vmul.f32 %v3114, %v3130
    %v3132 = vsub.f32 1.0, %v3131
    %v3133 = vmul.f32 %v3130, %v3132
    %v3134 = vadd.f32 %v3130, %v3133
    %vm3135 = vweird.f32 %v3114
    %vm3136 = vweird.f32 %v3130
    %vm3137 = vmor %vm3135, %vm3136
    %v3138 = vsel %vm3137, %v3130, %v3134
    %v3139 = vand.u32 2147483647, %v3114
    %vm3140 = vcmp.eq.f32.partialorder %v3139, 8.507059e+37
    %v3141 = vand.u32 %v3114, 2147483648
    %v3142 = vor.u32 1.1754944e-38, %v3141
    %v3143 = vsel %vm3140, %v3142, %v3138
    %v3144 = vmul.f32 1.0, %v3143
    %v3145 = vxor.u32 %v2949, 2147483648
    %v3146 = vxor.u32 %v2950, 2147483648
    %v3147 = vmul.f32 %v3145, 1.442695
    %v3148 = vpow.pop %v3147
    %v3149 = vmul.f32 %v3146, 1.442695
    %v3150 = vpow.pop %v3149
    %v3151 = vadd.f32 %v3148, 1.0
    %v3152 = vadd.f32 %v3150, 1.0
    %v3153 = vrcp.pop %v3151
    %v3154 = vmul.f32 %v3151, %v3153
    %v3155 = vsub.f32 1.0, %v3154
    %v3156 = vmul.f32 %v3153, %v3155
    %v3157 = vadd.f32 %v3153, %v3156
    %vm3158 = vweird.f32 %v3151
    %vm3159 = vweird.f32 %v3153
    %vm3160 = vmor %vm3158, %vm3159
    %v3161 = vsel %vm3160, %v3153, %v3157
    %v3162 = vand.u32 2147483647, %v3151
    %vm3163 = vcmp.eq.f32.partialorder %v3162, 8.507059e+37
    %v3164 = vand.u32 %v3151, 2147483648
    %v3165 = vor.u32 1.1754944e-38, %v3164
    %v3166 = vsel %vm3163, %v3165, %v3161
    %v3167 = vmul.f32 1.0, %v3166
    %v3168 = vrcp.pop %v3152
    %v3169 = vmul.f32 %v3152, %v3168
    %v3170 = vsub.f32 1.0, %v3169
    %v3171 = vmul.f32 %v3168, %v3170
    %v3172 = vadd.f32 %v3168, %v3171
    %vm3173 = vweird.f32 %v3152
    %vm3174 = vweird.f32 %v3168
    %vm3175 = vmor %vm3173, %vm3174
    %v3176 = vsel %vm3175, %v3168, %v3172
    %v3177 = vand.u32 2147483647, %v3152
    %vm3178 = vcmp.eq.f32.partialorder %v3177, 8.507059e+37
    %v3179 = vand.u32 %v3152, 2147483648
    %v3180 = vor.u32 1.1754944e-38, %v3179
    %v3181 = vsel %vm3178, %v3180, %v3176
    %v3182 = vmul.f32 1.0, %v3181
    %v3183 = vmul.f32 %v3049, %v2798
    %v3184 = vmul.f32 %v3064, %v2799
    %v3185 = vmul.f32 %v2973, %v3103
    %v3186 = vmul.f32 %v2988, %v3104
    %v3187 = vadd.f32 %v3183, %v3185
    %v3188 = vadd.f32 %v3184, %v3186
    %v3189 = vmul.f32 %v3087, %v2813
    %v3190 = vmul.f32 %v3102, %v2814
    %v3191 = vmul.f32 %v3011, %v3105
    %v3192 = vmul.f32 %v3026, %v3106
    %v3193 = vadd.f32 %v3189, %v3191
    %v3194 = vadd.f32 %v3190, %v3192
    %v3195 = vtanh.pop %v3187
    %v3196 = vtanh.pop %v3188
    %v3197 = vmul.f32 %v3129, %v3195
    %v3198 = vmul.f32 %v3144, %v3196
    %v3199 = vtanh.pop %v3193
    %v3200 = vtanh.pop %v3194
    %v3201 = vmul.f32 %v3167, %v3199
    %v3202 = vmul.f32 %v3182, %v3200
    %v3203 = vld [vmem:[%s2783] sm:$0x1]
    %v3204 = vld [vmem:[%s2781] sm:$0x1]
    %v3205 = vsub.f32 %v3197, %v2792
    %v3206 = vsub.f32 %v3198, %v2793
    %v3208 = vperm.slane %v3203, 0
    %v3210 = vmul.f32 %v3208, %v3205
    %v3211 = vmul.f32 %v3208, %v3206
    %v3212 = vadd.f32 %v2792, %v3210
    %v3213 = vadd.f32 %v2793, %v3211
    %v3214 = vsub.f32 %v3187, %v2798
    %v3215 = vsub.f32 %v3188, %v2799
    %v3216 = vmul.f32 %v3208, %v3214
    %v3217 = vmul.f32 %v3208, %v3215
    %v3218 = vadd.f32 %v2798, %v3216
    %v3219 = vadd.f32 %v2799, %v3217
    %v3220 = vsub.f32 %v3201, %v2807
    %v3221 = vsub.f32 %v3202, %v2808
    %v3223 = vperm.slane %v3204, 0
    %v3225 = vmul.f32 %v3223, %v3220
    %v3226 = vmul.f32 %v3223, %v3221
    %v3227 = vadd.f32 %v2807, %v3225
    %v3228 = vadd.f32 %v2808, %v3226
    %v3229 = vsub.f32 %v3193, %v2813
    %v3230 = vsub.f32 %v3194, %v2814
    %v3231 = vmul.f32 %v3223, %v3229
    %v3232 = vmul.f32 %v3223, %v3230
    %v3233 = vadd.f32 %v2813, %v3231
    %v3234 = vadd.f32 %v2814, %v3232
    %3235 = vst [vmem:[%s2818] sm:$0xff] %v3212
    %3236 = vst [vmem:[%s2818 + $0x8] sm:$0xff] %v3213
    %3237 = vst [vmem:[%s2815 + $0x10] sm:$0xff] %v3227
    %3238 = vst [vmem:[%s2815 + $0x18] sm:$0xff] %v3228
    %3239 = vmatpush.msra.mxu0 0.0
    %3240 = vmatpush.msra.mxu0 0.0
    %3241 = vmatpush.msra.mxu0 0.0
    %3242 = vmatpush.msra.mxu0 0.0
    %3243 = vmatpush.msra.mxu0 0.0
    %3244 = vmatpush.msra.mxu0 0.0
    %3245 = vmatpush.msra.mxu0 0.0
    %3246 = vmatpush.msra.mxu0 0.0
    %3247 = vmatpush.msra.mxu0 0.0
    %3248 = vmatpush.msra.mxu0 0.0
    %3249 = vmatpush.msra.mxu0 0.0
    %3250 = vmatpush.msra.mxu0 0.0
    %3251 = vmatpush.msra.mxu0 0.0
    %3252 = vmatpush.msra.mxu0 0.0
    %3253 = vmatpush.msra.mxu0 %v3213
    %3254 = vmatpush.msra.mxu0 %v3212
    %3255 = vmatmul.f32.gmra.mxu0 %v1096
    %v3256 = vpop.f32.mrf.mxu0
    %v3257 = vadd.f32 0.0, %v3256
    %3258 = vmatmul.f32.gmra.mxu0 %v1099
    %v3259 = vpop.f32.mrf.mxu0
    %v3260 = vadd.f32 0.0, %v3259
    %3261 = vmatmul.f32.gmra.mxu0 %v1102
    %v3262 = vpop.f32.mrf.mxu0
    %v3263 = vadd.f32 0.0, %v3262
    %3264 = vmatmul.f32.gmra.mxu0 %v1105
    %v3265 = vpop.f32.mrf.mxu0
    %v3266 = vadd.f32 0.0, %v3265
    %3267 = vmatmul.f32.gmra.mxu0 %v1108
    %v3268 = vpop.f32.mrf.mxu0
    %v3269 = vadd.f32 0.0, %v3268
    %3270 = vmatmul.f32.gmra.mxu0 %v1111
    %v3271 = vpop.f32.mrf.mxu0
    %v3272 = vadd.f32 0.0, %v3271
    %3273 = vmatmul.f32.gmra.mxu0 %v1114
    %v3274 = vpop.f32.mrf.mxu0
    %v3275 = vadd.f32 0.0, %v3274
    %3276 = vmatmul.f32.gmra.mxu0 %v1117
    %v3277 = vpop.f32.mrf.mxu0
    %v3278 = vadd.f32 0.0, %v3277
    %3279 = vdwg.mxu0
    %3280 = vmatpush.msra.mxu0 0.0
    %3281 = vmatpush.msra.mxu0 0.0
    %3282 = vmatpush.msra.mxu0 0.0
    %3283 = vmatpush.msra.mxu0 0.0
    %3284 = vmatpush.msra.mxu0 0.0
    %3285 = vmatpush.msra.mxu0 0.0
    %3286 = vmatpush.msra.mxu0 0.0
    %3287 = vmatpush.msra.mxu0 0.0
    %3288 = vmatpush.msra.mxu0 0.0
    %3289 = vmatpush.msra.mxu0 0.0
    %3290 = vmatpush.msra.mxu0 0.0
    %3291 = vmatpush.msra.mxu0 0.0
    %3292 = vmatpush.msra.mxu0 0.0
    %3293 = vmatpush.msra.mxu0 0.0
    %3294 = vmatpush.msra.mxu0 %v3228
    %3295 = vmatpush.msra.mxu0 %v3227
    %3296 = vmatmul.f32.gmra.mxu0 %v1161
    %v3297 = vpop.f32.mrf.mxu0
    %v3298 = vadd.f32 0.0, %v3297
    %3299 = vmatmul.f32.gmra.mxu0 %v1164
    %v3300 = vpop.f32.mrf.mxu0
    %v3301 = vadd.f32 0.0, %v3300
    %3302 = vmatmul.f32.gmra.mxu0 %v1167
    %v3303 = vpop.f32.mrf.mxu0
    %v3304 = vadd.f32 0.0, %v3303
    %3305 = vmatmul.f32.gmra.mxu0 %v1170
    %v3306 = vpop.f32.mrf.mxu0
    %v3307 = vadd.f32 0.0, %v3306
    %3308 = vmatmul.f32.gmra.mxu0 %v1173
    %v3309 = vpop.f32.mrf.mxu0
    %v3310 = vadd.f32 0.0, %v3309
    %3311 = vmatmul.f32.gmra.mxu0 %v1176
    %v3312 = vpop.f32.mrf.mxu0
    %v3313 = vadd.f32 0.0, %v3312
    %3314 = vmatmul.f32.gmra.mxu0 %v1179
    %v3315 = vpop.f32.mrf.mxu0
    %v3316 = vadd.f32 0.0, %v3315
    %3317 = vmatmul.f32.gmra.mxu0 %v1182
    %v3318 = vpop.f32.mrf.mxu0
    %v3319 = vadd.f32 0.0, %v3318
    %3320 = vdwg.mxu0
    %v3321 = vld [vmem:[%s856] sm:$0xf]
    %v3322 = vld [vmem:[%s856 + $0x4] sm:$0xf]
    %v3323 = vld [vmem:[%s856 + $0x8] sm:$0xf]
    %v3324 = vld [vmem:[%s856 + $0xc] sm:$0xf]
    %v3325 = vld [vmem:[%s856 + $0x10] sm:$0xf]
    %v3326 = vld [vmem:[%s856 + $0x14] sm:$0xf]
    %v3327 = vld [vmem:[%s856 + $0x18] sm:$0xf]
    %v3328 = vld [vmem:[%s856 + $0x1c] sm:$0xf]
    %v3329 = vunpack.c.l.bf16 %v3321
    %v3330 = vunpack.c.l.bf16 %v3322
    %v3331 = vunpack.c.l.bf16 %v3323
    %v3332 = vunpack.c.l.bf16 %v3324
    %v3333 = vunpack.c.l.bf16 %v3325
    %v3334 = vunpack.c.l.bf16 %v3326
    %v3335 = vunpack.c.l.bf16 %v3327
    %v3336 = vunpack.c.l.bf16 %v3328
    %v3337 = vadd.f32 %v3329, %v3257
    %v3338 = vadd.f32 %v3330, %v3260
    %v3339 = vadd.f32 %v3331, %v3263
    %v3340 = vadd.f32 %v3332, %v3266
    %v3341 = vadd.f32 %v3333, %v3269
    %v3342 = vadd.f32 %v3334, %v3272
    %v3343 = vadd.f32 %v3335, %v3275
    %v3344 = vadd.f32 %v3336, %v3278
    %v3345 = vld [vmem:[%s856 + $0x20] sm:$0xf]
    %v3346 = vld [vmem:[%s856 + $0x24] sm:$0xf]
    %v3347 = vld [vmem:[%s856 + $0x28] sm:$0xf]
    %v3348 = vld [vmem:[%s856 + $0x2c] sm:$0xf]
    %v3349 = vld [vmem:[%s856 + $0x30] sm:$0xf]
    %v3350 = vld [vmem:[%s856 + $0x34] sm:$0xf]
    %v3351 = vld [vmem:[%s856 + $0x38] sm:$0xf]
    %v3352 = vld [vmem:[%s856 + $0x3c] sm:$0xf]
    %v3353 = vunpack.c.l.bf16 %v3345
    %v3354 = vunpack.c.l.bf16 %v3346
    %v3355 = vunpack.c.l.bf16 %v3347
    %v3356 = vunpack.c.l.bf16 %v3348
    %v3357 = vunpack.c.l.bf16 %v3349
    %v3358 = vunpack.c.l.bf16 %v3350
    %v3359 = vunpack.c.l.bf16 %v3351
    %v3360 = vunpack.c.l.bf16 %v3352
    %v3361 = vadd.f32 %v3353, %v3298
    %v3362 = vadd.f32 %v3354, %v3301
    %v3363 = vadd.f32 %v3355, %v3304
    %v3364 = vadd.f32 %v3356, %v3307
    %v3365 = vadd.f32 %v3357, %v3310
    %v3366 = vadd.f32 %v3358, %v3313
    %v3367 = vadd.f32 %v3359, %v3316
    %v3368 = vadd.f32 %v3360, %v3319
    %v3369 = vxor.u32 %v3337, 2147483648
    %v3370 = vxor.u32 %v3338, 2147483648
    %v3371 = vmul.f32 %v3369, 1.442695
    %v3372 = vpow.pop %v3371
    %v3373 = vmul.f32 %v3370, 1.442695
    %v3374 = vpow.pop %v3373
    %v3375 = vadd.f32 %v3372, 1.0
    %v3376 = vadd.f32 %v3374, 1.0
    %v3377 = vrcp.pop %v3375
    %v3378 = vmul.f32 %v3375, %v3377
    %v3379 = vsub.f32 1.0, %v3378
    %v3380 = vmul.f32 %v3377, %v3379
    %v3381 = vadd.f32 %v3377, %v3380
    %vm3382 = vweird.f32 %v3375
    %vm3383 = vweird.f32 %v3377
    %vm3384 = vmor %vm3382, %vm3383
    %v3385 = vsel %vm3384, %v3377, %v3381
    %v3386 = vand.u32 2147483647, %v3375
    %vm3387 = vcmp.eq.f32.partialorder %v3386, 8.507059e+37
    %v3388 = vand.u32 %v3375, 2147483648
    %v3389 = vor.u32 1.1754944e-38, %v3388
    %v3390 = vsel %vm3387, %v3389, %v3385
    %v3391 = vmul.f32 1.0, %v3390
    %v3392 = vrcp.pop %v3376
    %v3393 = vmul.f32 %v3376, %v3392
    %v3394 = vsub.f32 1.0, %v3393
    %v3395 = vmul.f32 %v3392, %v3394
    %v3396 = vadd.f32 %v3392, %v3395
    %vm3397 = vweird.f32 %v3376
    %vm3398 = vweird.f32 %v3392
    %vm3399 = vmor %vm3397, %vm3398
    %v3400 = vsel %vm3399, %v3392, %v3396
    %v3401 = vand.u32 2147483647, %v3376
    %vm3402 = vcmp.eq.f32.partialorder %v3401, 8.507059e+37
    %v3403 = vand.u32 %v3376, 2147483648
    %v3404 = vor.u32 1.1754944e-38, %v3403
    %v3405 = vsel %vm3402, %v3404, %v3400
    %v3406 = vmul.f32 1.0, %v3405
    %v3407 = vxor.u32 %v3361, 2147483648
    %v3408 = vxor.u32 %v3362, 2147483648
    %v3409 = vmul.f32 %v3407, 1.442695
    %v3410 = vpow.pop %v3409
    %v3411 = vmul.f32 %v3408, 1.442695
    %v3412 = vpow.pop %v3411
    %v3413 = vadd.f32 %v3410, 1.0
    %v3414 = vadd.f32 %v3412, 1.0
    %v3415 = vrcp.pop %v3413
    %v3416 = vmul.f32 %v3413, %v3415
    %v3417 = vsub.f32 1.0, %v3416
    %v3418 = vmul.f32 %v3415, %v3417
    %v3419 = vadd.f32 %v3415, %v3418
    %vm3420 = vweird.f32 %v3413
    %vm3421 = vweird.f32 %v3415
    %vm3422 = vmor %vm3420, %vm3421
    %v3423 = vsel %vm3422, %v3415, %v3419
    %v3424 = vand.u32 2147483647, %v3413
    %vm3425 = vcmp.eq.f32.partialorder %v3424, 8.507059e+37
    %v3426 = vand.u32 %v3413, 2147483648
    %v3427 = vor.u32 1.1754944e-38, %v3426
    %v3428 = vsel %vm3425, %v3427, %v3423
    %v3429 = vmul.f32 1.0, %v3428
    %v3430 = vrcp.pop %v3414
    %v3431 = vmul.f32 %v3414, %v3430
    %v3432 = vsub.f32 1.0, %v3431
    %v3433 = vmul.f32 %v3430, %v3432
    %v3434 = vadd.f32 %v3430, %v3433
    %vm3435 = vweird.f32 %v3414
    %vm3436 = vweird.f32 %v3430
    %vm3437 = vmor %vm3435, %vm3436
    %v3438 = vsel %vm3437, %v3430, %v3434
    %v3439 = vand.u32 2147483647, %v3414
    %vm3440 = vcmp.eq.f32.partialorder %v3439, 8.507059e+37
    %v3441 = vand.u32 %v3414, 2147483648
    %v3442 = vor.u32 1.1754944e-38, %v3441
    %v3443 = vsel %vm3440, %v3442, %v3438
    %v3444 = vmul.f32 1.0, %v3443
    %v3445 = vxor.u32 %v3339, 2147483648
    %v3446 = vxor.u32 %v3340, 2147483648
    %v3447 = vmul.f32 %v3445, 1.442695
    %v3448 = vpow.pop %v3447
    %v3449 = vmul.f32 %v3446, 1.442695
    %v3450 = vpow.pop %v3449
    %v3451 = vadd.f32 %v3448, 1.0
    %v3452 = vadd.f32 %v3450, 1.0
    %v3453 = vrcp.pop %v3451
    %v3454 = vmul.f32 %v3451, %v3453
    %v3455 = vsub.f32 1.0, %v3454
    %v3456 = vmul.f32 %v3453, %v3455
    %v3457 = vadd.f32 %v3453, %v3456
    %vm3458 = vweird.f32 %v3451
    %vm3459 = vweird.f32 %v3453
    %vm3460 = vmor %vm3458, %vm3459
    %v3461 = vsel %vm3460, %v3453, %v3457
    %v3462 = vand.u32 2147483647, %v3451
    %vm3463 = vcmp.eq.f32.partialorder %v3462, 8.507059e+37
    %v3464 = vand.u32 %v3451, 2147483648
    %v3465 = vor.u32 1.1754944e-38, %v3464
    %v3466 = vsel %vm3463, %v3465, %v3461
    %v3467 = vmul.f32 1.0, %v3466
    %v3468 = vrcp.pop %v3452
    %v3469 = vmul.f32 %v3452, %v3468
    %v3470 = vsub.f32 1.0, %v3469
    %v3471 = vmul.f32 %v3468, %v3470
    %v3472 = vadd.f32 %v3468, %v3471
    %vm3473 = vweird.f32 %v3452
    %vm3474 = vweird.f32 %v3468
    %vm3475 = vmor %vm3473, %vm3474
    %v3476 = vsel %vm3475, %v3468, %v3472
    %v3477 = vand.u32 2147483647, %v3452
    %vm3478 = vcmp.eq.f32.partialorder %v3477, 8.507059e+37
    %v3479 = vand.u32 %v3452, 2147483648
    %v3480 = vor.u32 1.1754944e-38, %v3479
    %v3481 = vsel %vm3478, %v3480, %v3476
    %v3482 = vmul.f32 1.0, %v3481
    %v3483 = vxor.u32 %v3363, 2147483648
    %v3484 = vxor.u32 %v3364, 2147483648
    %v3485 = vmul.f32 %v3483, 1.442695
    %v3486 = vpow.pop %v3485
    %v3487 = vmul.f32 %v3484, 1.442695
    %v3488 = vpow.pop %v3487
    %v3489 = vadd.f32 %v3486, 1.0
    %v3490 = vadd.f32 %v3488, 1.0
    %v3491 = vrcp.pop %v3489
    %v3492 = vmul.f32 %v3489, %v3491
    %v3493 = vsub.f32 1.0, %v3492
    %v3494 = vmul.f32 %v3491, %v3493
    %v3495 = vadd.f32 %v3491, %v3494
    %vm3496 = vweird.f32 %v3489
    %vm3497 = vweird.f32 %v3491
    %vm3498 = vmor %vm3496, %vm3497
    %v3499 = vsel %vm3498, %v3491, %v3495
    %v3500 = vand.u32 2147483647, %v3489
    %vm3501 = vcmp.eq.f32.partialorder %v3500, 8.507059e+37
    %v3502 = vand.u32 %v3489, 2147483648
    %v3503 = vor.u32 1.1754944e-38, %v3502
    %v3504 = vsel %vm3501, %v3503, %v3499
    %v3505 = vmul.f32 1.0, %v3504
    %v3506 = vrcp.pop %v3490
    %v3507 = vmul.f32 %v3490, %v3506
    %v3508 = vsub.f32 1.0, %v3507
    %v3509 = vmul.f32 %v3506, %v3508
    %v3510 = vadd.f32 %v3506, %v3509
    %vm3511 = vweird.f32 %v3490
    %vm3512 = vweird.f32 %v3506
    %vm3513 = vmor %vm3511, %vm3512
    %v3514 = vsel %vm3513, %v3506, %v3510
    %v3515 = vand.u32 2147483647, %v3490
    %vm3516 = vcmp.eq.f32.partialorder %v3515, 8.507059e+37
    %v3517 = vand.u32 %v3490, 2147483648
    %v3518 = vor.u32 1.1754944e-38, %v3517
    %v3519 = vsel %vm3516, %v3518, %v3514
    %v3520 = vmul.f32 1.0, %v3519
    %v3521 = vtanh.pop %v3341
    %v3522 = vtanh.pop %v3342
    %v3523 = vtanh.pop %v3365
    %v3524 = vtanh.pop %v3366
    %v3525 = vxor.u32 %v3343, 2147483648
    %v3526 = vxor.u32 %v3344, 2147483648
    %v3527 = vmul.f32 %v3525, 1.442695
    %v3528 = vpow.pop %v3527
    %v3529 = vmul.f32 %v3526, 1.442695
    %v3530 = vpow.pop %v3529
    %v3531 = vadd.f32 %v3528, 1.0
    %v3532 = vadd.f32 %v3530, 1.0
    %v3533 = vrcp.pop %v3531
    %v3534 = vmul.f32 %v3531, %v3533
    %v3535 = vsub.f32 1.0, %v3534
    %v3536 = vmul.f32 %v3533, %v3535
    %v3537 = vadd.f32 %v3533, %v3536
    %vm3538 = vweird.f32 %v3531
    %vm3539 = vweird.f32 %v3533
    %vm3540 = vmor %vm3538, %vm3539
    %v3541 = vsel %vm3540, %v3533, %v3537
    %v3542 = vand.u32 2147483647, %v3531
    %vm3543 = vcmp.eq.f32.partialorder %v3542, 8.507059e+37
    %v3544 = vand.u32 %v3531, 2147483648
    %v3545 = vor.u32 1.1754944e-38, %v3544
    %v3546 = vsel %vm3543, %v3545, %v3541
    %v3547 = vmul.f32 1.0, %v3546
    %v3548 = vrcp.pop %v3532
    %v3549 = vmul.f32 %v3532, %v3548
    %v3550 = vsub.f32 1.0, %v3549
    %v3551 = vmul.f32 %v3548, %v3550
    %v3552 = vadd.f32 %v3548, %v3551
    %vm3553 = vweird.f32 %v3532
    %vm3554 = vweird.f32 %v3548
    %vm3555 = vmor %vm3553, %vm3554
    %v3556 = vsel %vm3555, %v3548, %v3552
    %v3557 = vand.u32 2147483647, %v3532
    %vm3558 = vcmp.eq.f32.partialorder %v3557, 8.507059e+37
    %v3559 = vand.u32 %v3532, 2147483648
    %v3560 = vor.u32 1.1754944e-38, %v3559
    %v3561 = vsel %vm3558, %v3560, %v3556
    %v3562 = vmul.f32 1.0, %v3561
    %v3563 = vxor.u32 %v3367, 2147483648
    %v3564 = vxor.u32 %v3368, 2147483648
    %v3565 = vmul.f32 %v3563, 1.442695
    %v3566 = vpow.pop %v3565
    %v3567 = vmul.f32 %v3564, 1.442695
    %v3568 = vpow.pop %v3567
    %v3569 = vadd.f32 %v3566, 1.0
    %v3570 = vadd.f32 %v3568, 1.0
    %v3571 = vrcp.pop %v3569
    %v3572 = vmul.f32 %v3569, %v3571
    %v3573 = vsub.f32 1.0, %v3572
    %v3574 = vmul.f32 %v3571, %v3573
    %v3575 = vadd.f32 %v3571, %v3574
    %vm3576 = vweird.f32 %v3569
    %vm3577 = vweird.f32 %v3571
    %vm3578 = vmor %vm3576, %vm3577
    %v3579 = vsel %vm3578, %v3571, %v3575
    %v3580 = vand.u32 2147483647, %v3569
    %vm3581 = vcmp.eq.f32.partialorder %v3580, 8.507059e+37
    %v3582 = vand.u32 %v3569, 2147483648
    %v3583 = vor.u32 1.1754944e-38, %v3582
    %v3584 = vsel %vm3581, %v3583, %v3579
    %v3585 = vmul.f32 1.0, %v3584
    %v3586 = vrcp.pop %v3570
    %v3587 = vmul.f32 %v3570, %v3586
    %v3588 = vsub.f32 1.0, %v3587
    %v3589 = vmul.f32 %v3586, %v3588
    %v3590 = vadd.f32 %v3586, %v3589
    %vm3591 = vweird.f32 %v3570
    %vm3592 = vweird.f32 %v3586
    %vm3593 = vmor %vm3591, %vm3592
    %v3594 = vsel %vm3593, %v3586, %v3590
    %v3595 = vand.u32 2147483647, %v3570
    %vm3596 = vcmp.eq.f32.partialorder %v3595, 8.507059e+37
    %v3597 = vand.u32 %v3570, 2147483648
    %v3598 = vor.u32 1.1754944e-38, %v3597
    %v3599 = vsel %vm3596, %v3598, %v3594
    %v3600 = vmul.f32 1.0, %v3599
    %v3601 = vmul.f32 %v3467, %v3218
    %v3602 = vmul.f32 %v3482, %v3219
    %v3603 = vmul.f32 %v3391, %v3521
    %v3604 = vmul.f32 %v3406, %v3522
    %v3605 = vadd.f32 %v3601, %v3603
    %v3606 = vadd.f32 %v3602, %v3604
    %v3607 = vmul.f32 %v3505, %v3233
    %v3608 = vmul.f32 %v3520, %v3234
    %v3609 = vmul.f32 %v3429, %v3523
    %v3610 = vmul.f32 %v3444, %v3524
    %v3611 = vadd.f32 %v3607, %v3609
    %v3612 = vadd.f32 %v3608, %v3610
    %v3613 = vtanh.pop %v3605
    %v3614 = vtanh.pop %v3606
    %v3615 = vmul.f32 %v3547, %v3613
    %v3616 = vmul.f32 %v3562, %v3614
    %v3617 = vtanh.pop %v3611
    %v3618 = vtanh.pop %v3612
    %v3619 = vmul.f32 %v3585, %v3617
    %v3620 = vmul.f32 %v3600, %v3618
    %v3621 = vld [vmem:[%s2361] sm:$0x1]
    %v3622 = vld [vmem:[%s2359] sm:$0x1]
    %v3623 = vsub.f32 %v3615, %v3212
    %v3624 = vsub.f32 %v3616, %v3213
    %v3626 = vperm.slane %v3621, 0
    %v3628 = vmul.f32 %v3626, %v3623
    %v3629 = vmul.f32 %v3626, %v3624
    %v3630 = vadd.f32 %v3212, %v3628
    %v3631 = vadd.f32 %v3213, %v3629
    %v3632 = vsub.f32 %v3605, %v3218
    %v3633 = vsub.f32 %v3606, %v3219
    %v3634 = vmul.f32 %v3626, %v3632
    %v3635 = vmul.f32 %v3626, %v3633
    %v3636 = vadd.f32 %v3218, %v3634
    %v3637 = vadd.f32 %v3219, %v3635
    %v3638 = vsub.f32 %v3619, %v3227
    %v3639 = vsub.f32 %v3620, %v3228
    %v3641 = vperm.slane %v3622, 0
    %v3643 = vmul.f32 %v3641, %v3638
    %v3644 = vmul.f32 %v3641, %v3639
    %v3645 = vadd.f32 %v3227, %v3643
    %v3646 = vadd.f32 %v3228, %v3644
    %v3647 = vsub.f32 %v3611, %v3233
    %v3648 = vsub.f32 %v3612, %v3234
    %v3649 = vmul.f32 %v3641, %v3647
    %v3650 = vmul.f32 %v3641, %v3648
    %v3651 = vadd.f32 %v3233, %v3649
    %v3652 = vadd.f32 %v3234, %v3650
    %3653 = vst [vmem:[%s2396] sm:$0xff] %v3630
    %3654 = vst [vmem:[%s2396 + $0x8] sm:$0xff] %v3631
    %3655 = vst [vmem:[%s2393 + $0x10] sm:$0xff] %v3645
    %3656 = vst [vmem:[%s2393 + $0x18] sm:$0xff] %v3646
    %3657 = vmatpush.msra.mxu0 0.0
    %3658 = vmatpush.msra.mxu0 0.0
    %3659 = vmatpush.msra.mxu0 0.0
    %3660 = vmatpush.msra.mxu0 0.0
    %3661 = vmatpush.msra.mxu0 0.0
    %3662 = vmatpush.msra.mxu0 0.0
    %3663 = vmatpush.msra.mxu0 0.0
    %3664 = vmatpush.msra.mxu0 0.0
    %3665 = vmatpush.msra.mxu0 0.0
    %3666 = vmatpush.msra.mxu0 0.0
    %3667 = vmatpush.msra.mxu0 0.0
    %3668 = vmatpush.msra.mxu0 0.0
    %3669 = vmatpush.msra.mxu0 0.0
    %3670 = vmatpush.msra.mxu0 0.0
    %3671 = vmatpush.msra.mxu0 %v3631
    %3672 = vmatpush.msra.mxu0 %v3630
    %3673 = vmatmul.f32.gmra.mxu0 %v1096
    %v3674 = vpop.f32.mrf.mxu0
    %v3675 = vadd.f32 0.0, %v3674
    %3676 = vmatmul.f32.gmra.mxu0 %v1099
    %v3677 = vpop.f32.mrf.mxu0
    %v3678 = vadd.f32 0.0, %v3677
    %3679 = vmatmul.f32.gmra.mxu0 %v1102
    %v3680 = vpop.f32.mrf.mxu0
    %v3681 = vadd.f32 0.0, %v3680
    %3682 = vmatmul.f32.gmra.mxu0 %v1105
    %v3683 = vpop.f32.mrf.mxu0
    %v3684 = vadd.f32 0.0, %v3683
    %3685 = vmatmul.f32.gmra.mxu0 %v1108
    %v3686 = vpop.f32.mrf.mxu0
    %v3687 = vadd.f32 0.0, %v3686
    %3688 = vmatmul.f32.gmra.mxu0 %v1111
    %v3689 = vpop.f32.mrf.mxu0
    %v3690 = vadd.f32 0.0, %v3689
    %3691 = vmatmul.f32.gmra.mxu0 %v1114
    %v3692 = vpop.f32.mrf.mxu0
    %v3693 = vadd.f32 0.0, %v3692
    %3694 = vmatmul.f32.gmra.mxu0 %v1117
    %v3695 = vpop.f32.mrf.mxu0
    %v3696 = vadd.f32 0.0, %v3695
    %3697 = vdwg.mxu0
    %3698 = vmatpush.msra.mxu0 0.0
    %3699 = vmatpush.msra.mxu0 0.0
    %3700 = vmatpush.msra.mxu0 0.0
    %3701 = vmatpush.msra.mxu0 0.0
    %3702 = vmatpush.msra.mxu0 0.0
    %3703 = vmatpush.msra.mxu0 0.0
    %3704 = vmatpush.msra.mxu0 0.0
    %3705 = vmatpush.msra.mxu0 0.0
    %3706 = vmatpush.msra.mxu0 0.0
    %3707 = vmatpush.msra.mxu0 0.0
    %3708 = vmatpush.msra.mxu0 0.0
    %3709 = vmatpush.msra.mxu0 0.0
    %3710 = vmatpush.msra.mxu0 0.0
    %3711 = vmatpush.msra.mxu0 0.0
    %3712 = vmatpush.msra.mxu0 %v3646
    %3713 = vmatpush.msra.mxu0 %v3645
    %3714 = vmatmul.f32.gmra.mxu0 %v1161
    %v3715 = vpop.f32.mrf.mxu0
    %v3716 = vadd.f32 0.0, %v3715
    %3717 = vmatmul.f32.gmra.mxu0 %v1164
    %v3718 = vpop.f32.mrf.mxu0
    %v3719 = vadd.f32 0.0, %v3718
    %3720 = vmatmul.f32.gmra.mxu0 %v1167
    %v3721 = vpop.f32.mrf.mxu0
    %v3722 = vadd.f32 0.0, %v3721
    %3723 = vmatmul.f32.gmra.mxu0 %v1170
    %v3724 = vpop.f32.mrf.mxu0
    %v3725 = vadd.f32 0.0, %v3724
    %3726 = vmatmul.f32.gmra.mxu0 %v1173
    %v3727 = vpop.f32.mrf.mxu0
    %v3728 = vadd.f32 0.0, %v3727
    %3729 = vmatmul.f32.gmra.mxu0 %v1176
    %v3730 = vpop.f32.mrf.mxu0
    %v3731 = vadd.f32 0.0, %v3730
    %3732 = vmatmul.f32.gmra.mxu0 %v1179
    %v3733 = vpop.f32.mrf.mxu0
    %v3734 = vadd.f32 0.0, %v3733
    %3735 = vmatmul.f32.gmra.mxu0 %v1182
    %v3736 = vpop.f32.mrf.mxu0
    %v3737 = vadd.f32 0.0, %v3736
    %3738 = vdwg.mxu0
    %v3739 = vld [vmem:[%s963] sm:$0xf]
    %v3740 = vld [vmem:[%s963 + $0x4] sm:$0xf]
    %v3741 = vld [vmem:[%s963 + $0x8] sm:$0xf]
    %v3742 = vld [vmem:[%s963 + $0xc] sm:$0xf]
    %v3743 = vld [vmem:[%s963 + $0x10] sm:$0xf]
    %v3744 = vld [vmem:[%s963 + $0x14] sm:$0xf]
    %v3745 = vld [vmem:[%s963 + $0x18] sm:$0xf]
    %v3746 = vld [vmem:[%s963 + $0x1c] sm:$0xf]
    %v3747 = vunpack.c.l.bf16 %v3739
    %v3748 = vunpack.c.l.bf16 %v3740
    %v3749 = vunpack.c.l.bf16 %v3741
    %v3750 = vunpack.c.l.bf16 %v3742
    %v3751 = vunpack.c.l.bf16 %v3743
    %v3752 = vunpack.c.l.bf16 %v3744
    %v3753 = vunpack.c.l.bf16 %v3745
    %v3754 = vunpack.c.l.bf16 %v3746
    %v3755 = vadd.f32 %v3747, %v3675
    %v3756 = vadd.f32 %v3748, %v3678
    %v3757 = vadd.f32 %v3749, %v3681
    %v3758 = vadd.f32 %v3750, %v3684
    %v3759 = vadd.f32 %v3751, %v3687
    %v3760 = vadd.f32 %v3752, %v3690
    %v3761 = vadd.f32 %v3753, %v3693
    %v3762 = vadd.f32 %v3754, %v3696
    %v3763 = vld [vmem:[%s963 + $0x20] sm:$0xf]
    %v3764 = vld [vmem:[%s963 + $0x24] sm:$0xf]
    %v3765 = vld [vmem:[%s963 + $0x28] sm:$0xf]
    %v3766 = vld [vmem:[%s963 + $0x2c] sm:$0xf]
    %v3767 = vld [vmem:[%s963 + $0x30] sm:$0xf]
    %v3768 = vld [vmem:[%s963 + $0x34] sm:$0xf]
    %v3769 = vld [vmem:[%s963 + $0x38] sm:$0xf]
    %v3770 = vld [vmem:[%s963 + $0x3c] sm:$0xf]
    %v3771 = vunpack.c.l.bf16 %v3763
    %v3772 = vunpack.c.l.bf16 %v3764
    %v3773 = vunpack.c.l.bf16 %v3765
    %v3774 = vunpack.c.l.bf16 %v3766
    %v3775 = vunpack.c.l.bf16 %v3767
    %v3776 = vunpack.c.l.bf16 %v3768
    %v3777 = vunpack.c.l.bf16 %v3769
    %v3778 = vunpack.c.l.bf16 %v3770
    %v3779 = vadd.f32 %v3771, %v3716
    %v3780 = vadd.f32 %v3772, %v3719
    %v3781 = vadd.f32 %v3773, %v3722
    %v3782 = vadd.f32 %v3774, %v3725
    %v3783 = vadd.f32 %v3775, %v3728
    %v3784 = vadd.f32 %v3776, %v3731
    %v3785 = vadd.f32 %v3777, %v3734
    %v3786 = vadd.f32 %v3778, %v3737
    %v3787 = vxor.u32 %v3755, 2147483648
    %v3788 = vxor.u32 %v3756, 2147483648
    %v3789 = vmul.f32 %v3787, 1.442695
    %v3790 = vpow.pop %v3789
    %v3791 = vmul.f32 %v3788, 1.442695
    %v3792 = vpow.pop %v3791
    %v3793 = vadd.f32 %v3790, 1.0
    %v3794 = vadd.f32 %v3792, 1.0
    %v3795 = vrcp.pop %v3793
    %v3796 = vmul.f32 %v3793, %v3795
    %v3797 = vsub.f32 1.0, %v3796
    %v3798 = vmul.f32 %v3795, %v3797
    %v3799 = vadd.f32 %v3795, %v3798
    %vm3800 = vweird.f32 %v3793
    %vm3801 = vweird.f32 %v3795
    %vm3802 = vmor %vm3800, %vm3801
    %v3803 = vsel %vm3802, %v3795, %v3799
    %v3804 = vand.u32 2147483647, %v3793
    %vm3805 = vcmp.eq.f32.partialorder %v3804, 8.507059e+37
    %v3806 = vand.u32 %v3793, 2147483648
    %v3807 = vor.u32 1.1754944e-38, %v3806
    %v3808 = vsel %vm3805, %v3807, %v3803
    %v3809 = vmul.f32 1.0, %v3808
    %v3810 = vrcp.pop %v3794
    %v3811 = vmul.f32 %v3794, %v3810
    %v3812 = vsub.f32 1.0, %v3811
    %v3813 = vmul.f32 %v3810, %v3812
    %v3814 = vadd.f32 %v3810, %v3813
    %vm3815 = vweird.f32 %v3794
    %vm3816 = vweird.f32 %v3810
    %vm3817 = vmor %vm3815, %vm3816
    %v3818 = vsel %vm3817, %v3810, %v3814
    %v3819 = vand.u32 2147483647, %v3794
    %vm3820 = vcmp.eq.f32.partialorder %v3819, 8.507059e+37
    %v3821 = vand.u32 %v3794, 2147483648
    %v3822 = vor.u32 1.1754944e-38, %v3821
    %v3823 = vsel %vm3820, %v3822, %v3818
    %v3824 = vmul.f32 1.0, %v3823
    %v3825 = vxor.u32 %v3779, 2147483648
    %v3826 = vxor.u32 %v3780, 2147483648
    %v3827 = vmul.f32 %v3825, 1.442695
    %v3828 = vpow.pop %v3827
    %v3829 = vmul.f32 %v3826, 1.442695
    %v3830 = vpow.pop %v3829
    %v3831 = vadd.f32 %v3828, 1.0
    %v3832 = vadd.f32 %v3830, 1.0
    %v3833 = vrcp.pop %v3831
    %v3834 = vmul.f32 %v3831, %v3833
    %v3835 = vsub.f32 1.0, %v3834
    %v3836 = vmul.f32 %v3833, %v3835
    %v3837 = vadd.f32 %v3833, %v3836
    %vm3838 = vweird.f32 %v3831
    %vm3839 = vweird.f32 %v3833
    %vm3840 = vmor %vm3838, %vm3839
    %v3841 = vsel %vm3840, %v3833, %v3837
    %v3842 = vand.u32 2147483647, %v3831
    %vm3843 = vcmp.eq.f32.partialorder %v3842, 8.507059e+37
    %v3844 = vand.u32 %v3831, 2147483648
    %v3845 = vor.u32 1.1754944e-38, %v3844
    %v3846 = vsel %vm3843, %v3845, %v3841
    %v3847 = vmul.f32 1.0, %v3846
    %v3848 = vrcp.pop %v3832
    %v3849 = vmul.f32 %v3832, %v3848
    %v3850 = vsub.f32 1.0, %v3849
    %v3851 = vmul.f32 %v3848, %v3850
    %v3852 = vadd.f32 %v3848, %v3851
    %vm3853 = vweird.f32 %v3832
    %vm3854 = vweird.f32 %v3848
    %vm3855 = vmor %vm3853, %vm3854
    %v3856 = vsel %vm3855, %v3848, %v3852
    %v3857 = vand.u32 2147483647, %v3832
    %vm3858 = vcmp.eq.f32.partialorder %v3857, 8.507059e+37
    %v3859 = vand.u32 %v3832, 2147483648
    %v3860 = vor.u32 1.1754944e-38, %v3859
    %v3861 = vsel %vm3858, %v3860, %v3856
    %v3862 = vmul.f32 1.0, %v3861
    %v3863 = vxor.u32 %v3757, 2147483648
    %v3864 = vxor.u32 %v3758, 2147483648
    %v3865 = vmul.f32 %v3863, 1.442695
    %v3866 = vpow.pop %v3865
    %v3867 = vmul.f32 %v3864, 1.442695
    %v3868 = vpow.pop %v3867
    %v3869 = vadd.f32 %v3866, 1.0
    %v3870 = vadd.f32 %v3868, 1.0
    %v3871 = vrcp.pop %v3869
    %v3872 = vmul.f32 %v3869, %v3871
    %v3873 = vsub.f32 1.0, %v3872
    %v3874 = vmul.f32 %v3871, %v3873
    %v3875 = vadd.f32 %v3871, %v3874
    %vm3876 = vweird.f32 %v3869
    %vm3877 = vweird.f32 %v3871
    %vm3878 = vmor %vm3876, %vm3877
    %v3879 = vsel %vm3878, %v3871, %v3875
    %v3880 = vand.u32 2147483647, %v3869
    %vm3881 = vcmp.eq.f32.partialorder %v3880, 8.507059e+37
    %v3882 = vand.u32 %v3869, 2147483648
    %v3883 = vor.u32 1.1754944e-38, %v3882
    %v3884 = vsel %vm3881, %v3883, %v3879
    %v3885 = vmul.f32 1.0, %v3884
    %v3886 = vrcp.pop %v3870
    %v3887 = vmul.f32 %v3870, %v3886
    %v3888 = vsub.f32 1.0, %v3887
    %v3889 = vmul.f32 %v3886, %v3888
    %v3890 = vadd.f32 %v3886, %v3889
    %vm3891 = vweird.f32 %v3870
    %vm3892 = vweird.f32 %v3886
    %vm3893 = vmor %vm3891, %vm3892
    %v3894 = vsel %vm3893, %v3886, %v3890
    %v3895 = vand.u32 2147483647, %v3870
    %vm3896 = vcmp.eq.f32.partialorder %v3895, 8.507059e+37
    %v3897 = vand.u32 %v3870, 2147483648
    %v3898 = vor.u32 1.1754944e-38, %v3897
    %v3899 = vsel %vm3896, %v3898, %v3894
    %v3900 = vmul.f32 1.0, %v3899
    %v3901 = vxor.u32 %v3781, 2147483648
    %v3902 = vxor.u32 %v3782, 2147483648
    %v3903 = vmul.f32 %v3901, 1.442695
    %v3904 = vpow.pop %v3903
    %v3905 = vmul.f32 %v3902, 1.442695
    %v3906 = vpow.pop %v3905
    %v3907 = vadd.f32 %v3904, 1.0
    %v3908 = vadd.f32 %v3906, 1.0
    %v3909 = vrcp.pop %v3907
    %v3910 = vmul.f32 %v3907, %v3909
    %v3911 = vsub.f32 1.0, %v3910
    %v3912 = vmul.f32 %v3909, %v3911
    %v3913 = vadd.f32 %v3909, %v3912
    %vm3914 = vweird.f32 %v3907
    %vm3915 = vweird.f32 %v3909
    %vm3916 = vmor %vm3914, %vm3915
    %v3917 = vsel %vm3916, %v3909, %v3913
    %v3918 = vand.u32 2147483647, %v3907
    %vm3919 = vcmp.eq.f32.partialorder %v3918, 8.507059e+37
    %v3920 = vand.u32 %v3907, 2147483648
    %v3921 = vor.u32 1.1754944e-38, %v3920
    %v3922 = vsel %vm3919, %v3921, %v3917
    %v3923 = vmul.f32 1.0, %v3922
    %v3924 = vrcp.pop %v3908
    %v3925 = vmul.f32 %v3908, %v3924
    %v3926 = vsub.f32 1.0, %v3925
    %v3927 = vmul.f32 %v3924, %v3926
    %v3928 = vadd.f32 %v3924, %v3927
    %vm3929 = vweird.f32 %v3908
    %vm3930 = vweird.f32 %v3924
    %vm3931 = vmor %vm3929, %vm3930
    %v3932 = vsel %vm3931, %v3924, %v3928
    %v3933 = vand.u32 2147483647, %v3908
    %vm3934 = vcmp.eq.f32.partialorder %v3933, 8.507059e+37
    %v3935 = vand.u32 %v3908, 2147483648
    %v3936 = vor.u32 1.1754944e-38, %v3935
    %v3937 = vsel %vm3934, %v3936, %v3932
    %v3938 = vmul.f32 1.0, %v3937
    %v3939 = vtanh.pop %v3759
    %v3940 = vtanh.pop %v3760
    %v3941 = vtanh.pop %v3783
    %v3942 = vtanh.pop %v3784
    %v3943 = vxor.u32 %v3761, 2147483648
    %v3944 = vxor.u32 %v3762, 2147483648
    %v3945 = vmul.f32 %v3943, 1.442695
    %v3946 = vpow.pop %v3945
    %v3947 = vmul.f32 %v3944, 1.442695
    %v3948 = vpow.pop %v3947
    %v3949 = vadd.f32 %v3946, 1.0
    %v3950 = vadd.f32 %v3948, 1.0
    %v3951 = vrcp.pop %v3949
    %v3952 = vmul.f32 %v3949, %v3951
    %v3953 = vsub.f32 1.0, %v3952
    %v3954 = vmul.f32 %v3951, %v3953
    %v3955 = vadd.f32 %v3951, %v3954
    %vm3956 = vweird.f32 %v3949
    %vm3957 = vweird.f32 %v3951
    %vm3958 = vmor %vm3956, %vm3957
    %v3959 = vsel %vm3958, %v3951, %v3955
    %v3960 = vand.u32 2147483647, %v3949
    %vm3961 = vcmp.eq.f32.partialorder %v3960, 8.507059e+37
    %v3962 = vand.u32 %v3949, 2147483648
    %v3963 = vor.u32 1.1754944e-38, %v3962
    %v3964 = vsel %vm3961, %v3963, %v3959
    %v3965 = vmul.f32 1.0, %v3964
    %v3966 = vrcp.pop %v3950
    %v3967 = vmul.f32 %v3950, %v3966
    %v3968 = vsub.f32 1.0, %v3967
    %v3969 = vmul.f32 %v3966, %v3968
    %v3970 = vadd.f32 %v3966, %v3969
    %vm3971 = vweird.f32 %v3950
    %vm3972 = vweird.f32 %v3966
    %vm3973 = vmor %vm3971, %vm3972
    %v3974 = vsel %vm3973, %v3966, %v3970
    %v3975 = vand.u32 2147483647, %v3950
    %vm3976 = vcmp.eq.f32.partialorder %v3975, 8.507059e+37
    %v3977 = vand.u32 %v3950, 2147483648
    %v3978 = vor.u32 1.1754944e-38, %v3977
    %v3979 = vsel %vm3976, %v3978, %v3974
    %v3980 = vmul.f32 1.0, %v3979
    %v3981 = vxor.u32 %v3785, 2147483648
    %v3982 = vxor.u32 %v3786, 2147483648
    %v3983 = vmul.f32 %v3981, 1.442695
    %v3984 = vpow.pop %v3983
    %v3985 = vmul.f32 %v3982, 1.442695
    %v3986 = vpow.pop %v3985
    %v3987 = vadd.f32 %v3984, 1.0
    %v3988 = vadd.f32 %v3986, 1.0
    %v3989 = vrcp.pop %v3987
    %v3990 = vmul.f32 %v3987, %v3989
    %v3991 = vsub.f32 1.0, %v3990
    %v3992 = vmul.f32 %v3989, %v3991
    %v3993 = vadd.f32 %v3989, %v3992
    %vm3994 = vweird.f32 %v3987
    %vm3995 = vweird.f32 %v3989
    %vm3996 = vmor %vm3994, %vm3995
    %v3997 = vsel %vm3996, %v3989, %v3993
    %v3998 = vand.u32 2147483647, %v3987
    %vm3999 = vcmp.eq.f32.partialorder %v3998, 8.507059e+37
    %v4000 = vand.u32 %v3987, 2147483648
    %v4001 = vor.u32 1.1754944e-38, %v4000
    %v4002 = vsel %vm3999, %v4001, %v3997
    %v4003 = vmul.f32 1.0, %v4002
    %v4004 = vrcp.pop %v3988
    %v4005 = vmul.f32 %v3988, %v4004
    %v4006 = vsub.f32 1.0, %v4005
    %v4007 = vmul.f32 %v4004, %v4006
    %v4008 = vadd.f32 %v4004, %v4007
    %vm4009 = vweird.f32 %v3988
    %vm4010 = vweird.f32 %v4004
    %vm4011 = vmor %vm4009, %vm4010
    %v4012 = vsel %vm4011, %v4004, %v4008
    %v4013 = vand.u32 2147483647, %v3988
    %vm4014 = vcmp.eq.f32.partialorder %v4013, 8.507059e+37
    %v4015 = vand.u32 %v3988, 2147483648
    %v4016 = vor.u32 1.1754944e-38, %v4015
    %v4017 = vsel %vm4014, %v4016, %v4012
    %v4018 = vmul.f32 1.0, %v4017
    %v4019 = vmul.f32 %v3885, %v3636
    %v4020 = vmul.f32 %v3900, %v3637
    %v4021 = vmul.f32 %v3809, %v3939
    %v4022 = vmul.f32 %v3824, %v3940
    %v4023 = vadd.f32 %v4019, %v4021
    %v4024 = vadd.f32 %v4020, %v4022
    %v4025 = vmul.f32 %v3923, %v3651
    %v4026 = vmul.f32 %v3938, %v3652
    %v4027 = vmul.f32 %v3847, %v3941
    %v4028 = vmul.f32 %v3862, %v3942
    %v4029 = vadd.f32 %v4025, %v4027
    %v4030 = vadd.f32 %v4026, %v4028
    %v4031 = vtanh.pop %v4023
    %v4032 = vtanh.pop %v4024
    %v4033 = vmul.f32 %v3965, %v4031
    %v4034 = vmul.f32 %v3980, %v4032
    %v4035 = vtanh.pop %v4029
    %v4036 = vtanh.pop %v4030
    %v4037 = vmul.f32 %v4003, %v4035
    %v4038 = vmul.f32 %v4018, %v4036
    %v4039 = vld [vmem:[%s1939] sm:$0x1]
    %v4040 = vld [vmem:[%s1937] sm:$0x1]
    %v4041 = vsub.f32 %v4033, %v3630
    %v4042 = vsub.f32 %v4034, %v3631
    %v4044 = vperm.slane %v4039, 0
    %v4046 = vmul.f32 %v4044, %v4041
    %v4047 = vmul.f32 %v4044, %v4042
    %v4048 = vadd.f32 %v3630, %v4046
    %v4049 = vadd.f32 %v3631, %v4047
    %v4050 = vsub.f32 %v4023, %v3636
    %v4051 = vsub.f32 %v4024, %v3637
    %v4052 = vmul.f32 %v4044, %v4050
    %v4053 = vmul.f32 %v4044, %v4051
    %v4054 = vadd.f32 %v3636, %v4052
    %v4055 = vadd.f32 %v3637, %v4053
    %v4056 = vsub.f32 %v4037, %v3645
    %v4057 = vsub.f32 %v4038, %v3646
    %v4059 = vperm.slane %v4040, 0
    %v4061 = vmul.f32 %v4059, %v4056
    %v4062 = vmul.f32 %v4059, %v4057
    %v4063 = vadd.f32 %v3645, %v4061
    %v4064 = vadd.f32 %v3646, %v4062
    %v4065 = vsub.f32 %v4029, %v3651
    %v4066 = vsub.f32 %v4030, %v3652
    %v4067 = vmul.f32 %v4059, %v4065
    %v4068 = vmul.f32 %v4059, %v4066
    %v4069 = vadd.f32 %v3651, %v4067
    %v4070 = vadd.f32 %v3652, %v4068
    %4071 = vst [vmem:[%s1974] sm:$0xff] %v4048
    %4072 = vst [vmem:[%s1974 + $0x8] sm:$0xff] %v4049
    %4073 = vst [vmem:[%s1971 + $0x10] sm:$0xff] %v4063
    %4074 = vst [vmem:[%s1971 + $0x18] sm:$0xff] %v4064
    %4075 = vmatpush.msra.mxu0 0.0
    %4076 = vmatpush.msra.mxu0 0.0
    %4077 = vmatpush.msra.mxu0 0.0
    %4078 = vmatpush.msra.mxu0 0.0
    %4079 = vmatpush.msra.mxu0 0.0
    %4080 = vmatpush.msra.mxu0 0.0
    %4081 = vmatpush.msra.mxu0 0.0
    %4082 = vmatpush.msra.mxu0 0.0
    %4083 = vmatpush.msra.mxu0 0.0
    %4084 = vmatpush.msra.mxu0 0.0
    %4085 = vmatpush.msra.mxu0 0.0
    %4086 = vmatpush.msra.mxu0 0.0
    %4087 = vmatpush.msra.mxu0 0.0
    %4088 = vmatpush.msra.mxu0 0.0
    %4089 = vmatpush.msra.mxu0 %v4049
    %4090 = vmatpush.msra.mxu0 %v4048
    %4091 = vmatmul.f32.gmra.mxu0 %v1096
    %v4092 = vpop.f32.mrf.mxu0
    %v4093 = vadd.f32 0.0, %v4092
    %4094 = vmatmul.f32.gmra.mxu0 %v1099
    %v4095 = vpop.f32.mrf.mxu0
    %v4096 = vadd.f32 0.0, %v4095
    %4097 = vmatmul.f32.gmra.mxu0 %v1102
    %v4098 = vpop.f32.mrf.mxu0
    %v4099 = vadd.f32 0.0, %v4098
    %4100 = vmatmul.f32.gmra.mxu0 %v1105
    %v4101 = vpop.f32.mrf.mxu0
    %v4102 = vadd.f32 0.0, %v4101
    %4103 = vmatmul.f32.gmra.mxu0 %v1108
    %v4104 = vpop.f32.mrf.mxu0
    %v4105 = vadd.f32 0.0, %v4104
    %4106 = vmatmul.f32.gmra.mxu0 %v1111
    %v4107 = vpop.f32.mrf.mxu0
    %v4108 = vadd.f32 0.0, %v4107
    %4109 = vmatmul.f32.gmra.mxu0 %v1114
    %v4110 = vpop.f32.mrf.mxu0
    %v4111 = vadd.f32 0.0, %v4110
    %4112 = vmatmul.f32.gmra.mxu0 %v1117
    %v4113 = vpop.f32.mrf.mxu0
    %v4114 = vadd.f32 0.0, %v4113
    %4115 = vdwg.mxu0
    %4116 = vmatpush.msra.mxu0 0.0
    %4117 = vmatpush.msra.mxu0 0.0
    %4118 = vmatpush.msra.mxu0 0.0
    %4119 = vmatpush.msra.mxu0 0.0
    %4120 = vmatpush.msra.mxu0 0.0
    %4121 = vmatpush.msra.mxu0 0.0
    %4122 = vmatpush.msra.mxu0 0.0
    %4123 = vmatpush.msra.mxu0 0.0
    %4124 = vmatpush.msra.mxu0 0.0
    %4125 = vmatpush.msra.mxu0 0.0
    %4126 = vmatpush.msra.mxu0 0.0
    %4127 = vmatpush.msra.mxu0 0.0
    %4128 = vmatpush.msra.mxu0 0.0
    %4129 = vmatpush.msra.mxu0 0.0
    %4130 = vmatpush.msra.mxu0 %v4064
    %4131 = vmatpush.msra.mxu0 %v4063
    %4132 = vmatmul.f32.gmra.mxu0 %v1161
    %v4133 = vpop.f32.mrf.mxu0
    %v4134 = vadd.f32 0.0, %v4133
    %4135 = vmatmul.f32.gmra.mxu0 %v1164
    %v4136 = vpop.f32.mrf.mxu0
    %v4137 = vadd.f32 0.0, %v4136
    %4138 = vmatmul.f32.gmra.mxu0 %v1167
    %v4139 = vpop.f32.mrf.mxu0
    %v4140 = vadd.f32 0.0, %v4139
    %4141 = vmatmul.f32.gmra.mxu0 %v1170
    %v4142 = vpop.f32.mrf.mxu0
    %v4143 = vadd.f32 0.0, %v4142
    %4144 = vmatmul.f32.gmra.mxu0 %v1173
    %v4145 = vpop.f32.mrf.mxu0
    %v4146 = vadd.f32 0.0, %v4145
    %4147 = vmatmul.f32.gmra.mxu0 %v1176
    %v4148 = vpop.f32.mrf.mxu0
    %v4149 = vadd.f32 0.0, %v4148
    %4150 = vmatmul.f32.gmra.mxu0 %v1179
    %v4151 = vpop.f32.mrf.mxu0
    %v4152 = vadd.f32 0.0, %v4151
    %4153 = vmatmul.f32.gmra.mxu0 %v1182
    %v4154 = vpop.f32.mrf.mxu0
    %v4155 = vadd.f32 0.0, %v4154
    %4156 = vdwg.mxu0
    %v4157 = vld [vmem:[%s1070] sm:$0xf]
    %v4158 = vld [vmem:[%s1070 + $0x4] sm:$0xf]
    %v4159 = vld [vmem:[%s1070 + $0x8] sm:$0xf]
    %v4160 = vld [vmem:[%s1070 + $0xc] sm:$0xf]
    %v4161 = vld [vmem:[%s1070 + $0x10] sm:$0xf]
    %v4162 = vld [vmem:[%s1070 + $0x14] sm:$0xf]
    %v4163 = vld [vmem:[%s1070 + $0x18] sm:$0xf]
    %v4164 = vld [vmem:[%s1070 + $0x1c] sm:$0xf]
    %v4165 = vunpack.c.l.bf16 %v4157
    %v4166 = vunpack.c.l.bf16 %v4158
    %v4167 = vunpack.c.l.bf16 %v4159
    %v4168 = vunpack.c.l.bf16 %v4160
    %v4169 = vunpack.c.l.bf16 %v4161
    %v4170 = vunpack.c.l.bf16 %v4162
    %v4171 = vunpack.c.l.bf16 %v4163
    %v4172 = vunpack.c.l.bf16 %v4164
    %v4173 = vadd.f32 %v4165, %v4093
    %v4174 = vadd.f32 %v4166, %v4096
    %v4175 = vadd.f32 %v4167, %v4099
    %v4176 = vadd.f32 %v4168, %v4102
    %v4177 = vadd.f32 %v4169, %v4105
    %v4178 = vadd.f32 %v4170, %v4108
    %v4179 = vadd.f32 %v4171, %v4111
    %v4180 = vadd.f32 %v4172, %v4114
    %v4181 = vld [vmem:[%s1070 + $0x20] sm:$0xf]
    %v4182 = vld [vmem:[%s1070 + $0x24] sm:$0xf]
    %v4183 = vld [vmem:[%s1070 + $0x28] sm:$0xf]
    %v4184 = vld [vmem:[%s1070 + $0x2c] sm:$0xf]
    %v4185 = vld [vmem:[%s1070 + $0x30] sm:$0xf]
    %v4186 = vld [vmem:[%s1070 + $0x34] sm:$0xf]
    %v4187 = vld [vmem:[%s1070 + $0x38] sm:$0xf]
    %v4188 = vld [vmem:[%s1070 + $0x3c] sm:$0xf]
    %v4189 = vunpack.c.l.bf16 %v4181
    %v4190 = vunpack.c.l.bf16 %v4182
    %v4191 = vunpack.c.l.bf16 %v4183
    %v4192 = vunpack.c.l.bf16 %v4184
    %v4193 = vunpack.c.l.bf16 %v4185
    %v4194 = vunpack.c.l.bf16 %v4186
    %v4195 = vunpack.c.l.bf16 %v4187
    %v4196 = vunpack.c.l.bf16 %v4188
    %v4197 = vadd.f32 %v4189, %v4134
    %v4198 = vadd.f32 %v4190, %v4137
    %v4199 = vadd.f32 %v4191, %v4140
    %v4200 = vadd.f32 %v4192, %v4143
    %v4201 = vadd.f32 %v4193, %v4146
    %v4202 = vadd.f32 %v4194, %v4149
    %v4203 = vadd.f32 %v4195, %v4152
    %v4204 = vadd.f32 %v4196, %v4155
    %v4205 = vxor.u32 %v4173, 2147483648
    %v4206 = vxor.u32 %v4174, 2147483648
    %v4207 = vmul.f32 %v4205, 1.442695
    %v4208 = vpow.pop %v4207
    %v4209 = vmul.f32 %v4206, 1.442695
    %v4210 = vpow.pop %v4209
    %v4211 = vadd.f32 %v4208, 1.0
    %v4212 = vadd.f32 %v4210, 1.0
    %v4213 = vrcp.pop %v4211
    %v4214 = vmul.f32 %v4211, %v4213
    %v4215 = vsub.f32 1.0, %v4214
    %v4216 = vmul.f32 %v4213, %v4215
    %v4217 = vadd.f32 %v4213, %v4216
    %vm4218 = vweird.f32 %v4211
    %vm4219 = vweird.f32 %v4213
    %vm4220 = vmor %vm4218, %vm4219
    %v4221 = vsel %vm4220, %v4213, %v4217
    %v4222 = vand.u32 2147483647, %v4211
    %vm4223 = vcmp.eq.f32.partialorder %v4222, 8.507059e+37
    %v4224 = vand.u32 %v4211, 2147483648
    %v4225 = vor.u32 1.1754944e-38, %v4224
    %v4226 = vsel %vm4223, %v4225, %v4221
    %v4227 = vmul.f32 1.0, %v4226
    %v4228 = vrcp.pop %v4212
    %v4229 = vmul.f32 %v4212, %v4228
    %v4230 = vsub.f32 1.0, %v4229
    %v4231 = vmul.f32 %v4228, %v4230
    %v4232 = vadd.f32 %v4228, %v4231
    %vm4233 = vweird.f32 %v4212
    %vm4234 = vweird.f32 %v4228
    %vm4235 = vmor %vm4233, %vm4234
    %v4236 = vsel %vm4235, %v4228, %v4232
    %v4237 = vand.u32 2147483647, %v4212
    %vm4238 = vcmp.eq.f32.partialorder %v4237, 8.507059e+37
    %v4239 = vand.u32 %v4212, 2147483648
    %v4240 = vor.u32 1.1754944e-38, %v4239
    %v4241 = vsel %vm4238, %v4240, %v4236
    %v4242 = vmul.f32 1.0, %v4241
    %v4243 = vxor.u32 %v4197, 2147483648
    %v4244 = vxor.u32 %v4198, 2147483648
    %v4245 = vmul.f32 %v4243, 1.442695
    %v4246 = vpow.pop %v4245
    %v4247 = vmul.f32 %v4244, 1.442695
    %v4248 = vpow.pop %v4247
    %v4249 = vadd.f32 %v4246, 1.0
    %v4250 = vadd.f32 %v4248, 1.0
    %v4251 = vrcp.pop %v4249
    %v4252 = vmul.f32 %v4249, %v4251
    %v4253 = vsub.f32 1.0, %v4252
    %v4254 = vmul.f32 %v4251, %v4253
    %v4255 = vadd.f32 %v4251, %v4254
    %vm4256 = vweird.f32 %v4249
    %vm4257 = vweird.f32 %v4251
    %vm4258 = vmor %vm4256, %vm4257
    %v4259 = vsel %vm4258, %v4251, %v4255
    %v4260 = vand.u32 2147483647, %v4249
    %vm4261 = vcmp.eq.f32.partialorder %v4260, 8.507059e+37
    %v4262 = vand.u32 %v4249, 2147483648
    %v4263 = vor.u32 1.1754944e-38, %v4262
    %v4264 = vsel %vm4261, %v4263, %v4259
    %v4265 = vmul.f32 1.0, %v4264
    %v4266 = vrcp.pop %v4250
    %v4267 = vmul.f32 %v4250, %v4266
    %v4268 = vsub.f32 1.0, %v4267
    %v4269 = vmul.f32 %v4266, %v4268
    %v4270 = vadd.f32 %v4266, %v4269
    %vm4271 = vweird.f32 %v4250
    %vm4272 = vweird.f32 %v4266
    %vm4273 = vmor %vm4271, %vm4272
    %v4274 = vsel %vm4273, %v4266, %v4270
    %v4275 = vand.u32 2147483647, %v4250
    %vm4276 = vcmp.eq.f32.partialorder %v4275, 8.507059e+37
    %v4277 = vand.u32 %v4250, 2147483648
    %v4278 = vor.u32 1.1754944e-38, %v4277
    %v4279 = vsel %vm4276, %v4278, %v4274
    %v4280 = vmul.f32 1.0, %v4279
    %v4281 = vxor.u32 %v4175, 2147483648
    %v4282 = vxor.u32 %v4176, 2147483648
    %v4283 = vmul.f32 %v4281, 1.442695
    %v4284 = vpow.pop %v4283
    %v4285 = vmul.f32 %v4282, 1.442695
    %v4286 = vpow.pop %v4285
    %v4287 = vadd.f32 %v4284, 1.0
    %v4288 = vadd.f32 %v4286, 1.0
    %v4289 = vrcp.pop %v4287
    %v4290 = vmul.f32 %v4287, %v4289
    %v4291 = vsub.f32 1.0, %v4290
    %v4292 = vmul.f32 %v4289, %v4291
    %v4293 = vadd.f32 %v4289, %v4292
    %vm4294 = vweird.f32 %v4287
    %vm4295 = vweird.f32 %v4289
    %vm4296 = vmor %vm4294, %vm4295
    %v4297 = vsel %vm4296, %v4289, %v4293
    %v4298 = vand.u32 2147483647, %v4287
    %vm4299 = vcmp.eq.f32.partialorder %v4298, 8.507059e+37
    %v4300 = vand.u32 %v4287, 2147483648
    %v4301 = vor.u32 1.1754944e-38, %v4300
    %v4302 = vsel %vm4299, %v4301, %v4297
    %v4303 = vmul.f32 1.0, %v4302
    %v4304 = vrcp.pop %v4288
    %v4305 = vmul.f32 %v4288, %v4304
    %v4306 = vsub.f32 1.0, %v4305
    %v4307 = vmul.f32 %v4304, %v4306
    %v4308 = vadd.f32 %v4304, %v4307
    %vm4309 = vweird.f32 %v4288
    %vm4310 = vweird.f32 %v4304
    %vm4311 = vmor %vm4309, %vm4310
    %v4312 = vsel %vm4311, %v4304, %v4308
    %v4313 = vand.u32 2147483647, %v4288
    %vm4314 = vcmp.eq.f32.partialorder %v4313, 8.507059e+37
    %v4315 = vand.u32 %v4288, 2147483648
    %v4316 = vor.u32 1.1754944e-38, %v4315
    %v4317 = vsel %vm4314, %v4316, %v4312
    %v4318 = vmul.f32 1.0, %v4317
    %v4319 = vxor.u32 %v4199, 2147483648
    %v4320 = vxor.u32 %v4200, 2147483648
    %v4321 = vmul.f32 %v4319, 1.442695
    %v4322 = vpow.pop %v4321
    %v4323 = vmul.f32 %v4320, 1.442695
    %v4324 = vpow.pop %v4323
    %v4325 = vadd.f32 %v4322, 1.0
    %v4326 = vadd.f32 %v4324, 1.0
    %v4327 = vrcp.pop %v4325
    %v4328 = vmul.f32 %v4325, %v4327
    %v4329 = vsub.f32 1.0, %v4328
    %v4330 = vmul.f32 %v4327, %v4329
    %v4331 = vadd.f32 %v4327, %v4330
    %vm4332 = vweird.f32 %v4325
    %vm4333 = vweird.f32 %v4327
    %vm4334 = vmor %vm4332, %vm4333
    %v4335 = vsel %vm4334, %v4327, %v4331
    %v4336 = vand.u32 2147483647, %v4325
    %vm4337 = vcmp.eq.f32.partialorder %v4336, 8.507059e+37
    %v4338 = vand.u32 %v4325, 2147483648
    %v4339 = vor.u32 1.1754944e-38, %v4338
    %v4340 = vsel %vm4337, %v4339, %v4335
    %v4341 = vmul.f32 1.0, %v4340
    %v4342 = vrcp.pop %v4326
    %v4343 = vmul.f32 %v4326, %v4342
    %v4344 = vsub.f32 1.0, %v4343
    %v4345 = vmul.f32 %v4342, %v4344
    %v4346 = vadd.f32 %v4342, %v4345
    %vm4347 = vweird.f32 %v4326
    %vm4348 = vweird.f32 %v4342
    %vm4349 = vmor %vm4347, %vm4348
    %v4350 = vsel %vm4349, %v4342, %v4346
    %v4351 = vand.u32 2147483647, %v4326
    %vm4352 = vcmp.eq.f32.partialorder %v4351, 8.507059e+37
    %v4353 = vand.u32 %v4326, 2147483648
    %v4354 = vor.u32 1.1754944e-38, %v4353
    %v4355 = vsel %vm4352, %v4354, %v4350
    %v4356 = vmul.f32 1.0, %v4355
    %v4357 = vtanh.pop %v4177
    %v4358 = vtanh.pop %v4178
    %v4359 = vtanh.pop %v4201
    %v4360 = vtanh.pop %v4202
    %v4361 = vxor.u32 %v4179, 2147483648
    %v4362 = vxor.u32 %v4180, 2147483648
    %v4363 = vmul.f32 %v4361, 1.442695
    %v4364 = vpow.pop %v4363
    %v4365 = vmul.f32 %v4362, 1.442695
    %v4366 = vpow.pop %v4365
    %v4367 = vadd.f32 %v4364, 1.0
    %v4368 = vadd.f32 %v4366, 1.0
    %v4369 = vrcp.pop %v4367
    %v4370 = vmul.f32 %v4367, %v4369
    %v4371 = vsub.f32 1.0, %v4370
    %v4372 = vmul.f32 %v4369, %v4371
    %v4373 = vadd.f32 %v4369, %v4372
    %vm4374 = vweird.f32 %v4367
    %vm4375 = vweird.f32 %v4369
    %vm4376 = vmor %vm4374, %vm4375
    %v4377 = vsel %vm4376, %v4369, %v4373
    %v4378 = vand.u32 2147483647, %v4367
    %vm4379 = vcmp.eq.f32.partialorder %v4378, 8.507059e+37
    %v4380 = vand.u32 %v4367, 2147483648
    %v4381 = vor.u32 1.1754944e-38, %v4380
    %v4382 = vsel %vm4379, %v4381, %v4377
    %v4383 = vmul.f32 1.0, %v4382
    %v4384 = vrcp.pop %v4368
    %v4385 = vmul.f32 %v4368, %v4384
    %v4386 = vsub.f32 1.0, %v4385
    %v4387 = vmul.f32 %v4384, %v4386
    %v4388 = vadd.f32 %v4384, %v4387
    %vm4389 = vweird.f32 %v4368
    %vm4390 = vweird.f32 %v4384
    %vm4391 = vmor %vm4389, %vm4390
    %v4392 = vsel %vm4391, %v4384, %v4388
    %v4393 = vand.u32 2147483647, %v4368
    %vm4394 = vcmp.eq.f32.partialorder %v4393, 8.507059e+37
    %v4395 = vand.u32 %v4368, 2147483648
    %v4396 = vor.u32 1.1754944e-38, %v4395
    %v4397 = vsel %vm4394, %v4396, %v4392
    %v4398 = vmul.f32 1.0, %v4397
    %v4399 = vxor.u32 %v4203, 2147483648
    %v4400 = vxor.u32 %v4204, 2147483648
    %v4401 = vmul.f32 %v4399, 1.442695
    %v4402 = vpow.pop %v4401
    %v4403 = vmul.f32 %v4400, 1.442695
    %v4404 = vpow.pop %v4403
    %v4405 = vadd.f32 %v4402, 1.0
    %v4406 = vadd.f32 %v4404, 1.0
    %v4407 = vrcp.pop %v4405
    %v4408 = vmul.f32 %v4405, %v4407
    %v4409 = vsub.f32 1.0, %v4408
    %v4410 = vmul.f32 %v4407, %v4409
    %v4411 = vadd.f32 %v4407, %v4410
    %vm4412 = vweird.f32 %v4405
    %vm4413 = vweird.f32 %v4407
    %vm4414 = vmor %vm4412, %vm4413
    %v4415 = vsel %vm4414, %v4407, %v4411
    %v4416 = vand.u32 2147483647, %v4405
    %vm4417 = vcmp.eq.f32.partialorder %v4416, 8.507059e+37
    %v4418 = vand.u32 %v4405, 2147483648
    %v4419 = vor.u32 1.1754944e-38, %v4418
    %v4420 = vsel %vm4417, %v4419, %v4415
    %v4421 = vmul.f32 1.0, %v4420
    %v4422 = vrcp.pop %v4406
    %v4423 = vmul.f32 %v4406, %v4422
    %v4424 = vsub.f32 1.0, %v4423
    %v4425 = vmul.f32 %v4422, %v4424
    %v4426 = vadd.f32 %v4422, %v4425
    %vm4427 = vweird.f32 %v4406
    %vm4428 = vweird.f32 %v4422
    %vm4429 = vmor %vm4427, %vm4428
    %v4430 = vsel %vm4429, %v4422, %v4426
    %v4431 = vand.u32 2147483647, %v4406
    %vm4432 = vcmp.eq.f32.partialorder %v4431, 8.507059e+37
    %v4433 = vand.u32 %v4406, 2147483648
    %v4434 = vor.u32 1.1754944e-38, %v4433
    %v4435 = vsel %vm4432, %v4434, %v4430
    %v4436 = vmul.f32 1.0, %v4435
    %v4437 = vmul.f32 %v4303, %v4054
    %v4438 = vmul.f32 %v4318, %v4055
    %v4439 = vmul.f32 %v4227, %v4357
    %v4440 = vmul.f32 %v4242, %v4358
    %v4441 = vadd.f32 %v4437, %v4439
    %v4442 = vadd.f32 %v4438, %v4440
    %v4443 = vmul.f32 %v4341, %v4069
    %v4444 = vmul.f32 %v4356, %v4070
    %v4445 = vmul.f32 %v4265, %v4359
    %v4446 = vmul.f32 %v4280, %v4360
    %v4447 = vadd.f32 %v4443, %v4445
    %v4448 = vadd.f32 %v4444, %v4446
    %v4449 = vtanh.pop %v4441
    %v4450 = vtanh.pop %v4442
    %v4451 = vmul.f32 %v4383, %v4449
    %v4452 = vmul.f32 %v4398, %v4450
    %v4453 = vtanh.pop %v4447
    %v4454 = vtanh.pop %v4448
    %v4455 = vmul.f32 %v4421, %v4453
    %v4456 = vmul.f32 %v4436, %v4454
    %v4457 = vld [vmem:[%s1526] sm:$0x1]
    %v4458 = vld [vmem:[%s1] sm:$0x1]
    %v4459 = vsub.f32 %v4451, %v4048
    %v4460 = vsub.f32 %v4452, %v4049
    %v4462 = vperm.slane %v4457, 0
    %v4464 = vmul.f32 %v4462, %v4459
    %v4465 = vmul.f32 %v4462, %v4460
    %v4466 = vadd.f32 %v4048, %v4464
    %v4467 = vadd.f32 %v4049, %v4465
    %v4468 = vsub.f32 %v4455, %v4063
    %v4469 = vsub.f32 %v4456, %v4064
    %v4471 = vperm.slane %v4458, 0
    %v4473 = vmul.f32 %v4471, %v4468
    %v4474 = vmul.f32 %v4471, %v4469
    %v4475 = vadd.f32 %v4063, %v4473
    %v4476 = vadd.f32 %v4064, %v4474
    %4477 = vst [vmem:[%s1552] sm:$0xff] %v4466
    %4478 = vst [vmem:[%s1552 + $0x8] sm:$0xff] %v4467
    %4479 = vst [vmem:[#allocation3 + $0x10] sm:$0xff] %v4475
    %4480 = vst [vmem:[#allocation3 + $0x18] sm:$0xff] %v4476
    %v4481 = vld [vmem:[#allocation3] sm:$0xff]
    %v4482 = vld [vmem:[#allocation3 + $0x8] sm:$0xff]
    %v4483 = vld [vmem:[#allocation3 + $0x10] sm:$0xff]
    %v4484 = vld [vmem:[#allocation3 + $0x18] sm:$0xff]
    %vm4485 = vcmask 261120
    %v4487 = vsel %vm4485, %v165, 0
    %v4490 = vsel %vm4485, %v166, 0
    %4492 = vmatpush.msra.mxu0 0.0
    %4493 = vmatpush.msra.mxu0 0.0
    %4494 = vmatpush.msra.mxu0 0.0
    %4495 = vmatpush.msra.mxu0 0.0
    %4496 = vmatpush.msra.mxu0 0.0
    %4497 = vmatpush.msra.mxu0 0.0
    %4498 = vmatpush.msra.mxu0 0.0
    %4499 = vmatpush.msra.mxu0 0.0
    %4500 = vmatpush.msra.mxu0 0.0
    %4501 = vmatpush.msra.mxu0 0.0
    %4502 = vmatpush.msra.mxu0 0.0
    %4503 = vmatpush.msra.mxu0 0.0
    %4504 = vmatpush.msra.mxu0 %v4484
    %4505 = vmatpush.msra.mxu0 %v4483
    %4506 = vmatpush.msra.mxu0 %v4482
    %4507 = vmatpush.msra.mxu0 %v4481
    %4508 = vmatmul.f32.gmra.mxu0 %v4487
    %v4509 = vpop.f32.mrf.mxu0
    %v4510 = vadd.f32 0.0, %v4509
    %4511 = vmatmul.f32.gmra.mxu0 %v4490
    %v4512 = vpop.f32.mrf.mxu0
    %v4513 = vadd.f32 0.0, %v4512
    %4514 = vdwg.mxu0
    %v4515 = vtanh.pop %v4510
    %v4516 = vtanh.pop %v4513
    %v4518 = vsel %vm199, %v167, 0
    %4520 = vmatpush.msra.mxu0 0.0
    %4521 = vmatpush.msra.mxu0 0.0
    %4522 = vmatpush.msra.mxu0 0.0
    %4523 = vmatpush.msra.mxu0 0.0
    %4524 = vmatpush.msra.mxu0 0.0
    %4525 = vmatpush.msra.mxu0 0.0
    %4526 = vmatpush.msra.mxu0 0.0
    %4527 = vmatpush.msra.mxu0 0.0
    %4528 = vmatpush.msra.mxu0 0.0
    %4529 = vmatpush.msra.mxu0 0.0
    %4530 = vmatpush.msra.mxu0 0.0
    %4531 = vmatpush.msra.mxu0 0.0
    %4532 = vmatpush.msra.mxu0 0.0
    %4533 = vmatpush.msra.mxu0 0.0
    %4534 = vmatpush.msra.mxu0 %v4516
    %4535 = vmatpush.msra.mxu0 %v4515
    %4536 = vmatmul.f32.gmra.mxu0 %v4518
    %v4537 = vpop.f32.mrf.mxu0
    %v4538 = vadd.f32 0.0, %v4537
    %4539 = vdwg.mxu0
    %4540 = vst [vmem:[#allocation4] sm:$0x7] %v4538
    %v4541 = vld [vmem:[%s1971] sm:$0xff]
    %v4542 = vld [vmem:[%s1971 + $0x8] sm:$0xff]
    %v4543 = vld [vmem:[%s1971 + $0x10] sm:$0xff]
    %v4544 = vld [vmem:[%s1971 + $0x18] sm:$0xff]
    %4545 = vmatpush.msra.mxu0 0.0
    %4546 = vmatpush.msra.mxu0 0.0
    %4547 = vmatpush.msra.mxu0 0.0
    %4548 = vmatpush.msra.mxu0 0.0
    %4549 = vmatpush.msra.mxu0 0.0
    %4550 = vmatpush.msra.mxu0 0.0
    %4551 = vmatpush.msra.mxu0 0.0
    %4552 = vmatpush.msra.mxu0 0.0
    %4553 = vmatpush.msra.mxu0 0.0
    %4554 = vmatpush.msra.mxu0 0.0
    %4555 = vmatpush.msra.mxu0 0.0
    %4556 = vmatpush.msra.mxu0 0.0
    %4557 = vmatpush.msra.mxu0 %v4544
    %4558 = vmatpush.msra.mxu0 %v4543
    %4559 = vmatpush.msra.mxu0 %v4542
    %4560 = vmatpush.msra.mxu0 %v4541
    %4561 = vmatmul.f32.gmra.mxu0 %v4487
    %v4562 = vpop.f32.mrf.mxu0
    %v4563 = vadd.f32 0.0, %v4562
    %4564 = vmatmul.f32.gmra.mxu0 %v4490
    %v4565 = vpop.f32.mrf.mxu0
    %v4566 = vadd.f32 0.0, %v4565
    %4567 = vdwg.mxu0
    %v4568 = vtanh.pop %v4563
    %v4569 = vtanh.pop %v4566
    %4570 = vmatpush.msra.mxu0 0.0
    %4571 = vmatpush.msra.mxu0 0.0
    %4572 = vmatpush.msra.mxu0 0.0
    %4573 = vmatpush.msra.mxu0 0.0
    %4574 = vmatpush.msra.mxu0 0.0
    %4575 = vmatpush.msra.mxu0 0.0
    %4576 = vmatpush.msra.mxu0 0.0
    %4577 = vmatpush.msra.mxu0 0.0
    %4578 = vmatpush.msra.mxu0 0.0
    %4579 = vmatpush.msra.mxu0 0.0
    %4580 = vmatpush.msra.mxu0 0.0
    %4581 = vmatpush.msra.mxu0 0.0
    %4582 = vmatpush.msra.mxu0 0.0
    %4583 = vmatpush.msra.mxu0 0.0
    %4584 = vmatpush.msra.mxu0 %v4569
    %4585 = vmatpush.msra.mxu0 %v4568
    %4586 = vmatmul.f32.gmra.mxu0 %v4518
    %v4587 = vpop.f32.mrf.mxu0
    %v4588 = vadd.f32 0.0, %v4587
    %4589 = vdwg.mxu0
    %s4590 = scalar_lea.vmem [#allocation4], 4
    %4591 = vst [vmem:[%s4590] sm:$0x7] %v4588
    %v4592 = vld [vmem:[%s2393] sm:$0xff]
    %v4593 = vld [vmem:[%s2393 + $0x8] sm:$0xff]
    %v4594 = vld [vmem:[%s2393 + $0x10] sm:$0xff]
    %v4595 = vld [vmem:[%s2393 + $0x18] sm:$0xff]
    %4596 = vmatpush.msra.mxu0 0.0
    %4597 = vmatpush.msra.mxu0 0.0
    %4598 = vmatpush.msra.mxu0 0.0
    %4599 = vmatpush.msra.mxu0 0.0
    %4600 = vmatpush.msra.mxu0 0.0
    %4601 = vmatpush.msra.mxu0 0.0
    %4602 = vmatpush.msra.mxu0 0.0
    %4603 = vmatpush.msra.mxu0 0.0
    %4604 = vmatpush.msra.mxu0 0.0
    %4605 = vmatpush.msra.mxu0 0.0
    %4606 = vmatpush.msra.mxu0 0.0
    %4607 = vmatpush.msra.mxu0 0.0
    %4608 = vmatpush.msra.mxu0 %v4595
    %4609 = vmatpush.msra.mxu0 %v4594
    %4610 = vmatpush.msra.mxu0 %v4593
    %4611 = vmatpush.msra.mxu0 %v4592
    %4612 = vmatmul.f32.gmra.mxu0 %v4487
    %v4613 = vpop.f32.mrf.mxu0
    %v4614 = vadd.f32 0.0, %v4613
    %4615 = vmatmul.f32.gmra.mxu0 %v4490
    %v4616 = vpop.f32.mrf.mxu0
    %v4617 = vadd.f32 0.0, %v4616
    %4618 = vdwg.mxu0
    %v4619 = vtanh.pop %v4614
    %v4620 = vtanh.pop %v4617
    %4621 = vmatpush.msra.mxu0 0.0
    %4622 = vmatpush.msra.mxu0 0.0
    %4623 = vmatpush.msra.mxu0 0.0
    %4624 = vmatpush.msra.mxu0 0.0
    %4625 = vmatpush.msra.mxu0 0.0
    %4626 = vmatpush.msra.mxu0 0.0
    %4627 = vmatpush.msra.mxu0 0.0
    %4628 = vmatpush.msra.mxu0 0.0
    %4629 = vmatpush.msra.mxu0 0.0
    %4630 = vmatpush.msra.mxu0 0.0
    %4631 = vmatpush.msra.mxu0 0.0
    %4632 = vmatpush.msra.mxu0 0.0
    %4633 = vmatpush.msra.mxu0 0.0
    %4634 = vmatpush.msra.mxu0 0.0
    %4635 = vmatpush.msra.mxu0 %v4620
    %4636 = vmatpush.msra.mxu0 %v4619
    %4637 = vmatmul.f32.gmra.mxu0 %v4518
    %v4638 = vpop.f32.mrf.mxu0
    %v4639 = vadd.f32 0.0, %v4638
    %4640 = vdwg.mxu0
    %s4641 = scalar_lea.vmem [#allocation4], 8
    %4642 = vst [vmem:[%s4641] sm:$0x7] %v4639
    %v4643 = vld [vmem:[%s2815] sm:$0xff]
    %v4644 = vld [vmem:[%s2815 + $0x8] sm:$0xff]
    %v4645 = vld [vmem:[%s2815 + $0x10] sm:$0xff]
    %v4646 = vld [vmem:[%s2815 + $0x18] sm:$0xff]
    %4647 = vmatpush.msra.mxu0 0.0
    %4648 = vmatpush.msra.mxu0 0.0
    %4649 = vmatpush.msra.mxu0 0.0
    %4650 = vmatpush.msra.mxu0 0.0
    %4651 = vmatpush.msra.mxu0 0.0
    %4652 = vmatpush.msra.mxu0 0.0
    %4653 = vmatpush.msra.mxu0 0.0
    %4654 = vmatpush.msra.mxu0 0.0
    %4655 = vmatpush.msra.mxu0 0.0
    %4656 = vmatpush.msra.mxu0 0.0
    %4657 = vmatpush.msra.mxu0 0.0
    %4658 = vmatpush.msra.mxu0 0.0
    %4659 = vmatpush.msra.mxu0 %v4646
    %4660 = vmatpush.msra.mxu0 %v4645
    %4661 = vmatpush.msra.mxu0 %v4644
    %4662 = vmatpush.msra.mxu0 %v4643
    %4663 = vmatmul.f32.gmra.mxu0 %v4487
    %v4664 = vpop.f32.mrf.mxu0
    %v4665 = vadd.f32 0.0, %v4664
    %4666 = vmatmul.f32.gmra.mxu0 %v4490
    %v4667 = vpop.f32.mrf.mxu0
    %v4668 = vadd.f32 0.0, %v4667
    %4669 = vdwg.mxu0
    %v4670 = vtanh.pop %v4665
    %v4671 = vtanh.pop %v4668
    %4672 = vmatpush.msra.mxu0 0.0
    %4673 = vmatpush.msra.mxu0 0.0
    %4674 = vmatpush.msra.mxu0 0.0
    %4675 = vmatpush.msra.mxu0 0.0
    %4676 = vmatpush.msra.mxu0 0.0
    %4677 = vmatpush.msra.mxu0 0.0
    %4678 = vmatpush.msra.mxu0 0.0
    %4679 = vmatpush.msra.mxu0 0.0
    %4680 = vmatpush.msra.mxu0 0.0
    %4681 = vmatpush.msra.mxu0 0.0
    %4682 = vmatpush.msra.mxu0 0.0
    %4683 = vmatpush.msra.mxu0 0.0
    %4684 = vmatpush.msra.mxu0 0.0
    %4685 = vmatpush.msra.mxu0 0.0
    %4686 = vmatpush.msra.mxu0 %v4671
    %4687 = vmatpush.msra.mxu0 %v4670
    %4688 = vmatmul.f32.gmra.mxu0 %v4518
    %v4689 = vpop.f32.mrf.mxu0
    %v4690 = vadd.f32 0.0, %v4689
    %4691 = vdwg.mxu0
    %s4692 = scalar_lea.vmem [#allocation4], 12
    %4693 = vst [vmem:[%s4692] sm:$0x7] %v4690
    %v4694 = vld [vmem:[%s2818] sm:$0xff]
    %v4695 = vld [vmem:[%s2818 + $0x8] sm:$0xff]
    %v4696 = vld [vmem:[%s2818 + $0x10] sm:$0xff]
    %v4697 = vld [vmem:[%s2818 + $0x18] sm:$0xff]
    %4698 = vmatpush.msra.mxu0 0.0
    %4699 = vmatpush.msra.mxu0 0.0
    %4700 = vmatpush.msra.mxu0 0.0
    %4701 = vmatpush.msra.mxu0 0.0
    %4702 = vmatpush.msra.mxu0 0.0
    %4703 = vmatpush.msra.mxu0 0.0
    %4704 = vmatpush.msra.mxu0 0.0
    %4705 = vmatpush.msra.mxu0 0.0
    %4706 = vmatpush.msra.mxu0 0.0
    %4707 = vmatpush.msra.mxu0 0.0
    %4708 = vmatpush.msra.mxu0 0.0
    %4709 = vmatpush.msra.mxu0 0.0
    %4710 = vmatpush.msra.mxu0 %v4697
    %4711 = vmatpush.msra.mxu0 %v4696
    %4712 = vmatpush.msra.mxu0 %v4695
    %4713 = vmatpush.msra.mxu0 %v4694
    %4714 = vmatmul.f32.gmra.mxu0 %v4487
    %v4715 = vpop.f32.mrf.mxu0
    %v4716 = vadd.f32 0.0, %v4715
    %4717 = vmatmul.f32.gmra.mxu0 %v4490
    %v4718 = vpop.f32.mrf.mxu0
    %v4719 = vadd.f32 0.0, %v4718
    %4720 = vdwg.mxu0
    %v4721 = vtanh.pop %v4716
    %v4722 = vtanh.pop %v4719
    %4723 = vmatpush.msra.mxu0 0.0
    %4724 = vmatpush.msra.mxu0 0.0
    %4725 = vmatpush.msra.mxu0 0.0
    %4726 = vmatpush.msra.mxu0 0.0
    %4727 = vmatpush.msra.mxu0 0.0
    %4728 = vmatpush.msra.mxu0 0.0
    %4729 = vmatpush.msra.mxu0 0.0
    %4730 = vmatpush.msra.mxu0 0.0
    %4731 = vmatpush.msra.mxu0 0.0
    %4732 = vmatpush.msra.mxu0 0.0
    %4733 = vmatpush.msra.mxu0 0.0
    %4734 = vmatpush.msra.mxu0 0.0
    %4735 = vmatpush.msra.mxu0 0.0
    %4736 = vmatpush.msra.mxu0 0.0
    %4737 = vmatpush.msra.mxu0 %v4722
    %4738 = vmatpush.msra.mxu0 %v4721
    %4739 = vmatmul.f32.gmra.mxu0 %v4518
    %v4740 = vpop.f32.mrf.mxu0
    %v4741 = vadd.f32 0.0, %v4740
    %4742 = vdwg.mxu0
    %s4743 = scalar_lea.vmem [#allocation4], 16
    %4744 = vst [vmem:[%s4743] sm:$0x7] %v4741
    %v4745 = vld [vmem:[%s2396] sm:$0xff]
    %v4746 = vld [vmem:[%s2396 + $0x8] sm:$0xff]
    %v4747 = vld [vmem:[%s2396 + $0x10] sm:$0xff]
    %v4748 = vld [vmem:[%s2396 + $0x18] sm:$0xff]
    %4749 = vmatpush.msra.mxu0 0.0
    %4750 = vmatpush.msra.mxu0 0.0
    %4751 = vmatpush.msra.mxu0 0.0
    %4752 = vmatpush.msra.mxu0 0.0
    %4753 = vmatpush.msra.mxu0 0.0
    %4754 = vmatpush.msra.mxu0 0.0
    %4755 = vmatpush.msra.mxu0 0.0
    %4756 = vmatpush.msra.mxu0 0.0
    %4757 = vmatpush.msra.mxu0 0.0
    %4758 = vmatpush.msra.mxu0 0.0
    %4759 = vmatpush.msra.mxu0 0.0
    %4760 = vmatpush.msra.mxu0 0.0
    %4761 = vmatpush.msra.mxu0 %v4748
    %4762 = vmatpush.msra.mxu0 %v4747
    %4763 = vmatpush.msra.mxu0 %v4746
    %4764 = vmatpush.msra.mxu0 %v4745
    %4765 = vmatmul.f32.gmra.mxu0 %v4487
    %v4766 = vpop.f32.mrf.mxu0
    %v4767 = vadd.f32 0.0, %v4766
    %4768 = vmatmul.f32.gmra.mxu0 %v4490
    %v4769 = vpop.f32.mrf.mxu0
    %v4770 = vadd.f32 0.0, %v4769
    %4771 = vdwg.mxu0
    %v4772 = vtanh.pop %v4767
    %v4773 = vtanh.pop %v4770
    %4774 = vmatpush.msra.mxu0 0.0
    %4775 = vmatpush.msra.mxu0 0.0
    %4776 = vmatpush.msra.mxu0 0.0
    %4777 = vmatpush.msra.mxu0 0.0
    %4778 = vmatpush.msra.mxu0 0.0
    %4779 = vmatpush.msra.mxu0 0.0
    %4780 = vmatpush.msra.mxu0 0.0
    %4781 = vmatpush.msra.mxu0 0.0
    %4782 = vmatpush.msra.mxu0 0.0
    %4783 = vmatpush.msra.mxu0 0.0
    %4784 = vmatpush.msra.mxu0 0.0
    %4785 = vmatpush.msra.mxu0 0.0
    %4786 = vmatpush.msra.mxu0 0.0
    %4787 = vmatpush.msra.mxu0 0.0
    %4788 = vmatpush.msra.mxu0 %v4773
    %4789 = vmatpush.msra.mxu0 %v4772
    %4790 = vmatmul.f32.gmra.mxu0 %v4518
    %v4791 = vpop.f32.mrf.mxu0
    %v4792 = vadd.f32 0.0, %v4791
    %4793 = vdwg.mxu0
    %s4794 = scalar_lea.vmem [#allocation4], 20
    %4795 = vst [vmem:[%s4794] sm:$0x7] %v4792
    %v4796 = vld [vmem:[%s1974] sm:$0xff]
    %v4797 = vld [vmem:[%s1974 + $0x8] sm:$0xff]
    %v4798 = vld [vmem:[%s1974 + $0x10] sm:$0xff]
    %v4799 = vld [vmem:[%s1974 + $0x18] sm:$0xff]
    %4800 = vmatpush.msra.mxu0 0.0
    %4801 = vmatpush.msra.mxu0 0.0
    %4802 = vmatpush.msra.mxu0 0.0
    %4803 = vmatpush.msra.mxu0 0.0
    %4804 = vmatpush.msra.mxu0 0.0
    %4805 = vmatpush.msra.mxu0 0.0
    %4806 = vmatpush.msra.mxu0 0.0
    %4807 = vmatpush.msra.mxu0 0.0
    %4808 = vmatpush.msra.mxu0 0.0
    %4809 = vmatpush.msra.mxu0 0.0
    %4810 = vmatpush.msra.mxu0 0.0
    %4811 = vmatpush.msra.mxu0 0.0
    %4812 = vmatpush.msra.mxu0 %v4799
    %4813 = vmatpush.msra.mxu0 %v4798
    %4814 = vmatpush.msra.mxu0 %v4797
    %4815 = vmatpush.msra.mxu0 %v4796
    %4816 = vmatmul.f32.gmra.mxu0 %v4487
    %v4817 = vpop.f32.mrf.mxu0
    %v4818 = vadd.f32 0.0, %v4817
    %4819 = vmatmul.f32.gmra.mxu0 %v4490
    %v4820 = vpop.f32.mrf.mxu0
    %v4821 = vadd.f32 0.0, %v4820
    %4822 = vdwg.mxu0
    %v4823 = vtanh.pop %v4818
    %v4824 = vtanh.pop %v4821
    %4825 = vmatpush.msra.mxu0 0.0
    %4826 = vmatpush.msra.mxu0 0.0
    %4827 = vmatpush.msra.mxu0 0.0
    %4828 = vmatpush.msra.mxu0 0.0
    %4829 = vmatpush.msra.mxu0 0.0
    %4830 = vmatpush.msra.mxu0 0.0
    %4831 = vmatpush.msra.mxu0 0.0
    %4832 = vmatpush.msra.mxu0 0.0
    %4833 = vmatpush.msra.mxu0 0.0
    %4834 = vmatpush.msra.mxu0 0.0
    %4835 = vmatpush.msra.mxu0 0.0
    %4836 = vmatpush.msra.mxu0 0.0
    %4837 = vmatpush.msra.mxu0 0.0
    %4838 = vmatpush.msra.mxu0 0.0
    %4839 = vmatpush.msra.mxu0 %v4824
    %4840 = vmatpush.msra.mxu0 %v4823
    %4841 = vmatmul.f32.gmra.mxu0 %v4518
    %v4842 = vpop.f32.mrf.mxu0
    %v4843 = vadd.f32 0.0, %v4842
    %4844 = vdwg.mxu0
    %s4845 = scalar_lea.vmem [#allocation4], 24
    %4846 = vst [vmem:[%s4845] sm:$0x7] %v4843
    %v4847 = vld [vmem:[%s1552] sm:$0xff]
    %v4848 = vld [vmem:[%s1552 + $0x8] sm:$0xff]
    %v4849 = vld [vmem:[%s1552 + $0x10] sm:$0xff]
    %v4850 = vld [vmem:[%s1552 + $0x18] sm:$0xff]
    %4851 = vmatpush.msra.mxu0 0.0
    %4852 = vmatpush.msra.mxu0 0.0
    %4853 = vmatpush.msra.mxu0 0.0
    %4854 = vmatpush.msra.mxu0 0.0
    %4855 = vmatpush.msra.mxu0 0.0
    %4856 = vmatpush.msra.mxu0 0.0
    %4857 = vmatpush.msra.mxu0 0.0
    %4858 = vmatpush.msra.mxu0 0.0
    %4859 = vmatpush.msra.mxu0 0.0
    %4860 = vmatpush.msra.mxu0 0.0
    %4861 = vmatpush.msra.mxu0 0.0
    %4862 = vmatpush.msra.mxu0 0.0
    %4863 = vmatpush.msra.mxu0 %v4850
    %4864 = vmatpush.msra.mxu0 %v4849
    %4865 = vmatpush.msra.mxu0 %v4848
    %4866 = vmatpush.msra.mxu0 %v4847
    %4867 = vmatmul.f32.gmra.mxu0 %v4487
    %v4868 = vpop.f32.mrf.mxu0
    %v4869 = vadd.f32 0.0, %v4868
    %4870 = vmatmul.f32.gmra.mxu0 %v4490
    %v4871 = vpop.f32.mrf.mxu0
    %v4872 = vadd.f32 0.0, %v4871
    %4873 = vdwg.mxu0
    %v4874 = vtanh.pop %v4869
    %v4875 = vtanh.pop %v4872
    %4876 = vmatpush.msra.mxu0 0.0
    %4877 = vmatpush.msra.mxu0 0.0
    %4878 = vmatpush.msra.mxu0 0.0
    %4879 = vmatpush.msra.mxu0 0.0
    %4880 = vmatpush.msra.mxu0 0.0
    %4881 = vmatpush.msra.mxu0 0.0
    %4882 = vmatpush.msra.mxu0 0.0
    %4883 = vmatpush.msra.mxu0 0.0
    %4884 = vmatpush.msra.mxu0 0.0
    %4885 = vmatpush.msra.mxu0 0.0
    %4886 = vmatpush.msra.mxu0 0.0
    %4887 = vmatpush.msra.mxu0 0.0
    %4888 = vmatpush.msra.mxu0 0.0
    %4889 = vmatpush.msra.mxu0 0.0
    %4890 = vmatpush.msra.mxu0 %v4875
    %4891 = vmatpush.msra.mxu0 %v4874
    %4892 = vmatmul.f32.gmra.mxu0 %v4518
    %v4893 = vpop.f32.mrf.mxu0
    %v4894 = vadd.f32 0.0, %v4893
    %4895 = vdwg.mxu0
    %s4896 = scalar_lea.vmem [#allocation4], 28
    %4897 = vst [vmem:[%s4896] sm:$0x7] %v4894
    %v4898 = vld [vmem:[%s1] sm:$0x1]
    %v4899 = vld [vmem:[%s1 + $0x1] sm:$0x1]
    %v4900 = vld [vmem:[%s1 + $0x2] sm:$0x1]
    %v4901 = vld [vmem:[%s1 + $0x3] sm:$0x1]
    %v4902 = vld [vmem:[%s1 + $0x4] sm:$0x1]
    %v4903 = vld [vmem:[%s1 + $0x5] sm:$0x1]
    %v4904 = vld [vmem:[%s1 + $0x6] sm:$0x1]
    %v4905 = vld [vmem:[%s1 + $0x7] sm:$0x1]
    %v4906 = vld [vmem:[#allocation4] sm:$0x7]
    %v4907 = vld [vmem:[#allocation4 + $0x4] sm:$0x7]
    %v4908 = vld [vmem:[#allocation4 + $0x8] sm:$0x7]
    %v4909 = vld [vmem:[#allocation4 + $0xc] sm:$0x7]
    %v4910 = vld [vmem:[#allocation4 + $0x10] sm:$0x7]
    %v4911 = vld [vmem:[#allocation4 + $0x14] sm:$0x7]
    %v4912 = vld [vmem:[#allocation4 + $0x18] sm:$0x7]
    %v4913 = vld [vmem:[#allocation4 + $0x1c] sm:$0x7]
    %v4922 = vperm.slane %v4898, 0
    %v4923 = vperm.slane %v4899, 0
    %v4924 = vperm.slane %v4900, 0
    %v4925 = vperm.slane %v4901, 0
    %v4926 = vperm.slane %v4902, 0
    %v4927 = vperm.slane %v4903, 0
    %v4928 = vperm.slane %v4904, 0
    %v4929 = vperm.slane %v4905, 0
    %v4938 = vmul.f32 %v4906, %v4922
    %v4939 = vmul.f32 %v4907, %v4923
    %v4940 = vmul.f32 %v4908, %v4924
    %v4941 = vmul.f32 %v4909, %v4925
    %v4942 = vmul.f32 %v4910, %v4926
    %v4943 = vmul.f32 %v4911, %v4927
    %v4944 = vmul.f32 %v4912, %v4928
    %v4945 = vmul.f32 %v4913, %v4929
    %v4946 = vsub.f32 1.0, %v4898
    %v4947 = vsub.f32 1.0, %v4899
    %v4948 = vsub.f32 1.0, %v4900
    %v4949 = vsub.f32 1.0, %v4901
    %v4950 = vsub.f32 1.0, %v4902
    %v4951 = vsub.f32 1.0, %v4903
    %v4952 = vsub.f32 1.0, %v4904
    %v4953 = vsub.f32 1.0, %v4905
    %v4954 = vmul.f32 %v4946, 1e+30
    %v4955 = vmul.f32 %v4947, 1e+30
    %v4956 = vmul.f32 %v4948, 1e+30
    %v4957 = vmul.f32 %v4949, 1e+30
    %v4958 = vmul.f32 %v4950, 1e+30
    %v4959 = vmul.f32 %v4951, 1e+30
    %v4960 = vmul.f32 %v4952, 1e+30
    %v4961 = vmul.f32 %v4953, 1e+30
    %v4970 = vperm.slane %v4954, 0
    %v4971 = vperm.slane %v4955, 0
    %v4972 = vperm.slane %v4956, 0
    %v4973 = vperm.slane %v4957, 0
    %v4974 = vperm.slane %v4958, 0
    %v4975 = vperm.slane %v4959, 0
    %v4976 = vperm.slane %v4960, 0
    %v4977 = vperm.slane %v4961, 0
    %v4986 = vsub.f32 %v4938, %v4970
    %v4987 = vsub.f32 %v4939, %v4971
    %v4988 = vsub.f32 %v4940, %v4972
    %v4989 = vsub.f32 %v4941, %v4973
    %v4990 = vsub.f32 %v4942, %v4974
    %v4991 = vsub.f32 %v4943, %v4975
    %v4992 = vsub.f32 %v4944, %v4976
    %v4993 = vsub.f32 %v4945, %v4977
    %vm4994 = vcmask 1042432
    %v4995 = vsel %vm4994, %v4986, -inf
    %v4996 = vsel %vm4994, %v4987, -inf
    %v4997 = vsel %vm4994, %v4988, -inf
    %v4998 = vsel %vm4994, %v4989, -inf
    %v4999 = vsel %vm4994, %v4990, -inf
    %v5000 = vmax.f32 %v4995, %v4999
    %v5001 = vsel %vm4994, %v4991, -inf
    %v5002 = vmax.f32 %v4996, %v5001
    %v5003 = vsel %vm4994, %v4992, -inf
    %v5004 = vmax.f32 %v4997, %v5003
    %v5005 = vsel %vm4994, %v4993, -inf
    %v5006 = vmax.f32 %v4998, %v5005
    %v5007 = vmax.f32 %v5000, %v5002
    %v5008 = vmax.f32 %v5004, %v5006
    %v5009 = vmax.f32 %v5007, %v5008
    %v5010 = vsub.f32 %v4986, %v5009
    %v5011 = vsub.f32 %v4987, %v5009
    %v5012 = vsub.f32 %v4988, %v5009
    %v5013 = vsub.f32 %v4989, %v5009
    %v5014 = vsub.f32 %v4990, %v5009
    %v5015 = vsub.f32 %v4991, %v5009
    %v5016 = vsub.f32 %v4992, %v5009
    %v5017 = vsub.f32 %v4993, %v5009
    %v5018 = vmul.f32 %v5010, 1.442695
    %v5019 = vpow.pop %v5018
    %v5020 = vmul.f32 %v5011, 1.442695
    %v5021 = vpow.pop %v5020
    %v5022 = vmul.f32 %v5012, 1.442695
    %v5023 = vpow.pop %v5022
    %v5024 = vmul.f32 %v5013, 1.442695
    %v5025 = vpow.pop %v5024
    %v5026 = vmul.f32 %v5014, 1.442695
    %v5027 = vpow.pop %v5026
    %v5028 = vmul.f32 %v5015, 1.442695
    %v5029 = vpow.pop %v5028
    %v5030 = vmul.f32 %v5016, 1.442695
    %v5031 = vpow.pop %v5030
    %v5032 = vmul.f32 %v5017, 1.442695
    %v5033 = vpow.pop %v5032
    %v5034 = vsel %vm4994, %v5019, 0.0
    %v5035 = vsel %vm4994, %v5021, 0.0
    %v5036 = vadd.f32 %v5034, %v5035
    %v5037 = vsel %vm4994, %v5023, 0.0
    %v5038 = vadd.f32 %v5036, %v5037
    %v5039 = vsel %vm4994, %v5025, 0.0
    %v5040 = vadd.f32 %v5038, %v5039
    %v5041 = vsel %vm4994, %v5027, 0.0
    %v5042 = vadd.f32 %v5040, %v5041
    %v5043 = vsel %vm4994, %v5029, 0.0
    %v5044 = vadd.f32 %v5042, %v5043
    %v5045 = vsel %vm4994, %v5031, 0.0
    %v5046 = vadd.f32 %v5044, %v5045
    %v5047 = vsel %vm4994, %v5033, 0.0
    %v5048 = vadd.f32 %v5046, %v5047
    %v5049 = vrcp.pop %v5048
    %v5050 = vmul.f32 %v5019, %v5049
    %v5051 = vmul.f32 %v5021, %v5049
    %v5052 = vmul.f32 %v5023, %v5049
    %v5053 = vmul.f32 %v5025, %v5049
    %v5054 = vmul.f32 %v5027, %v5049
    %v5055 = vmul.f32 %v5029, %v5049
    %v5056 = vmul.f32 %v5031, %v5049
    %v5057 = vmul.f32 %v5033, %v5049
    %v5058 = vsel %vm4994, %v5050, 0.0
    %v5059 = vrot.slane %v5058, 4
    %v5060 = vadd.f32 %v5058, %v5059
    %v5061 = vrot.slane %v5060, 2
    %v5062 = vadd.f32 %v5060, %v5061
    %v5063 = vrot.slane %v5062, 1
    %v5064 = vadd.f32 %v5062, %v5063
    %v5065 = vsel %vm4994, %v5051, 0.0
    %v5066 = vrot.slane %v5065, 4
    %v5067 = vadd.f32 %v5065, %v5066
    %v5068 = vrot.slane %v5067, 2
    %v5069 = vadd.f32 %v5067, %v5068
    %v5070 = vrot.slane %v5069, 1
    %v5071 = vadd.f32 %v5069, %v5070
    %v5072 = vsel %vm4994, %v5052, 0.0
    %v5073 = vrot.slane %v5072, 4
    %v5074 = vadd.f32 %v5072, %v5073
    %v5075 = vrot.slane %v5074, 2
    %v5076 = vadd.f32 %v5074, %v5075
    %v5077 = vrot.slane %v5076, 1
    %v5078 = vadd.f32 %v5076, %v5077
    %v5079 = vsel %vm4994, %v5053, 0.0
    %v5080 = vrot.slane %v5079, 4
    %v5081 = vadd.f32 %v5079, %v5080
    %v5082 = vrot.slane %v5081, 2
    %v5083 = vadd.f32 %v5081, %v5082
    %v5084 = vrot.slane %v5083, 1
    %v5085 = vadd.f32 %v5083, %v5084
    %v5086 = vsel %vm4994, %v5054, 0.0
    %v5087 = vrot.slane %v5086, 4
    %v5088 = vadd.f32 %v5086, %v5087
    %v5089 = vrot.slane %v5088, 2
    %v5090 = vadd.f32 %v5088, %v5089
    %v5091 = vrot.slane %v5090, 1
    %v5092 = vadd.f32 %v5090, %v5091
    %v5093 = vsel %vm4994, %v5055, 0.0
    %v5094 = vrot.slane %v5093, 4
    %v5095 = vadd.f32 %v5093, %v5094
    %v5096 = vrot.slane %v5095, 2
    %v5097 = vadd.f32 %v5095, %v5096
    %v5098 = vrot.slane %v5097, 1
    %v5099 = vadd.f32 %v5097, %v5098
    %v5100 = vsel %vm4994, %v5056, 0.0
    %v5101 = vrot.slane %v5100, 4
    %v5102 = vadd.f32 %v5100, %v5101
    %v5103 = vrot.slane %v5102, 2
    %v5104 = vadd.f32 %v5102, %v5103
    %v5105 = vrot.slane %v5104, 1
    %v5106 = vadd.f32 %v5104, %v5105
    %v5107 = vsel %vm4994, %v5057, 0.0
    %v5108 = vrot.slane %v5107, 4
    %v5109 = vadd.f32 %v5107, %v5108
    %v5110 = vrot.slane %v5109, 2
    %v5111 = vadd.f32 %v5109, %v5110
    %v5112 = vrot.slane %v5111, 1
    %v5113 = vadd.f32 %v5111, %v5112
    %v5114 = vmul.f32 %v5064, 0.33333334
    %v5115 = vmul.f32 %v5071, 0.33333334
    %v5116 = vmul.f32 %v5078, 0.33333334
    %v5117 = vmul.f32 %v5085, 0.33333334
    %v5118 = vmul.f32 %v5092, 0.33333334
    %v5119 = vmul.f32 %v5099, 0.33333334
    %v5120 = vmul.f32 %v5106, 0.33333334
    %v5121 = vmul.f32 %v5113, 0.33333334
    %v5122 = vld [vmem:[#allocation3] sm:$0xff]
    %v5123 = vld [vmem:[#allocation3 + $0x8] sm:$0xff]
    %v5124 = vld [vmem:[#allocation3 + $0x10] sm:$0xff]
    %v5125 = vld [vmem:[#allocation3 + $0x18] sm:$0xff]
    %v5126 = vld [vmem:[#allocation3 + $0x20] sm:$0xff]
    %v5127 = vld [vmem:[#allocation3 + $0x28] sm:$0xff]
    %v5128 = vld [vmem:[#allocation3 + $0x30] sm:$0xff]
    %v5129 = vld [vmem:[#allocation3 + $0x38] sm:$0xff]
    %v5130 = vld [vmem:[#allocation3 + $0x40] sm:$0xff]
    %v5131 = vld [vmem:[#allocation3 + $0x48] sm:$0xff]
    %v5132 = vld [vmem:[#allocation3 + $0x50] sm:$0xff]
    %v5133 = vld [vmem:[#allocation3 + $0x58] sm:$0xff]
    %v5134 = vld [vmem:[#allocation3 + $0x60] sm:$0xff]
    %v5135 = vld [vmem:[#allocation3 + $0x68] sm:$0xff]
    %v5136 = vld [vmem:[#allocation3 + $0x70] sm:$0xff]
    %v5137 = vld [vmem:[#allocation3 + $0x78] sm:$0xff]
    %v5138 = vld [vmem:[#allocation3 + $0x80] sm:$0xff]
    %v5139 = vld [vmem:[#allocation3 + $0x88] sm:$0xff]
    %v5140 = vld [vmem:[#allocation3 + $0x90] sm:$0xff]
    %v5141 = vld [vmem:[#allocation3 + $0x98] sm:$0xff]
    %v5142 = vld [vmem:[#allocation3 + $0xa0] sm:$0xff]
    %v5143 = vld [vmem:[#allocation3 + $0xa8] sm:$0xff]
    %v5144 = vld [vmem:[#allocation3 + $0xb0] sm:$0xff]
    %v5145 = vld [vmem:[#allocation3 + $0xb8] sm:$0xff]
    %v5146 = vld [vmem:[#allocation3 + $0xc0] sm:$0xff]
    %v5147 = vld [vmem:[#allocation3 + $0xc8] sm:$0xff]
    %v5148 = vld [vmem:[#allocation3 + $0xd0] sm:$0xff]
    %v5149 = vld [vmem:[#allocation3 + $0xd8] sm:$0xff]
    %v5150 = vld [vmem:[#allocation3 + $0xe0] sm:$0xff]
    %v5151 = vld [vmem:[#allocation3 + $0xe8] sm:$0xff]
    %v5152 = vld [vmem:[#allocation3 + $0xf0] sm:$0xff]
    %v5153 = vld [vmem:[#allocation3 + $0xf8] sm:$0xff]
    %v5154 = vmul.f32 %v5114, %v5122
    %v5155 = vmul.f32 %v5114, %v5123
    %v5156 = vmul.f32 %v5114, %v5124
    %v5157 = vmul.f32 %v5114, %v5125
    %v5158 = vmul.f32 %v5115, %v5126
    %v5159 = vmul.f32 %v5115, %v5127
    %v5160 = vmul.f32 %v5115, %v5128
    %v5161 = vmul.f32 %v5115, %v5129
    %v5162 = vmul.f32 %v5116, %v5130
    %v5163 = vmul.f32 %v5116, %v5131
    %v5164 = vmul.f32 %v5116, %v5132
    %v5165 = vmul.f32 %v5116, %v5133
    %v5166 = vmul.f32 %v5117, %v5134
    %v5167 = vmul.f32 %v5117, %v5135
    %v5168 = vmul.f32 %v5117, %v5136
    %v5169 = vmul.f32 %v5117, %v5137
    %v5170 = vmul.f32 %v5118, %v5138
    %v5171 = vmul.f32 %v5118, %v5139
    %v5172 = vmul.f32 %v5118, %v5140
    %v5173 = vmul.f32 %v5118, %v5141
    %v5174 = vmul.f32 %v5119, %v5142
    %v5175 = vmul.f32 %v5119, %v5143
    %v5176 = vmul.f32 %v5119, %v5144
    %v5177 = vmul.f32 %v5119, %v5145
    %v5178 = vmul.f32 %v5120, %v5146
    %v5179 = vmul.f32 %v5120, %v5147
    %v5180 = vmul.f32 %v5120, %v5148
    %v5181 = vmul.f32 %v5120, %v5149
    %v5182 = vmul.f32 %v5121, %v5150
    %v5183 = vmul.f32 %v5121, %v5151
    %v5184 = vmul.f32 %v5121, %v5152
    %v5185 = vmul.f32 %v5121, %v5153
    %v5186 = vadd.f32 %v5154, %v5158
    %v5187 = vadd.f32 %v5186, %v5162
    %v5188 = vadd.f32 %v5187, %v5166
    %v5189 = vadd.f32 %v5188, %v5170
    %v5190 = vadd.f32 %v5189, %v5174
    %v5191 = vadd.f32 %v5190, %v5178
    %v5192 = vadd.f32 %v5191, %v5182
    %v5193 = vadd.f32 %v5155, %v5159
    %v5194 = vadd.f32 %v5193, %v5163
    %v5195 = vadd.f32 %v5194, %v5167
    %v5196 = vadd.f32 %v5195, %v5171
    %v5197 = vadd.f32 %v5196, %v5175
    %v5198 = vadd.f32 %v5197, %v5179
    %v5199 = vadd.f32 %v5198, %v5183
    %v5200 = vadd.f32 %v5156, %v5160
    %v5201 = vadd.f32 %v5200, %v5164
    %v5202 = vadd.f32 %v5201, %v5168
    %v5203 = vadd.f32 %v5202, %v5172
    %v5204 = vadd.f32 %v5203, %v5176
    %v5205 = vadd.f32 %v5204, %v5180
    %v5206 = vadd.f32 %v5205, %v5184
    %v5207 = vadd.f32 %v5157, %v5161
    %v5208 = vadd.f32 %v5207, %v5165
    %v5209 = vadd.f32 %v5208, %v5169
    %v5210 = vadd.f32 %v5209, %v5173
    %v5211 = vadd.f32 %v5210, %v5177
    %v5212 = vadd.f32 %v5211, %v5181
    %v5213 = vadd.f32 %v5212, %v5185
    %v5214 = vld [vmem:[%s1] sm:$0x1]
    %v5216 = vperm.slane %v5214, 0
    %v5218 = vmul.f32 %v5192, %v5216
    %v5219 = vmul.f32 %v5199, %v5216
    %v5220 = vmul.f32 %v5206, %v5216
    %v5221 = vmul.f32 %v5213, %v5216
    %5222 = vst [vmem:[#allocation5] sm:$0xff] %v5218
    %5223 = vst [vmem:[#allocation5 + $0x8] sm:$0xff] %v5219
    %5224 = vst [vmem:[#allocation5 + $0x10] sm:$0xff] %v5220
    %5225 = vst [vmem:[#allocation5 + $0x18] sm:$0xff] %v5221
    // Predicated region
    $region42: #{tpu_custom_call.1} parent=1 // pred_check
      _
    $region43: #{tpu_custom_call.1} parent=1 // pred_check_branch
      %5227 = sbr.rel (0) target = $region45
    $region44: #{tpu_custom_call.1} parent=1 // pred_region
      %5229 = vsyncadd [#allocation6], 0
      %s5230 = sshll.u32 [#allocation5], 4
      %s5231 = int_to_ptr.vmem [resolvable:$true] %s5230
      %s5232 = sshll.u32 %s10, 4
      %s5233 = int_to_ptr.hbm [resolvable:$true] %s5232
      %5238 = dma.vmem_to_hbm [thread:$0]  %s5231, 512, %s5233, [#allocation6], 128, 128, 8
    $region45: #{tpu_custom_call.1} parent=1 // pred_fallthru
      _
    // Predicated region
    $region46: #{tpu_custom_call.1} parent=1 // pred_check
      _
    $region47: #{tpu_custom_call.1} parent=1 // pred_check_branch
      %5240 = sbr.rel (0) target = $region49
    $region48: #{tpu_custom_call.1} parent=1 // pred_region
      %5242 = dma.done [#allocation6], 512
    $region49: #{tpu_custom_call.1} parent=1 // pred_fallthru
      _
    %5243 = vsyncpa [#allocation6], 1

</llo_original>
